<compile_context>
chip_gen: v5e
topology: v5e:2x2
jax: 0.10.0
libtpu: 0.0.40
codegen_flags: <defaults>
</compile_context>

<pallas_src>
import functools

import numpy as np

import jax
import jax.numpy as jnp
from jax import lax
from jax.experimental import pallas as pl
from jax.experimental.pallas import tpu as pltpu


def _rup(n, m):
    return ((n + m - 1) // m) * m


def _cin_pad(cin):
    # Lane-padding rule for the expand conv's input channels: >=8 always, full 128
    # once Cin is big enough that the extra zero lanes are cheap relative to the win.
    return _rup(cin, 128) if cin >= 32 else _rup(cin, 8)


def _const_spec(a):
    nd = a.ndim
    return pl.BlockSpec(a.shape, lambda b, t, _nd=nd: (0,) * _nd)


def _vmem_budget():
    """~0.75x of this generation's physical VMEM (v7x: 64 MiB, v5e/v6e: 128 MiB)."""
    cap = 128 << 20
    try:
        cap = int(getattr(pltpu.get_tpu_info(), "vmem_capacity_bytes", cap))
    except Exception:
        pass
    return (cap * 3) // 4


def _bf16_valu_ok():
    """bf16 VALU exists on v6e/v7x but not on v2-v5; gate the bf16 depthwise path."""
    try:
        kind = jax.devices()[0].device_kind.lower()
    except Exception:
        return False
    return not any(tag in kind for tag in ("v2", "v3", "v4", "v5"))


# ----------------------------------------------------------------------------- stage 1
def _mbconv_stage1_kernel(*refs, expand, ksize, stride, pad, tr_out, h_in, w_in,
                          ho, wo, mask_pool_rows, mm_dtype, dw_dtype):
    """Expand 1x1 + BN + Swish, depthwise KxK (stride) + BN + Swish, SE partial sums."""
    if expand:
        (x_ref, w_exp_ref, bn1_s_ref, bn1_b_ref,
         w_dw_ref, bn2_s_ref, bn2_b_ref, xd_ref, pool_ref) = refs
    else:
        (x_ref, w_dw_ref, bn2_s_ref, bn2_b_ref, xd_ref, pool_ref) = refs

    t = pl.program_id(1)
    K, s = ksize, stride
    R, wp = x_ref.shape[2], x_ref.shape[3]
    cexp = bn2_s_ref.shape[-1]

    xwin = x_ref[0, 0]                                        # (R, wp, cin_store)

    # ---- expand: 1x1 conv (no bias) + BN + Swish (f32 math) -----------------------
    if expand:
        cin = xwin.shape[-1]
        xf = xwin.reshape(R * wp, cin).astype(mm_dtype)
        xe = jnp.dot(xf, w_exp_ref[...], preferred_element_type=jnp.float32)
        xe = xe * bn1_s_ref[...] + bn1_b_ref[...]
        xe = xe * jax.nn.sigmoid(xe)
        xe = xe.reshape(R, wp, cexp)
        # Depthwise zero-padding is applied AFTER the expand conv in the reference
        # module; padded positions currently hold swish(bn1_bias).  Zero them with a
        # rank-1 x rank-1 mask -> one broadcast multiply over the tile.
        rid = lax.broadcasted_iota(jnp.int32, (R, 1, 1), 0) + t * (tr_out * s)
        cid = lax.broadcasted_iota(jnp.int32, (1, wp, 1), 1)
        rmask = ((rid >= pad) & (rid < pad + h_in)).astype(jnp.float32)
        cmask = ((cid >= pad) & (cid < pad + w_in)).astype(jnp.float32)
        xe = xe * (rmask * cmask)
    else:
        xe = xwin                                             # already zero-padded

    # ---- depthwise KxK (groups=C), only the strided outputs ----------------------
    # kw (sublane-axis offsets) is the OUTER loop -> K sublane slices per tile; the
    # K*K inner slices are leading-dim slices, which are cheap.
    xe = xe.astype(dw_dtype)
    w_dw = w_dw_ref[...].astype(dw_dtype)                     # (K*K, cexp)
    acc = jnp.zeros((tr_out, wo, cexp), dw_dtype)
    for kw in range(K):
        cols = xe[:, kw: kw + (wo - 1) * s + 1: s, :]         # (R, wo, cexp)
        for kh in range(K):
            win = cols[kh: kh + (tr_out - 1) * s + 1: s]      # (tr_out, wo, cexp)
            acc = acc + win * w_dw[kh * K + kw]

    xd = acc.astype(jnp.float32) * bn2_s_ref[...] + bn2_b_ref[...]
    xd = xd * jax.nn.sigmoid(xd)
    xd_ref[0] = xd.astype(xd_ref.dtype)

    # ---- per-tile partial channel sums for SE pooling (reduced in plain JAX) ------
    if mask_pool_rows:                                        # static: only if ragged
        orow = lax.broadcasted_iota(jnp.int32, (tr_out, 1, 1), 0) + t * tr_out
        xd = xd * (orow < ho).astype(jnp.float32)
    pool_ref[...] = jnp.sum(xd, axis=(0, 1)).reshape(1, 1, 1, cexp)


# ----------------------------------------------------------------------------- stage 2
def _mbconv_stage2_kernel(*refs, skip, mm_dtype):
    """Apply precomputed SE gate, 1x1 project (no bias) + BN + optional residual."""
    if skip:
        (gate_ref, xd_ref, w_proj_ref, bn3_s_ref, bn3_b_ref, xres_ref, o_ref) = refs
    else:
        (gate_ref, xd_ref, w_proj_ref, bn3_s_ref, bn3_b_ref, o_ref) = refs

    gate = gate_ref[0]                                        # (1, cexp) f32
    xd = xd_ref[0].astype(jnp.float32)                        # (tr2, wo, cexp)
    tr2, wo, cexp = xd.shape
    xs = xd * gate

    xo = jnp.dot(xs.reshape(tr2 * wo, cexp).astype(mm_dtype), w_proj_ref[...],
                 preferred_element_type=jnp.float32)
    xo = xo * bn3_s_ref[...] + bn3_b_ref[...]
    xo = xo.reshape(tr2, wo, -1)
    if skip:
        xo = xo + xres_ref[0].astype(jnp.float32)
    o_ref[0] = xo.astype(o_ref.dtype)


# ----------------------------------------------------------------------------- wrapper
@functools.partial(jax.jit, static_argnames=("out_channels", "ksize", "stride",
                                             "expansion_factor", "row_tile",
                                             "compute_dtype", "interstage_dtype"))
def mbconv_forward(x_nchw, params, *, out_channels, ksize, stride, expansion_factor,
                   row_tile=32, compute_dtype=None, interstage_dtype=jnp.bfloat16):
    x = jnp.transpose(x_nchw, (0, 2, 3, 1))                   # NCHW -> NHWC
    B, H, W, Cin = x.shape
    K, s = ksize, stride
    pad = K // 2
    expand = expansion_factor != 1
    mm_dtype = compute_dtype if compute_dtype is not None else x.dtype
    xd_dtype = interstage_dtype
    # bf16 depthwise MAC only where the VALU supports it (v6e/v7x); v5e keeps f32 VPU
    # math (bf16 MXU inputs are still fine there).
    dw_dtype = (jnp.bfloat16 if (mm_dtype == jnp.bfloat16 and _bf16_valu_ok())
                else jnp.float32)

    cexp_p = params["bn2_s"].shape[-1]                        # lane-padded channels
    cout_p = params["bn3_s"].shape[-1]

    Ho = (H + 2 * pad - K) // s + 1
    Wo = (W + 2 * pad - K) // s + 1
    Wp = W + 2 * pad
    skip = (s == 1) and (Cin == out_channels)
    budget = _vmem_budget()

    def _nb(dt):
        return int(np.dtype(dt).itemsize)

    cin_store = _cin_pad(Cin) if expand else cexp_p
    in_store_dtype = mm_dtype if mm_dtype == jnp.bfloat16 else x.dtype

    w1_names = ((("w_exp", "bn1_s", "bn1_b") if expand else ())
                + ("w_dw", "bn2_s", "bn2_b"))
    weight_bytes1 = sum(int(params[k].size) * _nb(params[k].dtype) for k in w1_names)

    # ---- stage-1 row tile, shrunk until the per-step footprint fits the budget -----
    def _p1_footprint(tr):
        r = (tr - 1) * s + K
        xblk = r * Wp * cin_store * _nb(in_store_dtype)
        xdblk = tr * Wo * cexp_p * _nb(xd_dtype)
        inter = 4 * r * Wp * (cexp_p + cin_store) + 4 * r * Wo * cexp_p \
            + 8 * tr * Wo * cexp_p
        return 2 * (xblk + xdblk + weight_bytes1) + inter + (2 << 20)

    tr_out = max(1, min(row_tile, Ho))
    while tr_out > 1 and _p1_footprint(tr_out) > budget:
        tr_out = max(1, tr_out // 2)
    n_tiles = -(-Ho // tr_out)
    ho_pad = n_tiles * tr_out
    rows_needed = (tr_out - 1) * s + K
    hp_need = (ho_pad - 1) * s + K
    hp_total = max(hp_need, pad + H)

    # ---- channel pad, spatial pad, and gather overlapping row windows --------------
    x_in = x if cin_store == Cin else jnp.pad(
        x, ((0, 0), (0, 0), (0, 0), (0, cin_store - Cin)))
    x_sp = jnp.pad(x_in, ((0, 0), (pad, hp_total - pad - H), (pad, pad), (0, 0)))
    row_idx = (np.arange(n_tiles) * (tr_out * s))[:, None] + \
        np.arange(rows_needed)[None, :]
    x_win = x_sp[:, row_idx].astype(in_store_dtype)  # (B, n_tiles, R, Wp, cin_store)

    # ======================= stage 1: expand + depthwise ============================
    p1_inputs = [x_win]
    p1_specs = [pl.BlockSpec((1, 1, rows_needed, Wp, cin_store),
                             lambda b, t: (b, t, 0, 0, 0))]
    for k in w1_names:
        p1_inputs.append(params[k])
        p1_specs.append(_const_spec(params[k]))

    p1_out_shape = (jax.ShapeDtypeStruct((B, ho_pad, Wo, cexp_p), xd_dtype),
                    jax.ShapeDtypeStruct((B, n_tiles, 1, cexp_p), jnp.float32))
    p1_out_specs = (pl.BlockSpec((1, tr_out, Wo, cexp_p), lambda b, t: (b, t, 0, 0)),
                    pl.BlockSpec((1, 1, 1, cexp_p), lambda b, t: (b, t, 0, 0)))

    p1_vmem = int(min(budget, max(32 << 20, _p1_footprint(tr_out))))
    p1_cost = pl.CostEstimate(
        flops=int((2 * B * n_tiles * rows_needed * Wp * cin_store * cexp_p
                   if expand else 0) + 2 * B * ho_pad * Wo * cexp_p * K * K),
        transcendentals=int((B * n_tiles * rows_needed * Wp * cexp_p if expand else 0)
                            + B * ho_pad * Wo * cexp_p),
        bytes_accessed=int(int(x_win.size) * _nb(in_store_dtype) + weight_bytes1
                           + B * ho_pad * Wo * cexp_p * _nb(xd_dtype)
                           + B * n_tiles * cexp_p * 4))

    kern1 = functools.partial(
        _mbconv_stage1_kernel, expand=expand, ksize=K, stride=s, pad=pad,
        tr_out=tr_out, h_in=H, w_in=W, ho=Ho, wo=Wo,
        mask_pool_rows=(ho_pad != Ho), mm_dtype=mm_dtype, dw_dtype=dw_dtype)

    xd, pool = pl.pallas_call(
        kern1,
        out_shape=p1_out_shape,
        grid=(B, n_tiles),
        in_specs=p1_specs,
        out_specs=p1_out_specs,
        compiler_params=pltpu.CompilerParams(
            dimension_semantics=("parallel", "parallel"),
            vmem_limit_bytes=p1_vmem),
        cost_estimate=p1_cost,
    )(*p1_inputs)

    # ============ SE gate: reduce partial sums + two tiny matmuls in plain JAX ======
    pooled = jnp.sum(pool, axis=1)[:, 0, :] * (1.0 / float(Ho * Wo))     # (B, cexp_p)
    h = pooled @ params["w_fc1"].astype(jnp.float32) + params["b_fc1"]
    h = h * jax.nn.sigmoid(h)
    g = h @ params["w_fc2"].astype(jnp.float32) + params["b_fc2"]
    gate = jax.nn.sigmoid(g).reshape(B, 1, cexp_p).astype(jnp.float32)

    # ======================= stage 2: gate + project + residual =====================
    weight_bytes2 = sum(int(params[k].size) * _nb(params[k].dtype)
                        for k in ("w_proj", "bn3_s", "bn3_b"))

    def _p2_footprint(f):
        tr2_ = tr_out * f
        xdblk = tr2_ * Wo * cexp_p * _nb(xd_dtype)
        oblk = tr2_ * Wo * cout_p * _nb(x.dtype)
        rblk = oblk if skip else 0
        inter = 4 * tr2_ * Wo * (2 * cexp_p + cout_p)
        return 2 * (xdblk + oblk + rblk + weight_bytes2) + inter + (2 << 20)

    f2 = 1
    for f in range(1, n_tiles + 1):
        if n_tiles % f == 0 and _p2_footprint(f) <= budget:
            f2 = f
    tr2 = tr_out * f2
    n_t2 = n_tiles // f2

    p2_inputs = [gate, xd]
    p2_specs = [pl.BlockSpec((1, 1, cexp_p), lambda b, t: (b, 0, 0)),
                pl.BlockSpec((1, tr2, Wo, cexp_p), lambda b, t: (b, t, 0, 0))]
    for k in ("w_proj", "bn3_s", "bn3_b"):
        p2_inputs.append(params[k])
        p2_specs.append(_const_spec(params[k]))
    if skip:
        x_res = x if cout_p == Cin else jnp.pad(
            x, ((0, 0), (0, 0), (0, 0), (0, cout_p - Cin)))
        if ho_pad > H:
            x_res = jnp.pad(x_res, ((0, 0), (0, ho_pad - H), (0, 0), (0, 0)))
        p2_inputs.append(x_res)
        p2_specs.append(pl.BlockSpec((1, tr2, Wo, cout_p), lambda b, t: (b, t, 0, 0)))

    p2_out_shape = jax.ShapeDtypeStruct((B, ho_pad, Wo, cout_p), x.dtype)
    p2_out_spec = pl.BlockSpec((1, tr2, Wo, cout_p), lambda b, t: (b, t, 0, 0))

    p2_vmem = int(min(budget, max(32 << 20, _p2_footprint(f2))))
    p2_cost = pl.CostEstimate(
        flops=int(2 * B * ho_pad * Wo * cexp_p * cout_p),
        transcendentals=0,
        bytes_accessed=int(B * ho_pad * Wo * (cexp_p * _nb(xd_dtype)
                                              + cout_p * _nb(x.dtype)
                                              * (2 if skip else 1))
                           + weight_bytes2 + B * cexp_p * 4))

    kern2 = functools.partial(_mbconv_stage2_kernel, skip=skip, mm_dtype=mm_dtype)

    out_pad = pl.pallas_call(
        kern2,
        out_shape=p2_out_shape,
        grid=(B, n_t2),
        in_specs=p2_specs,
        out_specs=p2_out_spec,
        compiler_params=pltpu.CompilerParams(
            dimension_semantics=("parallel", "parallel"),
            vmem_limit_bytes=p2_vmem),
        cost_estimate=p2_cost,
    )(*p2_inputs)

    out = out_pad[:, :Ho, :, :out_channels]
    return jnp.transpose(out, (0, 3, 1, 2))                   # NHWC -> NCHW


# ----------------------------------------------------------------------------- params
def init_torch_params(key, cin, cout, ksize, expansion_factor, se_ratio=0.25):
    cexp = cin * expansion_factor
    cred = cexp // int(1.0 / se_ratio)
    ks = jax.random.split(key, 10)

    def bn_params(k, c):
        k1, k2, k3, k4 = jax.random.split(k, 4)
        g = 1.0 + 0.1 * jax.random.normal(k1, (c,), jnp.float32)
        b = 0.1 * jax.random.normal(k2, (c,), jnp.float32)
        m = 0.05 * jax.random.normal(k3, (c,), jnp.float32)
        v = 1.0 + 0.1 * jnp.abs(jax.random.normal(k4, (c,), jnp.float32))
        return g, b, m, v

    return {
        "w_exp": 0.2 * jax.random.normal(ks[0], (cexp, cin, 1, 1), jnp.float32),  # OIHW
        "w_dw": 0.2 * jax.random.normal(ks[1], (cexp, 1, ksize, ksize), jnp.float32),
        "w_proj": 0.2 * jax.random.normal(ks[2], (cout, cexp, 1, 1), jnp.float32),
        "fc1_w": 0.2 * jax.random.normal(ks[3], (cred, cexp), jnp.float32),
        "fc1_b": 0.1 * jax.random.normal(ks[4], (cred,), jnp.float32),
        "fc2_w": 0.2 * jax.random.normal(ks[5], (cexp, cred), jnp.float32),
        "fc2_b": 0.1 * jax.random.normal(ks[6], (cexp,), jnp.float32),
        "bn1": bn_params(ks[7], cexp),
        "bn2": bn_params(ks[8], cexp),
        "bn3": bn_params(ks[9], cout),
    }


def prepare_params(tp, *, expansion_factor, compute_dtype=None, eps=1e-5):
    """Fold BN stats, transpose to kernel layout, pad channels to lane multiples."""
    mmdt = compute_dtype if compute_dtype is not None else jnp.float32
    expand = expansion_factor != 1
    cexp = tp["w_dw"].shape[0]
    cout = tp["w_proj"].shape[0]
    cred = tp["fc1_w"].shape[0]
    K = tp["w_dw"].shape[-1]
    cexp_p, cout_p, cred_p = _rup(cexp, 128), _rup(cout, 128), _rup(cred, 128)

    def fold(bn):
        g, b, m, v = bn
        sc = g / jnp.sqrt(v + eps)
        return sc, b - m * sc

    def pad_vec(v, n):
        return jnp.pad(v, (0, n - v.shape[0])).reshape(1, n).astype(jnp.float32)

    def pad_mat(w, r, c, dt):
        return jnp.pad(w, ((0, r - w.shape[0]), (0, c - w.shape[1]))).astype(dt)

    p = {}
    if expand:
        cin = tp["w_exp"].shape[1]
        cin_p = _cin_pad(cin)
        w_exp = jnp.transpose(tp["w_exp"][:, :, 0, 0], (1, 0))          # (cin, cexp)
        p["w_exp"] = pad_mat(w_exp, cin_p, cexp_p, mmdt)                # zero K-rows
        s1, b1 = fold(tp["bn1"])
        p["bn1_s"], p["bn1_b"] = pad_vec(s1, cexp_p), pad_vec(b1, cexp_p)
    w_dw = jnp.transpose(tp["w_dw"][:, 0], (1, 2, 0)).reshape(K * K, cexp)
    p["w_dw"] = pad_mat(w_dw, K * K, cexp_p, jnp.float32)
    s2, b2 = fold(tp["bn2"])
    p["bn2_s"], p["bn2_b"] = pad_vec(s2, cexp_p), pad_vec(b2, cexp_p)
    p["w_fc1"] = pad_mat(tp["fc1_w"].T, cexp_p, cred_p, mmdt)
    p["b_fc1"] = pad_vec(tp["fc1_b"], cred_p)
    p["w_fc2"] = pad_mat(tp["fc2_w"].T, cred_p, cexp_p, mmdt)
    p["b_fc2"] = pad_vec(tp["fc2_b"], cexp_p)
    p["w_proj"] = pad_mat(jnp.transpose(tp["w_proj"][:, :, 0, 0], (1, 0)),
                          cexp_p, cout_p, mmdt)
    s3, b3 = fold(tp["bn3"])
    p["bn3_s"], p["bn3_b"] = pad_vec(s3, cout_p), pad_vec(b3, cout_p)
    return p


# ----------------------------------------------------------------------------- pure-JAX reference
def reference(x, tp, *, ksize, stride, expansion_factor, eps=1e-5):
    def bn(y, stats):
        g, b, m, v = stats
        sh = (1, -1, 1, 1)
        return ((y - m.reshape(sh)) / jnp.sqrt(v + eps).reshape(sh) * g.reshape(sh)
                + b.reshape(sh))

    def swish(y):
        return y * jax.nn.sigmoid(y)

    dn = ("NCHW", "OIHW", "NCHW")
    out = x
    if expansion_factor != 1:
        out = lax.conv_general_dilated(out, tp["w_exp"], (1, 1), "VALID",
                                       dimension_numbers=dn)
        out = swish(bn(out, tp["bn1"]))
    pad = ksize // 2
    cexp = tp["w_dw"].shape[0]
    out = lax.conv_general_dilated(out, tp["w_dw"], (stride, stride),
                                   [(pad, pad), (pad, pad)], dimension_numbers=dn,
                                   feature_group_count=cexp)
    out = swish(bn(out, tp["bn2"]))
    sq = jnp.mean(out, axis=(2, 3))
    h = swish(sq @ tp["fc1_w"].T + tp["fc1_b"])
    gate = jax.nn.sigmoid(h @ tp["fc2_w"].T + tp["fc2_b"])
    out = out * gate[:, :, None, None]
    out = lax.conv_general_dilated(out, tp["w_proj"], (1, 1), "VALID",
                                   dimension_numbers=dn)
    out = bn(out, tp["bn3"])
    if stride == 1 and x.shape[1] == out.shape[1]:
        out = out + x
    return out


# ----------------------------------------------------------------------------- main
if __name__ == "__main__":
    key = jax.random.PRNGKey(0)
    B = 2

    configs = [
        # (cin, cout, H, W, k, stride, expf, row_tile)
        (4, 4, 16, 16, 3, 1, 4, 8),    # expand + skip, two stage-1 row tiles
        (4, 8, 16, 16, 3, 2, 4, 4),    # stride 2, no skip
        (8, 8, 16, 16, 5, 1, 1, 7),    # no expand, 5x5 depthwise, skip, ragged tiles
    ]

    for i, (cin, cout, H, W, k, s, expf, row_tile) in enumerate(configs):
        kx, kp, key = jax.random.split(key, 3)
        x = jax.random.normal(kx, (B, cin, H, W), jnp.float32)
        tparams = init_torch_params(kp, cin, cout, k, expf)
        kparams = prepare_params(tparams, expansion_factor=expf)
        ref = reference(x, tparams, ksize=k, stride=s, expansion_factor=expf)

        # Default path: bf16 inter-stage activation storage (perf), f32 math.
        out = mbconv_forward(x, kparams, out_channels=cout, ksize=k, stride=s,
                             expansion_factor=expf, row_tile=row_tile)
        out = jax.block_until_ready(out)
        assert out.shape == ref.shape, (i, out.shape, ref.shape)
        max_err = float(jnp.max(jnp.abs(out - ref)))
        assert jnp.allclose(out, ref, atol=2e-2, rtol=2e-2), (i, max_err)

        if i == 0:
            # Full-f32 path (f32 inter-stage) for a tight numerical check.
            out32 = mbconv_forward(x, kparams, out_channels=cout, ksize=k, stride=s,
                                   expansion_factor=expf, row_tile=row_tile,
                                   interstage_dtype=jnp.float32)
            out32 = jax.block_until_ready(out32)
            max_err32 = float(jnp.max(jnp.abs(out32 - ref)))
            assert jnp.allclose(out32, ref, atol=5e-4, rtol=5e-4), (i, max_err32)

    # bf16 MXU inputs (+ bf16 depthwise MAC on v6e/v7x only; f32 VPU kept on v5e).
    cin, cout, H, W, k, s, expf, row_tile = configs[0]
    kx, kp, key = jax.random.split(key, 3)
    x = jax.random.normal(kx, (B, cin, H, W), jnp.float32)
    tparams = init_torch_params(kp, cin, cout, k, expf)
    kparams_bf16 = prepare_params(tparams, expansion_factor=expf,
                                  compute_dtype=jnp.bfloat16)
    out_bf16 = mbconv_forward(x, kparams_bf16, out_channels=cout, ksize=k, stride=s,
                              expansion_factor=expf, row_tile=row_tile,
                              compute_dtype=jnp.bfloat16)
    out_bf16 = jax.block_until_ready(out_bf16)
    ref = reference(x, tparams, ksize=k, stride=s, expansion_factor=expf)
    assert out_bf16.shape == ref.shape
    assert bool(jnp.all(jnp.isfinite(out_bf16)))
    assert jnp.allclose(out_bf16, ref, atol=0.25, rtol=0.25)

    print("KERNEL_OK")
</pallas_src>

<mosaic_0001>
module attributes {stable_mosaic.version = 11 : i64} {
  func.func @_mbconv_stage1_kernel(%arg0: i32, %arg1: i32, %arg2: memref<1x1x10x18x8xf32, #tpu.memory_space<vmem>>, %arg3: memref<8x128xf32, #tpu.memory_space<vmem>>, %arg4: memref<1x128xf32, #tpu.memory_space<vmem>>, %arg5: memref<1x128xf32, #tpu.memory_space<vmem>>, %arg6: memref<9x128xf32, #tpu.memory_space<vmem>>, %arg7: memref<1x128xf32, #tpu.memory_space<vmem>>, %arg8: memref<1x128xf32, #tpu.memory_space<vmem>>, %arg9: memref<1x8x16x128xbf16, #tpu.memory_space<vmem>>, %arg10: memref<1x1x1x128xf32, #tpu.memory_space<vmem>>) attributes {dimension_semantics = [#tpu.dimension_semantics<parallel>, #tpu.dimension_semantics<parallel>], iteration_bounds = array<i64: 2, 2>, scalar_prefetch = 0 : i64, scratch_operands = 0 : i64, tpu.core_type = #tpu.core_type<tc>, window_params = [{transform_indices = @transform_0, window_bounds = array<i64: 1, 1, 10, 18, 8>}, {pipeline_mode = #tpu.pipeline_mode<synchronous>, transform_indices = @transform_1, window_bounds = array<i64: 8, 128>}, {pipeline_mode = #tpu.pipeline_mode<synchronous>, transform_indices = @transform_2, window_bounds = array<i64: 1, 128>}, {pipeline_mode = #tpu.pipeline_mode<synchronous>, transform_indices = @transform_3, window_bounds = array<i64: 1, 128>}, {pipeline_mode = #tpu.pipeline_mode<synchronous>, transform_indices = @transform_4, window_bounds = array<i64: 9, 128>}, {pipeline_mode = #tpu.pipeline_mode<synchronous>, transform_indices = @transform_5, window_bounds = array<i64: 1, 128>}, {pipeline_mode = #tpu.pipeline_mode<synchronous>, transform_indices = @transform_6, window_bounds = array<i64: 1, 128>}, {transform_indices = @transform_7, window_bounds = array<i64: 1, 8, 16, 128>}, {transform_indices = @transform_8, window_bounds = array<i64: 1, 1, 1, 128>}]} {
    %c0 = arith.constant 0 : index
    %c0_0 = arith.constant 0 : index
    %c0_1 = arith.constant 0 : index
    %c0_2 = arith.constant 0 : index
    %c0_3 = arith.constant 0 : index
    %0 = vector.load %arg2[%c0, %c0_0, %c0_1, %c0_2, %c0_3] : memref<1x1x10x18x8xf32, #tpu.memory_space<vmem>>, vector<1x1x10x18x8xf32>
    %1 = vector.shape_cast %0 : vector<1x1x10x18x8xf32> to vector<10x18x8xf32>
    %2 = vector.shape_cast %1 : vector<10x18x8xf32> to vector<180x8xf32>
    %c0_4 = arith.constant 0 : index
    %c0_5 = arith.constant 0 : index
    %3 = vector.load %arg3[%c0_4, %c0_5] : memref<8x128xf32, #tpu.memory_space<vmem>>, vector<8x128xf32>
    %cst = arith.constant dense<0.000000e+00> : vector<180x128xf32>
    %4 = tpu.matmul %2, %3, %cst {dimension_numbers = #tpu.dot_dimension_numbers<[1], [0], [0], [1], [0, 0, 1, 1], [], []>} : vector<180x8xf32>, vector<8x128xf32>, vector<180x128xf32> -> vector<180x128xf32>
    %c0_6 = arith.constant 0 : index
    %c0_7 = arith.constant 0 : index
    %5 = vector.load %arg4[%c0_6, %c0_7] : memref<1x128xf32, #tpu.memory_space<vmem>>, vector<1x128xf32>
    %6 = vector.broadcast %5 : vector<1x128xf32> to vector<180x128xf32>
    %7 = arith.mulf %4, %6 : vector<180x128xf32>
    %c0_8 = arith.constant 0 : index
    %c0_9 = arith.constant 0 : index
    %8 = vector.load %arg5[%c0_8, %c0_9] : memref<1x128xf32, #tpu.memory_space<vmem>>, vector<1x128xf32>
    %9 = vector.broadcast %8 : vector<1x128xf32> to vector<180x128xf32>
    %10 = arith.addf %7, %9 : vector<180x128xf32>
    %11 = arith.negf %10 : vector<180x128xf32>
    %12 = math.exp %11 : vector<180x128xf32>
    %cst_10 = arith.constant 1.000000e+00 : f32
    %13 = vector.broadcast %cst_10 : f32 to vector<180x128xf32>
    %14 = arith.addf %13, %12 : vector<180x128xf32>
    %15 = arith.divf %13, %14 : vector<180x128xf32>
    %16 = arith.mulf %10, %15 : vector<180x128xf32>
    %17 = vector.shape_cast %16 : vector<180x128xf32> to vector<10x18x128xf32>
    %18 = tpu.iota {dimensions = array<i32: 0>} : vector<10x1x1xi32>
    %c8_i32 = arith.constant 8 : i32
    %19 = arith.muli %arg1, %c8_i32 : i32
    %20 = vector.broadcast %19 : i32 to vector<10x1x1xi32>
    %21 = arith.addi %18, %20 : vector<10x1x1xi32>
    %22 = tpu.iota {dimensions = array<i32: 1>} : vector<1x18x1xi32>
    %c1_i32 = arith.constant 1 : i32
    %23 = vector.broadcast %c1_i32 : i32 to vector<10x1x1xi32>
    %24 = arith.cmpi sge, %21, %23 : vector<10x1x1xi32>
    %c17_i32 = arith.constant 17 : i32
    %25 = vector.broadcast %c17_i32 : i32 to vector<10x1x1xi32>
    %26 = arith.cmpi slt, %21, %25 : vector<10x1x1xi32>
    %27 = arith.andi %24, %26 : vector<10x1x1xi1>
    %28 = arith.extui %27 : vector<10x1x1xi1> to vector<10x1x1xi32>
    %29 = arith.sitofp %28 : vector<10x1x1xi32> to vector<10x1x1xf32>
    %c1_i32_11 = arith.constant 1 : i32
    %30 = vector.broadcast %c1_i32_11 : i32 to vector<1x18x1xi32>
    %31 = arith.cmpi sge, %22, %30 : vector<1x18x1xi32>
    %c17_i32_12 = arith.constant 17 : i32
    %32 = vector.broadcast %c17_i32_12 : i32 to vector<1x18x1xi32>
    %33 = arith.cmpi slt, %22, %32 : vector<1x18x1xi32>
    %34 = arith.andi %31, %33 : vector<1x18x1xi1>
    %35 = arith.extui %34 : vector<1x18x1xi1> to vector<1x18x1xi32>
    %36 = arith.sitofp %35 : vector<1x18x1xi32> to vector<1x18x1xf32>
    %37 = vector.broadcast %29 : vector<10x1x1xf32> to vector<10x18x1xf32>
    %38 = vector.broadcast %36 : vector<1x18x1xf32> to vector<10x18x1xf32>
    %39 = arith.mulf %37, %38 : vector<10x18x1xf32>
    %40 = vector.broadcast %39 : vector<10x18x1xf32> to vector<10x18x128xf32>
    %41 = arith.mulf %17, %40 : vector<10x18x128xf32>
    %c0_13 = arith.constant 0 : index
    %c0_14 = arith.constant 0 : index
    %42 = vector.load %arg6[%c0_13, %c0_14] : memref<9x128xf32, #tpu.memory_space<vmem>>, vector<9x128xf32>
    %cst_15 = arith.constant 0.000000e+00 : f32
    %43 = vector.broadcast %cst_15 : f32 to vector<8x16x128xf32>
    %44 = vector.extract_strided_slice %41 {offsets = [0, 0, 0], sizes = [10, 16, 128], strides = [1, 1, 1]} : vector<10x18x128xf32> to vector<10x16x128xf32>
    %45 = vector.extract_strided_slice %44 {offsets = [0, 0, 0], sizes = [8, 16, 128], strides = [1, 1, 1]} : vector<10x16x128xf32> to vector<8x16x128xf32>
    %46 = vector.extract_strided_slice %42 {offsets = [0, 0], sizes = [1, 128], strides = [1, 1]} : vector<9x128xf32> to vector<1x128xf32>
    %47 = vector.shape_cast %46 : vector<1x128xf32> to vector<128xf32>
    %48 = vector.shape_cast %47 : vector<128xf32> to vector<1x1x128xf32>
    %49 = vector.broadcast %48 : vector<1x1x128xf32> to vector<8x16x128xf32>
    %50 = arith.mulf %45, %49 : vector<8x16x128xf32>
    %51 = arith.addf %43, %50 : vector<8x16x128xf32>
    %52 = vector.extract_strided_slice %44 {offsets = [1, 0, 0], sizes = [8, 16, 128], strides = [1, 1, 1]} : vector<10x16x128xf32> to vector<8x16x128xf32>
    %53 = vector.extract_strided_slice %42 {offsets = [3, 0], sizes = [1, 128], strides = [1, 1]} : vector<9x128xf32> to vector<1x128xf32>
    %54 = vector.shape_cast %53 : vector<1x128xf32> to vector<128xf32>
    %55 = vector.shape_cast %54 : vector<128xf32> to vector<1x1x128xf32>
    %56 = vector.broadcast %55 : vector<1x1x128xf32> to vector<8x16x128xf32>
    %57 = arith.mulf %52, %56 : vector<8x16x128xf32>
    %58 = arith.addf %51, %57 : vector<8x16x128xf32>
    %59 = vector.extract_strided_slice %44 {offsets = [2, 0, 0], sizes = [8, 16, 128], strides = [1, 1, 1]} : vector<10x16x128xf32> to vector<8x16x128xf32>
    %60 = vector.extract_strided_slice %42 {offsets = [6, 0], sizes = [1, 128], strides = [1, 1]} : vector<9x128xf32> to vector<1x128xf32>
    %61 = vector.shape_cast %60 : vector<1x128xf32> to vector<128xf32>
    %62 = vector.shape_cast %61 : vector<128xf32> to vector<1x1x128xf32>
    %63 = vector.broadcast %62 : vector<1x1x128xf32> to vector<8x16x128xf32>
    %64 = arith.mulf %59, %63 : vector<8x16x128xf32>
    %65 = arith.addf %58, %64 : vector<8x16x128xf32>
    %66 = vector.extract_strided_slice %41 {offsets = [0, 1, 0], sizes = [10, 16, 128], strides = [1, 1, 1]} : vector<10x18x128xf32> to vector<10x16x128xf32>
    %67 = vector.extract_strided_slice %66 {offsets = [0, 0, 0], sizes = [8, 16, 128], strides = [1, 1, 1]} : vector<10x16x128xf32> to vector<8x16x128xf32>
    %68 = vector.extract_strided_slice %42 {offsets = [1, 0], sizes = [1, 128], strides = [1, 1]} : vector<9x128xf32> to vector<1x128xf32>
    %69 = vector.shape_cast %68 : vector<1x128xf32> to vector<128xf32>
    %70 = vector.shape_cast %69 : vector<128xf32> to vector<1x1x128xf32>
    %71 = vector.broadcast %70 : vector<1x1x128xf32> to vector<8x16x128xf32>
    %72 = arith.mulf %67, %71 : vector<8x16x128xf32>
    %73 = arith.addf %65, %72 : vector<8x16x128xf32>
    %74 = vector.extract_strided_slice %66 {offsets = [1, 0, 0], sizes = [8, 16, 128], strides = [1, 1, 1]} : vector<10x16x128xf32> to vector<8x16x128xf32>
    %75 = vector.extract_strided_slice %42 {offsets = [4, 0], sizes = [1, 128], strides = [1, 1]} : vector<9x128xf32> to vector<1x128xf32>
    %76 = vector.shape_cast %75 : vector<1x128xf32> to vector<128xf32>
    %77 = vector.shape_cast %76 : vector<128xf32> to vector<1x1x128xf32>
    %78 = vector.broadcast %77 : vector<1x1x128xf32> to vector<8x16x128xf32>
    %79 = arith.mulf %74, %78 : vector<8x16x128xf32>
    %80 = arith.addf %73, %79 : vector<8x16x128xf32>
    %81 = vector.extract_strided_slice %66 {offsets = [2, 0, 0], sizes = [8, 16, 128], strides = [1, 1, 1]} : vector<10x16x128xf32> to vector<8x16x128xf32>
    %82 = vector.extract_strided_slice %42 {offsets = [7, 0], sizes = [1, 128], strides = [1, 1]} : vector<9x128xf32> to vector<1x128xf32>
    %83 = vector.shape_cast %82 : vector<1x128xf32> to vector<128xf32>
    %84 = vector.shape_cast %83 : vector<128xf32> to vector<1x1x128xf32>
    %85 = vector.broadcast %84 : vector<1x1x128xf32> to vector<8x16x128xf32>
    %86 = arith.mulf %81, %85 : vector<8x16x128xf32>
    %87 = arith.addf %80, %86 : vector<8x16x128xf32>
    %88 = vector.extract_strided_slice %41 {offsets = [0, 2, 0], sizes = [10, 16, 128], strides = [1, 1, 1]} : vector<10x18x128xf32> to vector<10x16x128xf32>
    %89 = vector.extract_strided_slice %88 {offsets = [0, 0, 0], sizes = [8, 16, 128], strides = [1, 1, 1]} : vector<10x16x128xf32> to vector<8x16x128xf32>
    %90 = vector.extract_strided_slice %42 {offsets = [2, 0], sizes = [1, 128], strides = [1, 1]} : vector<9x128xf32> to vector<1x128xf32>
    %91 = vector.shape_cast %90 : vector<1x128xf32> to vector<128xf32>
    %92 = vector.shape_cast %91 : vector<128xf32> to vector<1x1x128xf32>
    %93 = vector.broadcast %92 : vector<1x1x128xf32> to vector<8x16x128xf32>
    %94 = arith.mulf %89, %93 : vector<8x16x128xf32>
    %95 = arith.addf %87, %94 : vector<8x16x128xf32>
    %96 = vector.extract_strided_slice %88 {offsets = [1, 0, 0], sizes = [8, 16, 128], strides = [1, 1, 1]} : vector<10x16x128xf32> to vector<8x16x128xf32>
    %97 = vector.extract_strided_slice %42 {offsets = [5, 0], sizes = [1, 128], strides = [1, 1]} : vector<9x128xf32> to vector<1x128xf32>
    %98 = vector.shape_cast %97 : vector<1x128xf32> to vector<128xf32>
    %99 = vector.shape_cast %98 : vector<128xf32> to vector<1x1x128xf32>
    %100 = vector.broadcast %99 : vector<1x1x128xf32> to vector<8x16x128xf32>
    %101 = arith.mulf %96, %100 : vector<8x16x128xf32>
    %102 = arith.addf %95, %101 : vector<8x16x128xf32>
    %103 = vector.extract_strided_slice %88 {offsets = [2, 0, 0], sizes = [8, 16, 128], strides = [1, 1, 1]} : vector<10x16x128xf32> to vector<8x16x128xf32>
    %104 = vector.extract_strided_slice %42 {offsets = [8, 0], sizes = [1, 128], strides = [1, 1]} : vector<9x128xf32> to vector<1x128xf32>
    %105 = vector.shape_cast %104 : vector<1x128xf32> to vector<128xf32>
    %106 = vector.shape_cast %105 : vector<128xf32> to vector<1x1x128xf32>
    %107 = vector.broadcast %106 : vector<1x1x128xf32> to vector<8x16x128xf32>
    %108 = arith.mulf %103, %107 : vector<8x16x128xf32>
    %109 = arith.addf %102, %108 : vector<8x16x128xf32>
    %c0_16 = arith.constant 0 : index
    %c0_17 = arith.constant 0 : index
    %110 = vector.load %arg7[%c0_16, %c0_17] : memref<1x128xf32, #tpu.memory_space<vmem>>, vector<1x128xf32>
    %111 = vector.shape_cast %110 : vector<1x128xf32> to vector<1x1x128xf32>
    %112 = vector.broadcast %111 : vector<1x1x128xf32> to vector<8x16x128xf32>
    %113 = arith.mulf %109, %112 : vector<8x16x128xf32>
    %c0_18 = arith.constant 0 : index
    %c0_19 = arith.constant 0 : index
    %114 = vector.load %arg8[%c0_18, %c0_19] : memref<1x128xf32, #tpu.memory_space<vmem>>, vector<1x128xf32>
    %115 = vector.shape_cast %114 : vector<1x128xf32> to vector<1x1x128xf32>
    %116 = vector.broadcast %115 : vector<1x1x128xf32> to vector<8x16x128xf32>
    %117 = arith.addf %113, %116 : vector<8x16x128xf32>
    %118 = arith.negf %117 : vector<8x16x128xf32>
    %119 = math.exp %118 : vector<8x16x128xf32>
    %cst_20 = arith.constant 1.000000e+00 : f32
    %120 = vector.broadcast %cst_20 : f32 to vector<8x16x128xf32>
    %121 = arith.addf %120, %119 : vector<8x16x128xf32>
    %122 = arith.divf %120, %121 : vector<8x16x128xf32>
    %123 = arith.mulf %117, %122 : vector<8x16x128xf32>
    %124 = arith.truncf %123 : vector<8x16x128xf32> to vector<8x16x128xbf16>
    %c0_21 = arith.constant 0 : index
    %c0_22 = arith.constant 0 : index
    %c0_23 = arith.constant 0 : index
    %c0_24 = arith.constant 0 : index
    %125 = vector.load %arg9[%c0_21, %c0_22, %c0_23, %c0_24] : memref<1x8x16x128xbf16, #tpu.memory_space<vmem>>, vector<1x8x16x128xbf16>
    %126 = vector.shape_cast %125 : vector<1x8x16x128xbf16> to vector<8x16x128xbf16>
    %127 = vector.shape_cast %124 : vector<8x16x128xbf16> to vector<1x8x16x128xbf16>
    tpu.vector_store %arg9[%c0_21, %c0_22, %c0_23, %c0_24], %127 {strides = array<i32>} : memref<1x8x16x128xbf16, #tpu.memory_space<vmem>>, vector<1x8x16x128xbf16>,
    %cst_25 = arith.constant dense<0.000000e+00> : vector<128xf32>
    %128 = vector.multi_reduction <add>, %123, %cst_25 [0, 1] : vector<8x16x128xf32> to vector<128xf32>
    %129 = vector.shape_cast %128 : vector<128xf32> to vector<1x1x1x128xf32>
    %c0_26 = arith.constant 0 : index
    %c0_27 = arith.constant 0 : index
    %c0_28 = arith.constant 0 : index
    %c0_29 = arith.constant 0 : index
    %130 = vector.load %arg10[%c0_26, %c0_27, %c0_28, %c0_29] : memref<1x1x1x128xf32, #tpu.memory_space<vmem>>, vector<1x1x1x128xf32>
    tpu.vector_store %arg10[%c0_26, %c0_27, %c0_28, %c0_29], %129 {strides = array<i32>} : memref<1x1x1x128xf32, #tpu.memory_space<vmem>>, vector<1x1x1x128xf32>,
    return
  }
  func.func @transform_0(%arg0: i32, %arg1: i32) -> (i32, i32, i32, i32, i32) {
    %c0_i32 = arith.constant 0 : i32
    %c0_i32_0 = arith.constant 0 : i32
    %c0_i32_1 = arith.constant 0 : i32
    %c0_i32_2 = arith.constant 0 : i32
    return %arg0, %arg1, %c0_i32, %c0_i32_0, %c0_i32_1 : i32, i32, i32, i32, i32
  }
  func.func @transform_1(%arg0: i32, %arg1: i32) -> (i32, i32) {
    %c0_i32 = arith.constant 0 : i32
    %c0_i32_0 = arith.constant 0 : i32
    %c0_i32_1 = arith.constant 0 : i32
    return %c0_i32, %c0_i32_0 : i32, i32
  }
  func.func @transform_2(%arg0: i32, %arg1: i32) -> (i32, i32) {
    %c0_i32 = arith.constant 0 : i32
    %c0_i32_0 = arith.constant 0 : i32
    %c0_i32_1 = arith.constant 0 : i32
    return %c0_i32, %c0_i32_0 : i32, i32
  }
  func.func @transform_3(%arg0: i32, %arg1: i32) -> (i32, i32) {
    %c0_i32 = arith.constant 0 : i32
    %c0_i32_0 = arith.constant 0 : i32
    %c0_i32_1 = arith.constant 0 : i32
    return %c0_i32, %c0_i32_0 : i32, i32
  }
  func.func @transform_4(%arg0: i32, %arg1: i32) -> (i32, i32) {
    %c0_i32 = arith.constant 0 : i32
    %c0_i32_0 = arith.constant 0 : i32
    %c0_i32_1 = arith.constant 0 : i32
    return %c0_i32, %c0_i32_0 : i32, i32
  }
  func.func @transform_5(%arg0: i32, %arg1: i32) -> (i32, i32) {
    %c0_i32 = arith.constant 0 : i32
    %c0_i32_0 = arith.constant 0 : i32
    %c0_i32_1 = arith.constant 0 : i32
    return %c0_i32, %c0_i32_0 : i32, i32
  }
  func.func @transform_6(%arg0: i32, %arg1: i32) -> (i32, i32) {
    %c0_i32 = arith.constant 0 : i32
    %c0_i32_0 = arith.constant 0 : i32
    %c0_i32_1 = arith.constant 0 : i32
    return %c0_i32, %c0_i32_0 : i32, i32
  }
  func.func @transform_7(%arg0: i32, %arg1: i32) -> (i32, i32, i32, i32) {
    %c0_i32 = arith.constant 0 : i32
    %c0_i32_0 = arith.constant 0 : i32
    %c0_i32_1 = arith.constant 0 : i32
    return %arg0, %arg1, %c0_i32, %c0_i32_0 : i32, i32, i32, i32
  }
  func.func @transform_8(%arg0: i32, %arg1: i32) -> (i32, i32, i32, i32) {
    %c0_i32 = arith.constant 0 : i32
    %c0_i32_0 = arith.constant 0 : i32
    %c0_i32_1 = arith.constant 0 : i32
    return %arg0, %arg1, %c0_i32, %c0_i32_0 : i32, i32, i32, i32
  }
}

module attributes {stable_mosaic.version = 11 : i64} {
  func.func @_mbconv_stage2_kernel(%arg0: i32, %arg1: i32, %arg2: memref<1x1x128xf32, #tpu.memory_space<vmem>>, %arg3: memref<1x16x16x128xbf16, #tpu.memory_space<vmem>>, %arg4: memref<128x128xf32, #tpu.memory_space<vmem>>, %arg5: memref<1x128xf32, #tpu.memory_space<vmem>>, %arg6: memref<1x128xf32, #tpu.memory_space<vmem>>, %arg7: memref<1x16x16x128xf32, #tpu.memory_space<vmem>>, %arg8: memref<1x16x16x128xf32, #tpu.memory_space<vmem>>) attributes {dimension_semantics = [#tpu.dimension_semantics<parallel>, #tpu.dimension_semantics<parallel>], iteration_bounds = array<i64: 2, 1>, scalar_prefetch = 0 : i64, scratch_operands = 0 : i64, tpu.core_type = #tpu.core_type<tc>, window_params = [{transform_indices = @transform_0, window_bounds = array<i64: 1, 1, 128>}, {transform_indices = @transform_1, window_bounds = array<i64: 1, 16, 16, 128>}, {pipeline_mode = #tpu.pipeline_mode<synchronous>, transform_indices = @transform_2, window_bounds = array<i64: 128, 128>}, {pipeline_mode = #tpu.pipeline_mode<synchronous>, transform_indices = @transform_3, window_bounds = array<i64: 1, 128>}, {pipeline_mode = #tpu.pipeline_mode<synchronous>, transform_indices = @transform_4, window_bounds = array<i64: 1, 128>}, {transform_indices = @transform_5, window_bounds = array<i64: 1, 16, 16, 128>}, {transform_indices = @transform_6, window_bounds = array<i64: 1, 16, 16, 128>}]} {
    %c0 = arith.constant 0 : index
    %c0_0 = arith.constant 0 : index
    %c0_1 = arith.constant 0 : index
    %0 = vector.load %arg2[%c0, %c0_0, %c0_1] : memref<1x1x128xf32, #tpu.memory_space<vmem>>, vector<1x1x128xf32>
    %1 = vector.shape_cast %0 : vector<1x1x128xf32> to vector<1x128xf32>
    %c0_2 = arith.constant 0 : index
    %c0_3 = arith.constant 0 : index
    %c0_4 = arith.constant 0 : index
    %c0_5 = arith.constant 0 : index
    %2 = vector.load %arg3[%c0_2, %c0_3, %c0_4, %c0_5] : memref<1x16x16x128xbf16, #tpu.memory_space<vmem>>, vector<1x16x16x128xbf16>
    %3 = vector.shape_cast %2 : vector<1x16x16x128xbf16> to vector<16x16x128xbf16>
    %4 = arith.extf %3 : vector<16x16x128xbf16> to vector<16x16x128xf32>
    %5 = vector.shape_cast %1 : vector<1x128xf32> to vector<1x1x128xf32>
    %6 = vector.broadcast %5 : vector<1x1x128xf32> to vector<16x16x128xf32>
    %7 = arith.mulf %4, %6 : vector<16x16x128xf32>
    %8 = vector.shape_cast %7 : vector<16x16x128xf32> to vector<256x128xf32>
    %c0_6 = arith.constant 0 : index
    %c0_7 = arith.constant 0 : index
    %9 = vector.load %arg4[%c0_6, %c0_7] : memref<128x128xf32, #tpu.memory_space<vmem>>, vector<128x128xf32>
    %cst = arith.constant dense<0.000000e+00> : vector<256x128xf32>
    %10 = tpu.matmul %8, %9, %cst {dimension_numbers = #tpu.dot_dimension_numbers<[1], [0], [0], [1], [0, 0, 1, 1], [], []>} : vector<256x128xf32>, vector<128x128xf32>, vector<256x128xf32> -> vector<256x128xf32>
    %c0_8 = arith.constant 0 : index
    %c0_9 = arith.constant 0 : index
    %11 = vector.load %arg5[%c0_8, %c0_9] : memref<1x128xf32, #tpu.memory_space<vmem>>, vector<1x128xf32>
    %12 = vector.broadcast %11 : vector<1x128xf32> to vector<256x128xf32>
    %13 = arith.mulf %10, %12 : vector<256x128xf32>
    %c0_10 = arith.constant 0 : index
    %c0_11 = arith.constant 0 : index
    %14 = vector.load %arg6[%c0_10, %c0_11] : memref<1x128xf32, #tpu.memory_space<vmem>>, vector<1x128xf32>
    %15 = vector.broadcast %14 : vector<1x128xf32> to vector<256x128xf32>
    %16 = arith.addf %13, %15 : vector<256x128xf32>
    %17 = vector.shape_cast %16 : vector<256x128xf32> to vector<16x16x128xf32>
    %c0_12 = arith.constant 0 : index
    %c0_13 = arith.constant 0 : index
    %c0_14 = arith.constant 0 : index
    %c0_15 = arith.constant 0 : index
    %18 = vector.load %arg7[%c0_12, %c0_13, %c0_14, %c0_15] : memref<1x16x16x128xf32, #tpu.memory_space<vmem>>, vector<1x16x16x128xf32>
    %19 = vector.shape_cast %18 : vector<1x16x16x128xf32> to vector<16x16x128xf32>
    %20 = arith.addf %17, %19 : vector<16x16x128xf32>
    %c0_16 = arith.constant 0 : index
    %c0_17 = arith.constant 0 : index
    %c0_18 = arith.constant 0 : index
    %c0_19 = arith.constant 0 : index
    %21 = vector.load %arg8[%c0_16, %c0_17, %c0_18, %c0_19] : memref<1x16x16x128xf32, #tpu.memory_space<vmem>>, vector<1x16x16x128xf32>
    %22 = vector.shape_cast %21 : vector<1x16x16x128xf32> to vector<16x16x128xf32>
    %23 = vector.shape_cast %20 : vector<16x16x128xf32> to vector<1x16x16x128xf32>
    tpu.vector_store %arg8[%c0_16, %c0_17, %c0_18, %c0_19], %23 {strides = array<i32>} : memref<1x16x16x128xf32, #tpu.memory_space<vmem>>, vector<1x16x16x128xf32>,
    return
  }
  func.func @transform_0(%arg0: i32, %arg1: i32) -> (i32, i32, i32) {
    %c0_i32 = arith.constant 0 : i32
    %c0_i32_0 = arith.constant 0 : i32
    %c0_i32_1 = arith.constant 0 : i32
    return %arg0, %c0_i32, %c0_i32_0 : i32, i32, i32
  }
  func.func @transform_1(%arg0: i32, %arg1: i32) -> (i32, i32, i32, i32) {
    %c0_i32 = arith.constant 0 : i32
    %c0_i32_0 = arith.constant 0 : i32
    %c0_i32_1 = arith.constant 0 : i32
    return %arg0, %arg1, %c0_i32, %c0_i32_0 : i32, i32, i32, i32
  }
  func.func @transform_2(%arg0: i32, %arg1: i32) -> (i32, i32) {
    %c0_i32 = arith.constant 0 : i32
    %c0_i32_0 = arith.constant 0 : i32
    %c0_i32_1 = arith.constant 0 : i32
    return %c0_i32, %c0_i32_0 : i32, i32
  }
  func.func @transform_3(%arg0: i32, %arg1: i32) -> (i32, i32) {
    %c0_i32 = arith.constant 0 : i32
    %c0_i32_0 = arith.constant 0 : i32
    %c0_i32_1 = arith.constant 0 : i32
    return %c0_i32, %c0_i32_0 : i32, i32
  }
  func.func @transform_4(%arg0: i32, %arg1: i32) -> (i32, i32) {
    %c0_i32 = arith.constant 0 : i32
    %c0_i32_0 = arith.constant 0 : i32
    %c0_i32_1 = arith.constant 0 : i32
    return %c0_i32, %c0_i32_0 : i32, i32
  }
  func.func @transform_5(%arg0: i32, %arg1: i32) -> (i32, i32, i32, i32) {
    %c0_i32 = arith.constant 0 : i32
    %c0_i32_0 = arith.constant 0 : i32
    %c0_i32_1 = arith.constant 0 : i32
    return %arg0, %arg1, %c0_i32, %c0_i32_0 : i32, i32, i32, i32
  }
  func.func @transform_6(%arg0: i32, %arg1: i32) -> (i32, i32, i32, i32) {
    %c0_i32 = arith.constant 0 : i32
    %c0_i32_0 = arith.constant 0 : i32
    %c0_i32_1 = arith.constant 0 : i32
    return %arg0, %arg1, %c0_i32, %c0_i32_0 : i32, i32, i32, i32
  }
}

</mosaic_0001>

<llo_original>
// kernel: mbconv_forward.3
$region0: #{mbconv_forward.3}
  #allocation0 [shape = 'u32[]', space=smem, size = 0x4, offset = 0x4, fixed_abs, tag = 'smem constant byte address 0x4 - core index']
  #allocation1 [shape = 'u32[72,128]{1,0:T(1,128)}', space=vmem, size = 0x9000, scoped, tag = 'internal scratch']
  %s0 = inlined_call_operand.vmem [shape: f32[2,1,128], index: 0, kind: input, shape index: {}]
  %s1 = inlined_call_operand.vmem [shape: bf16[2,16,16,128], index: 1, kind: input, shape index: {}]
  %s2 = inlined_call_operand.vmem [shape: f32[128,128], index: 2, kind: input, shape index: {}]
  %s3 = inlined_call_operand.vmem [shape: f32[1,128], index: 3, kind: input, shape index: {}]
  %s4 = inlined_call_operand.vmem [shape: f32[1,128], index: 4, kind: input, shape index: {}]
  %s5 = inlined_call_operand.vmem [shape: f32[2,16,16,128], index: 5, kind: input, shape index: {}]
  %s6 = inlined_call_operand.vmem [shape: f32[2,16,16,128], index: 6, kind: output, shape index: {}]
  %s7 = sld [smem:[#allocation0]]
  $region57: #{mbconv_forward.3} parent=0
    _
  %s9 = ssub.s32 1, %s7
  %s10 = scalar_select 0, %s9, %s7
  loop: start=0, step=1, limit=4
  $region2: #{mbconv_forward.3} parent=0 // loop_pre_header
    _
  $region3: #{mbconv_forward.3} parent=0 // loop_header
    %s12 = sphi 0, %s16
    %p13 = scmp.ge.s32.totalorder %s12, 4
    %s19 = sphi 0, %s31
    %s20 = sphi 0, %s27
    %s21 = sphi 0, %s19
    %s22 = sphi 0, %s20
    %s23 = sphi 0, %s21
    %s24 = sphi 0, %s22
    %s34 = sphi 0, %s36
    %s37 = sphi 0, %s34
    %s38 = sphi 0, %s37
    %s54 = sphi 0, %s38
    %s62 = sphi 0, %s64
    %s65 = sphi 0, %s62
    %s66 = sphi 0, %s65
    %s82 = sphi 0, %s66
    %s86 = sphi 0, %s86
    %s88 = sphi 0, %s86
    %s89 = sphi 0, %s88
    %s103 = sphi 0, %s89
    %s107 = sphi 0, %s107
    %s109 = sphi 0, %s107
    %s110 = sphi 0, %s109
    %s124 = sphi 0, %s110
    %s128 = sphi 0, %s128
    %s130 = sphi 0, %s128
    %s131 = sphi 0, %s130
    %s145 = sphi 0, %s131
    %s153 = sphi 0, %s155
    %s156 = sphi 0, %s153
    %s157 = sphi 0, %s156
    %s173 = sphi 0, %s157
    %s181 = sphi 0, %s183
    %s184 = sphi 0, %s181
    %s185 = sphi 0, %s184
    %s201 = sphi 0, %s185
  $region4: #{mbconv_forward.3} parent=0 // loop_header_branch
    %15 = sbr.rel (%p13) target = $region8
  $region5: #{mbconv_forward.3} parent=0 // loop_body
    %s17 = ssub.s32 %s12, 1
    %s18 = ssub.s32 %s12, 2
    %s25 = sadd.s32 1, %s20
    %p26 = scmp.ge.s32.totalorder %s25, 1
    %s27 = scalar_select %p26, 0, %s25
    %s28 = sadd.s32 1, %s19
    %s29 = scalar_select %p26, %s28, %s19
    %p30 = scmp.ge.s32.totalorder %s29, 2
    %s31 = scalar_select %p30, 0, %s29
    %s32 = ssub.s32 %s19, %s31
    %p33 = scmp.eq.s32.totalorder %s32, 0
    %s35 = sadd.s32 %s34, 1
    %s36 = scalar_select %p33, %s34, %s35
    %p39 = pneg %p33
    %p40 = scmp.eq.s32.totalorder %s12, 1
    %p41 = por %p39, %p40
    %p42 = scmp.ne.s32.totalorder %s34, %s37
    %p43 = scmp.eq.s32.totalorder %s12, 0
    %p44 = por %p42, %p43
    %p45 = scmp.ne.s32.totalorder %s34, %s37
    %p46 = scmp.eq.s32.totalorder %s17, 1
    %p47 = por %p45, %p46
    %p48 = scmp.ne.s32.totalorder %s37, %s38
    %p49 = scmp.eq.s32.totalorder %s17, 0
    %p50 = por %p48, %p49
    %p51 = scmp.ne.s32.totalorder %s37, %s38
    %p52 = scmp.eq.s32.totalorder %s18, 1
    %p53 = por %p51, %p52
    %p55 = scmp.ne.s32.totalorder %s38, %s54
    %p56 = scmp.eq.s32.totalorder %s18, 0
    %p57 = por %p55, %p56
    %s58 = ssub.s32 %s19, %s31
    %s59 = ssub.s32 %s20, %s27
    %s60 = sor.u32 %s58, %s59
    %p61 = scmp.eq.s32.totalorder %s60, 0
    %s63 = sadd.s32 %s62, 1
    %s64 = scalar_select %p61, %s62, %s63
    %p67 = pneg %p61
    %p68 = scmp.eq.s32.totalorder %s12, 1
    %p69 = por %p67, %p68
    %p70 = scmp.ne.s32.totalorder %s62, %s65
    %p71 = scmp.eq.s32.totalorder %s12, 0
    %p72 = por %p70, %p71
    %p73 = scmp.ne.s32.totalorder %s62, %s65
    %p74 = scmp.eq.s32.totalorder %s17, 1
    %p75 = por %p73, %p74
    %p76 = scmp.ne.s32.totalorder %s65, %s66
    %p77 = scmp.eq.s32.totalorder %s17, 0
    %p78 = por %p76, %p77
    %p79 = scmp.ne.s32.totalorder %s65, %s66
    %p80 = scmp.eq.s32.totalorder %s18, 1
    %p81 = por %p79, %p80
    %p83 = scmp.ne.s32.totalorder %s66, %s82
    %p84 = scmp.eq.s32.totalorder %s18, 0
    %p85 = por %p83, %p84
    %s87 = sadd.s32 %s86, 1
    %p90 = scmp.eq.s32.totalorder %s12, 1
    %p91 = scmp.ne.s32.totalorder %s86, %s88
    %p92 = scmp.eq.s32.totalorder %s12, 0
    %p93 = por %p91, %p92
    %p94 = scmp.ne.s32.totalorder %s86, %s88
    %p95 = scmp.eq.s32.totalorder %s17, 1
    %p96 = por %p94, %p95
    %p97 = scmp.ne.s32.totalorder %s88, %s89
    %p98 = scmp.eq.s32.totalorder %s17, 0
    %p99 = por %p97, %p98
    %p100 = scmp.ne.s32.totalorder %s88, %s89
    %p101 = scmp.eq.s32.totalorder %s18, 1
    %p102 = por %p100, %p101
    %p104 = scmp.ne.s32.totalorder %s89, %s103
    %p105 = scmp.eq.s32.totalorder %s18, 0
    %p106 = por %p104, %p105
    %s108 = sadd.s32 %s107, 1
    %p111 = scmp.eq.s32.totalorder %s12, 1
    %p112 = scmp.ne.s32.totalorder %s107, %s109
    %p113 = scmp.eq.s32.totalorder %s12, 0
    %p114 = por %p112, %p113
    %p115 = scmp.ne.s32.totalorder %s107, %s109
    %p116 = scmp.eq.s32.totalorder %s17, 1
    %p117 = por %p115, %p116
    %p118 = scmp.ne.s32.totalorder %s109, %s110
    %p119 = scmp.eq.s32.totalorder %s17, 0
    %p120 = por %p118, %p119
    %p121 = scmp.ne.s32.totalorder %s109, %s110
    %p122 = scmp.eq.s32.totalorder %s18, 1
    %p123 = por %p121, %p122
    %p125 = scmp.ne.s32.totalorder %s110, %s124
    %p126 = scmp.eq.s32.totalorder %s18, 0
    %p127 = por %p125, %p126
    %s129 = sadd.s32 %s128, 1
    %p132 = scmp.eq.s32.totalorder %s12, 1
    %p133 = scmp.ne.s32.totalorder %s128, %s130
    %p134 = scmp.eq.s32.totalorder %s12, 0
    %p135 = por %p133, %p134
    %p136 = scmp.ne.s32.totalorder %s128, %s130
    %p137 = scmp.eq.s32.totalorder %s17, 1
    %p138 = por %p136, %p137
    %p139 = scmp.ne.s32.totalorder %s130, %s131
    %p140 = scmp.eq.s32.totalorder %s17, 0
    %p141 = por %p139, %p140
    %p142 = scmp.ne.s32.totalorder %s130, %s131
    %p143 = scmp.eq.s32.totalorder %s18, 1
    %p144 = por %p142, %p143
    %p146 = scmp.ne.s32.totalorder %s131, %s145
    %p147 = scmp.eq.s32.totalorder %s18, 0
    %p148 = por %p146, %p147
    %s149 = ssub.s32 %s19, %s31
    %s150 = ssub.s32 %s20, %s27
    %s151 = sor.u32 %s149, %s150
    %p152 = scmp.eq.s32.totalorder %s151, 0
    %s154 = sadd.s32 %s153, 1
    %s155 = scalar_select %p152, %s153, %s154
    %p158 = pneg %p152
    %p159 = scmp.eq.s32.totalorder %s12, 1
    %p160 = por %p158, %p159
    %p161 = scmp.ne.s32.totalorder %s153, %s156
    %p162 = scmp.eq.s32.totalorder %s12, 0
    %p163 = por %p161, %p162
    %p164 = scmp.ne.s32.totalorder %s153, %s156
    %p165 = scmp.eq.s32.totalorder %s17, 1
    %p166 = por %p164, %p165
    %p167 = scmp.ne.s32.totalorder %s156, %s157
    %p168 = scmp.eq.s32.totalorder %s17, 0
    %p169 = por %p167, %p168
    %p170 = scmp.ne.s32.totalorder %s156, %s157
    %p171 = scmp.eq.s32.totalorder %s18, 1
    %p172 = por %p170, %p171
    %p174 = scmp.ne.s32.totalorder %s157, %s173
    %p175 = scmp.eq.s32.totalorder %s18, 0
    %p176 = por %p174, %p175
    %s177 = ssub.s32 %s19, %s31
    %s178 = ssub.s32 %s20, %s27
    %s179 = sor.u32 %s177, %s178
    %p180 = scmp.eq.s32.totalorder %s179, 0
    %s182 = sadd.s32 %s181, 1
    %s183 = scalar_select %p180, %s181, %s182
    %p186 = pneg %p180
    %p187 = scmp.eq.s32.totalorder %s12, 1
    %p188 = por %p186, %p187
    %p189 = scmp.ne.s32.totalorder %s181, %s184
    %p190 = scmp.eq.s32.totalorder %s12, 0
    %p191 = por %p189, %p190
    %p192 = scmp.ne.s32.totalorder %s181, %s184
    %p193 = scmp.eq.s32.totalorder %s17, 1
    %p194 = por %p192, %p193
    %p195 = scmp.ne.s32.totalorder %s184, %s185
    %p196 = scmp.eq.s32.totalorder %s17, 0
    %p197 = por %p195, %p196
    %p198 = scmp.ne.s32.totalorder %s184, %s185
    %p199 = scmp.eq.s32.totalorder %s18, 1
    %p200 = por %p198, %p199
    %p202 = scmp.ne.s32.totalorder %s185, %s201
    %p203 = scmp.eq.s32.totalorder %s18, 0
    %p204 = por %p202, %p203
    %p205 = scmp.le.s32.totalorder 1, %s12
    %p206 = scmp.lt.s32.totalorder %s12, 3
    %p207 = pnand %p205, %p206
    %p208 = pneg %p207
    // Predicated region
    $region9: #{mbconv_forward.3} parent=5 // pred_check
      _
    $region10: #{mbconv_forward.3} parent=5 // pred_check_branch
      %210 = sbr.rel (%p207) target = $region12
    $region11: #{mbconv_forward.3} parent=5 // pred_region
      %s211 = ssub.s32 %s12, 1
      // Predicated region
      $region13: #{mbconv_forward.3} parent=11 // pred_check
        %p212 = pneg %p99
      $region14: #{mbconv_forward.3} parent=11 // pred_check_branch
        %214 = sbr.rel (%p212) target = $region16
      $region15: #{mbconv_forward.3} parent=11 // pred_region
        _
      $region16: #{mbconv_forward.3} parent=11 // pred_fallthru
        _
      // Predicated region
      $region17: #{mbconv_forward.3} parent=11 // pred_check
        %p215 = pneg %p120
      $region18: #{mbconv_forward.3} parent=11 // pred_check_branch
        %217 = sbr.rel (%p215) target = $region20
      $region19: #{mbconv_forward.3} parent=11 // pred_region
        _
      $region20: #{mbconv_forward.3} parent=11 // pred_fallthru
        _
      // Predicated region
      $region21: #{mbconv_forward.3} parent=11 // pred_check
        %p218 = pneg %p141
      $region22: #{mbconv_forward.3} parent=11 // pred_check_branch
        %220 = sbr.rel (%p218) target = $region24
      $region23: #{mbconv_forward.3} parent=11 // pred_region
        _
      $region24: #{mbconv_forward.3} parent=11 // pred_fallthru
        _
    $region12: #{mbconv_forward.3} parent=5 // pred_fallthru
      _
    %p221 = scmp.lt.s32.totalorder %s12, 2
    // Predicated region
    $region25: #{mbconv_forward.3} parent=5 // pred_check
      %p222 = pneg %p221
    $region26: #{mbconv_forward.3} parent=5 // pred_check_branch
      %224 = sbr.rel (%p222) target = $region28
    $region27: #{mbconv_forward.3} parent=5 // pred_region
      // Predicated region
      $region29: #{mbconv_forward.3} parent=27 // pred_check
        %p225 = pneg %p44
      $region30: #{mbconv_forward.3} parent=27 // pred_check_branch
        %227 = sbr.rel (%p225) target = $region32
      $region31: #{mbconv_forward.3} parent=27 // pred_region
        %p228 = scmp.lt.s32.totalorder %s19, 1
        %s229 = scalar_select %p228, %s19, 1
        %s230 = scalar_lea.vmem %s0, %s229
      $region32: #{mbconv_forward.3} parent=27 // pred_fallthru
        _
      // Predicated region
      $region33: #{mbconv_forward.3} parent=27 // pred_check
        %p231 = pneg %p72
      $region34: #{mbconv_forward.3} parent=27 // pred_check_branch
        %233 = sbr.rel (%p231) target = $region36
      $region35: #{mbconv_forward.3} parent=27 // pred_region
        %s234 = smul.u32 16, %s20
        %p235 = scmp.lt.s32.totalorder %s19, 1
        %s236 = scalar_select %p235, %s19, 1
        %p237 = scmp.lt.s32.totalorder %s234, 15
        %s238 = scalar_select %p237, %s234, 15
        %s239 = smul.addr %s238, 2
        %s240 = smul.addr %s236, 32
        %s241 = sadd.s32 %s239, %s240
        %s242 = smul.addr %s241, 4
        %s243 = scalar_lea.vmem %s1, %s242
        %s244 = smul.u32 16, %s20
      $region36: #{mbconv_forward.3} parent=27 // pred_fallthru
        _
      // Predicated region
      $region37: #{mbconv_forward.3} parent=27 // pred_check
        %p245 = pneg %p163
      $region38: #{mbconv_forward.3} parent=27 // pred_check_branch
        %247 = sbr.rel (%p245) target = $region40
      $region39: #{mbconv_forward.3} parent=27 // pred_region
        %s248 = smul.u32 16, %s20
        %p249 = scmp.lt.s32.totalorder %s19, 1
        %s250 = scalar_select %p249, %s19, 1
        %p251 = scmp.lt.s32.totalorder %s248, 15
        %s252 = scalar_select %p251, %s248, 15
        %s253 = smul.addr %s252, 2
        %s254 = smul.addr %s250, 32
        %s255 = sadd.s32 %s253, %s254
        %s256 = smul.addr %s255, 8
        %s257 = scalar_lea.vmem %s5, %s256
        %s258 = smul.u32 16, %s20
      $region40: #{mbconv_forward.3} parent=27 // pred_fallthru
        _
    $region28: #{mbconv_forward.3} parent=5 // pred_fallthru
      _
    %p259 = scmp.le.s32.totalorder 1, %s12
    %p260 = scmp.lt.s32.totalorder %s12, 3
    %p261 = pnand %p259, %p260
    %p262 = pneg %p261
    // Predicated region
    $region41: #{mbconv_forward.3} parent=5 // pred_check
      _
    $region42: #{mbconv_forward.3} parent=5 // pred_check_branch
      %264 = sbr.rel (%p261) target = $region44
    $region43: #{mbconv_forward.3} parent=5 // pred_region
      %s265 = ssub.s32 %s12, 1
      %p266 = scmp.lt.s32.totalorder %s21, 1
      %s267 = scalar_select %p266, %s21, 1
      %s268 = scalar_lea.vmem %s0, %s267
      %p269 = pneg %p50
      %p270 = pneg %p47
      %s271 = smul.u32 16, %s22
      %p272 = scmp.lt.s32.totalorder %s21, 1
      %s273 = scalar_select %p272, %s21, 1
      %p274 = scmp.lt.s32.totalorder %s271, 15
      %s275 = scalar_select %p274, %s271, 15
      %s276 = smul.addr %s275, 2
      %s277 = smul.addr %s273, 32
      %s278 = sadd.s32 %s276, %s277
      %s279 = smul.addr %s278, 4
      %s280 = scalar_lea.vmem %s1, %s279
      %p281 = pneg %p78
      %p282 = pneg %p75
      %p283 = pneg %p99
      %p284 = pneg %p96
      %p285 = pneg %p120
      %p286 = pneg %p117
      %p287 = pneg %p141
      %p288 = pneg %p138
      %s289 = smul.u32 16, %s22
      %p290 = scmp.lt.s32.totalorder %s21, 1
      %s291 = scalar_select %p290, %s21, 1
      %p292 = scmp.lt.s32.totalorder %s289, 15
      %s293 = scalar_select %p292, %s289, 15
      %s294 = smul.addr %s293, 2
      %s295 = smul.addr %s291, 32
      %s296 = sadd.s32 %s294, %s295
      %s297 = smul.addr %s296, 8
      %s298 = scalar_lea.vmem %s5, %s297
      %p299 = pneg %p169
      %p300 = pneg %p166
      %p301 = pneg %p197
      %p302 = pneg %p194
      %s303 = smul.u32 16, %s22
      %p304 = scmp.lt.s32.totalorder %s21, 1
      %s305 = scalar_select %p304, %s21, 1
      %p306 = scmp.lt.s32.totalorder %s303, 15
      %s307 = scalar_select %p306, %s303, 15
      %s308 = smul.addr %s307, 2
      %s309 = smul.addr %s305, 32
      %s310 = sadd.s32 %s308, %s309
      %s311 = smul.addr %s310, 8
      %s312 = scalar_lea.vmem %s6, %s311
      %p313 = scmp.lt.s32.totalorder %s21, 1
      %s314 = scalar_select %p313, %s21, 1
      %s315 = scalar_lea.vmem %s0, %s314
      %s316 = smul.u32 16, %s22
      %p317 = scmp.lt.s32.totalorder %s21, 1
      %s318 = scalar_select %p317, %s21, 1
      %p319 = scmp.lt.s32.totalorder %s316, 15
      %s320 = scalar_select %p319, %s316, 15
      %s321 = smul.addr %s320, 2
      %s322 = smul.addr %s318, 32
      %s323 = sadd.s32 %s321, %s322
      %s324 = smul.addr %s323, 4
      %s325 = scalar_lea.vmem %s1, %s324
      %s326 = smul.u32 16, %s22
      %s327 = smul.u32 16, %s22
      %p328 = scmp.lt.s32.totalorder %s21, 1
      %s329 = scalar_select %p328, %s21, 1
      %p330 = scmp.lt.s32.totalorder %s327, 15
      %s331 = scalar_select %p330, %s327, 15
      %s332 = smul.addr %s331, 2
      %s333 = smul.addr %s329, 32
      %s334 = sadd.s32 %s332, %s333
      %s335 = smul.addr %s334, 8
      %s336 = scalar_lea.vmem %s5, %s335
      %s337 = smul.u32 16, %s22
      %s338 = smul.u32 16, %s22
      %p339 = scmp.lt.s32.totalorder %s21, 1
      %s340 = scalar_select %p339, %s21, 1
      %p341 = scmp.lt.s32.totalorder %s338, 15
      %s342 = scalar_select %p341, %s338, 15
      %s343 = smul.addr %s342, 2
      %s344 = smul.addr %s340, 32
      %s345 = sadd.s32 %s343, %s344
      %s346 = smul.addr %s345, 8
      %s347 = scalar_lea.vmem %s6, %s346
      %s348 = smul.u32 16, %s22
      %v349 = vld [vmem:[%s315] sm:$0x1]
      %v350 = vld [vmem:[%s325] sm:$0xf]
      %v351 = vld [vmem:[%s325 + $0x4] sm:$0xf]
      %v352 = vld [vmem:[%s325 + $0x8] sm:$0xf]
      %v353 = vld [vmem:[%s325 + $0xc] sm:$0xf]
      %v354 = vld [vmem:[%s325 + $0x10] sm:$0xf]
      %v355 = vld [vmem:[%s325 + $0x14] sm:$0xf]
      %v356 = vld [vmem:[%s325 + $0x18] sm:$0xf]
      %v357 = vld [vmem:[%s325 + $0x1c] sm:$0xf]
      %v358 = vld [vmem:[%s325 + $0x20] sm:$0xf]
      %v359 = vld [vmem:[%s325 + $0x24] sm:$0xf]
      %v360 = vld [vmem:[%s325 + $0x28] sm:$0xf]
      %v361 = vld [vmem:[%s325 + $0x2c] sm:$0xf]
      %v362 = vld [vmem:[%s325 + $0x30] sm:$0xf]
      %v363 = vld [vmem:[%s325 + $0x34] sm:$0xf]
      %v364 = vld [vmem:[%s325 + $0x38] sm:$0xf]
      %v365 = vld [vmem:[%s325 + $0x3c] sm:$0xf]
      %v366 = vld [vmem:[%s325 + $0x40] sm:$0xf]
      %v367 = vld [vmem:[%s325 + $0x44] sm:$0xf]
      %v368 = vld [vmem:[%s325 + $0x48] sm:$0xf]
      %v369 = vld [vmem:[%s325 + $0x4c] sm:$0xf]
      %v370 = vld [vmem:[%s325 + $0x50] sm:$0xf]
      %v371 = vld [vmem:[%s325 + $0x54] sm:$0xf]
      %v372 = vld [vmem:[%s325 + $0x58] sm:$0xf]
      %v373 = vld [vmem:[%s325 + $0x5c] sm:$0xf]
      %v374 = vld [vmem:[%s325 + $0x60] sm:$0xf]
      %v375 = vld [vmem:[%s325 + $0x64] sm:$0xf]
      %v376 = vld [vmem:[%s325 + $0x68] sm:$0xf]
      %v377 = vld [vmem:[%s325 + $0x6c] sm:$0xf]
      %v378 = vld [vmem:[%s325 + $0x70] sm:$0xf]
      %v379 = vld [vmem:[%s325 + $0x74] sm:$0xf]
      %v380 = vld [vmem:[%s325 + $0x78] sm:$0xf]
      %v381 = vld [vmem:[%s325 + $0x7c] sm:$0xf]
      %v382 = vunpack.c.l.bf16 %v350
      %v383 = vunpack.c.l.bf16 %v351
      %v384 = vunpack.c.l.bf16 %v352
      %v385 = vunpack.c.l.bf16 %v353
      %v386 = vunpack.c.l.bf16 %v354
      %v387 = vunpack.c.l.bf16 %v355
      %v388 = vunpack.c.l.bf16 %v356
      %v389 = vunpack.c.l.bf16 %v357
      %v390 = vunpack.c.l.bf16 %v358
      %v391 = vunpack.c.l.bf16 %v359
      %v392 = vunpack.c.l.bf16 %v360
      %v393 = vunpack.c.l.bf16 %v361
      %v394 = vunpack.c.l.bf16 %v362
      %v395 = vunpack.c.l.bf16 %v363
      %v396 = vunpack.c.l.bf16 %v364
      %v397 = vunpack.c.l.bf16 %v365
      %v398 = vunpack.c.l.bf16 %v366
      %v399 = vunpack.c.l.bf16 %v367
      %v400 = vunpack.c.l.bf16 %v368
      %v401 = vunpack.c.l.bf16 %v369
      %v402 = vunpack.c.l.bf16 %v370
      %v403 = vunpack.c.l.bf16 %v371
      %v404 = vunpack.c.l.bf16 %v372
      %v405 = vunpack.c.l.bf16 %v373
      %v406 = vunpack.c.l.bf16 %v374
      %v407 = vunpack.c.l.bf16 %v375
      %v408 = vunpack.c.l.bf16 %v376
      %v409 = vunpack.c.l.bf16 %v377
      %v410 = vunpack.c.l.bf16 %v378
      %v411 = vunpack.c.l.bf16 %v379
      %v412 = vunpack.c.l.bf16 %v380
      %v413 = vunpack.c.l.bf16 %v381
      %v415 = vperm.slane %v349, 0
      %v417 = vmul.f32 %v382, %v415
      %v418 = vmul.f32 %v383, %v415
      %v419 = vmul.f32 %v384, %v415
      %v420 = vmul.f32 %v385, %v415
      %v421 = vmul.f32 %v386, %v415
      %v422 = vmul.f32 %v387, %v415
      %v423 = vmul.f32 %v388, %v415
      %v424 = vmul.f32 %v389, %v415
      %v425 = vmul.f32 %v390, %v415
      %v426 = vmul.f32 %v391, %v415
      %v427 = vmul.f32 %v392, %v415
      %v428 = vmul.f32 %v393, %v415
      %v429 = vmul.f32 %v394, %v415
      %v430 = vmul.f32 %v395, %v415
      %v431 = vmul.f32 %v396, %v415
      %v432 = vmul.f32 %v397, %v415
      %v433 = vmul.f32 %v398, %v415
      %v434 = vmul.f32 %v399, %v415
      %v435 = vmul.f32 %v400, %v415
      %v436 = vmul.f32 %v401, %v415
      %v437 = vmul.f32 %v402, %v415
      %v438 = vmul.f32 %v403, %v415
      %v439 = vmul.f32 %v404, %v415
      %v440 = vmul.f32 %v405, %v415
      %v441 = vmul.f32 %v406, %v415
      %v442 = vmul.f32 %v407, %v415
      %v443 = vmul.f32 %v408, %v415
      %v444 = vmul.f32 %v409, %v415
      %v445 = vmul.f32 %v410, %v415
      %v446 = vmul.f32 %v411, %v415
      %v447 = vmul.f32 %v412, %v415
      %v448 = vmul.f32 %v413, %v415
      %v449 = vld [vmem:[%s2] sm:$0xff]
      %v450 = vld [vmem:[%s2 + $0x8] sm:$0xff]
      %v451 = vld [vmem:[%s2 + $0x10] sm:$0xff]
      %v452 = vld [vmem:[%s2 + $0x18] sm:$0xff]
      %v453 = vld [vmem:[%s2 + $0x20] sm:$0xff]
      %v454 = vld [vmem:[%s2 + $0x28] sm:$0xff]
      %v455 = vld [vmem:[%s2 + $0x30] sm:$0xff]
      %v456 = vld [vmem:[%s2 + $0x38] sm:$0xff]
      %v457 = vld [vmem:[%s2 + $0x40] sm:$0xff]
      %v458 = vld [vmem:[%s2 + $0x48] sm:$0xff]
      %v459 = vld [vmem:[%s2 + $0x50] sm:$0xff]
      %v460 = vld [vmem:[%s2 + $0x58] sm:$0xff]
      %v461 = vld [vmem:[%s2 + $0x60] sm:$0xff]
      %v462 = vld [vmem:[%s2 + $0x68] sm:$0xff]
      %v463 = vld [vmem:[%s2 + $0x70] sm:$0xff]
      %v464 = vld [vmem:[%s2 + $0x78] sm:$0xff]
      %465 = vmatpush.msra.mxu0 %v464
      %466 = vmatpush.msra.mxu0 %v463
      %467 = vmatpush.msra.mxu0 %v462
      %468 = vmatpush.msra.mxu0 %v461
      %469 = vmatpush.msra.mxu0 %v460
      %470 = vmatpush.msra.mxu0 %v459
      %471 = vmatpush.msra.mxu0 %v458
      %472 = vmatpush.msra.mxu0 %v457
      %473 = vmatpush.msra.mxu0 %v456
      %474 = vmatpush.msra.mxu0 %v455
      %475 = vmatpush.msra.mxu0 %v454
      %476 = vmatpush.msra.mxu0 %v453
      %477 = vmatpush.msra.mxu0 %v452
      %478 = vmatpush.msra.mxu0 %v451
      %479 = vmatpush.msra.mxu0 %v450
      %480 = vmatpush.msra.mxu0 %v449
      %481 = vmatmul.f32.gmra.mxu0 %v417
      %v482 = vpop.f32.mrf.mxu0
      %v483 = vadd.f32 0.0, %v482
      %484 = vmatmul.f32.gmra.mxu0 %v418
      %v485 = vpop.f32.mrf.mxu0
      %v486 = vadd.f32 0.0, %v485
      %487 = vmatmul.f32.gmra.mxu0 %v419
      %v488 = vpop.f32.mrf.mxu0
      %v489 = vadd.f32 0.0, %v488
      %490 = vmatmul.f32.gmra.mxu0 %v420
      %v491 = vpop.f32.mrf.mxu0
      %v492 = vadd.f32 0.0, %v491
      %493 = vmatmul.f32.gmra.mxu0 %v421
      %v494 = vpop.f32.mrf.mxu0
      %v495 = vadd.f32 0.0, %v494
      %496 = vmatmul.f32.gmra.mxu0 %v422
      %v497 = vpop.f32.mrf.mxu0
      %v498 = vadd.f32 0.0, %v497
      %499 = vmatmul.f32.gmra.mxu0 %v423
      %v500 = vpop.f32.mrf.mxu0
      %v501 = vadd.f32 0.0, %v500
      %502 = vmatmul.f32.gmra.mxu0 %v424
      %v503 = vpop.f32.mrf.mxu0
      %v504 = vadd.f32 0.0, %v503
      %505 = vmatmul.f32.gmra.mxu0 %v425
      %v506 = vpop.f32.mrf.mxu0
      %v507 = vadd.f32 0.0, %v506
      %508 = vmatmul.f32.gmra.mxu0 %v426
      %v509 = vpop.f32.mrf.mxu0
      %v510 = vadd.f32 0.0, %v509
      %511 = vmatmul.f32.gmra.mxu0 %v427
      %v512 = vpop.f32.mrf.mxu0
      %v513 = vadd.f32 0.0, %v512
      %514 = vmatmul.f32.gmra.mxu0 %v428
      %v515 = vpop.f32.mrf.mxu0
      %v516 = vadd.f32 0.0, %v515
      %517 = vmatmul.f32.gmra.mxu0 %v429
      %v518 = vpop.f32.mrf.mxu0
      %v519 = vadd.f32 0.0, %v518
      %520 = vmatmul.f32.gmra.mxu0 %v430
      %v521 = vpop.f32.mrf.mxu0
      %v522 = vadd.f32 0.0, %v521
      %523 = vmatmul.f32.gmra.mxu0 %v431
      %v524 = vpop.f32.mrf.mxu0
      %v525 = vadd.f32 0.0, %v524
      %526 = vmatmul.f32.gmra.mxu0 %v432
      %v527 = vpop.f32.mrf.mxu0
      %v528 = vadd.f32 0.0, %v527
      %529 = vmatmul.f32.gmra.mxu0 %v433
      %v530 = vpop.f32.mrf.mxu0
      %v531 = vadd.f32 0.0, %v530
      %532 = vmatmul.f32.gmra.mxu0 %v434
      %v533 = vpop.f32.mrf.mxu0
      %v534 = vadd.f32 0.0, %v533
      %535 = vmatmul.f32.gmra.mxu0 %v435
      %v536 = vpop.f32.mrf.mxu0
      %v537 = vadd.f32 0.0, %v536
      %538 = vmatmul.f32.gmra.mxu0 %v436
      %v539 = vpop.f32.mrf.mxu0
      %v540 = vadd.f32 0.0, %v539
      %541 = vmatmul.f32.gmra.mxu0 %v437
      %v542 = vpop.f32.mrf.mxu0
      %v543 = vadd.f32 0.0, %v542
      %544 = vmatmul.f32.gmra.mxu0 %v438
      %v545 = vpop.f32.mrf.mxu0
      %v546 = vadd.f32 0.0, %v545
      %547 = vmatmul.f32.gmra.mxu0 %v439
      %v548 = vpop.f32.mrf.mxu0
      %v549 = vadd.f32 0.0, %v548
      %550 = vmatmul.f32.gmra.mxu0 %v440
      %v551 = vpop.f32.mrf.mxu0
      %v552 = vadd.f32 0.0, %v551
      %553 = vmatmul.f32.gmra.mxu0 %v441
      %v554 = vpop.f32.mrf.mxu0
      %v555 = vadd.f32 0.0, %v554
      %556 = vmatmul.f32.gmra.mxu0 %v442
      %v557 = vpop.f32.mrf.mxu0
      %v558 = vadd.f32 0.0, %v557
      %559 = vmatmul.f32.gmra.mxu0 %v443
      %v560 = vpop.f32.mrf.mxu0
      %v561 = vadd.f32 0.0, %v560
      %562 = vmatmul.f32.gmra.mxu0 %v444
      %v563 = vpop.f32.mrf.mxu0
      %v564 = vadd.f32 0.0, %v563
      %565 = vmatmul.f32.gmra.mxu0 %v445
      %v566 = vpop.f32.mrf.mxu0
      %v567 = vadd.f32 0.0, %v566
      %568 = vmatmul.f32.gmra.mxu0 %v446
      %v569 = vpop.f32.mrf.mxu0
      %v570 = vadd.f32 0.0, %v569
      %571 = vmatmul.f32.gmra.mxu0 %v447
      %v572 = vpop.f32.mrf.mxu0
      %v573 = vadd.f32 0.0, %v572
      %574 = vmatmul.f32.gmra.mxu0 %v448
      %v575 = vpop.f32.mrf.mxu0
      %v576 = vadd.f32 0.0, %v575
      %577 = vdwg.mxu0
      %v578 = vld [vmem:[%s3] sm:$0x1]
      %v580 = vperm.slane %v578, 0
      %v582 = vmul.f32 %v483, %v580
      %v583 = vmul.f32 %v486, %v580
      %v584 = vmul.f32 %v489, %v580
      %v585 = vmul.f32 %v492, %v580
      %v586 = vmul.f32 %v495, %v580
      %v587 = vmul.f32 %v498, %v580
      %v588 = vmul.f32 %v501, %v580
      %v589 = vmul.f32 %v504, %v580
      %v590 = vmul.f32 %v507, %v580
      %v591 = vmul.f32 %v510, %v580
      %v592 = vmul.f32 %v513, %v580
      %v593 = vmul.f32 %v516, %v580
      %v594 = vmul.f32 %v519, %v580
      %v595 = vmul.f32 %v522, %v580
      %v596 = vmul.f32 %v525, %v580
      %v597 = vmul.f32 %v528, %v580
      %v598 = vmul.f32 %v531, %v580
      %v599 = vmul.f32 %v534, %v580
      %v600 = vmul.f32 %v537, %v580
      %v601 = vmul.f32 %v540, %v580
      %v602 = vmul.f32 %v543, %v580
      %v603 = vmul.f32 %v546, %v580
      %v604 = vmul.f32 %v549, %v580
      %v605 = vmul.f32 %v552, %v580
      %v606 = vmul.f32 %v555, %v580
      %v607 = vmul.f32 %v558, %v580
      %v608 = vmul.f32 %v561, %v580
      %v609 = vmul.f32 %v564, %v580
      %v610 = vmul.f32 %v567, %v580
      %v611 = vmul.f32 %v570, %v580
      %v612 = vmul.f32 %v573, %v580
      %v613 = vmul.f32 %v576, %v580
      %v614 = vld [vmem:[%s4] sm:$0x1]
      %v616 = vperm.slane %v614, 0
      %v618 = vadd.f32 %v582, %v616
      %v619 = vadd.f32 %v583, %v616
      %v620 = vadd.f32 %v584, %v616
      %v621 = vadd.f32 %v585, %v616
      %v622 = vadd.f32 %v586, %v616
      %v623 = vadd.f32 %v587, %v616
      %v624 = vadd.f32 %v588, %v616
      %v625 = vadd.f32 %v589, %v616
      %v626 = vadd.f32 %v590, %v616
      %v627 = vadd.f32 %v591, %v616
      %v628 = vadd.f32 %v592, %v616
      %v629 = vadd.f32 %v593, %v616
      %v630 = vadd.f32 %v594, %v616
      %v631 = vadd.f32 %v595, %v616
      %v632 = vadd.f32 %v596, %v616
      %v633 = vadd.f32 %v597, %v616
      %v634 = vadd.f32 %v598, %v616
      %v635 = vadd.f32 %v599, %v616
      %v636 = vadd.f32 %v600, %v616
      %v637 = vadd.f32 %v601, %v616
      %v638 = vadd.f32 %v602, %v616
      %v639 = vadd.f32 %v603, %v616
      %v640 = vadd.f32 %v604, %v616
      %v641 = vadd.f32 %v605, %v616
      %v642 = vadd.f32 %v606, %v616
      %v643 = vadd.f32 %v607, %v616
      %v644 = vadd.f32 %v608, %v616
      %v645 = vadd.f32 %v609, %v616
      %v646 = vadd.f32 %v610, %v616
      %v647 = vadd.f32 %v611, %v616
      %v648 = vadd.f32 %v612, %v616
      %v649 = vadd.f32 %v613, %v616
      %v650 = vld [vmem:[%s336] sm:$0xff]
      %v651 = vld [vmem:[%s336 + $0x8] sm:$0xff]
      %v652 = vld [vmem:[%s336 + $0x10] sm:$0xff]
      %v653 = vld [vmem:[%s336 + $0x18] sm:$0xff]
      %v654 = vld [vmem:[%s336 + $0x20] sm:$0xff]
      %v655 = vld [vmem:[%s336 + $0x28] sm:$0xff]
      %v656 = vld [vmem:[%s336 + $0x30] sm:$0xff]
      %v657 = vld [vmem:[%s336 + $0x38] sm:$0xff]
      %v658 = vld [vmem:[%s336 + $0x40] sm:$0xff]
      %v659 = vld [vmem:[%s336 + $0x48] sm:$0xff]
      %v660 = vld [vmem:[%s336 + $0x50] sm:$0xff]
      %v661 = vld [vmem:[%s336 + $0x58] sm:$0xff]
      %v662 = vld [vmem:[%s336 + $0x60] sm:$0xff]
      %v663 = vld [vmem:[%s336 + $0x68] sm:$0xff]
      %v664 = vld [vmem:[%s336 + $0x70] sm:$0xff]
      %v665 = vld [vmem:[%s336 + $0x78] sm:$0xff]
      %v666 = vld [vmem:[%s336 + $0x80] sm:$0xff]
      %v667 = vld [vmem:[%s336 + $0x88] sm:$0xff]
      %v668 = vld [vmem:[%s336 + $0x90] sm:$0xff]
      %v669 = vld [vmem:[%s336 + $0x98] sm:$0xff]
      %v670 = vld [vmem:[%s336 + $0xa0] sm:$0xff]
      %v671 = vld [vmem:[%s336 + $0xa8] sm:$0xff]
      %v672 = vld [vmem:[%s336 + $0xb0] sm:$0xff]
      %v673 = vld [vmem:[%s336 + $0xb8] sm:$0xff]
      %v674 = vld [vmem:[%s336 + $0xc0] sm:$0xff]
      %v675 = vld [vmem:[%s336 + $0xc8] sm:$0xff]
      %v676 = vld [vmem:[%s336 + $0xd0] sm:$0xff]
      %v677 = vld [vmem:[%s336 + $0xd8] sm:$0xff]
      %v678 = vld [vmem:[%s336 + $0xe0] sm:$0xff]
      %v679 = vld [vmem:[%s336 + $0xe8] sm:$0xff]
      %v680 = vld [vmem:[%s336 + $0xf0] sm:$0xff]
      %v681 = vld [vmem:[%s336 + $0xf8] sm:$0xff]
      %v682 = vadd.f32 %v618, %v650
      %v683 = vadd.f32 %v619, %v651
      %v684 = vadd.f32 %v620, %v652
      %v685 = vadd.f32 %v621, %v653
      %v686 = vadd.f32 %v622, %v654
      %v687 = vadd.f32 %v623, %v655
      %v688 = vadd.f32 %v624, %v656
      %v689 = vadd.f32 %v625, %v657
      %v690 = vadd.f32 %v626, %v658
      %v691 = vadd.f32 %v627, %v659
      %v692 = vadd.f32 %v628, %v660
      %v693 = vadd.f32 %v629, %v661
      %v694 = vadd.f32 %v630, %v662
      %v695 = vadd.f32 %v631, %v663
      %v696 = vadd.f32 %v632, %v664
      %v697 = vadd.f32 %v633, %v665
      %v698 = vadd.f32 %v634, %v666
      %v699 = vadd.f32 %v635, %v667
      %v700 = vadd.f32 %v636, %v668
      %v701 = vadd.f32 %v637, %v669
      %v702 = vadd.f32 %v638, %v670
      %v703 = vadd.f32 %v639, %v671
      %v704 = vadd.f32 %v640, %v672
      %v705 = vadd.f32 %v641, %v673
      %v706 = vadd.f32 %v642, %v674
      %v707 = vadd.f32 %v643, %v675
      %v708 = vadd.f32 %v644, %v676
      %v709 = vadd.f32 %v645, %v677
      %v710 = vadd.f32 %v646, %v678
      %v711 = vadd.f32 %v647, %v679
      %v712 = vadd.f32 %v648, %v680
      %v713 = vadd.f32 %v649, %v681
      %714 = vst [vmem:[%s347] sm:$0xff] %v682
      %715 = vst [vmem:[%s347 + $0x8] sm:$0xff] %v683
      %716 = vst [vmem:[%s347 + $0x10] sm:$0xff] %v684
      %717 = vst [vmem:[%s347 + $0x18] sm:$0xff] %v685
      %718 = vst [vmem:[%s347 + $0x20] sm:$0xff] %v686
      %719 = vst [vmem:[%s347 + $0x28] sm:$0xff] %v687
      %720 = vst [vmem:[%s347 + $0x30] sm:$0xff] %v688
      %721 = vst [vmem:[%s347 + $0x38] sm:$0xff] %v689
      %722 = vst [vmem:[%s347 + $0x40] sm:$0xff] %v690
      %723 = vst [vmem:[%s347 + $0x48] sm:$0xff] %v691
      %724 = vst [vmem:[%s347 + $0x50] sm:$0xff] %v692
      %725 = vst [vmem:[%s347 + $0x58] sm:$0xff] %v693
      %726 = vst [vmem:[%s347 + $0x60] sm:$0xff] %v694
      %727 = vst [vmem:[%s347 + $0x68] sm:$0xff] %v695
      %728 = vst [vmem:[%s347 + $0x70] sm:$0xff] %v696
      %729 = vst [vmem:[%s347 + $0x78] sm:$0xff] %v697
      %730 = vst [vmem:[%s347 + $0x80] sm:$0xff] %v698
      %731 = vst [vmem:[%s347 + $0x88] sm:$0xff] %v699
      %732 = vst [vmem:[%s347 + $0x90] sm:$0xff] %v700
      %733 = vst [vmem:[%s347 + $0x98] sm:$0xff] %v701
      %734 = vst [vmem:[%s347 + $0xa0] sm:$0xff] %v702
      %735 = vst [vmem:[%s347 + $0xa8] sm:$0xff] %v703
      %736 = vst [vmem:[%s347 + $0xb0] sm:$0xff] %v704
      %737 = vst [vmem:[%s347 + $0xb8] sm:$0xff] %v705
      %738 = vst [vmem:[%s347 + $0xc0] sm:$0xff] %v706
      %739 = vst [vmem:[%s347 + $0xc8] sm:$0xff] %v707
      %740 = vst [vmem:[%s347 + $0xd0] sm:$0xff] %v708
      %741 = vst [vmem:[%s347 + $0xd8] sm:$0xff] %v709
      %742 = vst [vmem:[%s347 + $0xe0] sm:$0xff] %v710
      %743 = vst [vmem:[%s347 + $0xe8] sm:$0xff] %v711
      %744 = vst [vmem:[%s347 + $0xf0] sm:$0xff] %v712
      %745 = vst [vmem:[%s347 + $0xf8] sm:$0xff] %v713
      %s746 = smul.u32 16, %s22
      %p747 = scmp.lt.s32.totalorder %s21, 1
      %s748 = scalar_select %p747, %s21, 1
      %p749 = scmp.lt.s32.totalorder %s746, 15
      %s750 = scalar_select %p749, %s746, 15
      %s751 = smul.addr %s750, 2
      %s752 = smul.addr %s748, 32
      %s753 = sadd.s32 %s751, %s752
      %s754 = smul.addr %s753, 8
      %s755 = scalar_lea.vmem %s6, %s754
      // Predicated region
      $region45: #{mbconv_forward.3} parent=43 // pred_check
        %p756 = pneg %p194
      $region46: #{mbconv_forward.3} parent=43 // pred_check_branch
        %758 = sbr.rel (%p756) target = $region48
      $region47: #{mbconv_forward.3} parent=43 // pred_region
        %s759 = smul.u32 16, %s22
      $region48: #{mbconv_forward.3} parent=43 // pred_fallthru
        _
    $region44: #{mbconv_forward.3} parent=5 // pred_fallthru
      _
    %p760 = scmp.le.s32.totalorder 2, %s12
    // Predicated region
    $region49: #{mbconv_forward.3} parent=5 // pred_check
      %p761 = pneg %p760
    $region50: #{mbconv_forward.3} parent=5 // pred_check_branch
      %763 = sbr.rel (%p761) target = $region52
    $region51: #{mbconv_forward.3} parent=5 // pred_region
      %s764 = ssub.s32 %s12, 2
      // Predicated region
      $region53: #{mbconv_forward.3} parent=51 // pred_check
        %p765 = pneg %p200
      $region54: #{mbconv_forward.3} parent=51 // pred_check_branch
        %767 = sbr.rel (%p765) target = $region56
      $region55: #{mbconv_forward.3} parent=51 // pred_region
        %s768 = smul.u32 16, %s24
        %p769 = scmp.lt.s32.totalorder %s23, 1
        %s770 = scalar_select %p769, %s23, 1
        %p771 = scmp.lt.s32.totalorder %s768, 15
        %s772 = scalar_select %p771, %s768, 15
        %s773 = smul.addr %s772, 2
        %s774 = smul.addr %s770, 32
        %s775 = sadd.s32 %s773, %s774
        %s776 = smul.addr %s775, 8
        %s777 = scalar_lea.vmem %s6, %s776
      $region56: #{mbconv_forward.3} parent=51 // pred_fallthru
        _
    $region52: #{mbconv_forward.3} parent=5 // pred_fallthru
      _
  $region6: #{mbconv_forward.3} parent=0 // loop_footer
    %s16 = sadd.s32 1, %s12
  $region7: #{mbconv_forward.3} parent=0 // loop_footer_branch
    %11 = sbr.rel target = $region3
  $region8: #{mbconv_forward.3} parent=0 // loop_exit
    _

// kernel: mbconv_forward.2
$region0: #{mbconv_forward.2}
  #allocation0 [shape = 'u32[]', space=smem, size = 0x4, offset = 0x4, fixed_abs, tag = 'smem constant byte address 0x4 - core index']
  #allocation1 [shape = 'u32[72,128]{1,0:T(1,128)}', space=vmem, size = 0x9000, scoped, tag = 'internal scratch']
  %s0 = inlined_call_operand.vmem [shape: f32[2,2,10,18,8], index: 0, kind: input, shape index: {}]
  %s1 = inlined_call_operand.vmem [shape: f32[8,128], index: 1, kind: input, shape index: {}]
  %s2 = inlined_call_operand.vmem [shape: f32[1,128], index: 2, kind: input, shape index: {}]
  %s3 = inlined_call_operand.vmem [shape: f32[1,128], index: 3, kind: input, shape index: {}]
  %s4 = inlined_call_operand.vmem [shape: f32[9,128], index: 4, kind: input, shape index: {}]
  %s5 = inlined_call_operand.vmem [shape: f32[1,128], index: 5, kind: input, shape index: {}]
  %s6 = inlined_call_operand.vmem [shape: f32[1,128], index: 6, kind: input, shape index: {}]
  %s7 = inlined_call_operand.vmem [shape: bf16[2,16,16,128], index: 7, kind: output, shape index: {0}]
  %s8 = inlined_call_operand.vmem [shape: f32[2,2,1,128], index: 8, kind: output, shape index: {1}]
  %9 = xla_tuple %s7, %s8
  %s10 = sld [smem:[#allocation0]]
  $region69: #{mbconv_forward.2} parent=0
    _
  %s12 = ssub.s32 1, %s10
  %s13 = scalar_select 0, %s12, %s10
  loop: start=0, step=1, limit=6
  $region2: #{mbconv_forward.2} parent=0 // loop_pre_header
    _
  $region3: #{mbconv_forward.2} parent=0 // loop_header
    %s15 = sphi 0, %s19
    %p16 = scmp.ge.s32.totalorder %s15, 6
    %s22 = sphi 0, %s34
    %s23 = sphi 0, %s30
    %s24 = sphi 0, %s22
    %s25 = sphi 0, %s23
    %s26 = sphi 0, %s24
    %s27 = sphi 0, %s25
    %s39 = sphi 0, %s41
    %s42 = sphi 0, %s39
    %s43 = sphi 0, %s42
    %s59 = sphi 0, %s43
    %s63 = sphi 0, %s63
    %s65 = sphi 0, %s63
    %s66 = sphi 0, %s65
    %s80 = sphi 0, %s66
    %s84 = sphi 0, %s84
    %s86 = sphi 0, %s84
    %s87 = sphi 0, %s86
    %s101 = sphi 0, %s87
    %s105 = sphi 0, %s105
    %s107 = sphi 0, %s105
    %s108 = sphi 0, %s107
    %s122 = sphi 0, %s108
    %s126 = sphi 0, %s126
    %s128 = sphi 0, %s126
    %s129 = sphi 0, %s128
    %s143 = sphi 0, %s129
    %s147 = sphi 0, %s147
    %s149 = sphi 0, %s147
    %s150 = sphi 0, %s149
    %s164 = sphi 0, %s150
    %s168 = sphi 0, %s168
    %s170 = sphi 0, %s168
    %s171 = sphi 0, %s170
    %s185 = sphi 0, %s171
    %s193 = sphi 0, %s195
    %s196 = sphi 0, %s193
    %s197 = sphi 0, %s196
    %s213 = sphi 0, %s197
    %s221 = sphi 0, %s223
    %s224 = sphi 0, %s221
    %s225 = sphi 0, %s224
    %s241 = sphi 0, %s225
  $region4: #{mbconv_forward.2} parent=0 // loop_header_branch
    %18 = sbr.rel (%p16) target = $region8
  $region5: #{mbconv_forward.2} parent=0 // loop_body
    %s20 = ssub.s32 %s15, 1
    %s21 = ssub.s32 %s15, 2
    %s28 = sadd.s32 1, %s23
    %p29 = scmp.ge.s32.totalorder %s28, 2
    %s30 = scalar_select %p29, 0, %s28
    %s31 = sadd.s32 1, %s22
    %s32 = scalar_select %p29, %s31, %s22
    %p33 = scmp.ge.s32.totalorder %s32, 2
    %s34 = scalar_select %p33, 0, %s32
    %s35 = ssub.s32 %s22, %s34
    %s36 = ssub.s32 %s23, %s30
    %s37 = sor.u32 %s35, %s36
    %p38 = scmp.eq.s32.totalorder %s37, 0
    %s40 = sadd.s32 %s39, 1
    %s41 = scalar_select %p38, %s39, %s40
    %p44 = pneg %p38
    %p45 = scmp.eq.s32.totalorder %s15, 3
    %p46 = por %p44, %p45
    %p47 = scmp.ne.s32.totalorder %s39, %s42
    %p48 = scmp.eq.s32.totalorder %s15, 0
    %p49 = por %p47, %p48
    %p50 = scmp.ne.s32.totalorder %s39, %s42
    %p51 = scmp.eq.s32.totalorder %s20, 3
    %p52 = por %p50, %p51
    %p53 = scmp.ne.s32.totalorder %s42, %s43
    %p54 = scmp.eq.s32.totalorder %s20, 0
    %p55 = por %p53, %p54
    %p56 = scmp.ne.s32.totalorder %s42, %s43
    %p57 = scmp.eq.s32.totalorder %s21, 3
    %p58 = por %p56, %p57
    %p60 = scmp.ne.s32.totalorder %s43, %s59
    %p61 = scmp.eq.s32.totalorder %s21, 0
    %p62 = por %p60, %p61
    %s64 = sadd.s32 %s63, 1
    %p67 = scmp.eq.s32.totalorder %s15, 3
    %p68 = scmp.ne.s32.totalorder %s63, %s65
    %p69 = scmp.eq.s32.totalorder %s15, 0
    %p70 = por %p68, %p69
    %p71 = scmp.ne.s32.totalorder %s63, %s65
    %p72 = scmp.eq.s32.totalorder %s20, 3
    %p73 = por %p71, %p72
    %p74 = scmp.ne.s32.totalorder %s65, %s66
    %p75 = scmp.eq.s32.totalorder %s20, 0
    %p76 = por %p74, %p75
    %p77 = scmp.ne.s32.totalorder %s65, %s66
    %p78 = scmp.eq.s32.totalorder %s21, 3
    %p79 = por %p77, %p78
    %p81 = scmp.ne.s32.totalorder %s66, %s80
    %p82 = scmp.eq.s32.totalorder %s21, 0
    %p83 = por %p81, %p82
    %s85 = sadd.s32 %s84, 1
    %p88 = scmp.eq.s32.totalorder %s15, 3
    %p89 = scmp.ne.s32.totalorder %s84, %s86
    %p90 = scmp.eq.s32.totalorder %s15, 0
    %p91 = por %p89, %p90
    %p92 = scmp.ne.s32.totalorder %s84, %s86
    %p93 = scmp.eq.s32.totalorder %s20, 3
    %p94 = por %p92, %p93
    %p95 = scmp.ne.s32.totalorder %s86, %s87
    %p96 = scmp.eq.s32.totalorder %s20, 0
    %p97 = por %p95, %p96
    %p98 = scmp.ne.s32.totalorder %s86, %s87
    %p99 = scmp.eq.s32.totalorder %s21, 3
    %p100 = por %p98, %p99
    %p102 = scmp.ne.s32.totalorder %s87, %s101
    %p103 = scmp.eq.s32.totalorder %s21, 0
    %p104 = por %p102, %p103
    %s106 = sadd.s32 %s105, 1
    %p109 = scmp.eq.s32.totalorder %s15, 3
    %p110 = scmp.ne.s32.totalorder %s105, %s107
    %p111 = scmp.eq.s32.totalorder %s15, 0
    %p112 = por %p110, %p111
    %p113 = scmp.ne.s32.totalorder %s105, %s107
    %p114 = scmp.eq.s32.totalorder %s20, 3
    %p115 = por %p113, %p114
    %p116 = scmp.ne.s32.totalorder %s107, %s108
    %p117 = scmp.eq.s32.totalorder %s20, 0
    %p118 = por %p116, %p117
    %p119 = scmp.ne.s32.totalorder %s107, %s108
    %p120 = scmp.eq.s32.totalorder %s21, 3
    %p121 = por %p119, %p120
    %p123 = scmp.ne.s32.totalorder %s108, %s122
    %p124 = scmp.eq.s32.totalorder %s21, 0
    %p125 = por %p123, %p124
    %s127 = sadd.s32 %s126, 1
    %p130 = scmp.eq.s32.totalorder %s15, 3
    %p131 = scmp.ne.s32.totalorder %s126, %s128
    %p132 = scmp.eq.s32.totalorder %s15, 0
    %p133 = por %p131, %p132
    %p134 = scmp.ne.s32.totalorder %s126, %s128
    %p135 = scmp.eq.s32.totalorder %s20, 3
    %p136 = por %p134, %p135
    %p137 = scmp.ne.s32.totalorder %s128, %s129
    %p138 = scmp.eq.s32.totalorder %s20, 0
    %p139 = por %p137, %p138
    %p140 = scmp.ne.s32.totalorder %s128, %s129
    %p141 = scmp.eq.s32.totalorder %s21, 3
    %p142 = por %p140, %p141
    %p144 = scmp.ne.s32.totalorder %s129, %s143
    %p145 = scmp.eq.s32.totalorder %s21, 0
    %p146 = por %p144, %p145
    %s148 = sadd.s32 %s147, 1
    %p151 = scmp.eq.s32.totalorder %s15, 3
    %p152 = scmp.ne.s32.totalorder %s147, %s149
    %p153 = scmp.eq.s32.totalorder %s15, 0
    %p154 = por %p152, %p153
    %p155 = scmp.ne.s32.totalorder %s147, %s149
    %p156 = scmp.eq.s32.totalorder %s20, 3
    %p157 = por %p155, %p156
    %p158 = scmp.ne.s32.totalorder %s149, %s150
    %p159 = scmp.eq.s32.totalorder %s20, 0
    %p160 = por %p158, %p159
    %p161 = scmp.ne.s32.totalorder %s149, %s150
    %p162 = scmp.eq.s32.totalorder %s21, 3
    %p163 = por %p161, %p162
    %p165 = scmp.ne.s32.totalorder %s150, %s164
    %p166 = scmp.eq.s32.totalorder %s21, 0
    %p167 = por %p165, %p166
    %s169 = sadd.s32 %s168, 1
    %p172 = scmp.eq.s32.totalorder %s15, 3
    %p173 = scmp.ne.s32.totalorder %s168, %s170
    %p174 = scmp.eq.s32.totalorder %s15, 0
    %p175 = por %p173, %p174
    %p176 = scmp.ne.s32.totalorder %s168, %s170
    %p177 = scmp.eq.s32.totalorder %s20, 3
    %p178 = por %p176, %p177
    %p179 = scmp.ne.s32.totalorder %s170, %s171
    %p180 = scmp.eq.s32.totalorder %s20, 0
    %p181 = por %p179, %p180
    %p182 = scmp.ne.s32.totalorder %s170, %s171
    %p183 = scmp.eq.s32.totalorder %s21, 3
    %p184 = por %p182, %p183
    %p186 = scmp.ne.s32.totalorder %s171, %s185
    %p187 = scmp.eq.s32.totalorder %s21, 0
    %p188 = por %p186, %p187
    %s189 = ssub.s32 %s22, %s34
    %s190 = ssub.s32 %s23, %s30
    %s191 = sor.u32 %s189, %s190
    %p192 = scmp.eq.s32.totalorder %s191, 0
    %s194 = sadd.s32 %s193, 1
    %s195 = scalar_select %p192, %s193, %s194
    %p198 = pneg %p192
    %p199 = scmp.eq.s32.totalorder %s15, 3
    %p200 = por %p198, %p199
    %p201 = scmp.ne.s32.totalorder %s193, %s196
    %p202 = scmp.eq.s32.totalorder %s15, 0
    %p203 = por %p201, %p202
    %p204 = scmp.ne.s32.totalorder %s193, %s196
    %p205 = scmp.eq.s32.totalorder %s20, 3
    %p206 = por %p204, %p205
    %p207 = scmp.ne.s32.totalorder %s196, %s197
    %p208 = scmp.eq.s32.totalorder %s20, 0
    %p209 = por %p207, %p208
    %p210 = scmp.ne.s32.totalorder %s196, %s197
    %p211 = scmp.eq.s32.totalorder %s21, 3
    %p212 = por %p210, %p211
    %p214 = scmp.ne.s32.totalorder %s197, %s213
    %p215 = scmp.eq.s32.totalorder %s21, 0
    %p216 = por %p214, %p215
    %s217 = ssub.s32 %s22, %s34
    %s218 = ssub.s32 %s23, %s30
    %s219 = sor.u32 %s217, %s218
    %p220 = scmp.eq.s32.totalorder %s219, 0
    %s222 = sadd.s32 %s221, 1
    %s223 = scalar_select %p220, %s221, %s222
    %p226 = pneg %p220
    %p227 = scmp.eq.s32.totalorder %s15, 3
    %p228 = por %p226, %p227
    %p229 = scmp.ne.s32.totalorder %s221, %s224
    %p230 = scmp.eq.s32.totalorder %s15, 0
    %p231 = por %p229, %p230
    %p232 = scmp.ne.s32.totalorder %s221, %s224
    %p233 = scmp.eq.s32.totalorder %s20, 3
    %p234 = por %p232, %p233
    %p235 = scmp.ne.s32.totalorder %s224, %s225
    %p236 = scmp.eq.s32.totalorder %s20, 0
    %p237 = por %p235, %p236
    %p238 = scmp.ne.s32.totalorder %s224, %s225
    %p239 = scmp.eq.s32.totalorder %s21, 3
    %p240 = por %p238, %p239
    %p242 = scmp.ne.s32.totalorder %s225, %s241
    %p243 = scmp.eq.s32.totalorder %s21, 0
    %p244 = por %p242, %p243
    %p245 = scmp.le.s32.totalorder 1, %s15
    %p246 = scmp.lt.s32.totalorder %s15, 5
    %p247 = pnand %p245, %p246
    %p248 = pneg %p247
    // Predicated region
    $region9: #{mbconv_forward.2} parent=5 // pred_check
      _
    $region10: #{mbconv_forward.2} parent=5 // pred_check_branch
      %250 = sbr.rel (%p247) target = $region12
    $region11: #{mbconv_forward.2} parent=5 // pred_region
      %s251 = ssub.s32 %s15, 1
      // Predicated region
      $region13: #{mbconv_forward.2} parent=11 // pred_check
        %p252 = pneg %p76
      $region14: #{mbconv_forward.2} parent=11 // pred_check_branch
        %254 = sbr.rel (%p252) target = $region16
      $region15: #{mbconv_forward.2} parent=11 // pred_region
        _
      $region16: #{mbconv_forward.2} parent=11 // pred_fallthru
        _
      // Predicated region
      $region17: #{mbconv_forward.2} parent=11 // pred_check
        %p255 = pneg %p97
      $region18: #{mbconv_forward.2} parent=11 // pred_check_branch
        %257 = sbr.rel (%p255) target = $region20
      $region19: #{mbconv_forward.2} parent=11 // pred_region
        _
      $region20: #{mbconv_forward.2} parent=11 // pred_fallthru
        _
      // Predicated region
      $region21: #{mbconv_forward.2} parent=11 // pred_check
        %p258 = pneg %p118
      $region22: #{mbconv_forward.2} parent=11 // pred_check_branch
        %260 = sbr.rel (%p258) target = $region24
      $region23: #{mbconv_forward.2} parent=11 // pred_region
        _
      $region24: #{mbconv_forward.2} parent=11 // pred_fallthru
        _
      // Predicated region
      $region25: #{mbconv_forward.2} parent=11 // pred_check
        %p261 = pneg %p139
      $region26: #{mbconv_forward.2} parent=11 // pred_check_branch
        %263 = sbr.rel (%p261) target = $region28
      $region27: #{mbconv_forward.2} parent=11 // pred_region
        _
      $region28: #{mbconv_forward.2} parent=11 // pred_fallthru
        _
      // Predicated region
      $region29: #{mbconv_forward.2} parent=11 // pred_check
        %p264 = pneg %p160
      $region30: #{mbconv_forward.2} parent=11 // pred_check_branch
        %266 = sbr.rel (%p264) target = $region32
      $region31: #{mbconv_forward.2} parent=11 // pred_region
        _
      $region32: #{mbconv_forward.2} parent=11 // pred_fallthru
        _
      // Predicated region
      $region33: #{mbconv_forward.2} parent=11 // pred_check
        %p267 = pneg %p181
      $region34: #{mbconv_forward.2} parent=11 // pred_check_branch
        %269 = sbr.rel (%p267) target = $region36
      $region35: #{mbconv_forward.2} parent=11 // pred_region
        _
      $region36: #{mbconv_forward.2} parent=11 // pred_fallthru
        _
    $region12: #{mbconv_forward.2} parent=5 // pred_fallthru
      _
    %p270 = scmp.lt.s32.totalorder %s15, 4
    // Predicated region
    $region37: #{mbconv_forward.2} parent=5 // pred_check
      %p271 = pneg %p270
    $region38: #{mbconv_forward.2} parent=5 // pred_check_branch
      %273 = sbr.rel (%p271) target = $region40
    $region39: #{mbconv_forward.2} parent=5 // pred_region
      // Predicated region
      $region41: #{mbconv_forward.2} parent=39 // pred_check
        %p274 = pneg %p49
      $region42: #{mbconv_forward.2} parent=39 // pred_check_branch
        %276 = sbr.rel (%p274) target = $region44
      $region43: #{mbconv_forward.2} parent=39 // pred_region
        %p277 = scmp.lt.s32.totalorder %s22, 1
        %s278 = scalar_select %p277, %s22, 1
        %p279 = scmp.lt.s32.totalorder %s23, 1
        %s280 = scalar_select %p279, %s23, 1
        %s281 = smul.addr %s280, 30
        %s282 = smul.addr %s278, 60
        %s283 = sadd.s32 %s281, %s282
        %s284 = smul.addr %s283, 8
        %s285 = scalar_lea.vmem %s0, %s284
      $region44: #{mbconv_forward.2} parent=39 // pred_fallthru
        _
    $region40: #{mbconv_forward.2} parent=5 // pred_fallthru
      _
    %p286 = scmp.le.s32.totalorder 1, %s15
    %p287 = scmp.lt.s32.totalorder %s15, 5
    %p288 = pnand %p286, %p287
    %p289 = pneg %p288
    // Predicated region
    $region45: #{mbconv_forward.2} parent=5 // pred_check
      _
    $region46: #{mbconv_forward.2} parent=5 // pred_check_branch
      %291 = sbr.rel (%p288) target = $region48
    $region47: #{mbconv_forward.2} parent=5 // pred_region
      %s292 = ssub.s32 %s15, 1
      %p293 = scmp.lt.s32.totalorder %s24, 1
      %s294 = scalar_select %p293, %s24, 1
      %p295 = scmp.lt.s32.totalorder %s25, 1
      %s296 = scalar_select %p295, %s25, 1
      %s297 = smul.addr %s296, 30
      %s298 = smul.addr %s294, 60
      %s299 = sadd.s32 %s297, %s298
      %s300 = smul.addr %s299, 8
      %s301 = scalar_lea.vmem %s0, %s300
      %p302 = pneg %p55
      %p303 = pneg %p52
      %p304 = pneg %p76
      %p305 = pneg %p73
      %p306 = pneg %p97
      %p307 = pneg %p94
      %p308 = pneg %p118
      %p309 = pneg %p115
      %p310 = pneg %p139
      %p311 = pneg %p136
      %p312 = pneg %p160
      %p313 = pneg %p157
      %p314 = pneg %p181
      %p315 = pneg %p178
      %p316 = pneg %p209
      %p317 = pneg %p206
      %s318 = smul.u32 8, %s25
      %p319 = scmp.lt.s32.totalorder %s24, 1
      %s320 = scalar_select %p319, %s24, 1
      %p321 = scmp.lt.s32.totalorder %s318, 15
      %s322 = scalar_select %p321, %s318, 15
      %s323 = smul.addr %s322, 2
      %s324 = smul.addr %s320, 32
      %s325 = sadd.s32 %s323, %s324
      %s326 = smul.addr %s325, 4
      %s327 = scalar_lea.vmem %s7, %s326
      %p328 = pneg %p237
      %p329 = pneg %p234
      %p330 = scmp.lt.s32.totalorder %s24, 1
      %s331 = scalar_select %p330, %s24, 1
      %p332 = scmp.lt.s32.totalorder %s25, 1
      %s333 = scalar_select %p332, %s25, 1
      %s334 = smul.addr %s331, 2
      %s335 = sadd.s32 %s333, %s334
      %s336 = scalar_lea.vmem %s8, %s335
      %p337 = scmp.lt.s32.totalorder %s24, 1
      %s338 = scalar_select %p337, %s24, 1
      %p339 = scmp.lt.s32.totalorder %s25, 1
      %s340 = scalar_select %p339, %s25, 1
      %s341 = smul.addr %s340, 30
      %s342 = smul.addr %s338, 60
      %s343 = sadd.s32 %s341, %s342
      %s344 = smul.addr %s343, 8
      %s345 = scalar_lea.vmem %s0, %s344
      %s346 = smul.u32 8, %s25
      %p347 = scmp.lt.s32.totalorder %s24, 1
      %s348 = scalar_select %p347, %s24, 1
      %p349 = scmp.lt.s32.totalorder %s346, 15
      %s350 = scalar_select %p349, %s346, 15
      %s351 = smul.addr %s350, 2
      %s352 = smul.addr %s348, 32
      %s353 = sadd.s32 %s351, %s352
      %s354 = smul.addr %s353, 4
      %s355 = scalar_lea.vmem %s7, %s354
      %s356 = smul.u32 8, %s25
      %p357 = scmp.lt.s32.totalorder %s24, 1
      %s358 = scalar_select %p357, %s24, 1
      %p359 = scmp.lt.s32.totalorder %s25, 1
      %s360 = scalar_select %p359, %s25, 1
      %s361 = smul.addr %s358, 2
      %s362 = sadd.s32 %s360, %s361
      %s363 = scalar_lea.vmem %s8, %s362
      %v364 = vld [vmem:[%s345] sm:$0xff]
      %v365 = vld [vmem:[%s345 + $0x8] sm:$0xff]
      %v366 = vld [vmem:[%s345 + $0x10] sm:$0x3]
      %v367 = vld [vmem:[%s345 + $0x18] sm:$0xff]
      %v368 = vld [vmem:[%s345 + $0x20] sm:$0xff]
      %v369 = vld [vmem:[%s345 + $0x28] sm:$0x3]
      %v370 = vld [vmem:[%s345 + $0x30] sm:$0xff]
      %v371 = vld [vmem:[%s345 + $0x38] sm:$0xff]
      %v372 = vld [vmem:[%s345 + $0x40] sm:$0x3]
      %v373 = vld [vmem:[%s345 + $0x48] sm:$0xff]
      %v374 = vld [vmem:[%s345 + $0x50] sm:$0xff]
      %v375 = vld [vmem:[%s345 + $0x58] sm:$0x3]
      %v376 = vld [vmem:[%s345 + $0x60] sm:$0xff]
      %v377 = vld [vmem:[%s345 + $0x68] sm:$0xff]
      %v378 = vld [vmem:[%s345 + $0x70] sm:$0x3]
      %v379 = vld [vmem:[%s345 + $0x78] sm:$0xff]
      %v380 = vld [vmem:[%s345 + $0x80] sm:$0xff]
      %v381 = vld [vmem:[%s345 + $0x88] sm:$0x3]
      %v382 = vld [vmem:[%s345 + $0x90] sm:$0xff]
      %v383 = vld [vmem:[%s345 + $0x98] sm:$0xff]
      %v384 = vld [vmem:[%s345 + $0xa0] sm:$0x3]
      %v385 = vld [vmem:[%s345 + $0xa8] sm:$0xff]
      %v386 = vld [vmem:[%s345 + $0xb0] sm:$0xff]
      %v387 = vld [vmem:[%s345 + $0xb8] sm:$0x3]
      %v388 = vld [vmem:[%s345 + $0xc0] sm:$0xff]
      %v389 = vld [vmem:[%s345 + $0xc8] sm:$0xff]
      %v390 = vld [vmem:[%s345 + $0xd0] sm:$0x3]
      %v391 = vld [vmem:[%s345 + $0xd8] sm:$0xff]
      %v392 = vld [vmem:[%s345 + $0xe0] sm:$0xff]
      %v393 = vld [vmem:[%s345 + $0xe8] sm:$0x3]
      %v424 = vrot.slane %v364, 2
      %v425 = vrot.slane %v364, 4
      %v426 = vrot.slane %v364, 6
      %v427 = vrot.slane %v365, 2
      %v428 = vrot.slane %v365, 4
      %v429 = vrot.slane %v365, 6
      %v430 = vrot.slane %v367, 2
      %v431 = vrot.slane %v367, 4
      %v432 = vrot.slane %v367, 6
      %v433 = vrot.slane %v368, 2
      %v434 = vrot.slane %v368, 4
      %v435 = vrot.slane %v368, 6
      %v436 = vrot.slane %v370, 2
      %v437 = vrot.slane %v370, 4
      %v438 = vrot.slane %v370, 6
      %v439 = vrot.slane %v371, 2
      %v440 = vrot.slane %v371, 4
      %v441 = vrot.slane %v371, 6
      %v442 = vrot.slane %v373, 2
      %v443 = vrot.slane %v373, 4
      %v444 = vrot.slane %v373, 6
      %v445 = vrot.slane %v374, 2
      %v446 = vrot.slane %v374, 4
      %v447 = vrot.slane %v374, 6
      %v448 = vrot.slane %v376, 2
      %v449 = vrot.slane %v376, 4
      %v450 = vrot.slane %v376, 6
      %v451 = vrot.slane %v377, 2
      %v452 = vrot.slane %v377, 4
      %v453 = vrot.slane %v377, 6
      %v454 = vrot.slane %v379, 2
      %v455 = vrot.slane %v379, 4
      %v456 = vrot.slane %v379, 6
      %v457 = vrot.slane %v380, 2
      %v458 = vrot.slane %v380, 4
      %v459 = vrot.slane %v380, 6
      %v460 = vrot.slane %v382, 2
      %v461 = vrot.slane %v382, 4
      %v462 = vrot.slane %v382, 6
      %v463 = vrot.slane %v383, 2
      %v464 = vrot.slane %v383, 4
      %v465 = vrot.slane %v383, 6
      %v466 = vrot.slane %v385, 2
      %v467 = vrot.slane %v385, 4
      %v468 = vrot.slane %v385, 6
      %v469 = vrot.slane %v386, 2
      %v470 = vrot.slane %v386, 4
      %v471 = vrot.slane %v386, 6
      %v472 = vrot.slane %v388, 2
      %v473 = vrot.slane %v388, 4
      %v474 = vrot.slane %v388, 6
      %v475 = vrot.slane %v389, 2
      %v476 = vrot.slane %v389, 4
      %v477 = vrot.slane %v389, 6
      %v478 = vrot.slane %v391, 2
      %v479 = vrot.slane %v391, 4
      %v480 = vrot.slane %v391, 6
      %v481 = vrot.slane %v392, 2
      %v482 = vrot.slane %v392, 4
      %v483 = vrot.slane %v392, 6
      %v484 = vld [vmem:[%s1] sm:$0xff]
      %485 = vst [vmem:[#allocation1] ss:$4 sm:$0xff] %v364
      %s486 = scalar_lea.vmem [#allocation1], 1
      %487 = vst [vmem:[%s486] ss:$4 sm:$0xff] %v424
      %s488 = scalar_lea.vmem [#allocation1], 2
      %489 = vst [vmem:[%s488] ss:$4 sm:$0xff] %v425
      %s490 = scalar_lea.vmem [#allocation1], 3
      %491 = vst [vmem:[%s490] ss:$4 sm:$0xff] %v426
      %s492 = scalar_lea.vmem [#allocation1], 32
      %493 = vst [vmem:[%s492] ss:$4 sm:$0xff] %v365
      %s494 = scalar_lea.vmem [#allocation1], 33
      %495 = vst [vmem:[%s494] ss:$4 sm:$0xff] %v427
      %s496 = scalar_lea.vmem [#allocation1], 34
      %497 = vst [vmem:[%s496] ss:$4 sm:$0xff] %v428
      %s498 = scalar_lea.vmem [#allocation1], 35
      %499 = vst [vmem:[%s498] ss:$4 sm:$0xff] %v429
      %v500 = vld.sshfl [vmem:[#allocation1] sm:$0xff pattern:$0x73625140]
      %v501 = vld.sshfl [vmem:[#allocation1 + $0x20] sm:$0xff pattern:$0x73625140]
      %502 = vst [vmem:[#allocation1] ss:$4 sm:$0xff] %v366
      %503 = vst [vmem:[%s486] ss:$4 sm:$0xff] %v367
      %504 = vst [vmem:[%s488] ss:$4 sm:$0xff] %v430
      %505 = vst [vmem:[%s490] ss:$4 sm:$0xff] %v431
      %506 = vst [vmem:[%s492] ss:$4 sm:$0xff] %v432
      %507 = vst [vmem:[%s494] ss:$4 sm:$0xff] %v368
      %508 = vst [vmem:[%s496] ss:$4 sm:$0xff] %v433
      %509 = vst [vmem:[%s498] ss:$4 sm:$0xff] %v434
      %v510 = vld.sshfl [vmem:[#allocation1] sm:$0xff pattern:$0x73625140]
      %v511 = vld.sshfl [vmem:[#allocation1 + $0x20] sm:$0xff pattern:$0x73625140]
      %512 = vst [vmem:[#allocation1] ss:$4 sm:$0xff] %v435
      %513 = vst [vmem:[%s486] ss:$4 sm:$0xff] %v369
      %514 = vst [vmem:[%s488] ss:$4 sm:$0xff] %v370
      %515 = vst [vmem:[%s490] ss:$4 sm:$0xff] %v436
      %516 = vst [vmem:[%s492] ss:$4 sm:$0xff] %v437
      %517 = vst [vmem:[%s494] ss:$4 sm:$0xff] %v438
      %518 = vst [vmem:[%s496] ss:$4 sm:$0xff] %v371
      %519 = vst [vmem:[%s498] ss:$4 sm:$0xff] %v439
      %v520 = vld.sshfl [vmem:[#allocation1] sm:$0xff pattern:$0x73625140]
      %v521 = vld.sshfl [vmem:[#allocation1 + $0x20] sm:$0xff pattern:$0x73625140]
      %522 = vst [vmem:[#allocation1] ss:$4 sm:$0xff] %v440
      %523 = vst [vmem:[%s486] ss:$4 sm:$0xff] %v441
      %524 = vst [vmem:[%s488] ss:$4 sm:$0xff] %v372
      %525 = vst [vmem:[%s490] ss:$4 sm:$0xff] %v373
      %526 = vst [vmem:[%s492] ss:$4 sm:$0xff] %v442
      %527 = vst [vmem:[%s494] ss:$4 sm:$0xff] %v443
      %528 = vst [vmem:[%s496] ss:$4 sm:$0xff] %v444
      %529 = vst [vmem:[%s498] ss:$4 sm:$0xff] %v374
      %v530 = vld.sshfl [vmem:[#allocation1] sm:$0xff pattern:$0x73625140]
      %v531 = vld.sshfl [vmem:[#allocation1 + $0x20] sm:$0xff pattern:$0x73625140]
      %532 = vst [vmem:[#allocation1] ss:$4 sm:$0xff] %v445
      %533 = vst [vmem:[%s486] ss:$4 sm:$0xff] %v446
      %534 = vst [vmem:[%s488] ss:$4 sm:$0xff] %v447
      %535 = vst [vmem:[%s490] ss:$4 sm:$0xff] %v375
      %536 = vst [vmem:[%s492] ss:$4 sm:$0xff] %v376
      %537 = vst [vmem:[%s494] ss:$4 sm:$0xff] %v448
      %538 = vst [vmem:[%s496] ss:$4 sm:$0xff] %v449
      %539 = vst [vmem:[%s498] ss:$4 sm:$0xff] %v450
      %v540 = vld.sshfl [vmem:[#allocation1] sm:$0xff pattern:$0x73625140]
      %v541 = vld.sshfl [vmem:[#allocation1 + $0x20] sm:$0xff pattern:$0x73625140]
      %542 = vst [vmem:[#allocation1] ss:$4 sm:$0xff] %v377
      %543 = vst [vmem:[%s486] ss:$4 sm:$0xff] %v451
      %544 = vst [vmem:[%s488] ss:$4 sm:$0xff] %v452
      %545 = vst [vmem:[%s490] ss:$4 sm:$0xff] %v453
      %546 = vst [vmem:[%s492] ss:$4 sm:$0xff] %v378
      %547 = vst [vmem:[%s494] ss:$4 sm:$0xff] %v379
      %548 = vst [vmem:[%s496] ss:$4 sm:$0xff] %v454
      %549 = vst [vmem:[%s498] ss:$4 sm:$0xff] %v455
      %v550 = vld.sshfl [vmem:[#allocation1] sm:$0xff pattern:$0x73625140]
      %v551 = vld.sshfl [vmem:[#allocation1 + $0x20] sm:$0xff pattern:$0x73625140]
      %552 = vst [vmem:[#allocation1] ss:$4 sm:$0xff] %v456
      %553 = vst [vmem:[%s486] ss:$4 sm:$0xff] %v380
      %554 = vst [vmem:[%s488] ss:$4 sm:$0xff] %v457
      %555 = vst [vmem:[%s490] ss:$4 sm:$0xff] %v458
      %556 = vst [vmem:[%s492] ss:$4 sm:$0xff] %v459
      %557 = vst [vmem:[%s494] ss:$4 sm:$0xff] %v381
      %558 = vst [vmem:[%s496] ss:$4 sm:$0xff] %v382
      %559 = vst [vmem:[%s498] ss:$4 sm:$0xff] %v460
      %v560 = vld.sshfl [vmem:[#allocation1] sm:$0xff pattern:$0x73625140]
      %v561 = vld.sshfl [vmem:[#allocation1 + $0x20] sm:$0xff pattern:$0x73625140]
      %562 = vst [vmem:[#allocation1] ss:$4 sm:$0xff] %v461
      %563 = vst [vmem:[%s486] ss:$4 sm:$0xff] %v462
      %564 = vst [vmem:[%s488] ss:$4 sm:$0xff] %v383
      %565 = vst [vmem:[%s490] ss:$4 sm:$0xff] %v463
      %566 = vst [vmem:[%s492] ss:$4 sm:$0xff] %v464
      %567 = vst [vmem:[%s494] ss:$4 sm:$0xff] %v465
      %568 = vst [vmem:[%s496] ss:$4 sm:$0xff] %v384
      %569 = vst [vmem:[%s498] ss:$4 sm:$0xff] %v385
      %v570 = vld.sshfl [vmem:[#allocation1] sm:$0xff pattern:$0x73625140]
      %v571 = vld.sshfl [vmem:[#allocation1 + $0x20] sm:$0xff pattern:$0x73625140]
      %572 = vst [vmem:[#allocation1] ss:$4 sm:$0xff] %v466
      %573 = vst [vmem:[%s486] ss:$4 sm:$0xff] %v467
      %574 = vst [vmem:[%s488] ss:$4 sm:$0xff] %v468
      %575 = vst [vmem:[%s490] ss:$4 sm:$0xff] %v386
      %576 = vst [vmem:[%s492] ss:$4 sm:$0xff] %v469
      %577 = vst [vmem:[%s494] ss:$4 sm:$0xff] %v470
      %578 = vst [vmem:[%s496] ss:$4 sm:$0xff] %v471
      %579 = vst [vmem:[%s498] ss:$4 sm:$0xff] %v387
      %v580 = vld.sshfl [vmem:[#allocation1] sm:$0xff pattern:$0x73625140]
      %v581 = vld.sshfl [vmem:[#allocation1 + $0x20] sm:$0xff pattern:$0x73625140]
      %582 = vst [vmem:[#allocation1] ss:$4 sm:$0xff] %v388
      %583 = vst [vmem:[%s486] ss:$4 sm:$0xff] %v472
      %584 = vst [vmem:[%s488] ss:$4 sm:$0xff] %v473
      %585 = vst [vmem:[%s490] ss:$4 sm:$0xff] %v474
      %586 = vst [vmem:[%s492] ss:$4 sm:$0xff] %v389
      %587 = vst [vmem:[%s494] ss:$4 sm:$0xff] %v475
      %588 = vst [vmem:[%s496] ss:$4 sm:$0xff] %v476
      %589 = vst [vmem:[%s498] ss:$4 sm:$0xff] %v477
      %v590 = vld.sshfl [vmem:[#allocation1] sm:$0xff pattern:$0x73625140]
      %v591 = vld.sshfl [vmem:[#allocation1 + $0x20] sm:$0xff pattern:$0x73625140]
      %592 = vst [vmem:[#allocation1] ss:$4 sm:$0xff] %v390
      %593 = vst [vmem:[%s486] ss:$4 sm:$0xff] %v391
      %594 = vst [vmem:[%s488] ss:$4 sm:$0xff] %v478
      %595 = vst [vmem:[%s490] ss:$4 sm:$0xff] %v479
      %596 = vst [vmem:[%s492] ss:$4 sm:$0xff] %v480
      %597 = vst [vmem:[%s494] ss:$4 sm:$0xff] %v392
      %598 = vst [vmem:[%s496] ss:$4 sm:$0xff] %v481
      %599 = vst [vmem:[%s498] ss:$4 sm:$0xff] %v482
      %v600 = vld.sshfl [vmem:[#allocation1] sm:$0xff pattern:$0x73625140]
      %v601 = vld.sshfl [vmem:[#allocation1 + $0x20] sm:$0xff pattern:$0x73625140]
      %602 = vst [vmem:[#allocation1] ss:$4 sm:$0xff] %v483
      %603 = vst [vmem:[%s486] ss:$4 sm:$0xff] %v393
      %v604 = vld.sshfl [vmem:[#allocation1] sm:$0xff pattern:$0x73625140]
      %vm605 = vcmask 64512
      %v606 = vsel %vm605, %v500, 0
      %v608 = vsel %vm605, %v501, 0
      %v610 = vsel %vm605, %v510, 0
      %v612 = vsel %vm605, %v511, 0
      %v614 = vsel %vm605, %v520, 0
      %v616 = vsel %vm605, %v521, 0
      %v618 = vsel %vm605, %v530, 0
      %v620 = vsel %vm605, %v531, 0
      %v622 = vsel %vm605, %v540, 0
      %v624 = vsel %vm605, %v541, 0
      %v626 = vsel %vm605, %v550, 0
      %v628 = vsel %vm605, %v551, 0
      %v630 = vsel %vm605, %v560, 0
      %v632 = vsel %vm605, %v561, 0
      %v634 = vsel %vm605, %v570, 0
      %v636 = vsel %vm605, %v571, 0
      %v638 = vsel %vm605, %v580, 0
      %v640 = vsel %vm605, %v581, 0
      %v642 = vsel %vm605, %v590, 0
      %v644 = vsel %vm605, %v591, 0
      %v646 = vsel %vm605, %v600, 0
      %v648 = vsel %vm605, %v601, 0
      %v650 = vsel %vm605, %v604, 0
      %652 = vmatpush.msra.mxu0 0.0
      %653 = vmatpush.msra.mxu0 0.0
      %654 = vmatpush.msra.mxu0 0.0
      %655 = vmatpush.msra.mxu0 0.0
      %656 = vmatpush.msra.mxu0 0.0
      %657 = vmatpush.msra.mxu0 0.0
      %658 = vmatpush.msra.mxu0 0.0
      %659 = vmatpush.msra.mxu0 0.0
      %660 = vmatpush.msra.mxu0 0.0
      %661 = vmatpush.msra.mxu0 0.0
      %662 = vmatpush.msra.mxu0 0.0
      %663 = vmatpush.msra.mxu0 0.0
      %664 = vmatpush.msra.mxu0 0.0
      %665 = vmatpush.msra.mxu0 0.0
      %666 = vmatpush.msra.mxu0 0.0
      %667 = vmatpush.msra.mxu0 %v484
      %668 = vmatmul.f32.gmra.mxu0 %v606
      %v669 = vpop.f32.mrf.mxu0
      %v670 = vadd.f32 0.0, %v669
      %671 = vmatmul.f32.gmra.mxu0 %v608
      %v672 = vpop.f32.mrf.mxu0
      %v673 = vadd.f32 0.0, %v672
      %674 = vmatmul.f32.gmra.mxu0 %v610
      %v675 = vpop.f32.mrf.mxu0
      %v676 = vadd.f32 0.0, %v675
      %677 = vmatmul.f32.gmra.mxu0 %v612
      %v678 = vpop.f32.mrf.mxu0
      %v679 = vadd.f32 0.0, %v678
      %680 = vmatmul.f32.gmra.mxu0 %v614
      %v681 = vpop.f32.mrf.mxu0
      %v682 = vadd.f32 0.0, %v681
      %683 = vmatmul.f32.gmra.mxu0 %v616
      %v684 = vpop.f32.mrf.mxu0
      %v685 = vadd.f32 0.0, %v684
      %686 = vmatmul.f32.gmra.mxu0 %v618
      %v687 = vpop.f32.mrf.mxu0
      %v688 = vadd.f32 0.0, %v687
      %689 = vmatmul.f32.gmra.mxu0 %v620
      %v690 = vpop.f32.mrf.mxu0
      %v691 = vadd.f32 0.0, %v690
      %692 = vmatmul.f32.gmra.mxu0 %v622
      %v693 = vpop.f32.mrf.mxu0
      %v694 = vadd.f32 0.0, %v693
      %695 = vmatmul.f32.gmra.mxu0 %v624
      %v696 = vpop.f32.mrf.mxu0
      %v697 = vadd.f32 0.0, %v696
      %698 = vmatmul.f32.gmra.mxu0 %v626
      %v699 = vpop.f32.mrf.mxu0
      %v700 = vadd.f32 0.0, %v699
      %701 = vmatmul.f32.gmra.mxu0 %v628
      %v702 = vpop.f32.mrf.mxu0
      %v703 = vadd.f32 0.0, %v702
      %704 = vmatmul.f32.gmra.mxu0 %v630
      %v705 = vpop.f32.mrf.mxu0
      %v706 = vadd.f32 0.0, %v705
      %707 = vmatmul.f32.gmra.mxu0 %v632
      %v708 = vpop.f32.mrf.mxu0
      %v709 = vadd.f32 0.0, %v708
      %710 = vmatmul.f32.gmra.mxu0 %v634
      %v711 = vpop.f32.mrf.mxu0
      %v712 = vadd.f32 0.0, %v711
      %713 = vmatmul.f32.gmra.mxu0 %v636
      %v714 = vpop.f32.mrf.mxu0
      %v715 = vadd.f32 0.0, %v714
      %716 = vmatmul.f32.gmra.mxu0 %v638
      %v717 = vpop.f32.mrf.mxu0
      %v718 = vadd.f32 0.0, %v717
      %719 = vmatmul.f32.gmra.mxu0 %v640
      %v720 = vpop.f32.mrf.mxu0
      %v721 = vadd.f32 0.0, %v720
      %722 = vmatmul.f32.gmra.mxu0 %v642
      %v723 = vpop.f32.mrf.mxu0
      %v724 = vadd.f32 0.0, %v723
      %725 = vmatmul.f32.gmra.mxu0 %v644
      %v726 = vpop.f32.mrf.mxu0
      %v727 = vadd.f32 0.0, %v726
      %728 = vmatmul.f32.gmra.mxu0 %v646
      %v729 = vpop.f32.mrf.mxu0
      %v730 = vadd.f32 0.0, %v729
      %731 = vmatmul.f32.gmra.mxu0 %v648
      %v732 = vpop.f32.mrf.mxu0
      %v733 = vadd.f32 0.0, %v732
      %734 = vmatmul.f32.gmra.mxu0 %v650
      %v735 = vpop.f32.mrf.mxu0
      %v736 = vadd.f32 0.0, %v735
      %737 = vdwg.mxu0
      %v738 = vld [vmem:[%s2] sm:$0x1]
      %v740 = vperm.slane %v738, 0
      %v742 = vmul.f32 %v670, %v740
      %v743 = vmul.f32 %v673, %v740
      %v744 = vmul.f32 %v676, %v740
      %v745 = vmul.f32 %v679, %v740
      %v746 = vmul.f32 %v682, %v740
      %v747 = vmul.f32 %v685, %v740
      %v748 = vmul.f32 %v688, %v740
      %v749 = vmul.f32 %v691, %v740
      %v750 = vmul.f32 %v694, %v740
      %v751 = vmul.f32 %v697, %v740
      %v752 = vmul.f32 %v700, %v740
      %v753 = vmul.f32 %v703, %v740
      %v754 = vmul.f32 %v706, %v740
      %v755 = vmul.f32 %v709, %v740
      %v756 = vmul.f32 %v712, %v740
      %v757 = vmul.f32 %v715, %v740
      %v758 = vmul.f32 %v718, %v740
      %v759 = vmul.f32 %v721, %v740
      %v760 = vmul.f32 %v724, %v740
      %v761 = vmul.f32 %v727, %v740
      %v762 = vmul.f32 %v730, %v740
      %v763 = vmul.f32 %v733, %v740
      %v764 = vmul.f32 %v736, %v740
      %v765 = vld [vmem:[%s3] sm:$0x1]
      %v767 = vperm.slane %v765, 0
      %v769 = vadd.f32 %v742, %v767
      %v770 = vadd.f32 %v743, %v767
      %v771 = vadd.f32 %v744, %v767
      %v772 = vadd.f32 %v745, %v767
      %v773 = vadd.f32 %v746, %v767
      %v774 = vadd.f32 %v747, %v767
      %v775 = vadd.f32 %v748, %v767
      %v776 = vadd.f32 %v749, %v767
      %v777 = vadd.f32 %v750, %v767
      %v778 = vadd.f32 %v751, %v767
      %v779 = vadd.f32 %v752, %v767
      %v780 = vadd.f32 %v753, %v767
      %v781 = vadd.f32 %v754, %v767
      %v782 = vadd.f32 %v755, %v767
      %v783 = vadd.f32 %v756, %v767
      %v784 = vadd.f32 %v757, %v767
      %v785 = vadd.f32 %v758, %v767
      %v786 = vadd.f32 %v759, %v767
      %v787 = vadd.f32 %v760, %v767
      %v788 = vadd.f32 %v761, %v767
      %v789 = vadd.f32 %v762, %v767
      %v790 = vadd.f32 %v763, %v767
      %v791 = vadd.f32 %v764, %v767
      %v792 = vxor.u32 %v769, 2147483648
      %v793 = vxor.u32 %v770, 2147483648
      %v794 = vxor.u32 %v771, 2147483648
      %v795 = vxor.u32 %v772, 2147483648
      %v796 = vxor.u32 %v773, 2147483648
      %v797 = vxor.u32 %v774, 2147483648
      %v798 = vxor.u32 %v775, 2147483648
      %v799 = vxor.u32 %v776, 2147483648
      %v800 = vxor.u32 %v777, 2147483648
      %v801 = vxor.u32 %v778, 2147483648
      %v802 = vxor.u32 %v779, 2147483648
      %v803 = vxor.u32 %v780, 2147483648
      %v804 = vxor.u32 %v781, 2147483648
      %v805 = vxor.u32 %v782, 2147483648
      %v806 = vxor.u32 %v783, 2147483648
      %v807 = vxor.u32 %v784, 2147483648
      %v808 = vxor.u32 %v785, 2147483648
      %v809 = vxor.u32 %v786, 2147483648
      %v810 = vxor.u32 %v787, 2147483648
      %v811 = vxor.u32 %v788, 2147483648
      %v812 = vxor.u32 %v789, 2147483648
      %v813 = vxor.u32 %v790, 2147483648
      %v814 = vxor.u32 %v791, 2147483648
      %v815 = vmul.f32 %v792, 1.442695
      %v816 = vpow.pop %v815
      %v817 = vmul.f32 %v793, 1.442695
      %v818 = vpow.pop %v817
      %v819 = vmul.f32 %v794, 1.442695
      %v820 = vpow.pop %v819
      %v821 = vmul.f32 %v795, 1.442695
      %v822 = vpow.pop %v821
      %v823 = vmul.f32 %v796, 1.442695
      %v824 = vpow.pop %v823
      %v825 = vmul.f32 %v797, 1.442695
      %v826 = vpow.pop %v825
      %v827 = vmul.f32 %v798, 1.442695
      %v828 = vpow.pop %v827
      %v829 = vmul.f32 %v799, 1.442695
      %v830 = vpow.pop %v829
      %v831 = vmul.f32 %v800, 1.442695
      %v832 = vpow.pop %v831
      %v833 = vmul.f32 %v801, 1.442695
      %v834 = vpow.pop %v833
      %v835 = vmul.f32 %v802, 1.442695
      %v836 = vpow.pop %v835
      %v837 = vmul.f32 %v803, 1.442695
      %v838 = vpow.pop %v837
      %v839 = vmul.f32 %v804, 1.442695
      %v840 = vpow.pop %v839
      %v841 = vmul.f32 %v805, 1.442695
      %v842 = vpow.pop %v841
      %v843 = vmul.f32 %v806, 1.442695
      %v844 = vpow.pop %v843
      %v845 = vmul.f32 %v807, 1.442695
      %v846 = vpow.pop %v845
      %v847 = vmul.f32 %v808, 1.442695
      %v848 = vpow.pop %v847
      %v849 = vmul.f32 %v809, 1.442695
      %v850 = vpow.pop %v849
      %v851 = vmul.f32 %v810, 1.442695
      %v852 = vpow.pop %v851
      %v853 = vmul.f32 %v811, 1.442695
      %v854 = vpow.pop %v853
      %v855 = vmul.f32 %v812, 1.442695
      %v856 = vpow.pop %v855
      %v857 = vmul.f32 %v813, 1.442695
      %v858 = vpow.pop %v857
      %v859 = vmul.f32 %v814, 1.442695
      %v860 = vpow.pop %v859
      %v861 = vadd.f32 %v816, 1.0
      %v862 = vadd.f32 %v818, 1.0
      %v863 = vadd.f32 %v820, 1.0
      %v864 = vadd.f32 %v822, 1.0
      %v865 = vadd.f32 %v824, 1.0
      %v866 = vadd.f32 %v826, 1.0
      %v867 = vadd.f32 %v828, 1.0
      %v868 = vadd.f32 %v830, 1.0
      %v869 = vadd.f32 %v832, 1.0
      %v870 = vadd.f32 %v834, 1.0
      %v871 = vadd.f32 %v836, 1.0
      %v872 = vadd.f32 %v838, 1.0
      %v873 = vadd.f32 %v840, 1.0
      %v874 = vadd.f32 %v842, 1.0
      %v875 = vadd.f32 %v844, 1.0
      %v876 = vadd.f32 %v846, 1.0
      %v877 = vadd.f32 %v848, 1.0
      %v878 = vadd.f32 %v850, 1.0
      %v879 = vadd.f32 %v852, 1.0
      %v880 = vadd.f32 %v854, 1.0
      %v881 = vadd.f32 %v856, 1.0
      %v882 = vadd.f32 %v858, 1.0
      %v883 = vadd.f32 %v860, 1.0
      %v884 = vrcp.pop %v861
      %v885 = vmul.f32 %v861, %v884
      %v886 = vsub.f32 1.0, %v885
      %v887 = vmul.f32 %v884, %v886
      %v888 = vadd.f32 %v884, %v887
      %vm889 = vweird.f32 %v861
      %vm890 = vweird.f32 %v884
      %vm891 = vmor %vm889, %vm890
      %v892 = vsel %vm891, %v884, %v888
      %v893 = vand.u32 2147483647, %v861
      %vm894 = vcmp.eq.f32.partialorder %v893, 8.507059e+37
      %v895 = vand.u32 %v861, 2147483648
      %v896 = vor.u32 1.1754944e-38, %v895
      %v897 = vsel %vm894, %v896, %v892
      %v898 = vmul.f32 1.0, %v897
      %v899 = vrcp.pop %v862
      %v900 = vmul.f32 %v862, %v899
      %v901 = vsub.f32 1.0, %v900
      %v902 = vmul.f32 %v899, %v901
      %v903 = vadd.f32 %v899, %v902
      %vm904 = vweird.f32 %v862
      %vm905 = vweird.f32 %v899
      %vm906 = vmor %vm904, %vm905
      %v907 = vsel %vm906, %v899, %v903
      %v908 = vand.u32 2147483647, %v862
      %vm909 = vcmp.eq.f32.partialorder %v908, 8.507059e+37
      %v910 = vand.u32 %v862, 2147483648
      %v911 = vor.u32 1.1754944e-38, %v910
      %v912 = vsel %vm909, %v911, %v907
      %v913 = vmul.f32 1.0, %v912
      %v914 = vrcp.pop %v863
      %v915 = vmul.f32 %v863, %v914
      %v916 = vsub.f32 1.0, %v915
      %v917 = vmul.f32 %v914, %v916
      %v918 = vadd.f32 %v914, %v917
      %vm919 = vweird.f32 %v863
      %vm920 = vweird.f32 %v914
      %vm921 = vmor %vm919, %vm920
      %v922 = vsel %vm921, %v914, %v918
      %v923 = vand.u32 2147483647, %v863
      %vm924 = vcmp.eq.f32.partialorder %v923, 8.507059e+37
      %v925 = vand.u32 %v863, 2147483648
      %v926 = vor.u32 1.1754944e-38, %v925
      %v927 = vsel %vm924, %v926, %v922
      %v928 = vmul.f32 1.0, %v927
      %v929 = vrcp.pop %v864
      %v930 = vmul.f32 %v864, %v929
      %v931 = vsub.f32 1.0, %v930
      %v932 = vmul.f32 %v929, %v931
      %v933 = vadd.f32 %v929, %v932
      %vm934 = vweird.f32 %v864
      %vm935 = vweird.f32 %v929
      %vm936 = vmor %vm934, %vm935
      %v937 = vsel %vm936, %v929, %v933
      %v938 = vand.u32 2147483647, %v864
      %vm939 = vcmp.eq.f32.partialorder %v938, 8.507059e+37
      %v940 = vand.u32 %v864, 2147483648
      %v941 = vor.u32 1.1754944e-38, %v940
      %v942 = vsel %vm939, %v941, %v937
      %v943 = vmul.f32 1.0, %v942
      %v944 = vrcp.pop %v865
      %v945 = vmul.f32 %v865, %v944
      %v946 = vsub.f32 1.0, %v945
      %v947 = vmul.f32 %v944, %v946
      %v948 = vadd.f32 %v944, %v947
      %vm949 = vweird.f32 %v865
      %vm950 = vweird.f32 %v944
      %vm951 = vmor %vm949, %vm950
      %v952 = vsel %vm951, %v944, %v948
      %v953 = vand.u32 2147483647, %v865
      %vm954 = vcmp.eq.f32.partialorder %v953, 8.507059e+37
      %v955 = vand.u32 %v865, 2147483648
      %v956 = vor.u32 1.1754944e-38, %v955
      %v957 = vsel %vm954, %v956, %v952
      %v958 = vmul.f32 1.0, %v957
      %v959 = vrcp.pop %v866
      %v960 = vmul.f32 %v866, %v959
      %v961 = vsub.f32 1.0, %v960
      %v962 = vmul.f32 %v959, %v961
      %v963 = vadd.f32 %v959, %v962
      %vm964 = vweird.f32 %v866
      %vm965 = vweird.f32 %v959
      %vm966 = vmor %vm964, %vm965
      %v967 = vsel %vm966, %v959, %v963
      %v968 = vand.u32 2147483647, %v866
      %vm969 = vcmp.eq.f32.partialorder %v968, 8.507059e+37
      %v970 = vand.u32 %v866, 2147483648
      %v971 = vor.u32 1.1754944e-38, %v970
      %v972 = vsel %vm969, %v971, %v967
      %v973 = vmul.f32 1.0, %v972
      %v974 = vrcp.pop %v867
      %v975 = vmul.f32 %v867, %v974
      %v976 = vsub.f32 1.0, %v975
      %v977 = vmul.f32 %v974, %v976
      %v978 = vadd.f32 %v974, %v977
      %vm979 = vweird.f32 %v867
      %vm980 = vweird.f32 %v974
      %vm981 = vmor %vm979, %vm980
      %v982 = vsel %vm981, %v974, %v978
      %v983 = vand.u32 2147483647, %v867
      %vm984 = vcmp.eq.f32.partialorder %v983, 8.507059e+37
      %v985 = vand.u32 %v867, 2147483648
      %v986 = vor.u32 1.1754944e-38, %v985
      %v987 = vsel %vm984, %v986, %v982
      %v988 = vmul.f32 1.0, %v987
      %v989 = vrcp.pop %v868
      %v990 = vmul.f32 %v868, %v989
      %v991 = vsub.f32 1.0, %v990
      %v992 = vmul.f32 %v989, %v991
      %v993 = vadd.f32 %v989, %v992
      %vm994 = vweird.f32 %v868
      %vm995 = vweird.f32 %v989
      %vm996 = vmor %vm994, %vm995
      %v997 = vsel %vm996, %v989, %v993
      %v998 = vand.u32 2147483647, %v868
      %vm999 = vcmp.eq.f32.partialorder %v998, 8.507059e+37
      %v1000 = vand.u32 %v868, 2147483648
      %v1001 = vor.u32 1.1754944e-38, %v1000
      %v1002 = vsel %vm999, %v1001, %v997
      %v1003 = vmul.f32 1.0, %v1002
      %v1004 = vrcp.pop %v869
      %v1005 = vmul.f32 %v869, %v1004
      %v1006 = vsub.f32 1.0, %v1005
      %v1007 = vmul.f32 %v1004, %v1006
      %v1008 = vadd.f32 %v1004, %v1007
      %vm1009 = vweird.f32 %v869
      %vm1010 = vweird.f32 %v1004
      %vm1011 = vmor %vm1009, %vm1010
      %v1012 = vsel %vm1011, %v1004, %v1008
      %v1013 = vand.u32 2147483647, %v869
      %vm1014 = vcmp.eq.f32.partialorder %v1013, 8.507059e+37
      %v1015 = vand.u32 %v869, 2147483648
      %v1016 = vor.u32 1.1754944e-38, %v1015
      %v1017 = vsel %vm1014, %v1016, %v1012
      %v1018 = vmul.f32 1.0, %v1017
      %v1019 = vrcp.pop %v870
      %v1020 = vmul.f32 %v870, %v1019
      %v1021 = vsub.f32 1.0, %v1020
      %v1022 = vmul.f32 %v1019, %v1021
      %v1023 = vadd.f32 %v1019, %v1022
      %vm1024 = vweird.f32 %v870
      %vm1025 = vweird.f32 %v1019
      %vm1026 = vmor %vm1024, %vm1025
      %v1027 = vsel %vm1026, %v1019, %v1023
      %v1028 = vand.u32 2147483647, %v870
      %vm1029 = vcmp.eq.f32.partialorder %v1028, 8.507059e+37
      %v1030 = vand.u32 %v870, 2147483648
      %v1031 = vor.u32 1.1754944e-38, %v1030
      %v1032 = vsel %vm1029, %v1031, %v1027
      %v1033 = vmul.f32 1.0, %v1032
      %v1034 = vrcp.pop %v871
      %v1035 = vmul.f32 %v871, %v1034
      %v1036 = vsub.f32 1.0, %v1035
      %v1037 = vmul.f32 %v1034, %v1036
      %v1038 = vadd.f32 %v1034, %v1037
      %vm1039 = vweird.f32 %v871
      %vm1040 = vweird.f32 %v1034
      %vm1041 = vmor %vm1039, %vm1040
      %v1042 = vsel %vm1041, %v1034, %v1038
      %v1043 = vand.u32 2147483647, %v871
      %vm1044 = vcmp.eq.f32.partialorder %v1043, 8.507059e+37
      %v1045 = vand.u32 %v871, 2147483648
      %v1046 = vor.u32 1.1754944e-38, %v1045
      %v1047 = vsel %vm1044, %v1046, %v1042
      %v1048 = vmul.f32 1.0, %v1047
      %v1049 = vrcp.pop %v872
      %v1050 = vmul.f32 %v872, %v1049
      %v1051 = vsub.f32 1.0, %v1050
      %v1052 = vmul.f32 %v1049, %v1051
      %v1053 = vadd.f32 %v1049, %v1052
      %vm1054 = vweird.f32 %v872
      %vm1055 = vweird.f32 %v1049
      %vm1056 = vmor %vm1054, %vm1055
      %v1057 = vsel %vm1056, %v1049, %v1053
      %v1058 = vand.u32 2147483647, %v872
      %vm1059 = vcmp.eq.f32.partialorder %v1058, 8.507059e+37
      %v1060 = vand.u32 %v872, 2147483648
      %v1061 = vor.u32 1.1754944e-38, %v1060
      %v1062 = vsel %vm1059, %v1061, %v1057
      %v1063 = vmul.f32 1.0, %v1062
      %v1064 = vrcp.pop %v873
      %v1065 = vmul.f32 %v873, %v1064
      %v1066 = vsub.f32 1.0, %v1065
      %v1067 = vmul.f32 %v1064, %v1066
      %v1068 = vadd.f32 %v1064, %v1067
      %vm1069 = vweird.f32 %v873
      %vm1070 = vweird.f32 %v1064
      %vm1071 = vmor %vm1069, %vm1070
      %v1072 = vsel %vm1071, %v1064, %v1068
      %v1073 = vand.u32 2147483647, %v873
      %vm1074 = vcmp.eq.f32.partialorder %v1073, 8.507059e+37
      %v1075 = vand.u32 %v873, 2147483648
      %v1076 = vor.u32 1.1754944e-38, %v1075
      %v1077 = vsel %vm1074, %v1076, %v1072
      %v1078 = vmul.f32 1.0, %v1077
      %v1079 = vrcp.pop %v874
      %v1080 = vmul.f32 %v874, %v1079
      %v1081 = vsub.f32 1.0, %v1080
      %v1082 = vmul.f32 %v1079, %v1081
      %v1083 = vadd.f32 %v1079, %v1082
      %vm1084 = vweird.f32 %v874
      %vm1085 = vweird.f32 %v1079
      %vm1086 = vmor %vm1084, %vm1085
      %v1087 = vsel %vm1086, %v1079, %v1083
      %v1088 = vand.u32 2147483647, %v874
      %vm1089 = vcmp.eq.f32.partialorder %v1088, 8.507059e+37
      %v1090 = vand.u32 %v874, 2147483648
      %v1091 = vor.u32 1.1754944e-38, %v1090
      %v1092 = vsel %vm1089, %v1091, %v1087
      %v1093 = vmul.f32 1.0, %v1092
      %v1094 = vrcp.pop %v875
      %v1095 = vmul.f32 %v875, %v1094
      %v1096 = vsub.f32 1.0, %v1095
      %v1097 = vmul.f32 %v1094, %v1096
      %v1098 = vadd.f32 %v1094, %v1097
      %vm1099 = vweird.f32 %v875
      %vm1100 = vweird.f32 %v1094
      %vm1101 = vmor %vm1099, %vm1100
      %v1102 = vsel %vm1101, %v1094, %v1098
      %v1103 = vand.u32 2147483647, %v875
      %vm1104 = vcmp.eq.f32.partialorder %v1103, 8.507059e+37
      %v1105 = vand.u32 %v875, 2147483648
      %v1106 = vor.u32 1.1754944e-38, %v1105
      %v1107 = vsel %vm1104, %v1106, %v1102
      %v1108 = vmul.f32 1.0, %v1107
      %v1109 = vrcp.pop %v876
      %v1110 = vmul.f32 %v876, %v1109
      %v1111 = vsub.f32 1.0, %v1110
      %v1112 = vmul.f32 %v1109, %v1111
      %v1113 = vadd.f32 %v1109, %v1112
      %vm1114 = vweird.f32 %v876
      %vm1115 = vweird.f32 %v1109
      %vm1116 = vmor %vm1114, %vm1115
      %v1117 = vsel %vm1116, %v1109, %v1113
      %v1118 = vand.u32 2147483647, %v876
      %vm1119 = vcmp.eq.f32.partialorder %v1118, 8.507059e+37
      %v1120 = vand.u32 %v876, 2147483648
      %v1121 = vor.u32 1.1754944e-38, %v1120
      %v1122 = vsel %vm1119, %v1121, %v1117
      %v1123 = vmul.f32 1.0, %v1122
      %v1124 = vrcp.pop %v877
      %v1125 = vmul.f32 %v877, %v1124
      %v1126 = vsub.f32 1.0, %v1125
      %v1127 = vmul.f32 %v1124, %v1126
      %v1128 = vadd.f32 %v1124, %v1127
      %vm1129 = vweird.f32 %v877
      %vm1130 = vweird.f32 %v1124
      %vm1131 = vmor %vm1129, %vm1130
      %v1132 = vsel %vm1131, %v1124, %v1128
      %v1133 = vand.u32 2147483647, %v877
      %vm1134 = vcmp.eq.f32.partialorder %v1133, 8.507059e+37
      %v1135 = vand.u32 %v877, 2147483648
      %v1136 = vor.u32 1.1754944e-38, %v1135
      %v1137 = vsel %vm1134, %v1136, %v1132
      %v1138 = vmul.f32 1.0, %v1137
      %v1139 = vrcp.pop %v878
      %v1140 = vmul.f32 %v878, %v1139
      %v1141 = vsub.f32 1.0, %v1140
      %v1142 = vmul.f32 %v1139, %v1141
      %v1143 = vadd.f32 %v1139, %v1142
      %vm1144 = vweird.f32 %v878
      %vm1145 = vweird.f32 %v1139
      %vm1146 = vmor %vm1144, %vm1145
      %v1147 = vsel %vm1146, %v1139, %v1143
      %v1148 = vand.u32 2147483647, %v878
      %vm1149 = vcmp.eq.f32.partialorder %v1148, 8.507059e+37
      %v1150 = vand.u32 %v878, 2147483648
      %v1151 = vor.u32 1.1754944e-38, %v1150
      %v1152 = vsel %vm1149, %v1151, %v1147
      %v1153 = vmul.f32 1.0, %v1152
      %v1154 = vrcp.pop %v879
      %v1155 = vmul.f32 %v879, %v1154
      %v1156 = vsub.f32 1.0, %v1155
      %v1157 = vmul.f32 %v1154, %v1156
      %v1158 = vadd.f32 %v1154, %v1157
      %vm1159 = vweird.f32 %v879
      %vm1160 = vweird.f32 %v1154
      %vm1161 = vmor %vm1159, %vm1160
      %v1162 = vsel %vm1161, %v1154, %v1158
      %v1163 = vand.u32 2147483647, %v879
      %vm1164 = vcmp.eq.f32.partialorder %v1163, 8.507059e+37
      %v1165 = vand.u32 %v879, 2147483648
      %v1166 = vor.u32 1.1754944e-38, %v1165
      %v1167 = vsel %vm1164, %v1166, %v1162
      %v1168 = vmul.f32 1.0, %v1167
      %v1169 = vrcp.pop %v880
      %v1170 = vmul.f32 %v880, %v1169
      %v1171 = vsub.f32 1.0, %v1170
      %v1172 = vmul.f32 %v1169, %v1171
      %v1173 = vadd.f32 %v1169, %v1172
      %vm1174 = vweird.f32 %v880
      %vm1175 = vweird.f32 %v1169
      %vm1176 = vmor %vm1174, %vm1175
      %v1177 = vsel %vm1176, %v1169, %v1173
      %v1178 = vand.u32 2147483647, %v880
      %vm1179 = vcmp.eq.f32.partialorder %v1178, 8.507059e+37
      %v1180 = vand.u32 %v880, 2147483648
      %v1181 = vor.u32 1.1754944e-38, %v1180
      %v1182 = vsel %vm1179, %v1181, %v1177
      %v1183 = vmul.f32 1.0, %v1182
      %v1184 = vrcp.pop %v881
      %v1185 = vmul.f32 %v881, %v1184
      %v1186 = vsub.f32 1.0, %v1185
      %v1187 = vmul.f32 %v1184, %v1186
      %v1188 = vadd.f32 %v1184, %v1187
      %vm1189 = vweird.f32 %v881
      %vm1190 = vweird.f32 %v1184
      %vm1191 = vmor %vm1189, %vm1190
      %v1192 = vsel %vm1191, %v1184, %v1188
      %v1193 = vand.u32 2147483647, %v881
      %vm1194 = vcmp.eq.f32.partialorder %v1193, 8.507059e+37
      %v1195 = vand.u32 %v881, 2147483648
      %v1196 = vor.u32 1.1754944e-38, %v1195
      %v1197 = vsel %vm1194, %v1196, %v1192
      %v1198 = vmul.f32 1.0, %v1197
      %v1199 = vrcp.pop %v882
      %v1200 = vmul.f32 %v882, %v1199
      %v1201 = vsub.f32 1.0, %v1200
      %v1202 = vmul.f32 %v1199, %v1201
      %v1203 = vadd.f32 %v1199, %v1202
      %vm1204 = vweird.f32 %v882
      %vm1205 = vweird.f32 %v1199
      %vm1206 = vmor %vm1204, %vm1205
      %v1207 = vsel %vm1206, %v1199, %v1203
      %v1208 = vand.u32 2147483647, %v882
      %vm1209 = vcmp.eq.f32.partialorder %v1208, 8.507059e+37
      %v1210 = vand.u32 %v882, 2147483648
      %v1211 = vor.u32 1.1754944e-38, %v1210
      %v1212 = vsel %vm1209, %v1211, %v1207
      %v1213 = vmul.f32 1.0, %v1212
      %v1214 = vrcp.pop %v883
      %v1215 = vmul.f32 %v883, %v1214
      %v1216 = vsub.f32 1.0, %v1215
      %v1217 = vmul.f32 %v1214, %v1216
      %v1218 = vadd.f32 %v1214, %v1217
      %vm1219 = vweird.f32 %v883
      %vm1220 = vweird.f32 %v1214
      %vm1221 = vmor %vm1219, %vm1220
      %v1222 = vsel %vm1221, %v1214, %v1218
      %v1223 = vand.u32 2147483647, %v883
      %vm1224 = vcmp.eq.f32.partialorder %v1223, 8.507059e+37
      %v1225 = vand.u32 %v883, 2147483648
      %v1226 = vor.u32 1.1754944e-38, %v1225
      %v1227 = vsel %vm1224, %v1226, %v1222
      %v1228 = vmul.f32 1.0, %v1227
      %v1229 = vmul.f32 %v769, %v898
      %v1230 = vmul.f32 %v770, %v913
      %v1231 = vmul.f32 %v771, %v928
      %v1232 = vmul.f32 %v772, %v943
      %v1233 = vmul.f32 %v773, %v958
      %v1234 = vmul.f32 %v774, %v973
      %v1235 = vmul.f32 %v775, %v988
      %v1236 = vmul.f32 %v776, %v1003
      %v1237 = vmul.f32 %v777, %v1018
      %v1238 = vmul.f32 %v778, %v1033
      %v1239 = vmul.f32 %v779, %v1048
      %v1240 = vmul.f32 %v780, %v1063
      %v1241 = vmul.f32 %v781, %v1078
      %v1242 = vmul.f32 %v782, %v1093
      %v1243 = vmul.f32 %v783, %v1108
      %v1244 = vmul.f32 %v784, %v1123
      %v1245 = vmul.f32 %v785, %v1138
      %v1246 = vmul.f32 %v786, %v1153
      %v1247 = vmul.f32 %v787, %v1168
      %v1248 = vmul.f32 %v788, %v1183
      %v1249 = vmul.f32 %v789, %v1198
      %v1250 = vmul.f32 %v790, %v1213
      %v1251 = vmul.f32 %v791, %v1228
      %v1275 = vrot.slane %v1229, 2
      %v1276 = vrot.slane %v1229, 4
      %v1277 = vrot.slane %v1229, 6
      %v1278 = vrot.slane %v1230, 2
      %v1279 = vrot.slane %v1230, 4
      %v1280 = vrot.slane %v1230, 6
      %v1281 = vrot.slane %v1231, 2
      %v1282 = vrot.slane %v1231, 4
      %v1283 = vrot.slane %v1231, 6
      %v1284 = vrot.slane %v1232, 2
      %v1285 = vrot.slane %v1232, 4
      %v1286 = vrot.slane %v1232, 6
      %v1287 = vrot.slane %v1233, 2
      %v1288 = vrot.slane %v1233, 4
      %v1289 = vrot.slane %v1233, 6
      %v1290 = vrot.slane %v1234, 2
      %v1291 = vrot.slane %v1234, 4
      %v1292 = vrot.slane %v1234, 6
      %v1293 = vrot.slane %v1235, 2
      %v1294 = vrot.slane %v1235, 4
      %v1295 = vrot.slane %v1235, 6
      %v1296 = vrot.slane %v1236, 2
      %v1297 = vrot.slane %v1236, 4
      %v1298 = vrot.slane %v1236, 6
      %v1299 = vrot.slane %v1237, 2
      %v1300 = vrot.slane %v1237, 4
      %v1301 = vrot.slane %v1237, 6
      %v1302 = vrot.slane %v1238, 2
      %v1303 = vrot.slane %v1238, 4
      %v1304 = vrot.slane %v1238, 6
      %v1305 = vrot.slane %v1239, 2
      %v1306 = vrot.slane %v1239, 4
      %v1307 = vrot.slane %v1239, 6
      %v1308 = vrot.slane %v1240, 2
      %v1309 = vrot.slane %v1240, 4
      %v1310 = vrot.slane %v1240, 6
      %v1311 = vrot.slane %v1241, 2
      %v1312 = vrot.slane %v1241, 4
      %v1313 = vrot.slane %v1241, 6
      %v1314 = vrot.slane %v1242, 2
      %v1315 = vrot.slane %v1242, 4
      %v1316 = vrot.slane %v1242, 6
      %v1317 = vrot.slane %v1243, 2
      %v1318 = vrot.slane %v1243, 4
      %v1319 = vrot.slane %v1243, 6
      %v1320 = vrot.slane %v1244, 2
      %v1321 = vrot.slane %v1244, 4
      %v1322 = vrot.slane %v1244, 6
      %v1323 = vrot.slane %v1245, 2
      %v1324 = vrot.slane %v1245, 4
      %v1325 = vrot.slane %v1245, 6
      %v1326 = vrot.slane %v1246, 2
      %v1327 = vrot.slane %v1246, 4
      %v1328 = vrot.slane %v1246, 6
      %v1329 = vrot.slane %v1247, 2
      %v1330 = vrot.slane %v1247, 4
      %v1331 = vrot.slane %v1247, 6
      %v1332 = vrot.slane %v1248, 2
      %v1333 = vrot.slane %v1248, 4
      %v1334 = vrot.slane %v1248, 6
      %v1335 = vrot.slane %v1249, 2
      %v1336 = vrot.slane %v1249, 4
      %v1337 = vrot.slane %v1249, 6
      %v1338 = vrot.slane %v1250, 2
      %v1339 = vrot.slane %v1250, 4
      %v1340 = vrot.slane %v1250, 6
      %v1341 = vrot.slane %v1251, 2
      %s1409 = smul.u32 %s25, 8
      %v1410 = vstv %s1409
      %v1411 = vadd.s32 %v1410, 1
      %v1412 = vadd.s32 %v1410, 2
      %v1413 = vadd.s32 %v1410, 3
      %v1414 = vadd.s32 %v1410, 4
      %v1415 = vadd.s32 %v1410, 5
      %v1416 = vadd.s32 %v1410, 6
      %v1417 = vadd.s32 %v1410, 7
      %v1418 = vadd.s32 %v1410, 8
      %v1419 = vadd.s32 %v1410, 9
      %v1420 = vlaneseq
      %v1421 = vshrl.u32 %v1420, 7
      %v1422 = vadd.s32 %v1421, 8
      %v1423 = vadd.s32 %v1421, 16
      %vm1424 = vcmp.ge.s32.totalorder %v1410, 1
      %vm1425 = vcmp.ge.s32.totalorder %v1411, 1
      %vm1426 = vcmp.ge.s32.totalorder %v1412, 1
      %vm1427 = vcmp.ge.s32.totalorder %v1413, 1
      %vm1428 = vcmp.ge.s32.totalorder %v1414, 1
      %vm1429 = vcmp.ge.s32.totalorder %v1415, 1
      %vm1430 = vcmp.ge.s32.totalorder %v1416, 1
      %vm1431 = vcmp.ge.s32.totalorder %v1417, 1
      %vm1432 = vcmp.ge.s32.totalorder %v1418, 1
      %vm1433 = vcmp.ge.s32.totalorder %v1419, 1
      %vm1434 = vcmp.lt.s32.totalorder %v1410, 17
      %vm1435 = vcmp.lt.s32.totalorder %v1411, 17
      %vm1436 = vcmp.lt.s32.totalorder %v1412, 17
      %vm1437 = vcmp.lt.s32.totalorder %v1413, 17
      %vm1438 = vcmp.lt.s32.totalorder %v1414, 17
      %vm1439 = vcmp.lt.s32.totalorder %v1415, 17
      %vm1440 = vcmp.lt.s32.totalorder %v1416, 17
      %vm1441 = vcmp.lt.s32.totalorder %v1417, 17
      %vm1442 = vcmp.lt.s32.totalorder %v1418, 17
      %vm1443 = vcmp.lt.s32.totalorder %v1419, 17
      %vm1444 = vmand %vm1424, %vm1434
      %vm1445 = vmand %vm1425, %vm1435
      %vm1446 = vmand %vm1426, %vm1436
      %vm1447 = vmand %vm1427, %vm1437
      %vm1448 = vmand %vm1428, %vm1438
      %vm1449 = vmand %vm1429, %vm1439
      %vm1450 = vmand %vm1430, %vm1440
      %vm1451 = vmand %vm1431, %vm1441
      %vm1452 = vmand %vm1432, %vm1442
      %vm1453 = vmand %vm1433, %vm1443
      %v1454 = vsel %vm1444, 1, 0
      %v1455 = vsel %vm1445, 1, 0
      %v1456 = vsel %vm1446, 1, 0
      %v1457 = vsel %vm1447, 1, 0
      %v1458 = vsel %vm1448, 1, 0
      %v1459 = vsel %vm1449, 1, 0
      %v1460 = vsel %vm1450, 1, 0
      %v1461 = vsel %vm1451, 1, 0
      %v1462 = vsel %vm1452, 1, 0
      %v1463 = vsel %vm1453, 1, 0
      %v1464 = vcvt.s32.f32 %v1454
      %v1465 = vcvt.s32.f32 %v1455
      %v1466 = vcvt.s32.f32 %v1456
      %v1467 = vcvt.s32.f32 %v1457
      %v1468 = vcvt.s32.f32 %v1458
      %v1469 = vcvt.s32.f32 %v1459
      %v1470 = vcvt.s32.f32 %v1460
      %v1471 = vcvt.s32.f32 %v1461
      %v1472 = vcvt.s32.f32 %v1462
      %v1473 = vcvt.s32.f32 %v1463
      %vm1474 = vcmp.ge.s32.totalorder %v1421, 1
      %vm1475 = vcmp.ge.s32.totalorder %v1422, 1
      %vm1476 = vcmp.ge.s32.totalorder %v1423, 1
      %vm1477 = vcmp.lt.s32.totalorder %v1421, 17
      %vm1478 = vcmp.lt.s32.totalorder %v1422, 17
      %vm1479 = vcmp.lt.s32.totalorder %v1423, 17
      %vm1480 = vmand %vm1474, %vm1477
      %vm1481 = vmand %vm1475, %vm1478
      %vm1482 = vmand %vm1476, %vm1479
      %v1483 = vsel %vm1480, 1, 0
      %v1484 = vsel %vm1481, 1, 0
      %v1485 = vsel %vm1482, 1, 0
      %v1486 = vcvt.s32.f32 %v1483
      %v1487 = vcvt.s32.f32 %v1484
      %v1488 = vcvt.s32.f32 %v1485
      %v1489 = vmul.f32 %v1464, %v1486
      %v1490 = vmul.f32 %v1464, %v1487
      %v1491 = vmul.f32 %v1464, %v1488
      %v1492 = vmul.f32 %v1465, %v1486
      %v1493 = vmul.f32 %v1465, %v1487
      %v1494 = vmul.f32 %v1465, %v1488
      %v1495 = vmul.f32 %v1466, %v1486
      %v1496 = vmul.f32 %v1466, %v1487
      %v1497 = vmul.f32 %v1466, %v1488
      %v1498 = vmul.f32 %v1467, %v1486
      %v1499 = vmul.f32 %v1467, %v1487
      %v1500 = vmul.f32 %v1467, %v1488
      %v1501 = vmul.f32 %v1468, %v1486
      %v1502 = vmul.f32 %v1468, %v1487
      %v1503 = vmul.f32 %v1468, %v1488
      %v1504 = vmul.f32 %v1469, %v1486
      %v1505 = vmul.f32 %v1469, %v1487
      %v1506 = vmul.f32 %v1469, %v1488
      %v1507 = vmul.f32 %v1470, %v1486
      %v1508 = vmul.f32 %v1470, %v1487
      %v1509 = vmul.f32 %v1470, %v1488
      %v1510 = vmul.f32 %v1471, %v1486
      %v1511 = vmul.f32 %v1471, %v1487
      %v1512 = vmul.f32 %v1471, %v1488
      %v1513 = vmul.f32 %v1472, %v1486
      %v1514 = vmul.f32 %v1472, %v1487
      %v1515 = vmul.f32 %v1472, %v1488
      %v1516 = vmul.f32 %v1473, %v1486
      %v1517 = vmul.f32 %v1473, %v1487
      %v1518 = vmul.f32 %v1473, %v1488
      %v1550 = vunpack.c.l.s4 269488144
      %v1551 = vunpack.c.0.s8 %v1550
      %v1552 = vperm.slane %v1489, %v1551
      %v1554 = vunpack.c.l.s4 842150450
      %v1555 = vunpack.c.0.s8 %v1554
      %v1556 = vperm.slane %v1489, %v1555
      %v1558 = vunpack.c.l.s4 1414812756
      %v1559 = vunpack.c.0.s8 %v1558
      %v1560 = vperm.slane %v1489, %v1559
      %v1562 = vunpack.c.l.s4 1987475062
      %v1563 = vunpack.c.0.s8 %v1562
      %v1564 = vperm.slane %v1489, %v1563
      %v1566 = vunpack.c.l.s4 269488144
      %v1567 = vunpack.c.0.s8 %v1566
      %v1568 = vperm.slane %v1490, %v1567
      %v1570 = vunpack.c.l.s4 842150450
      %v1571 = vunpack.c.0.s8 %v1570
      %v1572 = vperm.slane %v1490, %v1571
      %v1574 = vunpack.c.l.s4 1414812756
      %v1575 = vunpack.c.0.s8 %v1574
      %v1576 = vperm.slane %v1490, %v1575
      %v1578 = vunpack.c.l.s4 1987475062
      %v1579 = vunpack.c.0.s8 %v1578
      %v1580 = vperm.slane %v1490, %v1579
      %v1582 = vunpack.c.l.s4 269488144
      %v1583 = vunpack.c.0.s8 %v1582
      %v1584 = vperm.slane %v1491, %v1583
      %v1586 = vunpack.c.l.s4 269488144
      %v1587 = vunpack.c.0.s8 %v1586
      %v1588 = vperm.slane %v1492, %v1587
      %v1590 = vunpack.c.l.s4 842150450
      %v1591 = vunpack.c.0.s8 %v1590
      %v1592 = vperm.slane %v1492, %v1591
      %v1594 = vunpack.c.l.s4 1414812756
      %v1595 = vunpack.c.0.s8 %v1594
      %v1596 = vperm.slane %v1492, %v1595
      %v1598 = vunpack.c.l.s4 1987475062
      %v1599 = vunpack.c.0.s8 %v1598
      %v1600 = vperm.slane %v1492, %v1599
      %v1602 = vunpack.c.l.s4 269488144
      %v1603 = vunpack.c.0.s8 %v1602
      %v1604 = vperm.slane %v1493, %v1603
      %v1606 = vunpack.c.l.s4 842150450
      %v1607 = vunpack.c.0.s8 %v1606
      %v1608 = vperm.slane %v1493, %v1607
      %v1610 = vunpack.c.l.s4 1414812756
      %v1611 = vunpack.c.0.s8 %v1610
      %v1612 = vperm.slane %v1493, %v1611
      %v1614 = vunpack.c.l.s4 1987475062
      %v1615 = vunpack.c.0.s8 %v1614
      %v1616 = vperm.slane %v1493, %v1615
      %v1618 = vunpack.c.l.s4 269488144
      %v1619 = vunpack.c.0.s8 %v1618
      %v1620 = vperm.slane %v1494, %v1619
      %v1622 = vunpack.c.l.s4 269488144
      %v1623 = vunpack.c.0.s8 %v1622
      %v1624 = vperm.slane %v1495, %v1623
      %v1626 = vunpack.c.l.s4 842150450
      %v1627 = vunpack.c.0.s8 %v1626
      %v1628 = vperm.slane %v1495, %v1627
      %v1630 = vunpack.c.l.s4 1414812756
      %v1631 = vunpack.c.0.s8 %v1630
      %v1632 = vperm.slane %v1495, %v1631
      %v1634 = vunpack.c.l.s4 1987475062
      %v1635 = vunpack.c.0.s8 %v1634
      %v1636 = vperm.slane %v1495, %v1635
      %v1638 = vunpack.c.l.s4 269488144
      %v1639 = vunpack.c.0.s8 %v1638
      %v1640 = vperm.slane %v1496, %v1639
      %v1642 = vunpack.c.l.s4 842150450
      %v1643 = vunpack.c.0.s8 %v1642
      %v1644 = vperm.slane %v1496, %v1643
      %v1646 = vunpack.c.l.s4 1414812756
      %v1647 = vunpack.c.0.s8 %v1646
      %v1648 = vperm.slane %v1496, %v1647
      %v1650 = vunpack.c.l.s4 1987475062
      %v1651 = vunpack.c.0.s8 %v1650
      %v1652 = vperm.slane %v1496, %v1651
      %v1654 = vunpack.c.l.s4 269488144
      %v1655 = vunpack.c.0.s8 %v1654
      %v1656 = vperm.slane %v1497, %v1655
      %v1658 = vunpack.c.l.s4 269488144
      %v1659 = vunpack.c.0.s8 %v1658
      %v1660 = vperm.slane %v1498, %v1659
      %v1662 = vunpack.c.l.s4 842150450
      %v1663 = vunpack.c.0.s8 %v1662
      %v1664 = vperm.slane %v1498, %v1663
      %v1666 = vunpack.c.l.s4 1414812756
      %v1667 = vunpack.c.0.s8 %v1666
      %v1668 = vperm.slane %v1498, %v1667
      %v1670 = vunpack.c.l.s4 1987475062
      %v1671 = vunpack.c.0.s8 %v1670
      %v1672 = vperm.slane %v1498, %v1671
      %v1674 = vunpack.c.l.s4 269488144
      %v1675 = vunpack.c.0.s8 %v1674
      %v1676 = vperm.slane %v1499, %v1675
      %v1678 = vunpack.c.l.s4 842150450
      %v1679 = vunpack.c.0.s8 %v1678
      %v1680 = vperm.slane %v1499, %v1679
      %v1682 = vunpack.c.l.s4 1414812756
      %v1683 = vunpack.c.0.s8 %v1682
      %v1684 = vperm.slane %v1499, %v1683
      %v1686 = vunpack.c.l.s4 1987475062
      %v1687 = vunpack.c.0.s8 %v1686
      %v1688 = vperm.slane %v1499, %v1687
      %v1690 = vunpack.c.l.s4 269488144
      %v1691 = vunpack.c.0.s8 %v1690
      %v1692 = vperm.slane %v1500, %v1691
      %v1694 = vunpack.c.l.s4 269488144
      %v1695 = vunpack.c.0.s8 %v1694
      %v1696 = vperm.slane %v1501, %v1695
      %v1698 = vunpack.c.l.s4 842150450
      %v1699 = vunpack.c.0.s8 %v1698
      %v1700 = vperm.slane %v1501, %v1699
      %v1702 = vunpack.c.l.s4 1414812756
      %v1703 = vunpack.c.0.s8 %v1702
      %v1704 = vperm.slane %v1501, %v1703
      %v1706 = vunpack.c.l.s4 1987475062
      %v1707 = vunpack.c.0.s8 %v1706
      %v1708 = vperm.slane %v1501, %v1707
      %v1710 = vunpack.c.l.s4 269488144
      %v1711 = vunpack.c.0.s8 %v1710
      %v1712 = vperm.slane %v1502, %v1711
      %v1714 = vunpack.c.l.s4 842150450
      %v1715 = vunpack.c.0.s8 %v1714
      %v1716 = vperm.slane %v1502, %v1715
      %v1718 = vunpack.c.l.s4 1414812756
      %v1719 = vunpack.c.0.s8 %v1718
      %v1720 = vperm.slane %v1502, %v1719
      %v1722 = vunpack.c.l.s4 1987475062
      %v1723 = vunpack.c.0.s8 %v1722
      %v1724 = vperm.slane %v1502, %v1723
      %v1726 = vunpack.c.l.s4 269488144
      %v1727 = vunpack.c.0.s8 %v1726
      %v1728 = vperm.slane %v1503, %v1727
      %v1730 = vunpack.c.l.s4 269488144
      %v1731 = vunpack.c.0.s8 %v1730
      %v1732 = vperm.slane %v1504, %v1731
      %v1734 = vunpack.c.l.s4 842150450
      %v1735 = vunpack.c.0.s8 %v1734
      %v1736 = vperm.slane %v1504, %v1735
      %v1738 = vunpack.c.l.s4 1414812756
      %v1739 = vunpack.c.0.s8 %v1738
      %v1740 = vperm.slane %v1504, %v1739
      %v1742 = vunpack.c.l.s4 1987475062
      %v1743 = vunpack.c.0.s8 %v1742
      %v1744 = vperm.slane %v1504, %v1743
      %v1746 = vunpack.c.l.s4 269488144
      %v1747 = vunpack.c.0.s8 %v1746
      %v1748 = vperm.slane %v1505, %v1747
      %v1750 = vunpack.c.l.s4 842150450
      %v1751 = vunpack.c.0.s8 %v1750
      %v1752 = vperm.slane %v1505, %v1751
      %v1754 = vunpack.c.l.s4 1414812756
      %v1755 = vunpack.c.0.s8 %v1754
      %v1756 = vperm.slane %v1505, %v1755
      %v1758 = vunpack.c.l.s4 1987475062
      %v1759 = vunpack.c.0.s8 %v1758
      %v1760 = vperm.slane %v1505, %v1759
      %v1762 = vunpack.c.l.s4 269488144
      %v1763 = vunpack.c.0.s8 %v1762
      %v1764 = vperm.slane %v1506, %v1763
      %v1766 = vunpack.c.l.s4 269488144
      %v1767 = vunpack.c.0.s8 %v1766
      %v1768 = vperm.slane %v1507, %v1767
      %v1770 = vunpack.c.l.s4 842150450
      %v1771 = vunpack.c.0.s8 %v1770
      %v1772 = vperm.slane %v1507, %v1771
      %v1774 = vunpack.c.l.s4 1414812756
      %v1775 = vunpack.c.0.s8 %v1774
      %v1776 = vperm.slane %v1507, %v1775
      %v1778 = vunpack.c.l.s4 1987475062
      %v1779 = vunpack.c.0.s8 %v1778
      %v1780 = vperm.slane %v1507, %v1779
      %v1782 = vunpack.c.l.s4 269488144
      %v1783 = vunpack.c.0.s8 %v1782
      %v1784 = vperm.slane %v1508, %v1783
      %v1786 = vunpack.c.l.s4 842150450
      %v1787 = vunpack.c.0.s8 %v1786
      %v1788 = vperm.slane %v1508, %v1787
      %v1790 = vunpack.c.l.s4 1414812756
      %v1791 = vunpack.c.0.s8 %v1790
      %v1792 = vperm.slane %v1508, %v1791
      %v1794 = vunpack.c.l.s4 1987475062
      %v1795 = vunpack.c.0.s8 %v1794
      %v1796 = vperm.slane %v1508, %v1795
      %v1798 = vunpack.c.l.s4 269488144
      %v1799 = vunpack.c.0.s8 %v1798
      %v1800 = vperm.slane %v1509, %v1799
      %v1802 = vunpack.c.l.s4 269488144
      %v1803 = vunpack.c.0.s8 %v1802
      %v1804 = vperm.slane %v1510, %v1803
      %v1806 = vunpack.c.l.s4 842150450
      %v1807 = vunpack.c.0.s8 %v1806
      %v1808 = vperm.slane %v1510, %v1807
      %v1810 = vunpack.c.l.s4 1414812756
      %v1811 = vunpack.c.0.s8 %v1810
      %v1812 = vperm.slane %v1510, %v1811
      %v1814 = vunpack.c.l.s4 1987475062
      %v1815 = vunpack.c.0.s8 %v1814
      %v1816 = vperm.slane %v1510, %v1815
      %v1818 = vunpack.c.l.s4 269488144
      %v1819 = vunpack.c.0.s8 %v1818
      %v1820 = vperm.slane %v1511, %v1819
      %v1822 = vunpack.c.l.s4 842150450
      %v1823 = vunpack.c.0.s8 %v1822
      %v1824 = vperm.slane %v1511, %v1823
      %v1826 = vunpack.c.l.s4 1414812756
      %v1827 = vunpack.c.0.s8 %v1826
      %v1828 = vperm.slane %v1511, %v1827
      %v1830 = vunpack.c.l.s4 1987475062
      %v1831 = vunpack.c.0.s8 %v1830
      %v1832 = vperm.slane %v1511, %v1831
      %v1834 = vunpack.c.l.s4 269488144
      %v1835 = vunpack.c.0.s8 %v1834
      %v1836 = vperm.slane %v1512, %v1835
      %v1838 = vunpack.c.l.s4 269488144
      %v1839 = vunpack.c.0.s8 %v1838
      %v1840 = vperm.slane %v1513, %v1839
      %v1842 = vunpack.c.l.s4 842150450
      %v1843 = vunpack.c.0.s8 %v1842
      %v1844 = vperm.slane %v1513, %v1843
      %v1846 = vunpack.c.l.s4 1414812756
      %v1847 = vunpack.c.0.s8 %v1846
      %v1848 = vperm.slane %v1513, %v1847
      %v1850 = vunpack.c.l.s4 1987475062
      %v1851 = vunpack.c.0.s8 %v1850
      %v1852 = vperm.slane %v1513, %v1851
      %v1854 = vunpack.c.l.s4 269488144
      %v1855 = vunpack.c.0.s8 %v1854
      %v1856 = vperm.slane %v1514, %v1855
      %v1858 = vunpack.c.l.s4 842150450
      %v1859 = vunpack.c.0.s8 %v1858
      %v1860 = vperm.slane %v1514, %v1859
      %v1862 = vunpack.c.l.s4 1414812756
      %v1863 = vunpack.c.0.s8 %v1862
      %v1864 = vperm.slane %v1514, %v1863
      %v1866 = vunpack.c.l.s4 1987475062
      %v1867 = vunpack.c.0.s8 %v1866
      %v1868 = vperm.slane %v1514, %v1867
      %v1870 = vunpack.c.l.s4 269488144
      %v1871 = vunpack.c.0.s8 %v1870
      %v1872 = vperm.slane %v1515, %v1871
      %v1874 = vunpack.c.l.s4 269488144
      %v1875 = vunpack.c.0.s8 %v1874
      %v1876 = vperm.slane %v1516, %v1875
      %v1878 = vunpack.c.l.s4 842150450
      %v1879 = vunpack.c.0.s8 %v1878
      %v1880 = vperm.slane %v1516, %v1879
      %v1882 = vunpack.c.l.s4 1414812756
      %v1883 = vunpack.c.0.s8 %v1882
      %v1884 = vperm.slane %v1516, %v1883
      %v1886 = vunpack.c.l.s4 1987475062
      %v1887 = vunpack.c.0.s8 %v1886
      %v1888 = vperm.slane %v1516, %v1887
      %v1890 = vunpack.c.l.s4 269488144
      %v1891 = vunpack.c.0.s8 %v1890
      %v1892 = vperm.slane %v1517, %v1891
      %v1894 = vunpack.c.l.s4 842150450
      %v1895 = vunpack.c.0.s8 %v1894
      %v1896 = vperm.slane %v1517, %v1895
      %v1898 = vunpack.c.l.s4 1414812756
      %v1899 = vunpack.c.0.s8 %v1898
      %v1900 = vperm.slane %v1517, %v1899
      %v1902 = vunpack.c.l.s4 1987475062
      %v1903 = vunpack.c.0.s8 %v1902
      %v1904 = vperm.slane %v1517, %v1903
      %v1906 = vunpack.c.l.s4 269488144
      %v1907 = vunpack.c.0.s8 %v1906
      %v1908 = vperm.slane %v1518, %v1907
      %v1999 = vmul.f32 %v1229, %v1552
      %v2000 = vmul.f32 %v1275, %v1556
      %v2001 = vmul.f32 %v1276, %v1560
      %v2002 = vmul.f32 %v1277, %v1564
      %v2003 = vmul.f32 %v1230, %v1568
      %v2004 = vmul.f32 %v1278, %v1572
      %v2005 = vmul.f32 %v1279, %v1576
      %v2006 = vmul.f32 %v1280, %v1580
      %v2007 = vmul.f32 %v1231, %v1584
      %v2008 = vmul.f32 %v1281, %v1588
      %v2009 = vmul.f32 %v1282, %v1592
      %v2010 = vmul.f32 %v1283, %v1596
      %v2011 = vmul.f32 %v1232, %v1600
      %v2012 = vmul.f32 %v1284, %v1604
      %v2013 = vmul.f32 %v1285, %v1608
      %v2014 = vmul.f32 %v1286, %v1612
      %v2015 = vmul.f32 %v1233, %v1616
      %v2016 = vmul.f32 %v1287, %v1620
      %v2017 = vmul.f32 %v1288, %v1624
      %v2018 = vmul.f32 %v1289, %v1628
      %v2019 = vmul.f32 %v1234, %v1632
      %v2020 = vmul.f32 %v1290, %v1636
      %v2021 = vmul.f32 %v1291, %v1640
      %v2022 = vmul.f32 %v1292, %v1644
      %v2023 = vmul.f32 %v1235, %v1648
      %v2024 = vmul.f32 %v1293, %v1652
      %v2025 = vmul.f32 %v1294, %v1656
      %v2026 = vmul.f32 %v1295, %v1660
      %v2027 = vmul.f32 %v1236, %v1664
      %v2028 = vmul.f32 %v1296, %v1668
      %v2029 = vmul.f32 %v1297, %v1672
      %v2030 = vmul.f32 %v1298, %v1676
      %v2031 = vmul.f32 %v1237, %v1680
      %v2032 = vmul.f32 %v1299, %v1684
      %v2033 = vmul.f32 %v1300, %v1688
      %v2034 = vmul.f32 %v1301, %v1692
      %v2035 = vmul.f32 %v1238, %v1696
      %v2036 = vmul.f32 %v1302, %v1700
      %v2037 = vmul.f32 %v1303, %v1704
      %v2038 = vmul.f32 %v1304, %v1708
      %v2039 = vmul.f32 %v1239, %v1712
      %v2040 = vmul.f32 %v1305, %v1716
      %v2041 = vmul.f32 %v1306, %v1720
      %v2042 = vmul.f32 %v1307, %v1724
      %v2043 = vmul.f32 %v1240, %v1728
      %v2044 = vmul.f32 %v1308, %v1732
      %v2045 = vmul.f32 %v1309, %v1736
      %v2046 = vmul.f32 %v1310, %v1740
      %v2047 = vmul.f32 %v1241, %v1744
      %v2048 = vmul.f32 %v1311, %v1748
      %v2049 = vmul.f32 %v1312, %v1752
      %v2050 = vmul.f32 %v1313, %v1756
      %v2051 = vmul.f32 %v1242, %v1760
      %v2052 = vmul.f32 %v1314, %v1764
      %v2053 = vmul.f32 %v1315, %v1768
      %v2054 = vmul.f32 %v1316, %v1772
      %v2055 = vmul.f32 %v1243, %v1776
      %v2056 = vmul.f32 %v1317, %v1780
      %v2057 = vmul.f32 %v1318, %v1784
      %v2058 = vmul.f32 %v1319, %v1788
      %v2059 = vmul.f32 %v1244, %v1792
      %v2060 = vmul.f32 %v1320, %v1796
      %v2061 = vmul.f32 %v1321, %v1800
      %v2062 = vmul.f32 %v1322, %v1804
      %v2063 = vmul.f32 %v1245, %v1808
      %v2064 = vmul.f32 %v1323, %v1812
      %v2065 = vmul.f32 %v1324, %v1816
      %v2066 = vmul.f32 %v1325, %v1820
      %v2067 = vmul.f32 %v1246, %v1824
      %v2068 = vmul.f32 %v1326, %v1828
      %v2069 = vmul.f32 %v1327, %v1832
      %v2070 = vmul.f32 %v1328, %v1836
      %v2071 = vmul.f32 %v1247, %v1840
      %v2072 = vmul.f32 %v1329, %v1844
      %v2073 = vmul.f32 %v1330, %v1848
      %v2074 = vmul.f32 %v1331, %v1852
      %v2075 = vmul.f32 %v1248, %v1856
      %v2076 = vmul.f32 %v1332, %v1860
      %v2077 = vmul.f32 %v1333, %v1864
      %v2078 = vmul.f32 %v1334, %v1868
      %v2079 = vmul.f32 %v1249, %v1872
      %v2080 = vmul.f32 %v1335, %v1876
      %v2081 = vmul.f32 %v1336, %v1880
      %v2082 = vmul.f32 %v1337, %v1884
      %v2083 = vmul.f32 %v1250, %v1888
      %v2084 = vmul.f32 %v1338, %v1892
      %v2085 = vmul.f32 %v1339, %v1896
      %v2086 = vmul.f32 %v1340, %v1900
      %v2087 = vmul.f32 %v1251, %v1904
      %v2088 = vmul.f32 %v1341, %v1908
      %v2089 = vld [vmem:[%s4] sm:$0xff]
      %v2090 = vld [vmem:[%s4 + $0x8] sm:$0x1]
      %v2091 = vperm.slane %v2089, 0
      %v2093 = vrot.slane %v2091, 2
      %v2094 = vrot.slane %v2091, 4
      %v2095 = vrot.slane %v2091, 6
      %v2099 = vmul.f32 %v1999, %v2091
      %v2100 = vmul.f32 %v2000, %v2093
      %v2101 = vmul.f32 %v2001, %v2094
      %v2102 = vmul.f32 %v2002, %v2095
      %v2103 = vmul.f32 %v2003, %v2091
      %v2104 = vmul.f32 %v2004, %v2093
      %v2105 = vmul.f32 %v2005, %v2094
      %v2106 = vmul.f32 %v2006, %v2095
      %v2107 = vmul.f32 %v2008, %v2091
      %v2108 = vmul.f32 %v2009, %v2093
      %v2109 = vmul.f32 %v2010, %v2094
      %v2110 = vmul.f32 %v2011, %v2095
      %v2111 = vmul.f32 %v2012, %v2091
      %v2112 = vmul.f32 %v2013, %v2093
      %v2113 = vmul.f32 %v2014, %v2094
      %v2114 = vmul.f32 %v2015, %v2095
      %v2115 = vmul.f32 %v2017, %v2091
      %v2116 = vmul.f32 %v2018, %v2093
      %v2117 = vmul.f32 %v2019, %v2094
      %v2118 = vmul.f32 %v2020, %v2095
      %v2119 = vmul.f32 %v2021, %v2091
      %v2120 = vmul.f32 %v2022, %v2093
      %v2121 = vmul.f32 %v2023, %v2094
      %v2122 = vmul.f32 %v2024, %v2095
      %v2123 = vmul.f32 %v2026, %v2091
      %v2124 = vmul.f32 %v2027, %v2093
      %v2125 = vmul.f32 %v2028, %v2094
      %v2126 = vmul.f32 %v2029, %v2095
      %v2127 = vmul.f32 %v2030, %v2091
      %v2128 = vmul.f32 %v2031, %v2093
      %v2129 = vmul.f32 %v2032, %v2094
      %v2130 = vmul.f32 %v2033, %v2095
      %v2131 = vmul.f32 %v2035, %v2091
      %v2132 = vmul.f32 %v2036, %v2093
      %v2133 = vmul.f32 %v2037, %v2094
      %v2134 = vmul.f32 %v2038, %v2095
      %v2135 = vmul.f32 %v2039, %v2091
      %v2136 = vmul.f32 %v2040, %v2093
      %v2137 = vmul.f32 %v2041, %v2094
      %v2138 = vmul.f32 %v2042, %v2095
      %v2139 = vmul.f32 %v2044, %v2091
      %v2140 = vmul.f32 %v2045, %v2093
      %v2141 = vmul.f32 %v2046, %v2094
      %v2142 = vmul.f32 %v2047, %v2095
      %v2143 = vmul.f32 %v2048, %v2091
      %v2144 = vmul.f32 %v2049, %v2093
      %v2145 = vmul.f32 %v2050, %v2094
      %v2146 = vmul.f32 %v2051, %v2095
      %v2147 = vmul.f32 %v2053, %v2091
      %v2148 = vmul.f32 %v2054, %v2093
      %v2149 = vmul.f32 %v2055, %v2094
      %v2150 = vmul.f32 %v2056, %v2095
      %v2151 = vmul.f32 %v2057, %v2091
      %v2152 = vmul.f32 %v2058, %v2093
      %v2153 = vmul.f32 %v2059, %v2094
      %v2154 = vmul.f32 %v2060, %v2095
      %v2155 = vmul.f32 %v2062, %v2091
      %v2156 = vmul.f32 %v2063, %v2093
      %v2157 = vmul.f32 %v2064, %v2094
      %v2158 = vmul.f32 %v2065, %v2095
      %v2159 = vmul.f32 %v2066, %v2091
      %v2160 = vmul.f32 %v2067, %v2093
      %v2161 = vmul.f32 %v2068, %v2094
      %v2162 = vmul.f32 %v2069, %v2095
      %v2163 = vadd.f32 %v2099, 0.0
      %v2164 = vadd.f32 %v2100, 0.0
      %v2165 = vadd.f32 %v2101, 0.0
      %v2166 = vadd.f32 %v2102, 0.0
      %v2167 = vadd.f32 %v2103, 0.0
      %v2168 = vadd.f32 %v2104, 0.0
      %v2169 = vadd.f32 %v2105, 0.0
      %v2170 = vadd.f32 %v2106, 0.0
      %v2171 = vadd.f32 %v2107, 0.0
      %v2172 = vadd.f32 %v2108, 0.0
      %v2173 = vadd.f32 %v2109, 0.0
      %v2174 = vadd.f32 %v2110, 0.0
      %v2175 = vadd.f32 %v2111, 0.0
      %v2176 = vadd.f32 %v2112, 0.0
      %v2177 = vadd.f32 %v2113, 0.0
      %v2178 = vadd.f32 %v2114, 0.0
      %v2179 = vadd.f32 %v2115, 0.0
      %v2180 = vadd.f32 %v2116, 0.0
      %v2181 = vadd.f32 %v2117, 0.0
      %v2182 = vadd.f32 %v2118, 0.0
      %v2183 = vadd.f32 %v2119, 0.0
      %v2184 = vadd.f32 %v2120, 0.0
      %v2185 = vadd.f32 %v2121, 0.0
      %v2186 = vadd.f32 %v2122, 0.0
      %v2187 = vadd.f32 %v2123, 0.0
      %v2188 = vadd.f32 %v2124, 0.0
      %v2189 = vadd.f32 %v2125, 0.0
      %v2190 = vadd.f32 %v2126, 0.0
      %v2191 = vadd.f32 %v2127, 0.0
      %v2192 = vadd.f32 %v2128, 0.0
      %v2193 = vadd.f32 %v2129, 0.0
      %v2194 = vadd.f32 %v2130, 0.0
      %v2195 = vadd.f32 %v2131, 0.0
      %v2196 = vadd.f32 %v2132, 0.0
      %v2197 = vadd.f32 %v2133, 0.0
      %v2198 = vadd.f32 %v2134, 0.0
      %v2199 = vadd.f32 %v2135, 0.0
      %v2200 = vadd.f32 %v2136, 0.0
      %v2201 = vadd.f32 %v2137, 0.0
      %v2202 = vadd.f32 %v2138, 0.0
      %v2203 = vadd.f32 %v2139, 0.0
      %v2204 = vadd.f32 %v2140, 0.0
      %v2205 = vadd.f32 %v2141, 0.0
      %v2206 = vadd.f32 %v2142, 0.0
      %v2207 = vadd.f32 %v2143, 0.0
      %v2208 = vadd.f32 %v2144, 0.0
      %v2209 = vadd.f32 %v2145, 0.0
      %v2210 = vadd.f32 %v2146, 0.0
      %v2211 = vadd.f32 %v2147, 0.0
      %v2212 = vadd.f32 %v2148, 0.0
      %v2213 = vadd.f32 %v2149, 0.0
      %v2214 = vadd.f32 %v2150, 0.0
      %v2215 = vadd.f32 %v2151, 0.0
      %v2216 = vadd.f32 %v2152, 0.0
      %v2217 = vadd.f32 %v2153, 0.0
      %v2218 = vadd.f32 %v2154, 0.0
      %v2219 = vadd.f32 %v2155, 0.0
      %v2220 = vadd.f32 %v2156, 0.0
      %v2221 = vadd.f32 %v2157, 0.0
      %v2222 = vadd.f32 %v2158, 0.0
      %v2223 = vadd.f32 %v2159, 0.0
      %v2224 = vadd.f32 %v2160, 0.0
      %v2225 = vadd.f32 %v2161, 0.0
      %v2226 = vadd.f32 %v2162, 0.0
      %v2227 = vperm.slane %v2089, 3
      %v2229 = vrot.slane %v2227, 2
      %v2230 = vrot.slane %v2227, 4
      %v2231 = vrot.slane %v2227, 6
      %v2235 = vmul.f32 %v2008, %v2227
      %v2236 = vmul.f32 %v2009, %v2229
      %v2237 = vmul.f32 %v2010, %v2230
      %v2238 = vmul.f32 %v2011, %v2231
      %v2239 = vmul.f32 %v2012, %v2227
      %v2240 = vmul.f32 %v2013, %v2229
      %v2241 = vmul.f32 %v2014, %v2230
      %v2242 = vmul.f32 %v2015, %v2231
      %v2243 = vmul.f32 %v2017, %v2227
      %v2244 = vmul.f32 %v2018, %v2229
      %v2245 = vmul.f32 %v2019, %v2230
      %v2246 = vmul.f32 %v2020, %v2231
      %v2247 = vmul.f32 %v2021, %v2227
      %v2248 = vmul.f32 %v2022, %v2229
      %v2249 = vmul.f32 %v2023, %v2230
      %v2250 = vmul.f32 %v2024, %v2231
      %v2251 = vmul.f32 %v2026, %v2227
      %v2252 = vmul.f32 %v2027, %v2229
      %v2253 = vmul.f32 %v2028, %v2230
      %v2254 = vmul.f32 %v2029, %v2231
      %v2255 = vmul.f32 %v2030, %v2227
      %v2256 = vmul.f32 %v2031, %v2229
      %v2257 = vmul.f32 %v2032, %v2230
      %v2258 = vmul.f32 %v2033, %v2231
      %v2259 = vmul.f32 %v2035, %v2227
      %v2260 = vmul.f32 %v2036, %v2229
      %v2261 = vmul.f32 %v2037, %v2230
      %v2262 = vmul.f32 %v2038, %v2231
      %v2263 = vmul.f32 %v2039, %v2227
      %v2264 = vmul.f32 %v2040, %v2229
      %v2265 = vmul.f32 %v2041, %v2230
      %v2266 = vmul.f32 %v2042, %v2231
      %v2267 = vmul.f32 %v2044, %v2227
      %v2268 = vmul.f32 %v2045, %v2229
      %v2269 = vmul.f32 %v2046, %v2230
      %v2270 = vmul.f32 %v2047, %v2231
      %v2271 = vmul.f32 %v2048, %v2227
      %v2272 = vmul.f32 %v2049, %v2229
      %v2273 = vmul.f32 %v2050, %v2230
      %v2274 = vmul.f32 %v2051, %v2231
      %v2275 = vmul.f32 %v2053, %v2227
      %v2276 = vmul.f32 %v2054, %v2229
      %v2277 = vmul.f32 %v2055, %v2230
      %v2278 = vmul.f32 %v2056, %v2231
      %v2279 = vmul.f32 %v2057, %v2227
      %v2280 = vmul.f32 %v2058, %v2229
      %v2281 = vmul.f32 %v2059, %v2230
      %v2282 = vmul.f32 %v2060, %v2231
      %v2283 = vmul.f32 %v2062, %v2227
      %v2284 = vmul.f32 %v2063, %v2229
      %v2285 = vmul.f32 %v2064, %v2230
      %v2286 = vmul.f32 %v2065, %v2231
      %v2287 = vmul.f32 %v2066, %v2227
      %v2288 = vmul.f32 %v2067, %v2229
      %v2289 = vmul.f32 %v2068, %v2230
      %v2290 = vmul.f32 %v2069, %v2231
      %v2291 = vmul.f32 %v2071, %v2227
      %v2292 = vmul.f32 %v2072, %v2229
      %v2293 = vmul.f32 %v2073, %v2230
      %v2294 = vmul.f32 %v2074, %v2231
      %v2295 = vmul.f32 %v2075, %v2227
      %v2296 = vmul.f32 %v2076, %v2229
      %v2297 = vmul.f32 %v2077, %v2230
      %v2298 = vmul.f32 %v2078, %v2231
      %v2299 = vadd.f32 %v2163, %v2235
      %v2300 = vadd.f32 %v2164, %v2236
      %v2301 = vadd.f32 %v2165, %v2237
      %v2302 = vadd.f32 %v2166, %v2238
      %v2303 = vadd.f32 %v2167, %v2239
      %v2304 = vadd.f32 %v2168, %v2240
      %v2305 = vadd.f32 %v2169, %v2241
      %v2306 = vadd.f32 %v2170, %v2242
      %v2307 = vadd.f32 %v2171, %v2243
      %v2308 = vadd.f32 %v2172, %v2244
      %v2309 = vadd.f32 %v2173, %v2245
      %v2310 = vadd.f32 %v2174, %v2246
      %v2311 = vadd.f32 %v2175, %v2247
      %v2312 = vadd.f32 %v2176, %v2248
      %v2313 = vadd.f32 %v2177, %v2249
      %v2314 = vadd.f32 %v2178, %v2250
      %v2315 = vadd.f32 %v2179, %v2251
      %v2316 = vadd.f32 %v2180, %v2252
      %v2317 = vadd.f32 %v2181, %v2253
      %v2318 = vadd.f32 %v2182, %v2254
      %v2319 = vadd.f32 %v2183, %v2255
      %v2320 = vadd.f32 %v2184, %v2256
      %v2321 = vadd.f32 %v2185, %v2257
      %v2322 = vadd.f32 %v2186, %v2258
      %v2323 = vadd.f32 %v2187, %v2259
      %v2324 = vadd.f32 %v2188, %v2260
      %v2325 = vadd.f32 %v2189, %v2261
      %v2326 = vadd.f32 %v2190, %v2262
      %v2327 = vadd.f32 %v2191, %v2263
      %v2328 = vadd.f32 %v2192, %v2264
      %v2329 = vadd.f32 %v2193, %v2265
      %v2330 = vadd.f32 %v2194, %v2266
      %v2331 = vadd.f32 %v2195, %v2267
      %v2332 = vadd.f32 %v2196, %v2268
      %v2333 = vadd.f32 %v2197, %v2269
      %v2334 = vadd.f32 %v2198, %v2270
      %v2335 = vadd.f32 %v2199, %v2271
      %v2336 = vadd.f32 %v2200, %v2272
      %v2337 = vadd.f32 %v2201, %v2273
      %v2338 = vadd.f32 %v2202, %v2274
      %v2339 = vadd.f32 %v2203, %v2275
      %v2340 = vadd.f32 %v2204, %v2276
      %v2341 = vadd.f32 %v2205, %v2277
      %v2342 = vadd.f32 %v2206, %v2278
      %v2343 = vadd.f32 %v2207, %v2279
      %v2344 = vadd.f32 %v2208, %v2280
      %v2345 = vadd.f32 %v2209, %v2281
      %v2346 = vadd.f32 %v2210, %v2282
      %v2347 = vadd.f32 %v2211, %v2283
      %v2348 = vadd.f32 %v2212, %v2284
      %v2349 = vadd.f32 %v2213, %v2285
      %v2350 = vadd.f32 %v2214, %v2286
      %v2351 = vadd.f32 %v2215, %v2287
      %v2352 = vadd.f32 %v2216, %v2288
      %v2353 = vadd.f32 %v2217, %v2289
      %v2354 = vadd.f32 %v2218, %v2290
      %v2355 = vadd.f32 %v2219, %v2291
      %v2356 = vadd.f32 %v2220, %v2292
      %v2357 = vadd.f32 %v2221, %v2293
      %v2358 = vadd.f32 %v2222, %v2294
      %v2359 = vadd.f32 %v2223, %v2295
      %v2360 = vadd.f32 %v2224, %v2296
      %v2361 = vadd.f32 %v2225, %v2297
      %v2362 = vadd.f32 %v2226, %v2298
      %v2363 = vperm.slane %v2089, 6
      %v2365 = vrot.slane %v2363, 2
      %v2366 = vrot.slane %v2363, 4
      %v2367 = vrot.slane %v2363, 6
      %v2371 = vmul.f32 %v2017, %v2363
      %v2372 = vmul.f32 %v2018, %v2365
      %v2373 = vmul.f32 %v2019, %v2366
      %v2374 = vmul.f32 %v2020, %v2367
      %v2375 = vmul.f32 %v2021, %v2363
      %v2376 = vmul.f32 %v2022, %v2365
      %v2377 = vmul.f32 %v2023, %v2366
      %v2378 = vmul.f32 %v2024, %v2367
      %v2379 = vmul.f32 %v2026, %v2363
      %v2380 = vmul.f32 %v2027, %v2365
      %v2381 = vmul.f32 %v2028, %v2366
      %v2382 = vmul.f32 %v2029, %v2367
      %v2383 = vmul.f32 %v2030, %v2363
      %v2384 = vmul.f32 %v2031, %v2365
      %v2385 = vmul.f32 %v2032, %v2366
      %v2386 = vmul.f32 %v2033, %v2367
      %v2387 = vmul.f32 %v2035, %v2363
      %v2388 = vmul.f32 %v2036, %v2365
      %v2389 = vmul.f32 %v2037, %v2366
      %v2390 = vmul.f32 %v2038, %v2367
      %v2391 = vmul.f32 %v2039, %v2363
      %v2392 = vmul.f32 %v2040, %v2365
      %v2393 = vmul.f32 %v2041, %v2366
      %v2394 = vmul.f32 %v2042, %v2367
      %v2395 = vmul.f32 %v2044, %v2363
      %v2396 = vmul.f32 %v2045, %v2365
      %v2397 = vmul.f32 %v2046, %v2366
      %v2398 = vmul.f32 %v2047, %v2367
      %v2399 = vmul.f32 %v2048, %v2363
      %v2400 = vmul.f32 %v2049, %v2365
      %v2401 = vmul.f32 %v2050, %v2366
      %v2402 = vmul.f32 %v2051, %v2367
      %v2403 = vmul.f32 %v2053, %v2363
      %v2404 = vmul.f32 %v2054, %v2365
      %v2405 = vmul.f32 %v2055, %v2366
      %v2406 = vmul.f32 %v2056, %v2367
      %v2407 = vmul.f32 %v2057, %v2363
      %v2408 = vmul.f32 %v2058, %v2365
      %v2409 = vmul.f32 %v2059, %v2366
      %v2410 = vmul.f32 %v2060, %v2367
      %v2411 = vmul.f32 %v2062, %v2363
      %v2412 = vmul.f32 %v2063, %v2365
      %v2413 = vmul.f32 %v2064, %v2366
      %v2414 = vmul.f32 %v2065, %v2367
      %v2415 = vmul.f32 %v2066, %v2363
      %v2416 = vmul.f32 %v2067, %v2365
      %v2417 = vmul.f32 %v2068, %v2366
      %v2418 = vmul.f32 %v2069, %v2367
      %v2419 = vmul.f32 %v2071, %v2363
      %v2420 = vmul.f32 %v2072, %v2365
      %v2421 = vmul.f32 %v2073, %v2366
      %v2422 = vmul.f32 %v2074, %v2367
      %v2423 = vmul.f32 %v2075, %v2363
      %v2424 = vmul.f32 %v2076, %v2365
      %v2425 = vmul.f32 %v2077, %v2366
      %v2426 = vmul.f32 %v2078, %v2367
      %v2427 = vmul.f32 %v2080, %v2363
      %v2428 = vmul.f32 %v2081, %v2365
      %v2429 = vmul.f32 %v2082, %v2366
      %v2430 = vmul.f32 %v2083, %v2367
      %v2431 = vmul.f32 %v2084, %v2363
      %v2432 = vmul.f32 %v2085, %v2365
      %v2433 = vmul.f32 %v2086, %v2366
      %v2434 = vmul.f32 %v2087, %v2367
      %v2435 = vadd.f32 %v2299, %v2371
      %v2436 = vadd.f32 %v2300, %v2372
      %v2437 = vadd.f32 %v2301, %v2373
      %v2438 = vadd.f32 %v2302, %v2374
      %v2439 = vadd.f32 %v2303, %v2375
      %v2440 = vadd.f32 %v2304, %v2376
      %v2441 = vadd.f32 %v2305, %v2377
      %v2442 = vadd.f32 %v2306, %v2378
      %v2443 = vadd.f32 %v2307, %v2379
      %v2444 = vadd.f32 %v2308, %v2380
      %v2445 = vadd.f32 %v2309, %v2381
      %v2446 = vadd.f32 %v2310, %v2382
      %v2447 = vadd.f32 %v2311, %v2383
      %v2448 = vadd.f32 %v2312, %v2384
      %v2449 = vadd.f32 %v2313, %v2385
      %v2450 = vadd.f32 %v2314, %v2386
      %v2451 = vadd.f32 %v2315, %v2387
      %v2452 = vadd.f32 %v2316, %v2388
      %v2453 = vadd.f32 %v2317, %v2389
      %v2454 = vadd.f32 %v2318, %v2390
      %v2455 = vadd.f32 %v2319, %v2391
      %v2456 = vadd.f32 %v2320, %v2392
      %v2457 = vadd.f32 %v2321, %v2393
      %v2458 = vadd.f32 %v2322, %v2394
      %v2459 = vadd.f32 %v2323, %v2395
      %v2460 = vadd.f32 %v2324, %v2396
      %v2461 = vadd.f32 %v2325, %v2397
      %v2462 = vadd.f32 %v2326, %v2398
      %v2463 = vadd.f32 %v2327, %v2399
      %v2464 = vadd.f32 %v2328, %v2400
      %v2465 = vadd.f32 %v2329, %v2401
      %v2466 = vadd.f32 %v2330, %v2402
      %v2467 = vadd.f32 %v2331, %v2403
      %v2468 = vadd.f32 %v2332, %v2404
      %v2469 = vadd.f32 %v2333, %v2405
      %v2470 = vadd.f32 %v2334, %v2406
      %v2471 = vadd.f32 %v2335, %v2407
      %v2472 = vadd.f32 %v2336, %v2408
      %v2473 = vadd.f32 %v2337, %v2409
      %v2474 = vadd.f32 %v2338, %v2410
      %v2475 = vadd.f32 %v2339, %v2411
      %v2476 = vadd.f32 %v2340, %v2412
      %v2477 = vadd.f32 %v2341, %v2413
      %v2478 = vadd.f32 %v2342, %v2414
      %v2479 = vadd.f32 %v2343, %v2415
      %v2480 = vadd.f32 %v2344, %v2416
      %v2481 = vadd.f32 %v2345, %v2417
      %v2482 = vadd.f32 %v2346, %v2418
      %v2483 = vadd.f32 %v2347, %v2419
      %v2484 = vadd.f32 %v2348, %v2420
      %v2485 = vadd.f32 %v2349, %v2421
      %v2486 = vadd.f32 %v2350, %v2422
      %v2487 = vadd.f32 %v2351, %v2423
      %v2488 = vadd.f32 %v2352, %v2424
      %v2489 = vadd.f32 %v2353, %v2425
      %v2490 = vadd.f32 %v2354, %v2426
      %v2491 = vadd.f32 %v2355, %v2427
      %v2492 = vadd.f32 %v2356, %v2428
      %v2493 = vadd.f32 %v2357, %v2429
      %v2494 = vadd.f32 %v2358, %v2430
      %v2495 = vadd.f32 %v2359, %v2431
      %v2496 = vadd.f32 %v2360, %v2432
      %v2497 = vadd.f32 %v2361, %v2433
      %v2498 = vadd.f32 %v2362, %v2434
      %v2499 = vperm.slane %v2089, 1
      %v2501 = vrot.slane %v2499, 2
      %v2502 = vrot.slane %v2499, 4
      %v2503 = vrot.slane %v2499, 6
      %vm2504 = vcmask 1040384
      %vm2505 = vcmask 1042434
      %vm2506 = vmor %vm2504, %vm2505
      %vm2507 = vcmask 1044484
      %vm2508 = vmor %vm2506, %vm2507
      %vm2509 = vcmask 1046534
      %vm2510 = vmor %vm2508, %vm2509
      %v2511 = vrot.slane %v2499, 7
      %v2512 = vrot.slane %v2511, 2
      %v2513 = vrot.slane %v2501, 7
      %v2514 = vsel %vm2510, %v2512, %v2513
      %v2515 = vrot.slane %v2513, 2
      %v2516 = vrot.slane %v2502, 7
      %v2517 = vsel %vm2510, %v2515, %v2516
      %v2518 = vrot.slane %v2516, 2
      %v2519 = vrot.slane %v2503, 7
      %v2520 = vsel %vm2510, %v2518, %v2519
      %v2521 = vrot.slane %v2519, 2
      %v2522 = vsel %vm2510, %v2521, %v2511
      %v2529 = vmul.f32 %v1999, %v2511
      %v2530 = vmul.f32 %v2000, %v2514
      %v2531 = vmul.f32 %v2001, %v2517
      %v2532 = vmul.f32 %v2002, %v2520
      %v2533 = vmul.f32 %v2003, %v2522
      %v2534 = vmul.f32 %v2004, %v2514
      %v2535 = vmul.f32 %v2005, %v2517
      %v2536 = vmul.f32 %v2006, %v2520
      %v2537 = vmul.f32 %v2007, %v2521
      %v2538 = vmul.f32 %v2008, %v2511
      %v2539 = vmul.f32 %v2009, %v2514
      %v2540 = vmul.f32 %v2010, %v2517
      %v2541 = vmul.f32 %v2011, %v2520
      %v2542 = vmul.f32 %v2012, %v2522
      %v2543 = vmul.f32 %v2013, %v2514
      %v2544 = vmul.f32 %v2014, %v2517
      %v2545 = vmul.f32 %v2015, %v2520
      %v2546 = vmul.f32 %v2016, %v2521
      %v2547 = vmul.f32 %v2017, %v2511
      %v2548 = vmul.f32 %v2018, %v2514
      %v2549 = vmul.f32 %v2019, %v2517
      %v2550 = vmul.f32 %v2020, %v2520
      %v2551 = vmul.f32 %v2021, %v2522
      %v2552 = vmul.f32 %v2022, %v2514
      %v2553 = vmul.f32 %v2023, %v2517
      %v2554 = vmul.f32 %v2024, %v2520
      %v2555 = vmul.f32 %v2025, %v2521
      %v2556 = vmul.f32 %v2026, %v2511
      %v2557 = vmul.f32 %v2027, %v2514
      %v2558 = vmul.f32 %v2028, %v2517
      %v2559 = vmul.f32 %v2029, %v2520
      %v2560 = vmul.f32 %v2030, %v2522
      %v2561 = vmul.f32 %v2031, %v2514
      %v2562 = vmul.f32 %v2032, %v2517
      %v2563 = vmul.f32 %v2033, %v2520
      %v2564 = vmul.f32 %v2034, %v2521
      %v2565 = vmul.f32 %v2035, %v2511
      %v2566 = vmul.f32 %v2036, %v2514
      %v2567 = vmul.f32 %v2037, %v2517
      %v2568 = vmul.f32 %v2038, %v2520
      %v2569 = vmul.f32 %v2039, %v2522
      %v2570 = vmul.f32 %v2040, %v2514
      %v2571 = vmul.f32 %v2041, %v2517
      %v2572 = vmul.f32 %v2042, %v2520
      %v2573 = vmul.f32 %v2043, %v2521
      %v2574 = vmul.f32 %v2044, %v2511
      %v2575 = vmul.f32 %v2045, %v2514
      %v2576 = vmul.f32 %v2046, %v2517
      %v2577 = vmul.f32 %v2047, %v2520
      %v2578 = vmul.f32 %v2048, %v2522
      %v2579 = vmul.f32 %v2049, %v2514
      %v2580 = vmul.f32 %v2050, %v2517
      %v2581 = vmul.f32 %v2051, %v2520
      %v2582 = vmul.f32 %v2052, %v2521
      %v2583 = vmul.f32 %v2053, %v2511
      %v2584 = vmul.f32 %v2054, %v2514
      %v2585 = vmul.f32 %v2055, %v2517
      %v2586 = vmul.f32 %v2056, %v2520
      %v2587 = vmul.f32 %v2057, %v2522
      %v2588 = vmul.f32 %v2058, %v2514
      %v2589 = vmul.f32 %v2059, %v2517
      %v2590 = vmul.f32 %v2060, %v2520
      %v2591 = vmul.f32 %v2061, %v2521
      %v2592 = vmul.f32 %v2062, %v2511
      %v2593 = vmul.f32 %v2063, %v2514
      %v2594 = vmul.f32 %v2064, %v2517
      %v2595 = vmul.f32 %v2065, %v2520
      %v2596 = vmul.f32 %v2066, %v2522
      %v2597 = vmul.f32 %v2067, %v2514
      %v2598 = vmul.f32 %v2068, %v2517
      %v2599 = vmul.f32 %v2069, %v2520
      %v2600 = vmul.f32 %v2070, %v2521
      %v2673 = vrot.slane %v2529, 7
      %v2674 = vrot.slane %v2673, 2
      %v2675 = vrot.slane %v2530, 7
      %v2676 = vsel %vm2510, %v2674, %v2675
      %v2677 = vrot.slane %v2675, 2
      %v2678 = vrot.slane %v2531, 7
      %v2679 = vsel %vm2510, %v2677, %v2678
      %v2680 = vrot.slane %v2678, 2
      %v2681 = vrot.slane %v2532, 7
      %v2682 = vsel %vm2510, %v2680, %v2681
      %v2683 = vrot.slane %v2681, 2
      %v2684 = vrot.slane %v2533, 7
      %v2685 = vsel %vm2510, %v2683, %v2684
      %v2686 = vrot.slane %v2684, 2
      %v2687 = vrot.slane %v2534, 7
      %v2688 = vsel %vm2510, %v2686, %v2687
      %v2689 = vrot.slane %v2687, 2
      %v2690 = vrot.slane %v2535, 7
      %v2691 = vsel %vm2510, %v2689, %v2690
      %v2692 = vrot.slane %v2690, 2
      %v2693 = vrot.slane %v2536, 7
      %v2694 = vsel %vm2510, %v2692, %v2693
      %v2695 = vrot.slane %v2693, 2
      %v2696 = vrot.slane %v2537, 7
      %v2697 = vsel %vm2510, %v2695, %v2696
      %v2698 = vrot.slane %v2538, 7
      %v2699 = vrot.slane %v2698, 2
      %v2700 = vrot.slane %v2539, 7
      %v2701 = vsel %vm2510, %v2699, %v2700
      %v2702 = vrot.slane %v2700, 2
      %v2703 = vrot.slane %v2540, 7
      %v2704 = vsel %vm2510, %v2702, %v2703
      %v2705 = vrot.slane %v2703, 2
      %v2706 = vrot.slane %v2541, 7
      %v2707 = vsel %vm2510, %v2705, %v2706
      %v2708 = vrot.slane %v2706, 2
      %v2709 = vrot.slane %v2542, 7
      %v2710 = vsel %vm2510, %v2708, %v2709
      %v2711 = vrot.slane %v2709, 2
      %v2712 = vrot.slane %v2543, 7
      %v2713 = vsel %vm2510, %v2711, %v2712
      %v2714 = vrot.slane %v2712, 2
      %v2715 = vrot.slane %v2544, 7
      %v2716 = vsel %vm2510, %v2714, %v2715
      %v2717 = vrot.slane %v2715, 2
      %v2718 = vrot.slane %v2545, 7
      %v2719 = vsel %vm2510, %v2717, %v2718
      %v2720 = vrot.slane %v2718, 2
      %v2721 = vrot.slane %v2546, 7
      %v2722 = vsel %vm2510, %v2720, %v2721
      %v2723 = vrot.slane %v2547, 7
      %v2724 = vrot.slane %v2723, 2
      %v2725 = vrot.slane %v2548, 7
      %v2726 = vsel %vm2510, %v2724, %v2725
      %v2727 = vrot.slane %v2725, 2
      %v2728 = vrot.slane %v2549, 7
      %v2729 = vsel %vm2510, %v2727, %v2728
      %v2730 = vrot.slane %v2728, 2
      %v2731 = vrot.slane %v2550, 7
      %v2732 = vsel %vm2510, %v2730, %v2731
      %v2733 = vrot.slane %v2731, 2
      %v2734 = vrot.slane %v2551, 7
      %v2735 = vsel %vm2510, %v2733, %v2734
      %v2736 = vrot.slane %v2734, 2
      %v2737 = vrot.slane %v2552, 7
      %v2738 = vsel %vm2510, %v2736, %v2737
      %v2739 = vrot.slane %v2737, 2
      %v2740 = vrot.slane %v2553, 7
      %v2741 = vsel %vm2510, %v2739, %v2740
      %v2742 = vrot.slane %v2740, 2
      %v2743 = vrot.slane %v2554, 7
      %v2744 = vsel %vm2510, %v2742, %v2743
      %v2745 = vrot.slane %v2743, 2
      %v2746 = vrot.slane %v2555, 7
      %v2747 = vsel %vm2510, %v2745, %v2746
      %v2748 = vrot.slane %v2556, 7
      %v2749 = vrot.slane %v2748, 2
      %v2750 = vrot.slane %v2557, 7
      %v2751 = vsel %vm2510, %v2749, %v2750
      %v2752 = vrot.slane %v2750, 2
      %v2753 = vrot.slane %v2558, 7
      %v2754 = vsel %vm2510, %v2752, %v2753
      %v2755 = vrot.slane %v2753, 2
      %v2756 = vrot.slane %v2559, 7
      %v2757 = vsel %vm2510, %v2755, %v2756
      %v2758 = vrot.slane %v2756, 2
      %v2759 = vrot.slane %v2560, 7
      %v2760 = vsel %vm2510, %v2758, %v2759
      %v2761 = vrot.slane %v2759, 2
      %v2762 = vrot.slane %v2561, 7
      %v2763 = vsel %vm2510, %v2761, %v2762
      %v2764 = vrot.slane %v2762, 2
      %v2765 = vrot.slane %v2562, 7
      %v2766 = vsel %vm2510, %v2764, %v2765
      %v2767 = vrot.slane %v2765, 2
      %v2768 = vrot.slane %v2563, 7
      %v2769 = vsel %vm2510, %v2767, %v2768
      %v2770 = vrot.slane %v2768, 2
      %v2771 = vrot.slane %v2564, 7
      %v2772 = vsel %vm2510, %v2770, %v2771
      %v2773 = vrot.slane %v2565, 7
      %v2774 = vrot.slane %v2773, 2
      %v2775 = vrot.slane %v2566, 7
      %v2776 = vsel %vm2510, %v2774, %v2775
      %v2777 = vrot.slane %v2775, 2
      %v2778 = vrot.slane %v2567, 7
      %v2779 = vsel %vm2510, %v2777, %v2778
      %v2780 = vrot.slane %v2778, 2
      %v2781 = vrot.slane %v2568, 7
      %v2782 = vsel %vm2510, %v2780, %v2781
      %v2783 = vrot.slane %v2781, 2
      %v2784 = vrot.slane %v2569, 7
      %v2785 = vsel %vm2510, %v2783, %v2784
      %v2786 = vrot.slane %v2784, 2
      %v2787 = vrot.slane %v2570, 7
      %v2788 = vsel %vm2510, %v2786, %v2787
      %v2789 = vrot.slane %v2787, 2
      %v2790 = vrot.slane %v2571, 7
      %v2791 = vsel %vm2510, %v2789, %v2790
      %v2792 = vrot.slane %v2790, 2
      %v2793 = vrot.slane %v2572, 7
      %v2794 = vsel %vm2510, %v2792, %v2793
      %v2795 = vrot.slane %v2793, 2
      %v2796 = vrot.slane %v2573, 7
      %v2797 = vsel %vm2510, %v2795, %v2796
      %v2798 = vrot.slane %v2574, 7
      %v2799 = vrot.slane %v2798, 2
      %v2800 = vrot.slane %v2575, 7
      %v2801 = vsel %vm2510, %v2799, %v2800
      %v2802 = vrot.slane %v2800, 2
      %v2803 = vrot.slane %v2576, 7
      %v2804 = vsel %vm2510, %v2802, %v2803
      %v2805 = vrot.slane %v2803, 2
      %v2806 = vrot.slane %v2577, 7
      %v2807 = vsel %vm2510, %v2805, %v2806
      %v2808 = vrot.slane %v2806, 2
      %v2809 = vrot.slane %v2578, 7
      %v2810 = vsel %vm2510, %v2808, %v2809
      %v2811 = vrot.slane %v2809, 2
      %v2812 = vrot.slane %v2579, 7
      %v2813 = vsel %vm2510, %v2811, %v2812
      %v2814 = vrot.slane %v2812, 2
      %v2815 = vrot.slane %v2580, 7
      %v2816 = vsel %vm2510, %v2814, %v2815
      %v2817 = vrot.slane %v2815, 2
      %v2818 = vrot.slane %v2581, 7
      %v2819 = vsel %vm2510, %v2817, %v2818
      %v2820 = vrot.slane %v2818, 2
      %v2821 = vrot.slane %v2582, 7
      %v2822 = vsel %vm2510, %v2820, %v2821
      %v2823 = vrot.slane %v2583, 7
      %v2824 = vrot.slane %v2823, 2
      %v2825 = vrot.slane %v2584, 7
      %v2826 = vsel %vm2510, %v2824, %v2825
      %v2827 = vrot.slane %v2825, 2
      %v2828 = vrot.slane %v2585, 7
      %v2829 = vsel %vm2510, %v2827, %v2828
      %v2830 = vrot.slane %v2828, 2
      %v2831 = vrot.slane %v2586, 7
      %v2832 = vsel %vm2510, %v2830, %v2831
      %v2833 = vrot.slane %v2831, 2
      %v2834 = vrot.slane %v2587, 7
      %v2835 = vsel %vm2510, %v2833, %v2834
      %v2836 = vrot.slane %v2834, 2
      %v2837 = vrot.slane %v2588, 7
      %v2838 = vsel %vm2510, %v2836, %v2837
      %v2839 = vrot.slane %v2837, 2
      %v2840 = vrot.slane %v2589, 7
      %v2841 = vsel %vm2510, %v2839, %v2840
      %v2842 = vrot.slane %v2840, 2
      %v2843 = vrot.slane %v2590, 7
      %v2844 = vsel %vm2510, %v2842, %v2843
      %v2845 = vrot.slane %v2843, 2
      %v2846 = vrot.slane %v2591, 7
      %v2847 = vsel %vm2510, %v2845, %v2846
      %v2848 = vrot.slane %v2592, 7
      %v2849 = vrot.slane %v2848, 2
      %v2850 = vrot.slane %v2593, 7
      %v2851 = vsel %vm2510, %v2849, %v2850
      %v2852 = vrot.slane %v2850, 2
      %v2853 = vrot.slane %v2594, 7
      %v2854 = vsel %vm2510, %v2852, %v2853
      %v2855 = vrot.slane %v2853, 2
      %v2856 = vrot.slane %v2595, 7
      %v2857 = vsel %vm2510, %v2855, %v2856
      %v2858 = vrot.slane %v2856, 2
      %v2859 = vrot.slane %v2596, 7
      %v2860 = vsel %vm2510, %v2858, %v2859
      %v2861 = vrot.slane %v2859, 2
      %v2862 = vrot.slane %v2597, 7
      %v2863 = vsel %vm2510, %v2861, %v2862
      %v2864 = vrot.slane %v2862, 2
      %v2865 = vrot.slane %v2598, 7
      %v2866 = vsel %vm2510, %v2864, %v2865
      %v2867 = vrot.slane %v2865, 2
      %v2868 = vrot.slane %v2599, 7
      %v2869 = vsel %vm2510, %v2867, %v2868
      %v2870 = vrot.slane %v2868, 2
      %v2871 = vrot.slane %v2600, 7
      %v2872 = vsel %vm2510, %v2870, %v2871
      %v2937 = vadd.f32 %v2435, %v2676
      %v2938 = vadd.f32 %v2436, %v2679
      %v2939 = vadd.f32 %v2437, %v2682
      %v2940 = vadd.f32 %v2438, %v2685
      %v2941 = vadd.f32 %v2439, %v2688
      %v2942 = vadd.f32 %v2440, %v2691
      %v2943 = vadd.f32 %v2441, %v2694
      %v2944 = vadd.f32 %v2442, %v2697
      %v2945 = vadd.f32 %v2443, %v2701
      %v2946 = vadd.f32 %v2444, %v2704
      %v2947 = vadd.f32 %v2445, %v2707
      %v2948 = vadd.f32 %v2446, %v2710
      %v2949 = vadd.f32 %v2447, %v2713
      %v2950 = vadd.f32 %v2448, %v2716
      %v2951 = vadd.f32 %v2449, %v2719
      %v2952 = vadd.f32 %v2450, %v2722
      %v2953 = vadd.f32 %v2451, %v2726
      %v2954 = vadd.f32 %v2452, %v2729
      %v2955 = vadd.f32 %v2453, %v2732
      %v2956 = vadd.f32 %v2454, %v2735
      %v2957 = vadd.f32 %v2455, %v2738
      %v2958 = vadd.f32 %v2456, %v2741
      %v2959 = vadd.f32 %v2457, %v2744
      %v2960 = vadd.f32 %v2458, %v2747
      %v2961 = vadd.f32 %v2459, %v2751
      %v2962 = vadd.f32 %v2460, %v2754
      %v2963 = vadd.f32 %v2461, %v2757
      %v2964 = vadd.f32 %v2462, %v2760
      %v2965 = vadd.f32 %v2463, %v2763
      %v2966 = vadd.f32 %v2464, %v2766
      %v2967 = vadd.f32 %v2465, %v2769
      %v2968 = vadd.f32 %v2466, %v2772
      %v2969 = vadd.f32 %v2467, %v2776
      %v2970 = vadd.f32 %v2468, %v2779
      %v2971 = vadd.f32 %v2469, %v2782
      %v2972 = vadd.f32 %v2470, %v2785
      %v2973 = vadd.f32 %v2471, %v2788
      %v2974 = vadd.f32 %v2472, %v2791
      %v2975 = vadd.f32 %v2473, %v2794
      %v2976 = vadd.f32 %v2474, %v2797
      %v2977 = vadd.f32 %v2475, %v2801
      %v2978 = vadd.f32 %v2476, %v2804
      %v2979 = vadd.f32 %v2477, %v2807
      %v2980 = vadd.f32 %v2478, %v2810
      %v2981 = vadd.f32 %v2479, %v2813
      %v2982 = vadd.f32 %v2480, %v2816
      %v2983 = vadd.f32 %v2481, %v2819
      %v2984 = vadd.f32 %v2482, %v2822
      %v2985 = vadd.f32 %v2483, %v2826
      %v2986 = vadd.f32 %v2484, %v2829
      %v2987 = vadd.f32 %v2485, %v2832
      %v2988 = vadd.f32 %v2486, %v2835
      %v2989 = vadd.f32 %v2487, %v2838
      %v2990 = vadd.f32 %v2488, %v2841
      %v2991 = vadd.f32 %v2489, %v2844
      %v2992 = vadd.f32 %v2490, %v2847
      %v2993 = vadd.f32 %v2491, %v2851
      %v2994 = vadd.f32 %v2492, %v2854
      %v2995 = vadd.f32 %v2493, %v2857
      %v2996 = vadd.f32 %v2494, %v2860
      %v2997 = vadd.f32 %v2495, %v2863
      %v2998 = vadd.f32 %v2496, %v2866
      %v2999 = vadd.f32 %v2497, %v2869
      %v3000 = vadd.f32 %v2498, %v2872
      %v3001 = vperm.slane %v2089, 4
      %v3003 = vrot.slane %v3001, 2
      %v3004 = vrot.slane %v3001, 4
      %v3005 = vrot.slane %v3001, 6
      %v3006 = vrot.slane %v3001, 7
      %v3007 = vrot.slane %v3006, 2
      %v3008 = vrot.slane %v3003, 7
      %v3009 = vsel %vm2510, %v3007, %v3008
      %v3010 = vrot.slane %v3008, 2
      %v3011 = vrot.slane %v3004, 7
      %v3012 = vsel %vm2510, %v3010, %v3011
      %v3013 = vrot.slane %v3011, 2
      %v3014 = vrot.slane %v3005, 7
      %v3015 = vsel %vm2510, %v3013, %v3014
      %v3016 = vrot.slane %v3014, 2
      %v3017 = vsel %vm2510, %v3016, %v3006
      %v3024 = vmul.f32 %v2008, %v3006
      %v3025 = vmul.f32 %v2009, %v3009
      %v3026 = vmul.f32 %v2010, %v3012
      %v3027 = vmul.f32 %v2011, %v3015
      %v3028 = vmul.f32 %v2012, %v3017
      %v3029 = vmul.f32 %v2013, %v3009
      %v3030 = vmul.f32 %v2014, %v3012
      %v3031 = vmul.f32 %v2015, %v3015
      %v3032 = vmul.f32 %v2016, %v3016
      %v3033 = vmul.f32 %v2017, %v3006
      %v3034 = vmul.f32 %v2018, %v3009
      %v3035 = vmul.f32 %v2019, %v3012
      %v3036 = vmul.f32 %v2020, %v3015
      %v3037 = vmul.f32 %v2021, %v3017
      %v3038 = vmul.f32 %v2022, %v3009
      %v3039 = vmul.f32 %v2023, %v3012
      %v3040 = vmul.f32 %v2024, %v3015
      %v3041 = vmul.f32 %v2025, %v3016
      %v3042 = vmul.f32 %v2026, %v3006
      %v3043 = vmul.f32 %v2027, %v3009
      %v3044 = vmul.f32 %v2028, %v3012
      %v3045 = vmul.f32 %v2029, %v3015
      %v3046 = vmul.f32 %v2030, %v3017
      %v3047 = vmul.f32 %v2031, %v3009
      %v3048 = vmul.f32 %v2032, %v3012
      %v3049 = vmul.f32 %v2033, %v3015
      %v3050 = vmul.f32 %v2034, %v3016
      %v3051 = vmul.f32 %v2035, %v3006
      %v3052 = vmul.f32 %v2036, %v3009
      %v3053 = vmul.f32 %v2037, %v3012
      %v3054 = vmul.f32 %v2038, %v3015
      %v3055 = vmul.f32 %v2039, %v3017
      %v3056 = vmul.f32 %v2040, %v3009
      %v3057 = vmul.f32 %v2041, %v3012
      %v3058 = vmul.f32 %v2042, %v3015
      %v3059 = vmul.f32 %v2043, %v3016
      %v3060 = vmul.f32 %v2044, %v3006
      %v3061 = vmul.f32 %v2045, %v3009
      %v3062 = vmul.f32 %v2046, %v3012
      %v3063 = vmul.f32 %v2047, %v3015
      %v3064 = vmul.f32 %v2048, %v3017
      %v3065 = vmul.f32 %v2049, %v3009
      %v3066 = vmul.f32 %v2050, %v3012
      %v3067 = vmul.f32 %v2051, %v3015
      %v3068 = vmul.f32 %v2052, %v3016
      %v3069 = vmul.f32 %v2053, %v3006
      %v3070 = vmul.f32 %v2054, %v3009
      %v3071 = vmul.f32 %v2055, %v3012
      %v3072 = vmul.f32 %v2056, %v3015
      %v3073 = vmul.f32 %v2057, %v3017
      %v3074 = vmul.f32 %v2058, %v3009
      %v3075 = vmul.f32 %v2059, %v3012
      %v3076 = vmul.f32 %v2060, %v3015
      %v3077 = vmul.f32 %v2061, %v3016
      %v3078 = vmul.f32 %v2062, %v3006
      %v3079 = vmul.f32 %v2063, %v3009
      %v3080 = vmul.f32 %v2064, %v3012
      %v3081 = vmul.f32 %v2065, %v3015
      %v3082 = vmul.f32 %v2066, %v3017
      %v3083 = vmul.f32 %v2067, %v3009
      %v3084 = vmul.f32 %v2068, %v3012
      %v3085 = vmul.f32 %v2069, %v3015
      %v3086 = vmul.f32 %v2070, %v3016
      %v3087 = vmul.f32 %v2071, %v3006
      %v3088 = vmul.f32 %v2072, %v3009
      %v3089 = vmul.f32 %v2073, %v3012
      %v3090 = vmul.f32 %v2074, %v3015
      %v3091 = vmul.f32 %v2075, %v3017
      %v3092 = vmul.f32 %v2076, %v3009
      %v3093 = vmul.f32 %v2077, %v3012
      %v3094 = vmul.f32 %v2078, %v3015
      %v3095 = vmul.f32 %v2079, %v3016
      %v3168 = vrot.slane %v3024, 7
      %v3169 = vrot.slane %v3168, 2
      %v3170 = vrot.slane %v3025, 7
      %v3171 = vsel %vm2510, %v3169, %v3170
      %v3172 = vrot.slane %v3170, 2
      %v3173 = vrot.slane %v3026, 7
      %v3174 = vsel %vm2510, %v3172, %v3173
      %v3175 = vrot.slane %v3173, 2
      %v3176 = vrot.slane %v3027, 7
      %v3177 = vsel %vm2510, %v3175, %v3176
      %v3178 = vrot.slane %v3176, 2
      %v3179 = vrot.slane %v3028, 7
      %v3180 = vsel %vm2510, %v3178, %v3179
      %v3181 = vrot.slane %v3179, 2
      %v3182 = vrot.slane %v3029, 7
      %v3183 = vsel %vm2510, %v3181, %v3182
      %v3184 = vrot.slane %v3182, 2
      %v3185 = vrot.slane %v3030, 7
      %v3186 = vsel %vm2510, %v3184, %v3185
      %v3187 = vrot.slane %v3185, 2
      %v3188 = vrot.slane %v3031, 7
      %v3189 = vsel %vm2510, %v3187, %v3188
      %v3190 = vrot.slane %v3188, 2
      %v3191 = vrot.slane %v3032, 7
      %v3192 = vsel %vm2510, %v3190, %v3191
      %v3193 = vrot.slane %v3033, 7
      %v3194 = vrot.slane %v3193, 2
      %v3195 = vrot.slane %v3034, 7
      %v3196 = vsel %vm2510, %v3194, %v3195
      %v3197 = vrot.slane %v3195, 2
      %v3198 = vrot.slane %v3035, 7
      %v3199 = vsel %vm2510, %v3197, %v3198
      %v3200 = vrot.slane %v3198, 2
      %v3201 = vrot.slane %v3036, 7
      %v3202 = vsel %vm2510, %v3200, %v3201
      %v3203 = vrot.slane %v3201, 2
      %v3204 = vrot.slane %v3037, 7
      %v3205 = vsel %vm2510, %v3203, %v3204
      %v3206 = vrot.slane %v3204, 2
      %v3207 = vrot.slane %v3038, 7
      %v3208 = vsel %vm2510, %v3206, %v3207
      %v3209 = vrot.slane %v3207, 2
      %v3210 = vrot.slane %v3039, 7
      %v3211 = vsel %vm2510, %v3209, %v3210
      %v3212 = vrot.slane %v3210, 2
      %v3213 = vrot.slane %v3040, 7
      %v3214 = vsel %vm2510, %v3212, %v3213
      %v3215 = vrot.slane %v3213, 2
      %v3216 = vrot.slane %v3041, 7
      %v3217 = vsel %vm2510, %v3215, %v3216
      %v3218 = vrot.slane %v3042, 7
      %v3219 = vrot.slane %v3218, 2
      %v3220 = vrot.slane %v3043, 7
      %v3221 = vsel %vm2510, %v3219, %v3220
      %v3222 = vrot.slane %v3220, 2
      %v3223 = vrot.slane %v3044, 7
      %v3224 = vsel %vm2510, %v3222, %v3223
      %v3225 = vrot.slane %v3223, 2
      %v3226 = vrot.slane %v3045, 7
      %v3227 = vsel %vm2510, %v3225, %v3226
      %v3228 = vrot.slane %v3226, 2
      %v3229 = vrot.slane %v3046, 7
      %v3230 = vsel %vm2510, %v3228, %v3229
      %v3231 = vrot.slane %v3229, 2
      %v3232 = vrot.slane %v3047, 7
      %v3233 = vsel %vm2510, %v3231, %v3232
      %v3234 = vrot.slane %v3232, 2
      %v3235 = vrot.slane %v3048, 7
      %v3236 = vsel %vm2510, %v3234, %v3235
      %v3237 = vrot.slane %v3235, 2
      %v3238 = vrot.slane %v3049, 7
      %v3239 = vsel %vm2510, %v3237, %v3238
      %v3240 = vrot.slane %v3238, 2
      %v3241 = vrot.slane %v3050, 7
      %v3242 = vsel %vm2510, %v3240, %v3241
      %v3243 = vrot.slane %v3051, 7
      %v3244 = vrot.slane %v3243, 2
      %v3245 = vrot.slane %v3052, 7
      %v3246 = vsel %vm2510, %v3244, %v3245
      %v3247 = vrot.slane %v3245, 2
      %v3248 = vrot.slane %v3053, 7
      %v3249 = vsel %vm2510, %v3247, %v3248
      %v3250 = vrot.slane %v3248, 2
      %v3251 = vrot.slane %v3054, 7
      %v3252 = vsel %vm2510, %v3250, %v3251
      %v3253 = vrot.slane %v3251, 2
      %v3254 = vrot.slane %v3055, 7
      %v3255 = vsel %vm2510, %v3253, %v3254
      %v3256 = vrot.slane %v3254, 2
      %v3257 = vrot.slane %v3056, 7
      %v3258 = vsel %vm2510, %v3256, %v3257
      %v3259 = vrot.slane %v3257, 2
      %v3260 = vrot.slane %v3057, 7
      %v3261 = vsel %vm2510, %v3259, %v3260
      %v3262 = vrot.slane %v3260, 2
      %v3263 = vrot.slane %v3058, 7
      %v3264 = vsel %vm2510, %v3262, %v3263
      %v3265 = vrot.slane %v3263, 2
      %v3266 = vrot.slane %v3059, 7
      %v3267 = vsel %vm2510, %v3265, %v3266
      %v3268 = vrot.slane %v3060, 7
      %v3269 = vrot.slane %v3268, 2
      %v3270 = vrot.slane %v3061, 7
      %v3271 = vsel %vm2510, %v3269, %v3270
      %v3272 = vrot.slane %v3270, 2
      %v3273 = vrot.slane %v3062, 7
      %v3274 = vsel %vm2510, %v3272, %v3273
      %v3275 = vrot.slane %v3273, 2
      %v3276 = vrot.slane %v3063, 7
      %v3277 = vsel %vm2510, %v3275, %v3276
      %v3278 = vrot.slane %v3276, 2
      %v3279 = vrot.slane %v3064, 7
      %v3280 = vsel %vm2510, %v3278, %v3279
      %v3281 = vrot.slane %v3279, 2
      %v3282 = vrot.slane %v3065, 7
      %v3283 = vsel %vm2510, %v3281, %v3282
      %v3284 = vrot.slane %v3282, 2
      %v3285 = vrot.slane %v3066, 7
      %v3286 = vsel %vm2510, %v3284, %v3285
      %v3287 = vrot.slane %v3285, 2
      %v3288 = vrot.slane %v3067, 7
      %v3289 = vsel %vm2510, %v3287, %v3288
      %v3290 = vrot.slane %v3288, 2
      %v3291 = vrot.slane %v3068, 7
      %v3292 = vsel %vm2510, %v3290, %v3291
      %v3293 = vrot.slane %v3069, 7
      %v3294 = vrot.slane %v3293, 2
      %v3295 = vrot.slane %v3070, 7
      %v3296 = vsel %vm2510, %v3294, %v3295
      %v3297 = vrot.slane %v3295, 2
      %v3298 = vrot.slane %v3071, 7
      %v3299 = vsel %vm2510, %v3297, %v3298
      %v3300 = vrot.slane %v3298, 2
      %v3301 = vrot.slane %v3072, 7
      %v3302 = vsel %vm2510, %v3300, %v3301
      %v3303 = vrot.slane %v3301, 2
      %v3304 = vrot.slane %v3073, 7
      %v3305 = vsel %vm2510, %v3303, %v3304
      %v3306 = vrot.slane %v3304, 2
      %v3307 = vrot.slane %v3074, 7
      %v3308 = vsel %vm2510, %v3306, %v3307
      %v3309 = vrot.slane %v3307, 2
      %v3310 = vrot.slane %v3075, 7
      %v3311 = vsel %vm2510, %v3309, %v3310
      %v3312 = vrot.slane %v3310, 2
      %v3313 = vrot.slane %v3076, 7
      %v3314 = vsel %vm2510, %v3312, %v3313
      %v3315 = vrot.slane %v3313, 2
      %v3316 = vrot.slane %v3077, 7
      %v3317 = vsel %vm2510, %v3315, %v3316
      %v3318 = vrot.slane %v3078, 7
      %v3319 = vrot.slane %v3318, 2
      %v3320 = vrot.slane %v3079, 7
      %v3321 = vsel %vm2510, %v3319, %v3320
      %v3322 = vrot.slane %v3320, 2
      %v3323 = vrot.slane %v3080, 7
      %v3324 = vsel %vm2510, %v3322, %v3323
      %v3325 = vrot.slane %v3323, 2
      %v3326 = vrot.slane %v3081, 7
      %v3327 = vsel %vm2510, %v3325, %v3326
      %v3328 = vrot.slane %v3326, 2
      %v3329 = vrot.slane %v3082, 7
      %v3330 = vsel %vm2510, %v3328, %v3329
      %v3331 = vrot.slane %v3329, 2
      %v3332 = vrot.slane %v3083, 7
      %v3333 = vsel %vm2510, %v3331, %v3332
      %v3334 = vrot.slane %v3332, 2
      %v3335 = vrot.slane %v3084, 7
      %v3336 = vsel %vm2510, %v3334, %v3335
      %v3337 = vrot.slane %v3335, 2
      %v3338 = vrot.slane %v3085, 7
      %v3339 = vsel %vm2510, %v3337, %v3338
      %v3340 = vrot.slane %v3338, 2
      %v3341 = vrot.slane %v3086, 7
      %v3342 = vsel %vm2510, %v3340, %v3341
      %v3343 = vrot.slane %v3087, 7
      %v3344 = vrot.slane %v3343, 2
      %v3345 = vrot.slane %v3088, 7
      %v3346 = vsel %vm2510, %v3344, %v3345
      %v3347 = vrot.slane %v3345, 2
      %v3348 = vrot.slane %v3089, 7
      %v3349 = vsel %vm2510, %v3347, %v3348
      %v3350 = vrot.slane %v3348, 2
      %v3351 = vrot.slane %v3090, 7
      %v3352 = vsel %vm2510, %v3350, %v3351
      %v3353 = vrot.slane %v3351, 2
      %v3354 = vrot.slane %v3091, 7
      %v3355 = vsel %vm2510, %v3353, %v3354
      %v3356 = vrot.slane %v3354, 2
      %v3357 = vrot.slane %v3092, 7
      %v3358 = vsel %vm2510, %v3356, %v3357
      %v3359 = vrot.slane %v3357, 2
      %v3360 = vrot.slane %v3093, 7
      %v3361 = vsel %vm2510, %v3359, %v3360
      %v3362 = vrot.slane %v3360, 2
      %v3363 = vrot.slane %v3094, 7
      %v3364 = vsel %vm2510, %v3362, %v3363
      %v3365 = vrot.slane %v3363, 2
      %v3366 = vrot.slane %v3095, 7
      %v3367 = vsel %vm2510, %v3365, %v3366
      %v3432 = vadd.f32 %v2937, %v3171
      %v3433 = vadd.f32 %v2938, %v3174
      %v3434 = vadd.f32 %v2939, %v3177
      %v3435 = vadd.f32 %v2940, %v3180
      %v3436 = vadd.f32 %v2941, %v3183
      %v3437 = vadd.f32 %v2942, %v3186
      %v3438 = vadd.f32 %v2943, %v3189
      %v3439 = vadd.f32 %v2944, %v3192
      %v3440 = vadd.f32 %v2945, %v3196
      %v3441 = vadd.f32 %v2946, %v3199
      %v3442 = vadd.f32 %v2947, %v3202
      %v3443 = vadd.f32 %v2948, %v3205
      %v3444 = vadd.f32 %v2949, %v3208
      %v3445 = vadd.f32 %v2950, %v3211
      %v3446 = vadd.f32 %v2951, %v3214
      %v3447 = vadd.f32 %v2952, %v3217
      %v3448 = vadd.f32 %v2953, %v3221
      %v3449 = vadd.f32 %v2954, %v3224
      %v3450 = vadd.f32 %v2955, %v3227
      %v3451 = vadd.f32 %v2956, %v3230
      %v3452 = vadd.f32 %v2957, %v3233
      %v3453 = vadd.f32 %v2958, %v3236
      %v3454 = vadd.f32 %v2959, %v3239
      %v3455 = vadd.f32 %v2960, %v3242
      %v3456 = vadd.f32 %v2961, %v3246
      %v3457 = vadd.f32 %v2962, %v3249
      %v3458 = vadd.f32 %v2963, %v3252
      %v3459 = vadd.f32 %v2964, %v3255
      %v3460 = vadd.f32 %v2965, %v3258
      %v3461 = vadd.f32 %v2966, %v3261
      %v3462 = vadd.f32 %v2967, %v3264
      %v3463 = vadd.f32 %v2968, %v3267
      %v3464 = vadd.f32 %v2969, %v3271
      %v3465 = vadd.f32 %v2970, %v3274
      %v3466 = vadd.f32 %v2971, %v3277
      %v3467 = vadd.f32 %v2972, %v3280
      %v3468 = vadd.f32 %v2973, %v3283
      %v3469 = vadd.f32 %v2974, %v3286
      %v3470 = vadd.f32 %v2975, %v3289
      %v3471 = vadd.f32 %v2976, %v3292
      %v3472 = vadd.f32 %v2977, %v3296
      %v3473 = vadd.f32 %v2978, %v3299
      %v3474 = vadd.f32 %v2979, %v3302
      %v3475 = vadd.f32 %v2980, %v3305
      %v3476 = vadd.f32 %v2981, %v3308
      %v3477 = vadd.f32 %v2982, %v3311
      %v3478 = vadd.f32 %v2983, %v3314
      %v3479 = vadd.f32 %v2984, %v3317
      %v3480 = vadd.f32 %v2985, %v3321
      %v3481 = vadd.f32 %v2986, %v3324
      %v3482 = vadd.f32 %v2987, %v3327
      %v3483 = vadd.f32 %v2988, %v3330
      %v3484 = vadd.f32 %v2989, %v3333
      %v3485 = vadd.f32 %v2990, %v3336
      %v3486 = vadd.f32 %v2991, %v3339
      %v3487 = vadd.f32 %v2992, %v3342
      %v3488 = vadd.f32 %v2993, %v3346
      %v3489 = vadd.f32 %v2994, %v3349
      %v3490 = vadd.f32 %v2995, %v3352
      %v3491 = vadd.f32 %v2996, %v3355
      %v3492 = vadd.f32 %v2997, %v3358
      %v3493 = vadd.f32 %v2998, %v3361
      %v3494 = vadd.f32 %v2999, %v3364
      %v3495 = vadd.f32 %v3000, %v3367
      %v3496 = vperm.slane %v2089, 7
      %v3498 = vrot.slane %v3496, 2
      %v3499 = vrot.slane %v3496, 4
      %v3500 = vrot.slane %v3496, 6
      %v3501 = vrot.slane %v3496, 7
      %v3502 = vrot.slane %v3501, 2
      %v3503 = vrot.slane %v3498, 7
      %v3504 = vsel %vm2510, %v3502, %v3503
      %v3505 = vrot.slane %v3503, 2
      %v3506 = vrot.slane %v3499, 7
      %v3507 = vsel %vm2510, %v3505, %v3506
      %v3508 = vrot.slane %v3506, 2
      %v3509 = vrot.slane %v3500, 7
      %v3510 = vsel %vm2510, %v3508, %v3509
      %v3511 = vrot.slane %v3509, 2
      %v3512 = vsel %vm2510, %v3511, %v3501
      %v3519 = vmul.f32 %v2017, %v3501
      %v3520 = vmul.f32 %v2018, %v3504
      %v3521 = vmul.f32 %v2019, %v3507
      %v3522 = vmul.f32 %v2020, %v3510
      %v3523 = vmul.f32 %v2021, %v3512
      %v3524 = vmul.f32 %v2022, %v3504
      %v3525 = vmul.f32 %v2023, %v3507
      %v3526 = vmul.f32 %v2024, %v3510
      %v3527 = vmul.f32 %v2025, %v3511
      %v3528 = vmul.f32 %v2026, %v3501
      %v3529 = vmul.f32 %v2027, %v3504
      %v3530 = vmul.f32 %v2028, %v3507
      %v3531 = vmul.f32 %v2029, %v3510
      %v3532 = vmul.f32 %v2030, %v3512
      %v3533 = vmul.f32 %v2031, %v3504
      %v3534 = vmul.f32 %v2032, %v3507
      %v3535 = vmul.f32 %v2033, %v3510
      %v3536 = vmul.f32 %v2034, %v3511
      %v3537 = vmul.f32 %v2035, %v3501
      %v3538 = vmul.f32 %v2036, %v3504
      %v3539 = vmul.f32 %v2037, %v3507
      %v3540 = vmul.f32 %v2038, %v3510
      %v3541 = vmul.f32 %v2039, %v3512
      %v3542 = vmul.f32 %v2040, %v3504
      %v3543 = vmul.f32 %v2041, %v3507
      %v3544 = vmul.f32 %v2042, %v3510
      %v3545 = vmul.f32 %v2043, %v3511
      %v3546 = vmul.f32 %v2044, %v3501
      %v3547 = vmul.f32 %v2045, %v3504
      %v3548 = vmul.f32 %v2046, %v3507
      %v3549 = vmul.f32 %v2047, %v3510
      %v3550 = vmul.f32 %v2048, %v3512
      %v3551 = vmul.f32 %v2049, %v3504
      %v3552 = vmul.f32 %v2050, %v3507
      %v3553 = vmul.f32 %v2051, %v3510
      %v3554 = vmul.f32 %v2052, %v3511
      %v3555 = vmul.f32 %v2053, %v3501
      %v3556 = vmul.f32 %v2054, %v3504
      %v3557 = vmul.f32 %v2055, %v3507
      %v3558 = vmul.f32 %v2056, %v3510
      %v3559 = vmul.f32 %v2057, %v3512
      %v3560 = vmul.f32 %v2058, %v3504
      %v3561 = vmul.f32 %v2059, %v3507
      %v3562 = vmul.f32 %v2060, %v3510
      %v3563 = vmul.f32 %v2061, %v3511
      %v3564 = vmul.f32 %v2062, %v3501
      %v3565 = vmul.f32 %v2063, %v3504
      %v3566 = vmul.f32 %v2064, %v3507
      %v3567 = vmul.f32 %v2065, %v3510
      %v3568 = vmul.f32 %v2066, %v3512
      %v3569 = vmul.f32 %v2067, %v3504
      %v3570 = vmul.f32 %v2068, %v3507
      %v3571 = vmul.f32 %v2069, %v3510
      %v3572 = vmul.f32 %v2070, %v3511
      %v3573 = vmul.f32 %v2071, %v3501
      %v3574 = vmul.f32 %v2072, %v3504
      %v3575 = vmul.f32 %v2073, %v3507
      %v3576 = vmul.f32 %v2074, %v3510
      %v3577 = vmul.f32 %v2075, %v3512
      %v3578 = vmul.f32 %v2076, %v3504
      %v3579 = vmul.f32 %v2077, %v3507
      %v3580 = vmul.f32 %v2078, %v3510
      %v3581 = vmul.f32 %v2079, %v3511
      %v3582 = vmul.f32 %v2080, %v3501
      %v3583 = vmul.f32 %v2081, %v3504
      %v3584 = vmul.f32 %v2082, %v3507
      %v3585 = vmul.f32 %v2083, %v3510
      %v3586 = vmul.f32 %v2084, %v3512
      %v3587 = vmul.f32 %v2085, %v3504
      %v3588 = vmul.f32 %v2086, %v3507
      %v3589 = vmul.f32 %v2087, %v3510
      %v3590 = vmul.f32 %v2088, %v3511
      %v3663 = vrot.slane %v3519, 7
      %v3664 = vrot.slane %v3663, 2
      %v3665 = vrot.slane %v3520, 7
      %v3666 = vsel %vm2510, %v3664, %v3665
      %v3667 = vrot.slane %v3665, 2
      %v3668 = vrot.slane %v3521, 7
      %v3669 = vsel %vm2510, %v3667, %v3668
      %v3670 = vrot.slane %v3668, 2
      %v3671 = vrot.slane %v3522, 7
      %v3672 = vsel %vm2510, %v3670, %v3671
      %v3673 = vrot.slane %v3671, 2
      %v3674 = vrot.slane %v3523, 7
      %v3675 = vsel %vm2510, %v3673, %v3674
      %v3676 = vrot.slane %v3674, 2
      %v3677 = vrot.slane %v3524, 7
      %v3678 = vsel %vm2510, %v3676, %v3677
      %v3679 = vrot.slane %v3677, 2
      %v3680 = vrot.slane %v3525, 7
      %v3681 = vsel %vm2510, %v3679, %v3680
      %v3682 = vrot.slane %v3680, 2
      %v3683 = vrot.slane %v3526, 7
      %v3684 = vsel %vm2510, %v3682, %v3683
      %v3685 = vrot.slane %v3683, 2
      %v3686 = vrot.slane %v3527, 7
      %v3687 = vsel %vm2510, %v3685, %v3686
      %v3688 = vrot.slane %v3528, 7
      %v3689 = vrot.slane %v3688, 2
      %v3690 = vrot.slane %v3529, 7
      %v3691 = vsel %vm2510, %v3689, %v3690
      %v3692 = vrot.slane %v3690, 2
      %v3693 = vrot.slane %v3530, 7
      %v3694 = vsel %vm2510, %v3692, %v3693
      %v3695 = vrot.slane %v3693, 2
      %v3696 = vrot.slane %v3531, 7
      %v3697 = vsel %vm2510, %v3695, %v3696
      %v3698 = vrot.slane %v3696, 2
      %v3699 = vrot.slane %v3532, 7
      %v3700 = vsel %vm2510, %v3698, %v3699
      %v3701 = vrot.slane %v3699, 2
      %v3702 = vrot.slane %v3533, 7
      %v3703 = vsel %vm2510, %v3701, %v3702
      %v3704 = vrot.slane %v3702, 2
      %v3705 = vrot.slane %v3534, 7
      %v3706 = vsel %vm2510, %v3704, %v3705
      %v3707 = vrot.slane %v3705, 2
      %v3708 = vrot.slane %v3535, 7
      %v3709 = vsel %vm2510, %v3707, %v3708
      %v3710 = vrot.slane %v3708, 2
      %v3711 = vrot.slane %v3536, 7
      %v3712 = vsel %vm2510, %v3710, %v3711
      %v3713 = vrot.slane %v3537, 7
      %v3714 = vrot.slane %v3713, 2
      %v3715 = vrot.slane %v3538, 7
      %v3716 = vsel %vm2510, %v3714, %v3715
      %v3717 = vrot.slane %v3715, 2
      %v3718 = vrot.slane %v3539, 7
      %v3719 = vsel %vm2510, %v3717, %v3718
      %v3720 = vrot.slane %v3718, 2
      %v3721 = vrot.slane %v3540, 7
      %v3722 = vsel %vm2510, %v3720, %v3721
      %v3723 = vrot.slane %v3721, 2
      %v3724 = vrot.slane %v3541, 7
      %v3725 = vsel %vm2510, %v3723, %v3724
      %v3726 = vrot.slane %v3724, 2
      %v3727 = vrot.slane %v3542, 7
      %v3728 = vsel %vm2510, %v3726, %v3727
      %v3729 = vrot.slane %v3727, 2
      %v3730 = vrot.slane %v3543, 7
      %v3731 = vsel %vm2510, %v3729, %v3730
      %v3732 = vrot.slane %v3730, 2
      %v3733 = vrot.slane %v3544, 7
      %v3734 = vsel %vm2510, %v3732, %v3733
      %v3735 = vrot.slane %v3733, 2
      %v3736 = vrot.slane %v3545, 7
      %v3737 = vsel %vm2510, %v3735, %v3736
      %v3738 = vrot.slane %v3546, 7
      %v3739 = vrot.slane %v3738, 2
      %v3740 = vrot.slane %v3547, 7
      %v3741 = vsel %vm2510, %v3739, %v3740
      %v3742 = vrot.slane %v3740, 2
      %v3743 = vrot.slane %v3548, 7
      %v3744 = vsel %vm2510, %v3742, %v3743
      %v3745 = vrot.slane %v3743, 2
      %v3746 = vrot.slane %v3549, 7
      %v3747 = vsel %vm2510, %v3745, %v3746
      %v3748 = vrot.slane %v3746, 2
      %v3749 = vrot.slane %v3550, 7
      %v3750 = vsel %vm2510, %v3748, %v3749
      %v3751 = vrot.slane %v3749, 2
      %v3752 = vrot.slane %v3551, 7
      %v3753 = vsel %vm2510, %v3751, %v3752
      %v3754 = vrot.slane %v3752, 2
      %v3755 = vrot.slane %v3552, 7
      %v3756 = vsel %vm2510, %v3754, %v3755
      %v3757 = vrot.slane %v3755, 2
      %v3758 = vrot.slane %v3553, 7
      %v3759 = vsel %vm2510, %v3757, %v3758
      %v3760 = vrot.slane %v3758, 2
      %v3761 = vrot.slane %v3554, 7
      %v3762 = vsel %vm2510, %v3760, %v3761
      %v3763 = vrot.slane %v3555, 7
      %v3764 = vrot.slane %v3763, 2
      %v3765 = vrot.slane %v3556, 7
      %v3766 = vsel %vm2510, %v3764, %v3765
      %v3767 = vrot.slane %v3765, 2
      %v3768 = vrot.slane %v3557, 7
      %v3769 = vsel %vm2510, %v3767, %v3768
      %v3770 = vrot.slane %v3768, 2
      %v3771 = vrot.slane %v3558, 7
      %v3772 = vsel %vm2510, %v3770, %v3771
      %v3773 = vrot.slane %v3771, 2
      %v3774 = vrot.slane %v3559, 7
      %v3775 = vsel %vm2510, %v3773, %v3774
      %v3776 = vrot.slane %v3774, 2
      %v3777 = vrot.slane %v3560, 7
      %v3778 = vsel %vm2510, %v3776, %v3777
      %v3779 = vrot.slane %v3777, 2
      %v3780 = vrot.slane %v3561, 7
      %v3781 = vsel %vm2510, %v3779, %v3780
      %v3782 = vrot.slane %v3780, 2
      %v3783 = vrot.slane %v3562, 7
      %v3784 = vsel %vm2510, %v3782, %v3783
      %v3785 = vrot.slane %v3783, 2
      %v3786 = vrot.slane %v3563, 7
      %v3787 = vsel %vm2510, %v3785, %v3786
      %v3788 = vrot.slane %v3564, 7
      %v3789 = vrot.slane %v3788, 2
      %v3790 = vrot.slane %v3565, 7
      %v3791 = vsel %vm2510, %v3789, %v3790
      %v3792 = vrot.slane %v3790, 2
      %v3793 = vrot.slane %v3566, 7
      %v3794 = vsel %vm2510, %v3792, %v3793
      %v3795 = vrot.slane %v3793, 2
      %v3796 = vrot.slane %v3567, 7
      %v3797 = vsel %vm2510, %v3795, %v3796
      %v3798 = vrot.slane %v3796, 2
      %v3799 = vrot.slane %v3568, 7
      %v3800 = vsel %vm2510, %v3798, %v3799
      %v3801 = vrot.slane %v3799, 2
      %v3802 = vrot.slane %v3569, 7
      %v3803 = vsel %vm2510, %v3801, %v3802
      %v3804 = vrot.slane %v3802, 2
      %v3805 = vrot.slane %v3570, 7
      %v3806 = vsel %vm2510, %v3804, %v3805
      %v3807 = vrot.slane %v3805, 2
      %v3808 = vrot.slane %v3571, 7
      %v3809 = vsel %vm2510, %v3807, %v3808
      %v3810 = vrot.slane %v3808, 2
      %v3811 = vrot.slane %v3572, 7
      %v3812 = vsel %vm2510, %v3810, %v3811
      %v3813 = vrot.slane %v3573, 7
      %v3814 = vrot.slane %v3813, 2
      %v3815 = vrot.slane %v3574, 7
      %v3816 = vsel %vm2510, %v3814, %v3815
      %v3817 = vrot.slane %v3815, 2
      %v3818 = vrot.slane %v3575, 7
      %v3819 = vsel %vm2510, %v3817, %v3818
      %v3820 = vrot.slane %v3818, 2
      %v3821 = vrot.slane %v3576, 7
      %v3822 = vsel %vm2510, %v3820, %v3821
      %v3823 = vrot.slane %v3821, 2
      %v3824 = vrot.slane %v3577, 7
      %v3825 = vsel %vm2510, %v3823, %v3824
      %v3826 = vrot.slane %v3824, 2
      %v3827 = vrot.slane %v3578, 7
      %v3828 = vsel %vm2510, %v3826, %v3827
      %v3829 = vrot.slane %v3827, 2
      %v3830 = vrot.slane %v3579, 7
      %v3831 = vsel %vm2510, %v3829, %v3830
      %v3832 = vrot.slane %v3830, 2
      %v3833 = vrot.slane %v3580, 7
      %v3834 = vsel %vm2510, %v3832, %v3833
      %v3835 = vrot.slane %v3833, 2
      %v3836 = vrot.slane %v3581, 7
      %v3837 = vsel %vm2510, %v3835, %v3836
      %v3838 = vrot.slane %v3582, 7
      %v3839 = vrot.slane %v3838, 2
      %v3840 = vrot.slane %v3583, 7
      %v3841 = vsel %vm2510, %v3839, %v3840
      %v3842 = vrot.slane %v3840, 2
      %v3843 = vrot.slane %v3584, 7
      %v3844 = vsel %vm2510, %v3842, %v3843
      %v3845 = vrot.slane %v3843, 2
      %v3846 = vrot.slane %v3585, 7
      %v3847 = vsel %vm2510, %v3845, %v3846
      %v3848 = vrot.slane %v3846, 2
      %v3849 = vrot.slane %v3586, 7
      %v3850 = vsel %vm2510, %v3848, %v3849
      %v3851 = vrot.slane %v3849, 2
      %v3852 = vrot.slane %v3587, 7
      %v3853 = vsel %vm2510, %v3851, %v3852
      %v3854 = vrot.slane %v3852, 2
      %v3855 = vrot.slane %v3588, 7
      %v3856 = vsel %vm2510, %v3854, %v3855
      %v3857 = vrot.slane %v3855, 2
      %v3858 = vrot.slane %v3589, 7
      %v3859 = vsel %vm2510, %v3857, %v3858
      %v3860 = vrot.slane %v3858, 2
      %v3861 = vrot.slane %v3590, 7
      %v3862 = vsel %vm2510, %v3860, %v3861
      %v3927 = vadd.f32 %v3432, %v3666
      %v3928 = vadd.f32 %v3433, %v3669
      %v3929 = vadd.f32 %v3434, %v3672
      %v3930 = vadd.f32 %v3435, %v3675
      %v3931 = vadd.f32 %v3436, %v3678
      %v3932 = vadd.f32 %v3437, %v3681
      %v3933 = vadd.f32 %v3438, %v3684
      %v3934 = vadd.f32 %v3439, %v3687
      %v3935 = vadd.f32 %v3440, %v3691
      %v3936 = vadd.f32 %v3441, %v3694
      %v3937 = vadd.f32 %v3442, %v3697
      %v3938 = vadd.f32 %v3443, %v3700
      %v3939 = vadd.f32 %v3444, %v3703
      %v3940 = vadd.f32 %v3445, %v3706
      %v3941 = vadd.f32 %v3446, %v3709
      %v3942 = vadd.f32 %v3447, %v3712
      %v3943 = vadd.f32 %v3448, %v3716
      %v3944 = vadd.f32 %v3449, %v3719
      %v3945 = vadd.f32 %v3450, %v3722
      %v3946 = vadd.f32 %v3451, %v3725
      %v3947 = vadd.f32 %v3452, %v3728
      %v3948 = vadd.f32 %v3453, %v3731
      %v3949 = vadd.f32 %v3454, %v3734
      %v3950 = vadd.f32 %v3455, %v3737
      %v3951 = vadd.f32 %v3456, %v3741
      %v3952 = vadd.f32 %v3457, %v3744
      %v3953 = vadd.f32 %v3458, %v3747
      %v3954 = vadd.f32 %v3459, %v3750
      %v3955 = vadd.f32 %v3460, %v3753
      %v3956 = vadd.f32 %v3461, %v3756
      %v3957 = vadd.f32 %v3462, %v3759
      %v3958 = vadd.f32 %v3463, %v3762
      %v3959 = vadd.f32 %v3464, %v3766
      %v3960 = vadd.f32 %v3465, %v3769
      %v3961 = vadd.f32 %v3466, %v3772
      %v3962 = vadd.f32 %v3467, %v3775
      %v3963 = vadd.f32 %v3468, %v3778
      %v3964 = vadd.f32 %v3469, %v3781
      %v3965 = vadd.f32 %v3470, %v3784
      %v3966 = vadd.f32 %v3471, %v3787
      %v3967 = vadd.f32 %v3472, %v3791
      %v3968 = vadd.f32 %v3473, %v3794
      %v3969 = vadd.f32 %v3474, %v3797
      %v3970 = vadd.f32 %v3475, %v3800
      %v3971 = vadd.f32 %v3476, %v3803
      %v3972 = vadd.f32 %v3477, %v3806
      %v3973 = vadd.f32 %v3478, %v3809
      %v3974 = vadd.f32 %v3479, %v3812
      %v3975 = vadd.f32 %v3480, %v3816
      %v3976 = vadd.f32 %v3481, %v3819
      %v3977 = vadd.f32 %v3482, %v3822
      %v3978 = vadd.f32 %v3483, %v3825
      %v3979 = vadd.f32 %v3484, %v3828
      %v3980 = vadd.f32 %v3485, %v3831
      %v3981 = vadd.f32 %v3486, %v3834
      %v3982 = vadd.f32 %v3487, %v3837
      %v3983 = vadd.f32 %v3488, %v3841
      %v3984 = vadd.f32 %v3489, %v3844
      %v3985 = vadd.f32 %v3490, %v3847
      %v3986 = vadd.f32 %v3491, %v3850
      %v3987 = vadd.f32 %v3492, %v3853
      %v3988 = vadd.f32 %v3493, %v3856
      %v3989 = vadd.f32 %v3494, %v3859
      %v3990 = vadd.f32 %v3495, %v3862
      %v3991 = vperm.slane %v2089, 2
      %v3993 = vrot.slane %v3991, 2
      %v3994 = vrot.slane %v3991, 4
      %v3995 = vrot.slane %v3991, 6
      %v3999 = vmul.f32 %v2000, %v3991
      %v4000 = vmul.f32 %v2001, %v3993
      %v4001 = vmul.f32 %v2002, %v3994
      %v4002 = vmul.f32 %v2003, %v3995
      %v4003 = vmul.f32 %v2004, %v3991
      %v4004 = vmul.f32 %v2005, %v3993
      %v4005 = vmul.f32 %v2006, %v3994
      %v4006 = vmul.f32 %v2007, %v3995
      %v4007 = vmul.f32 %v2009, %v3991
      %v4008 = vmul.f32 %v2010, %v3993
      %v4009 = vmul.f32 %v2011, %v3994
      %v4010 = vmul.f32 %v2012, %v3995
      %v4011 = vmul.f32 %v2013, %v3991
      %v4012 = vmul.f32 %v2014, %v3993
      %v4013 = vmul.f32 %v2015, %v3994
      %v4014 = vmul.f32 %v2016, %v3995
      %v4015 = vmul.f32 %v2018, %v3991
      %v4016 = vmul.f32 %v2019, %v3993
      %v4017 = vmul.f32 %v2020, %v3994
      %v4018 = vmul.f32 %v2021, %v3995
      %v4019 = vmul.f32 %v2022, %v3991
      %v4020 = vmul.f32 %v2023, %v3993
      %v4021 = vmul.f32 %v2024, %v3994
      %v4022 = vmul.f32 %v2025, %v3995
      %v4023 = vmul.f32 %v2027, %v3991
      %v4024 = vmul.f32 %v2028, %v3993
      %v4025 = vmul.f32 %v2029, %v3994
      %v4026 = vmul.f32 %v2030, %v3995
      %v4027 = vmul.f32 %v2031, %v3991
      %v4028 = vmul.f32 %v2032, %v3993
      %v4029 = vmul.f32 %v2033, %v3994
      %v4030 = vmul.f32 %v2034, %v3995
      %v4031 = vmul.f32 %v2036, %v3991
      %v4032 = vmul.f32 %v2037, %v3993
      %v4033 = vmul.f32 %v2038, %v3994
      %v4034 = vmul.f32 %v2039, %v3995
      %v4035 = vmul.f32 %v2040, %v3991
      %v4036 = vmul.f32 %v2041, %v3993
      %v4037 = vmul.f32 %v2042, %v3994
      %v4038 = vmul.f32 %v2043, %v3995
      %v4039 = vmul.f32 %v2045, %v3991
      %v4040 = vmul.f32 %v2046, %v3993
      %v4041 = vmul.f32 %v2047, %v3994
      %v4042 = vmul.f32 %v2048, %v3995
      %v4043 = vmul.f32 %v2049, %v3991
      %v4044 = vmul.f32 %v2050, %v3993
      %v4045 = vmul.f32 %v2051, %v3994
      %v4046 = vmul.f32 %v2052, %v3995
      %v4047 = vmul.f32 %v2054, %v3991
      %v4048 = vmul.f32 %v2055, %v3993
      %v4049 = vmul.f32 %v2056, %v3994
      %v4050 = vmul.f32 %v2057, %v3995
      %v4051 = vmul.f32 %v2058, %v3991
      %v4052 = vmul.f32 %v2059, %v3993
      %v4053 = vmul.f32 %v2060, %v3994
      %v4054 = vmul.f32 %v2061, %v3995
      %v4055 = vmul.f32 %v2063, %v3991
      %v4056 = vmul.f32 %v2064, %v3993
      %v4057 = vmul.f32 %v2065, %v3994
      %v4058 = vmul.f32 %v2066, %v3995
      %v4059 = vmul.f32 %v2067, %v3991
      %v4060 = vmul.f32 %v2068, %v3993
      %v4061 = vmul.f32 %v2069, %v3994
      %v4062 = vmul.f32 %v2070, %v3995
      %v4063 = vadd.f32 %v3927, %v3999
      %v4064 = vadd.f32 %v3928, %v4000
      %v4065 = vadd.f32 %v3929, %v4001
      %v4066 = vadd.f32 %v3930, %v4002
      %v4067 = vadd.f32 %v3931, %v4003
      %v4068 = vadd.f32 %v3932, %v4004
      %v4069 = vadd.f32 %v3933, %v4005
      %v4070 = vadd.f32 %v3934, %v4006
      %v4071 = vadd.f32 %v3935, %v4007
      %v4072 = vadd.f32 %v3936, %v4008
      %v4073 = vadd.f32 %v3937, %v4009
      %v4074 = vadd.f32 %v3938, %v4010
      %v4075 = vadd.f32 %v3939, %v4011
      %v4076 = vadd.f32 %v3940, %v4012
      %v4077 = vadd.f32 %v3941, %v4013
      %v4078 = vadd.f32 %v3942, %v4014
      %v4079 = vadd.f32 %v3943, %v4015
      %v4080 = vadd.f32 %v3944, %v4016
      %v4081 = vadd.f32 %v3945, %v4017
      %v4082 = vadd.f32 %v3946, %v4018
      %v4083 = vadd.f32 %v3947, %v4019
      %v4084 = vadd.f32 %v3948, %v4020
      %v4085 = vadd.f32 %v3949, %v4021
      %v4086 = vadd.f32 %v3950, %v4022
      %v4087 = vadd.f32 %v3951, %v4023
      %v4088 = vadd.f32 %v3952, %v4024
      %v4089 = vadd.f32 %v3953, %v4025
      %v4090 = vadd.f32 %v3954, %v4026
      %v4091 = vadd.f32 %v3955, %v4027
      %v4092 = vadd.f32 %v3956, %v4028
      %v4093 = vadd.f32 %v3957, %v4029
      %v4094 = vadd.f32 %v3958, %v4030
      %v4095 = vadd.f32 %v3959, %v4031
      %v4096 = vadd.f32 %v3960, %v4032
      %v4097 = vadd.f32 %v3961, %v4033
      %v4098 = vadd.f32 %v3962, %v4034
      %v4099 = vadd.f32 %v3963, %v4035
      %v4100 = vadd.f32 %v3964, %v4036
      %v4101 = vadd.f32 %v3965, %v4037
      %v4102 = vadd.f32 %v3966, %v4038
      %v4103 = vadd.f32 %v3967, %v4039
      %v4104 = vadd.f32 %v3968, %v4040
      %v4105 = vadd.f32 %v3969, %v4041
      %v4106 = vadd.f32 %v3970, %v4042
      %v4107 = vadd.f32 %v3971, %v4043
      %v4108 = vadd.f32 %v3972, %v4044
      %v4109 = vadd.f32 %v3973, %v4045
      %v4110 = vadd.f32 %v3974, %v4046
      %v4111 = vadd.f32 %v3975, %v4047
      %v4112 = vadd.f32 %v3976, %v4048
      %v4113 = vadd.f32 %v3977, %v4049
      %v4114 = vadd.f32 %v3978, %v4050
      %v4115 = vadd.f32 %v3979, %v4051
      %v4116 = vadd.f32 %v3980, %v4052
      %v4117 = vadd.f32 %v3981, %v4053
      %v4118 = vadd.f32 %v3982, %v4054
      %v4119 = vadd.f32 %v3983, %v4055
      %v4120 = vadd.f32 %v3984, %v4056
      %v4121 = vadd.f32 %v3985, %v4057
      %v4122 = vadd.f32 %v3986, %v4058
      %v4123 = vadd.f32 %v3987, %v4059
      %v4124 = vadd.f32 %v3988, %v4060
      %v4125 = vadd.f32 %v3989, %v4061
      %v4126 = vadd.f32 %v3990, %v4062
      %v4127 = vperm.slane %v2089, 5
      %v4129 = vrot.slane %v4127, 2
      %v4130 = vrot.slane %v4127, 4
      %v4131 = vrot.slane %v4127, 6
      %v4135 = vmul.f32 %v2009, %v4127
      %v4136 = vmul.f32 %v2010, %v4129
      %v4137 = vmul.f32 %v2011, %v4130
      %v4138 = vmul.f32 %v2012, %v4131
      %v4139 = vmul.f32 %v2013, %v4127
      %v4140 = vmul.f32 %v2014, %v4129
      %v4141 = vmul.f32 %v2015, %v4130
      %v4142 = vmul.f32 %v2016, %v4131
      %v4143 = vmul.f32 %v2018, %v4127
      %v4144 = vmul.f32 %v2019, %v4129
      %v4145 = vmul.f32 %v2020, %v4130
      %v4146 = vmul.f32 %v2021, %v4131
      %v4147 = vmul.f32 %v2022, %v4127
      %v4148 = vmul.f32 %v2023, %v4129
      %v4149 = vmul.f32 %v2024, %v4130
      %v4150 = vmul.f32 %v2025, %v4131
      %v4151 = vmul.f32 %v2027, %v4127
      %v4152 = vmul.f32 %v2028, %v4129
      %v4153 = vmul.f32 %v2029, %v4130
      %v4154 = vmul.f32 %v2030, %v4131
      %v4155 = vmul.f32 %v2031, %v4127
      %v4156 = vmul.f32 %v2032, %v4129
      %v4157 = vmul.f32 %v2033, %v4130
      %v4158 = vmul.f32 %v2034, %v4131
      %v4159 = vmul.f32 %v2036, %v4127
      %v4160 = vmul.f32 %v2037, %v4129
      %v4161 = vmul.f32 %v2038, %v4130
      %v4162 = vmul.f32 %v2039, %v4131
      %v4163 = vmul.f32 %v2040, %v4127
      %v4164 = vmul.f32 %v2041, %v4129
      %v4165 = vmul.f32 %v2042, %v4130
      %v4166 = vmul.f32 %v2043, %v4131
      %v4167 = vmul.f32 %v2045, %v4127
      %v4168 = vmul.f32 %v2046, %v4129
      %v4169 = vmul.f32 %v2047, %v4130
      %v4170 = vmul.f32 %v2048, %v4131
      %v4171 = vmul.f32 %v2049, %v4127
      %v4172 = vmul.f32 %v2050, %v4129
      %v4173 = vmul.f32 %v2051, %v4130
      %v4174 = vmul.f32 %v2052, %v4131
      %v4175 = vmul.f32 %v2054, %v4127
      %v4176 = vmul.f32 %v2055, %v4129
      %v4177 = vmul.f32 %v2056, %v4130
      %v4178 = vmul.f32 %v2057, %v4131
      %v4179 = vmul.f32 %v2058, %v4127
      %v4180 = vmul.f32 %v2059, %v4129
      %v4181 = vmul.f32 %v2060, %v4130
      %v4182 = vmul.f32 %v2061, %v4131
      %v4183 = vmul.f32 %v2063, %v4127
      %v4184 = vmul.f32 %v2064, %v4129
      %v4185 = vmul.f32 %v2065, %v4130
      %v4186 = vmul.f32 %v2066, %v4131
      %v4187 = vmul.f32 %v2067, %v4127
      %v4188 = vmul.f32 %v2068, %v4129
      %v4189 = vmul.f32 %v2069, %v4130
      %v4190 = vmul.f32 %v2070, %v4131
      %v4191 = vmul.f32 %v2072, %v4127
      %v4192 = vmul.f32 %v2073, %v4129
      %v4193 = vmul.f32 %v2074, %v4130
      %v4194 = vmul.f32 %v2075, %v4131
      %v4195 = vmul.f32 %v2076, %v4127
      %v4196 = vmul.f32 %v2077, %v4129
      %v4197 = vmul.f32 %v2078, %v4130
      %v4198 = vmul.f32 %v2079, %v4131
      %v4199 = vadd.f32 %v4063, %v4135
      %v4200 = vadd.f32 %v4064, %v4136
      %v4201 = vadd.f32 %v4065, %v4137
      %v4202 = vadd.f32 %v4066, %v4138
      %v4203 = vadd.f32 %v4067, %v4139
      %v4204 = vadd.f32 %v4068, %v4140
      %v4205 = vadd.f32 %v4069, %v4141
      %v4206 = vadd.f32 %v4070, %v4142
      %v4207 = vadd.f32 %v4071, %v4143
      %v4208 = vadd.f32 %v4072, %v4144
      %v4209 = vadd.f32 %v4073, %v4145
      %v4210 = vadd.f32 %v4074, %v4146
      %v4211 = vadd.f32 %v4075, %v4147
      %v4212 = vadd.f32 %v4076, %v4148
      %v4213 = vadd.f32 %v4077, %v4149
      %v4214 = vadd.f32 %v4078, %v4150
      %v4215 = vadd.f32 %v4079, %v4151
      %v4216 = vadd.f32 %v4080, %v4152
      %v4217 = vadd.f32 %v4081, %v4153
      %v4218 = vadd.f32 %v4082, %v4154
      %v4219 = vadd.f32 %v4083, %v4155
      %v4220 = vadd.f32 %v4084, %v4156
      %v4221 = vadd.f32 %v4085, %v4157
      %v4222 = vadd.f32 %v4086, %v4158
      %v4223 = vadd.f32 %v4087, %v4159
      %v4224 = vadd.f32 %v4088, %v4160
      %v4225 = vadd.f32 %v4089, %v4161
      %v4226 = vadd.f32 %v4090, %v4162
      %v4227 = vadd.f32 %v4091, %v4163
      %v4228 = vadd.f32 %v4092, %v4164
      %v4229 = vadd.f32 %v4093, %v4165
      %v4230 = vadd.f32 %v4094, %v4166
      %v4231 = vadd.f32 %v4095, %v4167
      %v4232 = vadd.f32 %v4096, %v4168
      %v4233 = vadd.f32 %v4097, %v4169
      %v4234 = vadd.f32 %v4098, %v4170
      %v4235 = vadd.f32 %v4099, %v4171
      %v4236 = vadd.f32 %v4100, %v4172
      %v4237 = vadd.f32 %v4101, %v4173
      %v4238 = vadd.f32 %v4102, %v4174
      %v4239 = vadd.f32 %v4103, %v4175
      %v4240 = vadd.f32 %v4104, %v4176
      %v4241 = vadd.f32 %v4105, %v4177
      %v4242 = vadd.f32 %v4106, %v4178
      %v4243 = vadd.f32 %v4107, %v4179
      %v4244 = vadd.f32 %v4108, %v4180
      %v4245 = vadd.f32 %v4109, %v4181
      %v4246 = vadd.f32 %v4110, %v4182
      %v4247 = vadd.f32 %v4111, %v4183
      %v4248 = vadd.f32 %v4112, %v4184
      %v4249 = vadd.f32 %v4113, %v4185
      %v4250 = vadd.f32 %v4114, %v4186
      %v4251 = vadd.f32 %v4115, %v4187
      %v4252 = vadd.f32 %v4116, %v4188
      %v4253 = vadd.f32 %v4117, %v4189
      %v4254 = vadd.f32 %v4118, %v4190
      %v4255 = vadd.f32 %v4119, %v4191
      %v4256 = vadd.f32 %v4120, %v4192
      %v4257 = vadd.f32 %v4121, %v4193
      %v4258 = vadd.f32 %v4122, %v4194
      %v4259 = vadd.f32 %v4123, %v4195
      %v4260 = vadd.f32 %v4124, %v4196
      %v4261 = vadd.f32 %v4125, %v4197
      %v4262 = vadd.f32 %v4126, %v4198
      %v4263 = vperm.slane %v2090, 0
      %v4265 = vrot.slane %v4263, 2
      %v4266 = vrot.slane %v4263, 4
      %v4267 = vrot.slane %v4263, 6
      %v4271 = vmul.f32 %v2018, %v4263
      %v4272 = vmul.f32 %v2019, %v4265
      %v4273 = vmul.f32 %v2020, %v4266
      %v4274 = vmul.f32 %v2021, %v4267
      %v4275 = vmul.f32 %v2022, %v4263
      %v4276 = vmul.f32 %v2023, %v4265
      %v4277 = vmul.f32 %v2024, %v4266
      %v4278 = vmul.f32 %v2025, %v4267
      %v4279 = vmul.f32 %v2027, %v4263
      %v4280 = vmul.f32 %v2028, %v4265
      %v4281 = vmul.f32 %v2029, %v4266
      %v4282 = vmul.f32 %v2030, %v4267
      %v4283 = vmul.f32 %v2031, %v4263
      %v4284 = vmul.f32 %v2032, %v4265
      %v4285 = vmul.f32 %v2033, %v4266
      %v4286 = vmul.f32 %v2034, %v4267
      %v4287 = vmul.f32 %v2036, %v4263
      %v4288 = vmul.f32 %v2037, %v4265
      %v4289 = vmul.f32 %v2038, %v4266
      %v4290 = vmul.f32 %v2039, %v4267
      %v4291 = vmul.f32 %v2040, %v4263
      %v4292 = vmul.f32 %v2041, %v4265
      %v4293 = vmul.f32 %v2042, %v4266
      %v4294 = vmul.f32 %v2043, %v4267
      %v4295 = vmul.f32 %v2045, %v4263
      %v4296 = vmul.f32 %v2046, %v4265
      %v4297 = vmul.f32 %v2047, %v4266
      %v4298 = vmul.f32 %v2048, %v4267
      %v4299 = vmul.f32 %v2049, %v4263
      %v4300 = vmul.f32 %v2050, %v4265
      %v4301 = vmul.f32 %v2051, %v4266
      %v4302 = vmul.f32 %v2052, %v4267
      %v4303 = vmul.f32 %v2054, %v4263
      %v4304 = vmul.f32 %v2055, %v4265
      %v4305 = vmul.f32 %v2056, %v4266
      %v4306 = vmul.f32 %v2057, %v4267
      %v4307 = vmul.f32 %v2058, %v4263
      %v4308 = vmul.f32 %v2059, %v4265
      %v4309 = vmul.f32 %v2060, %v4266
      %v4310 = vmul.f32 %v2061, %v4267
      %v4311 = vmul.f32 %v2063, %v4263
      %v4312 = vmul.f32 %v2064, %v4265
      %v4313 = vmul.f32 %v2065, %v4266
      %v4314 = vmul.f32 %v2066, %v4267
      %v4315 = vmul.f32 %v2067, %v4263
      %v4316 = vmul.f32 %v2068, %v4265
      %v4317 = vmul.f32 %v2069, %v4266
      %v4318 = vmul.f32 %v2070, %v4267
      %v4319 = vmul.f32 %v2072, %v4263
      %v4320 = vmul.f32 %v2073, %v4265
      %v4321 = vmul.f32 %v2074, %v4266
      %v4322 = vmul.f32 %v2075, %v4267
      %v4323 = vmul.f32 %v2076, %v4263
      %v4324 = vmul.f32 %v2077, %v4265
      %v4325 = vmul.f32 %v2078, %v4266
      %v4326 = vmul.f32 %v2079, %v4267
      %v4327 = vmul.f32 %v2081, %v4263
      %v4328 = vmul.f32 %v2082, %v4265
      %v4329 = vmul.f32 %v2083, %v4266
      %v4330 = vmul.f32 %v2084, %v4267
      %v4331 = vmul.f32 %v2085, %v4263
      %v4332 = vmul.f32 %v2086, %v4265
      %v4333 = vmul.f32 %v2087, %v4266
      %v4334 = vmul.f32 %v2088, %v4267
      %v4335 = vadd.f32 %v4199, %v4271
      %v4336 = vadd.f32 %v4200, %v4272
      %v4337 = vadd.f32 %v4201, %v4273
      %v4338 = vadd.f32 %v4202, %v4274
      %v4339 = vadd.f32 %v4203, %v4275
      %v4340 = vadd.f32 %v4204, %v4276
      %v4341 = vadd.f32 %v4205, %v4277
      %v4342 = vadd.f32 %v4206, %v4278
      %v4343 = vadd.f32 %v4207, %v4279
      %v4344 = vadd.f32 %v4208, %v4280
      %v4345 = vadd.f32 %v4209, %v4281
      %v4346 = vadd.f32 %v4210, %v4282
      %v4347 = vadd.f32 %v4211, %v4283
      %v4348 = vadd.f32 %v4212, %v4284
      %v4349 = vadd.f32 %v4213, %v4285
      %v4350 = vadd.f32 %v4214, %v4286
      %v4351 = vadd.f32 %v4215, %v4287
      %v4352 = vadd.f32 %v4216, %v4288
      %v4353 = vadd.f32 %v4217, %v4289
      %v4354 = vadd.f32 %v4218, %v4290
      %v4355 = vadd.f32 %v4219, %v4291
      %v4356 = vadd.f32 %v4220, %v4292
      %v4357 = vadd.f32 %v4221, %v4293
      %v4358 = vadd.f32 %v4222, %v4294
      %v4359 = vadd.f32 %v4223, %v4295
      %v4360 = vadd.f32 %v4224, %v4296
      %v4361 = vadd.f32 %v4225, %v4297
      %v4362 = vadd.f32 %v4226, %v4298
      %v4363 = vadd.f32 %v4227, %v4299
      %v4364 = vadd.f32 %v4228, %v4300
      %v4365 = vadd.f32 %v4229, %v4301
      %v4366 = vadd.f32 %v4230, %v4302
      %v4367 = vadd.f32 %v4231, %v4303
      %v4368 = vadd.f32 %v4232, %v4304
      %v4369 = vadd.f32 %v4233, %v4305
      %v4370 = vadd.f32 %v4234, %v4306
      %v4371 = vadd.f32 %v4235, %v4307
      %v4372 = vadd.f32 %v4236, %v4308
      %v4373 = vadd.f32 %v4237, %v4309
      %v4374 = vadd.f32 %v4238, %v4310
      %v4375 = vadd.f32 %v4239, %v4311
      %v4376 = vadd.f32 %v4240, %v4312
      %v4377 = vadd.f32 %v4241, %v4313
      %v4378 = vadd.f32 %v4242, %v4314
      %v4379 = vadd.f32 %v4243, %v4315
      %v4380 = vadd.f32 %v4244, %v4316
      %v4381 = vadd.f32 %v4245, %v4317
      %v4382 = vadd.f32 %v4246, %v4318
      %v4383 = vadd.f32 %v4247, %v4319
      %v4384 = vadd.f32 %v4248, %v4320
      %v4385 = vadd.f32 %v4249, %v4321
      %v4386 = vadd.f32 %v4250, %v4322
      %v4387 = vadd.f32 %v4251, %v4323
      %v4388 = vadd.f32 %v4252, %v4324
      %v4389 = vadd.f32 %v4253, %v4325
      %v4390 = vadd.f32 %v4254, %v4326
      %v4391 = vadd.f32 %v4255, %v4327
      %v4392 = vadd.f32 %v4256, %v4328
      %v4393 = vadd.f32 %v4257, %v4329
      %v4394 = vadd.f32 %v4258, %v4330
      %v4395 = vadd.f32 %v4259, %v4331
      %v4396 = vadd.f32 %v4260, %v4332
      %v4397 = vadd.f32 %v4261, %v4333
      %v4398 = vadd.f32 %v4262, %v4334
      %v4399 = vld [vmem:[%s5] sm:$0x1]
      %v4401 = vperm.slane %v4399, 0
      %v4403 = vrot.slane %v4401, 2
      %v4404 = vrot.slane %v4401, 4
      %v4405 = vrot.slane %v4401, 6
      %v4409 = vmul.f32 %v4335, %v4401
      %v4410 = vmul.f32 %v4336, %v4403
      %v4411 = vmul.f32 %v4337, %v4404
      %v4412 = vmul.f32 %v4338, %v4405
      %v4413 = vmul.f32 %v4339, %v4401
      %v4414 = vmul.f32 %v4340, %v4403
      %v4415 = vmul.f32 %v4341, %v4404
      %v4416 = vmul.f32 %v4342, %v4405
      %v4417 = vmul.f32 %v4343, %v4401
      %v4418 = vmul.f32 %v4344, %v4403
      %v4419 = vmul.f32 %v4345, %v4404
      %v4420 = vmul.f32 %v4346, %v4405
      %v4421 = vmul.f32 %v4347, %v4401
      %v4422 = vmul.f32 %v4348, %v4403
      %v4423 = vmul.f32 %v4349, %v4404
      %v4424 = vmul.f32 %v4350, %v4405
      %v4425 = vmul.f32 %v4351, %v4401
      %v4426 = vmul.f32 %v4352, %v4403
      %v4427 = vmul.f32 %v4353, %v4404
      %v4428 = vmul.f32 %v4354, %v4405
      %v4429 = vmul.f32 %v4355, %v4401
      %v4430 = vmul.f32 %v4356, %v4403
      %v4431 = vmul.f32 %v4357, %v4404
      %v4432 = vmul.f32 %v4358, %v4405
      %v4433 = vmul.f32 %v4359, %v4401
      %v4434 = vmul.f32 %v4360, %v4403
      %v4435 = vmul.f32 %v4361, %v4404
      %v4436 = vmul.f32 %v4362, %v4405
      %v4437 = vmul.f32 %v4363, %v4401
      %v4438 = vmul.f32 %v4364, %v4403
      %v4439 = vmul.f32 %v4365, %v4404
      %v4440 = vmul.f32 %v4366, %v4405
      %v4441 = vmul.f32 %v4367, %v4401
      %v4442 = vmul.f32 %v4368, %v4403
      %v4443 = vmul.f32 %v4369, %v4404
      %v4444 = vmul.f32 %v4370, %v4405
      %v4445 = vmul.f32 %v4371, %v4401
      %v4446 = vmul.f32 %v4372, %v4403
      %v4447 = vmul.f32 %v4373, %v4404
      %v4448 = vmul.f32 %v4374, %v4405
      %v4449 = vmul.f32 %v4375, %v4401
      %v4450 = vmul.f32 %v4376, %v4403
      %v4451 = vmul.f32 %v4377, %v4404
      %v4452 = vmul.f32 %v4378, %v4405
      %v4453 = vmul.f32 %v4379, %v4401
      %v4454 = vmul.f32 %v4380, %v4403
      %v4455 = vmul.f32 %v4381, %v4404
      %v4456 = vmul.f32 %v4382, %v4405
      %v4457 = vmul.f32 %v4383, %v4401
      %v4458 = vmul.f32 %v4384, %v4403
      %v4459 = vmul.f32 %v4385, %v4404
      %v4460 = vmul.f32 %v4386, %v4405
      %v4461 = vmul.f32 %v4387, %v4401
      %v4462 = vmul.f32 %v4388, %v4403
      %v4463 = vmul.f32 %v4389, %v4404
      %v4464 = vmul.f32 %v4390, %v4405
      %v4465 = vmul.f32 %v4391, %v4401
      %v4466 = vmul.f32 %v4392, %v4403
      %v4467 = vmul.f32 %v4393, %v4404
      %v4468 = vmul.f32 %v4394, %v4405
      %v4469 = vmul.f32 %v4395, %v4401
      %v4470 = vmul.f32 %v4396, %v4403
      %v4471 = vmul.f32 %v4397, %v4404
      %v4472 = vmul.f32 %v4398, %v4405
      %v4473 = vld [vmem:[%s6] sm:$0x1]
      %v4475 = vperm.slane %v4473, 0
      %v4477 = vrot.slane %v4475, 2
      %v4478 = vrot.slane %v4475, 4
      %v4479 = vrot.slane %v4475, 6
      %v4483 = vadd.f32 %v4409, %v4475
      %v4484 = vadd.f32 %v4410, %v4477
      %v4485 = vadd.f32 %v4411, %v4478
      %v4486 = vadd.f32 %v4412, %v4479
      %v4487 = vadd.f32 %v4413, %v4475
      %v4488 = vadd.f32 %v4414, %v4477
      %v4489 = vadd.f32 %v4415, %v4478
      %v4490 = vadd.f32 %v4416, %v4479
      %v4491 = vadd.f32 %v4417, %v4475
      %v4492 = vadd.f32 %v4418, %v4477
      %v4493 = vadd.f32 %v4419, %v4478
      %v4494 = vadd.f32 %v4420, %v4479
      %v4495 = vadd.f32 %v4421, %v4475
      %v4496 = vadd.f32 %v4422, %v4477
      %v4497 = vadd.f32 %v4423, %v4478
      %v4498 = vadd.f32 %v4424, %v4479
      %v4499 = vadd.f32 %v4425, %v4475
      %v4500 = vadd.f32 %v4426, %v4477
      %v4501 = vadd.f32 %v4427, %v4478
      %v4502 = vadd.f32 %v4428, %v4479
      %v4503 = vadd.f32 %v4429, %v4475
      %v4504 = vadd.f32 %v4430, %v4477
      %v4505 = vadd.f32 %v4431, %v4478
      %v4506 = vadd.f32 %v4432, %v4479
      %v4507 = vadd.f32 %v4433, %v4475
      %v4508 = vadd.f32 %v4434, %v4477
      %v4509 = vadd.f32 %v4435, %v4478
      %v4510 = vadd.f32 %v4436, %v4479
      %v4511 = vadd.f32 %v4437, %v4475
      %v4512 = vadd.f32 %v4438, %v4477
      %v4513 = vadd.f32 %v4439, %v4478
      %v4514 = vadd.f32 %v4440, %v4479
      %v4515 = vadd.f32 %v4441, %v4475
      %v4516 = vadd.f32 %v4442, %v4477
      %v4517 = vadd.f32 %v4443, %v4478
      %v4518 = vadd.f32 %v4444, %v4479
      %v4519 = vadd.f32 %v4445, %v4475
      %v4520 = vadd.f32 %v4446, %v4477
      %v4521 = vadd.f32 %v4447, %v4478
      %v4522 = vadd.f32 %v4448, %v4479
      %v4523 = vadd.f32 %v4449, %v4475
      %v4524 = vadd.f32 %v4450, %v4477
      %v4525 = vadd.f32 %v4451, %v4478
      %v4526 = vadd.f32 %v4452, %v4479
      %v4527 = vadd.f32 %v4453, %v4475
      %v4528 = vadd.f32 %v4454, %v4477
      %v4529 = vadd.f32 %v4455, %v4478
      %v4530 = vadd.f32 %v4456, %v4479
      %v4531 = vadd.f32 %v4457, %v4475
      %v4532 = vadd.f32 %v4458, %v4477
      %v4533 = vadd.f32 %v4459, %v4478
      %v4534 = vadd.f32 %v4460, %v4479
      %v4535 = vadd.f32 %v4461, %v4475
      %v4536 = vadd.f32 %v4462, %v4477
      %v4537 = vadd.f32 %v4463, %v4478
      %v4538 = vadd.f32 %v4464, %v4479
      %v4539 = vadd.f32 %v4465, %v4475
      %v4540 = vadd.f32 %v4466, %v4477
      %v4541 = vadd.f32 %v4467, %v4478
      %v4542 = vadd.f32 %v4468, %v4479
      %v4543 = vadd.f32 %v4469, %v4475
      %v4544 = vadd.f32 %v4470, %v4477
      %v4545 = vadd.f32 %v4471, %v4478
      %v4546 = vadd.f32 %v4472, %v4479
      %v4547 = vxor.u32 %v4483, 2147483648
      %v4548 = vxor.u32 %v4484, 2147483648
      %v4549 = vxor.u32 %v4485, 2147483648
      %v4550 = vxor.u32 %v4486, 2147483648
      %v4551 = vxor.u32 %v4487, 2147483648
      %v4552 = vxor.u32 %v4488, 2147483648
      %v4553 = vxor.u32 %v4489, 2147483648
      %v4554 = vxor.u32 %v4490, 2147483648
      %v4555 = vxor.u32 %v4491, 2147483648
      %v4556 = vxor.u32 %v4492, 2147483648
      %v4557 = vxor.u32 %v4493, 2147483648
      %v4558 = vxor.u32 %v4494, 2147483648
      %v4559 = vxor.u32 %v4495, 2147483648
      %v4560 = vxor.u32 %v4496, 2147483648
      %v4561 = vxor.u32 %v4497, 2147483648
      %v4562 = vxor.u32 %v4498, 2147483648
      %v4563 = vxor.u32 %v4499, 2147483648
      %v4564 = vxor.u32 %v4500, 2147483648
      %v4565 = vxor.u32 %v4501, 2147483648
      %v4566 = vxor.u32 %v4502, 2147483648
      %v4567 = vxor.u32 %v4503, 2147483648
      %v4568 = vxor.u32 %v4504, 2147483648
      %v4569 = vxor.u32 %v4505, 2147483648
      %v4570 = vxor.u32 %v4506, 2147483648
      %v4571 = vxor.u32 %v4507, 2147483648
      %v4572 = vxor.u32 %v4508, 2147483648
      %v4573 = vxor.u32 %v4509, 2147483648
      %v4574 = vxor.u32 %v4510, 2147483648
      %v4575 = vxor.u32 %v4511, 2147483648
      %v4576 = vxor.u32 %v4512, 2147483648
      %v4577 = vxor.u32 %v4513, 2147483648
      %v4578 = vxor.u32 %v4514, 2147483648
      %v4579 = vxor.u32 %v4515, 2147483648
      %v4580 = vxor.u32 %v4516, 2147483648
      %v4581 = vxor.u32 %v4517, 2147483648
      %v4582 = vxor.u32 %v4518, 2147483648
      %v4583 = vxor.u32 %v4519, 2147483648
      %v4584 = vxor.u32 %v4520, 2147483648
      %v4585 = vxor.u32 %v4521, 2147483648
      %v4586 = vxor.u32 %v4522, 2147483648
      %v4587 = vxor.u32 %v4523, 2147483648
      %v4588 = vxor.u32 %v4524, 2147483648
      %v4589 = vxor.u32 %v4525, 2147483648
      %v4590 = vxor.u32 %v4526, 2147483648
      %v4591 = vxor.u32 %v4527, 2147483648
      %v4592 = vxor.u32 %v4528, 2147483648
      %v4593 = vxor.u32 %v4529, 2147483648
      %v4594 = vxor.u32 %v4530, 2147483648
      %v4595 = vxor.u32 %v4531, 2147483648
      %v4596 = vxor.u32 %v4532, 2147483648
      %v4597 = vxor.u32 %v4533, 2147483648
      %v4598 = vxor.u32 %v4534, 2147483648
      %v4599 = vxor.u32 %v4535, 2147483648
      %v4600 = vxor.u32 %v4536, 2147483648
      %v4601 = vxor.u32 %v4537, 2147483648
      %v4602 = vxor.u32 %v4538, 2147483648
      %v4603 = vxor.u32 %v4539, 2147483648
      %v4604 = vxor.u32 %v4540, 2147483648
      %v4605 = vxor.u32 %v4541, 2147483648
      %v4606 = vxor.u32 %v4542, 2147483648
      %v4607 = vxor.u32 %v4543, 2147483648
      %v4608 = vxor.u32 %v4544, 2147483648
      %v4609 = vxor.u32 %v4545, 2147483648
      %v4610 = vxor.u32 %v4546, 2147483648
      %v4611 = vmul.f32 %v4547, 1.442695
      %v4612 = vpow.pop %v4611
      %v4613 = vmul.f32 %v4548, 1.442695
      %v4614 = vpow.pop %v4613
      %v4615 = vmul.f32 %v4549, 1.442695
      %v4616 = vpow.pop %v4615
      %v4617 = vmul.f32 %v4550, 1.442695
      %v4618 = vpow.pop %v4617
      %v4619 = vmul.f32 %v4551, 1.442695
      %v4620 = vpow.pop %v4619
      %v4621 = vmul.f32 %v4552, 1.442695
      %v4622 = vpow.pop %v4621
      %v4623 = vmul.f32 %v4553, 1.442695
      %v4624 = vpow.pop %v4623
      %v4625 = vmul.f32 %v4554, 1.442695
      %v4626 = vpow.pop %v4625
      %v4627 = vmul.f32 %v4555, 1.442695
      %v4628 = vpow.pop %v4627
      %v4629 = vmul.f32 %v4556, 1.442695
      %v4630 = vpow.pop %v4629
      %v4631 = vmul.f32 %v4557, 1.442695
      %v4632 = vpow.pop %v4631
      %v4633 = vmul.f32 %v4558, 1.442695
      %v4634 = vpow.pop %v4633
      %v4635 = vmul.f32 %v4559, 1.442695
      %v4636 = vpow.pop %v4635
      %v4637 = vmul.f32 %v4560, 1.442695
      %v4638 = vpow.pop %v4637
      %v4639 = vmul.f32 %v4561, 1.442695
      %v4640 = vpow.pop %v4639
      %v4641 = vmul.f32 %v4562, 1.442695
      %v4642 = vpow.pop %v4641
      %v4643 = vmul.f32 %v4563, 1.442695
      %v4644 = vpow.pop %v4643
      %v4645 = vmul.f32 %v4564, 1.442695
      %v4646 = vpow.pop %v4645
      %v4647 = vmul.f32 %v4565, 1.442695
      %v4648 = vpow.pop %v4647
      %v4649 = vmul.f32 %v4566, 1.442695
      %v4650 = vpow.pop %v4649
      %v4651 = vmul.f32 %v4567, 1.442695
      %v4652 = vpow.pop %v4651
      %v4653 = vmul.f32 %v4568, 1.442695
      %v4654 = vpow.pop %v4653
      %v4655 = vmul.f32 %v4569, 1.442695
      %v4656 = vpow.pop %v4655
      %v4657 = vmul.f32 %v4570, 1.442695
      %v4658 = vpow.pop %v4657
      %v4659 = vmul.f32 %v4571, 1.442695
      %v4660 = vpow.pop %v4659
      %v4661 = vmul.f32 %v4572, 1.442695
      %v4662 = vpow.pop %v4661
      %v4663 = vmul.f32 %v4573, 1.442695
      %v4664 = vpow.pop %v4663
      %v4665 = vmul.f32 %v4574, 1.442695
      %v4666 = vpow.pop %v4665
      %v4667 = vmul.f32 %v4575, 1.442695
      %v4668 = vpow.pop %v4667
      %v4669 = vmul.f32 %v4576, 1.442695
      %v4670 = vpow.pop %v4669
      %v4671 = vmul.f32 %v4577, 1.442695
      %v4672 = vpow.pop %v4671
      %v4673 = vmul.f32 %v4578, 1.442695
      %v4674 = vpow.pop %v4673
      %v4675 = vmul.f32 %v4579, 1.442695
      %v4676 = vpow.pop %v4675
      %v4677 = vmul.f32 %v4580, 1.442695
      %v4678 = vpow.pop %v4677
      %v4679 = vmul.f32 %v4581, 1.442695
      %v4680 = vpow.pop %v4679
      %v4681 = vmul.f32 %v4582, 1.442695
      %v4682 = vpow.pop %v4681
      %v4683 = vmul.f32 %v4583, 1.442695
      %v4684 = vpow.pop %v4683
      %v4685 = vmul.f32 %v4584, 1.442695
      %v4686 = vpow.pop %v4685
      %v4687 = vmul.f32 %v4585, 1.442695
      %v4688 = vpow.pop %v4687
      %v4689 = vmul.f32 %v4586, 1.442695
      %v4690 = vpow.pop %v4689
      %v4691 = vmul.f32 %v4587, 1.442695
      %v4692 = vpow.pop %v4691
      %v4693 = vmul.f32 %v4588, 1.442695
      %v4694 = vpow.pop %v4693
      %v4695 = vmul.f32 %v4589, 1.442695
      %v4696 = vpow.pop %v4695
      %v4697 = vmul.f32 %v4590, 1.442695
      %v4698 = vpow.pop %v4697
      %v4699 = vmul.f32 %v4591, 1.442695
      %v4700 = vpow.pop %v4699
      %v4701 = vmul.f32 %v4592, 1.442695
      %v4702 = vpow.pop %v4701
      %v4703 = vmul.f32 %v4593, 1.442695
      %v4704 = vpow.pop %v4703
      %v4705 = vmul.f32 %v4594, 1.442695
      %v4706 = vpow.pop %v4705
      %v4707 = vmul.f32 %v4595, 1.442695
      %v4708 = vpow.pop %v4707
      %v4709 = vmul.f32 %v4596, 1.442695
      %v4710 = vpow.pop %v4709
      %v4711 = vmul.f32 %v4597, 1.442695
      %v4712 = vpow.pop %v4711
      %v4713 = vmul.f32 %v4598, 1.442695
      %v4714 = vpow.pop %v4713
      %v4715 = vmul.f32 %v4599, 1.442695
      %v4716 = vpow.pop %v4715
      %v4717 = vmul.f32 %v4600, 1.442695
      %v4718 = vpow.pop %v4717
      %v4719 = vmul.f32 %v4601, 1.442695
      %v4720 = vpow.pop %v4719
      %v4721 = vmul.f32 %v4602, 1.442695
      %v4722 = vpow.pop %v4721
      %v4723 = vmul.f32 %v4603, 1.442695
      %v4724 = vpow.pop %v4723
      %v4725 = vmul.f32 %v4604, 1.442695
      %v4726 = vpow.pop %v4725
      %v4727 = vmul.f32 %v4605, 1.442695
      %v4728 = vpow.pop %v4727
      %v4729 = vmul.f32 %v4606, 1.442695
      %v4730 = vpow.pop %v4729
      %v4731 = vmul.f32 %v4607, 1.442695
      %v4732 = vpow.pop %v4731
      %v4733 = vmul.f32 %v4608, 1.442695
      %v4734 = vpow.pop %v4733
      %v4735 = vmul.f32 %v4609, 1.442695
      %v4736 = vpow.pop %v4735
      %v4737 = vmul.f32 %v4610, 1.442695
      %v4738 = vpow.pop %v4737
      %v4739 = vadd.f32 %v4612, 1.0
      %v4740 = vadd.f32 %v4614, 1.0
      %v4741 = vadd.f32 %v4616, 1.0
      %v4742 = vadd.f32 %v4618, 1.0
      %v4743 = vadd.f32 %v4620, 1.0
      %v4744 = vadd.f32 %v4622, 1.0
      %v4745 = vadd.f32 %v4624, 1.0
      %v4746 = vadd.f32 %v4626, 1.0
      %v4747 = vadd.f32 %v4628, 1.0
      %v4748 = vadd.f32 %v4630, 1.0
      %v4749 = vadd.f32 %v4632, 1.0
      %v4750 = vadd.f32 %v4634, 1.0
      %v4751 = vadd.f32 %v4636, 1.0
      %v4752 = vadd.f32 %v4638, 1.0
      %v4753 = vadd.f32 %v4640, 1.0
      %v4754 = vadd.f32 %v4642, 1.0
      %v4755 = vadd.f32 %v4644, 1.0
      %v4756 = vadd.f32 %v4646, 1.0
      %v4757 = vadd.f32 %v4648, 1.0
      %v4758 = vadd.f32 %v4650, 1.0
      %v4759 = vadd.f32 %v4652, 1.0
      %v4760 = vadd.f32 %v4654, 1.0
      %v4761 = vadd.f32 %v4656, 1.0
      %v4762 = vadd.f32 %v4658, 1.0
      %v4763 = vadd.f32 %v4660, 1.0
      %v4764 = vadd.f32 %v4662, 1.0
      %v4765 = vadd.f32 %v4664, 1.0
      %v4766 = vadd.f32 %v4666, 1.0
      %v4767 = vadd.f32 %v4668, 1.0
      %v4768 = vadd.f32 %v4670, 1.0
      %v4769 = vadd.f32 %v4672, 1.0
      %v4770 = vadd.f32 %v4674, 1.0
      %v4771 = vadd.f32 %v4676, 1.0
      %v4772 = vadd.f32 %v4678, 1.0
      %v4773 = vadd.f32 %v4680, 1.0
      %v4774 = vadd.f32 %v4682, 1.0
      %v4775 = vadd.f32 %v4684, 1.0
      %v4776 = vadd.f32 %v4686, 1.0
      %v4777 = vadd.f32 %v4688, 1.0
      %v4778 = vadd.f32 %v4690, 1.0
      %v4779 = vadd.f32 %v4692, 1.0
      %v4780 = vadd.f32 %v4694, 1.0
      %v4781 = vadd.f32 %v4696, 1.0
      %v4782 = vadd.f32 %v4698, 1.0
      %v4783 = vadd.f32 %v4700, 1.0
      %v4784 = vadd.f32 %v4702, 1.0
      %v4785 = vadd.f32 %v4704, 1.0
      %v4786 = vadd.f32 %v4706, 1.0
      %v4787 = vadd.f32 %v4708, 1.0
      %v4788 = vadd.f32 %v4710, 1.0
      %v4789 = vadd.f32 %v4712, 1.0
      %v4790 = vadd.f32 %v4714, 1.0
      %v4791 = vadd.f32 %v4716, 1.0
      %v4792 = vadd.f32 %v4718, 1.0
      %v4793 = vadd.f32 %v4720, 1.0
      %v4794 = vadd.f32 %v4722, 1.0
      %v4795 = vadd.f32 %v4724, 1.0
      %v4796 = vadd.f32 %v4726, 1.0
      %v4797 = vadd.f32 %v4728, 1.0
      %v4798 = vadd.f32 %v4730, 1.0
      %v4799 = vadd.f32 %v4732, 1.0
      %v4800 = vadd.f32 %v4734, 1.0
      %v4801 = vadd.f32 %v4736, 1.0
      %v4802 = vadd.f32 %v4738, 1.0
      %v4803 = vrcp.pop %v4739
      %v4804 = vmul.f32 %v4739, %v4803
      %v4805 = vsub.f32 1.0, %v4804
      %v4806 = vmul.f32 %v4803, %v4805
      %v4807 = vadd.f32 %v4803, %v4806
      %vm4808 = vweird.f32 %v4739
      %vm4809 = vweird.f32 %v4803
      %vm4810 = vmor %vm4808, %vm4809
      %v4811 = vsel %vm4810, %v4803, %v4807
      %v4812 = vand.u32 2147483647, %v4739
      %vm4813 = vcmp.eq.f32.partialorder %v4812, 8.507059e+37
      %v4814 = vand.u32 %v4739, 2147483648
      %v4815 = vor.u32 1.1754944e-38, %v4814
      %v4816 = vsel %vm4813, %v4815, %v4811
      %v4817 = vmul.f32 1.0, %v4816
      %v4818 = vrcp.pop %v4740
      %v4819 = vmul.f32 %v4740, %v4818
      %v4820 = vsub.f32 1.0, %v4819
      %v4821 = vmul.f32 %v4818, %v4820
      %v4822 = vadd.f32 %v4818, %v4821
      %vm4823 = vweird.f32 %v4740
      %vm4824 = vweird.f32 %v4818
      %vm4825 = vmor %vm4823, %vm4824
      %v4826 = vsel %vm4825, %v4818, %v4822
      %v4827 = vand.u32 2147483647, %v4740
      %vm4828 = vcmp.eq.f32.partialorder %v4827, 8.507059e+37
      %v4829 = vand.u32 %v4740, 2147483648
      %v4830 = vor.u32 1.1754944e-38, %v4829
      %v4831 = vsel %vm4828, %v4830, %v4826
      %v4832 = vmul.f32 1.0, %v4831
      %v4833 = vrcp.pop %v4741
      %v4834 = vmul.f32 %v4741, %v4833
      %v4835 = vsub.f32 1.0, %v4834
      %v4836 = vmul.f32 %v4833, %v4835
      %v4837 = vadd.f32 %v4833, %v4836
      %vm4838 = vweird.f32 %v4741
      %vm4839 = vweird.f32 %v4833
      %vm4840 = vmor %vm4838, %vm4839
      %v4841 = vsel %vm4840, %v4833, %v4837
      %v4842 = vand.u32 2147483647, %v4741
      %vm4843 = vcmp.eq.f32.partialorder %v4842, 8.507059e+37
      %v4844 = vand.u32 %v4741, 2147483648
      %v4845 = vor.u32 1.1754944e-38, %v4844
      %v4846 = vsel %vm4843, %v4845, %v4841
      %v4847 = vmul.f32 1.0, %v4846
      %v4848 = vrcp.pop %v4742
      %v4849 = vmul.f32 %v4742, %v4848
      %v4850 = vsub.f32 1.0, %v4849
      %v4851 = vmul.f32 %v4848, %v4850
      %v4852 = vadd.f32 %v4848, %v4851
      %vm4853 = vweird.f32 %v4742
      %vm4854 = vweird.f32 %v4848
      %vm4855 = vmor %vm4853, %vm4854
      %v4856 = vsel %vm4855, %v4848, %v4852
      %v4857 = vand.u32 2147483647, %v4742
      %vm4858 = vcmp.eq.f32.partialorder %v4857, 8.507059e+37
      %v4859 = vand.u32 %v4742, 2147483648
      %v4860 = vor.u32 1.1754944e-38, %v4859
      %v4861 = vsel %vm4858, %v4860, %v4856
      %v4862 = vmul.f32 1.0, %v4861
      %v4863 = vrcp.pop %v4743
      %v4864 = vmul.f32 %v4743, %v4863
      %v4865 = vsub.f32 1.0, %v4864
      %v4866 = vmul.f32 %v4863, %v4865
      %v4867 = vadd.f32 %v4863, %v4866
      %vm4868 = vweird.f32 %v4743
      %vm4869 = vweird.f32 %v4863
      %vm4870 = vmor %vm4868, %vm4869
      %v4871 = vsel %vm4870, %v4863, %v4867
      %v4872 = vand.u32 2147483647, %v4743
      %vm4873 = vcmp.eq.f32.partialorder %v4872, 8.507059e+37
      %v4874 = vand.u32 %v4743, 2147483648
      %v4875 = vor.u32 1.1754944e-38, %v4874
      %v4876 = vsel %vm4873, %v4875, %v4871
      %v4877 = vmul.f32 1.0, %v4876
      %v4878 = vrcp.pop %v4744
      %v4879 = vmul.f32 %v4744, %v4878
      %v4880 = vsub.f32 1.0, %v4879
      %v4881 = vmul.f32 %v4878, %v4880
      %v4882 = vadd.f32 %v4878, %v4881
      %vm4883 = vweird.f32 %v4744
      %vm4884 = vweird.f32 %v4878
      %vm4885 = vmor %vm4883, %vm4884
      %v4886 = vsel %vm4885, %v4878, %v4882
      %v4887 = vand.u32 2147483647, %v4744
      %vm4888 = vcmp.eq.f32.partialorder %v4887, 8.507059e+37
      %v4889 = vand.u32 %v4744, 2147483648
      %v4890 = vor.u32 1.1754944e-38, %v4889
      %v4891 = vsel %vm4888, %v4890, %v4886
      %v4892 = vmul.f32 1.0, %v4891
      %v4893 = vrcp.pop %v4745
      %v4894 = vmul.f32 %v4745, %v4893
      %v4895 = vsub.f32 1.0, %v4894
      %v4896 = vmul.f32 %v4893, %v4895
      %v4897 = vadd.f32 %v4893, %v4896
      %vm4898 = vweird.f32 %v4745
      %vm4899 = vweird.f32 %v4893
      %vm4900 = vmor %vm4898, %vm4899
      %v4901 = vsel %vm4900, %v4893, %v4897
      %v4902 = vand.u32 2147483647, %v4745
      %vm4903 = vcmp.eq.f32.partialorder %v4902, 8.507059e+37
      %v4904 = vand.u32 %v4745, 2147483648
      %v4905 = vor.u32 1.1754944e-38, %v4904
      %v4906 = vsel %vm4903, %v4905, %v4901
      %v4907 = vmul.f32 1.0, %v4906
      %v4908 = vrcp.pop %v4746
      %v4909 = vmul.f32 %v4746, %v4908
      %v4910 = vsub.f32 1.0, %v4909
      %v4911 = vmul.f32 %v4908, %v4910
      %v4912 = vadd.f32 %v4908, %v4911
      %vm4913 = vweird.f32 %v4746
      %vm4914 = vweird.f32 %v4908
      %vm4915 = vmor %vm4913, %vm4914
      %v4916 = vsel %vm4915, %v4908, %v4912
      %v4917 = vand.u32 2147483647, %v4746
      %vm4918 = vcmp.eq.f32.partialorder %v4917, 8.507059e+37
      %v4919 = vand.u32 %v4746, 2147483648
      %v4920 = vor.u32 1.1754944e-38, %v4919
      %v4921 = vsel %vm4918, %v4920, %v4916
      %v4922 = vmul.f32 1.0, %v4921
      %v4923 = vrcp.pop %v4747
      %v4924 = vmul.f32 %v4747, %v4923
      %v4925 = vsub.f32 1.0, %v4924
      %v4926 = vmul.f32 %v4923, %v4925
      %v4927 = vadd.f32 %v4923, %v4926
      %vm4928 = vweird.f32 %v4747
      %vm4929 = vweird.f32 %v4923
      %vm4930 = vmor %vm4928, %vm4929
      %v4931 = vsel %vm4930, %v4923, %v4927
      %v4932 = vand.u32 2147483647, %v4747
      %vm4933 = vcmp.eq.f32.partialorder %v4932, 8.507059e+37
      %v4934 = vand.u32 %v4747, 2147483648
      %v4935 = vor.u32 1.1754944e-38, %v4934
      %v4936 = vsel %vm4933, %v4935, %v4931
      %v4937 = vmul.f32 1.0, %v4936
      %v4938 = vrcp.pop %v4748
      %v4939 = vmul.f32 %v4748, %v4938
      %v4940 = vsub.f32 1.0, %v4939
      %v4941 = vmul.f32 %v4938, %v4940
      %v4942 = vadd.f32 %v4938, %v4941
      %vm4943 = vweird.f32 %v4748
      %vm4944 = vweird.f32 %v4938
      %vm4945 = vmor %vm4943, %vm4944
      %v4946 = vsel %vm4945, %v4938, %v4942
      %v4947 = vand.u32 2147483647, %v4748
      %vm4948 = vcmp.eq.f32.partialorder %v4947, 8.507059e+37
      %v4949 = vand.u32 %v4748, 2147483648
      %v4950 = vor.u32 1.1754944e-38, %v4949
      %v4951 = vsel %vm4948, %v4950, %v4946
      %v4952 = vmul.f32 1.0, %v4951
      %v4953 = vrcp.pop %v4749
      %v4954 = vmul.f32 %v4749, %v4953
      %v4955 = vsub.f32 1.0, %v4954
      %v4956 = vmul.f32 %v4953, %v4955
      %v4957 = vadd.f32 %v4953, %v4956
      %vm4958 = vweird.f32 %v4749
      %vm4959 = vweird.f32 %v4953
      %vm4960 = vmor %vm4958, %vm4959
      %v4961 = vsel %vm4960, %v4953, %v4957
      %v4962 = vand.u32 2147483647, %v4749
      %vm4963 = vcmp.eq.f32.partialorder %v4962, 8.507059e+37
      %v4964 = vand.u32 %v4749, 2147483648
      %v4965 = vor.u32 1.1754944e-38, %v4964
      %v4966 = vsel %vm4963, %v4965, %v4961
      %v4967 = vmul.f32 1.0, %v4966
      %v4968 = vrcp.pop %v4750
      %v4969 = vmul.f32 %v4750, %v4968
      %v4970 = vsub.f32 1.0, %v4969
      %v4971 = vmul.f32 %v4968, %v4970
      %v4972 = vadd.f32 %v4968, %v4971
      %vm4973 = vweird.f32 %v4750
      %vm4974 = vweird.f32 %v4968
      %vm4975 = vmor %vm4973, %vm4974
      %v4976 = vsel %vm4975, %v4968, %v4972
      %v4977 = vand.u32 2147483647, %v4750
      %vm4978 = vcmp.eq.f32.partialorder %v4977, 8.507059e+37
      %v4979 = vand.u32 %v4750, 2147483648
      %v4980 = vor.u32 1.1754944e-38, %v4979
      %v4981 = vsel %vm4978, %v4980, %v4976
      %v4982 = vmul.f32 1.0, %v4981
      %v4983 = vrcp.pop %v4751
      %v4984 = vmul.f32 %v4751, %v4983
      %v4985 = vsub.f32 1.0, %v4984
      %v4986 = vmul.f32 %v4983, %v4985
      %v4987 = vadd.f32 %v4983, %v4986
      %vm4988 = vweird.f32 %v4751
      %vm4989 = vweird.f32 %v4983
      %vm4990 = vmor %vm4988, %vm4989
      %v4991 = vsel %vm4990, %v4983, %v4987
      %v4992 = vand.u32 2147483647, %v4751
      %vm4993 = vcmp.eq.f32.partialorder %v4992, 8.507059e+37
      %v4994 = vand.u32 %v4751, 2147483648
      %v4995 = vor.u32 1.1754944e-38, %v4994
      %v4996 = vsel %vm4993, %v4995, %v4991
      %v4997 = vmul.f32 1.0, %v4996
      %v4998 = vrcp.pop %v4752
      %v4999 = vmul.f32 %v4752, %v4998
      %v5000 = vsub.f32 1.0, %v4999
      %v5001 = vmul.f32 %v4998, %v5000
      %v5002 = vadd.f32 %v4998, %v5001
      %vm5003 = vweird.f32 %v4752
      %vm5004 = vweird.f32 %v4998
      %vm5005 = vmor %vm5003, %vm5004
      %v5006 = vsel %vm5005, %v4998, %v5002
      %v5007 = vand.u32 2147483647, %v4752
      %vm5008 = vcmp.eq.f32.partialorder %v5007, 8.507059e+37
      %v5009 = vand.u32 %v4752, 2147483648
      %v5010 = vor.u32 1.1754944e-38, %v5009
      %v5011 = vsel %vm5008, %v5010, %v5006
      %v5012 = vmul.f32 1.0, %v5011
      %v5013 = vrcp.pop %v4753
      %v5014 = vmul.f32 %v4753, %v5013
      %v5015 = vsub.f32 1.0, %v5014
      %v5016 = vmul.f32 %v5013, %v5015
      %v5017 = vadd.f32 %v5013, %v5016
      %vm5018 = vweird.f32 %v4753
      %vm5019 = vweird.f32 %v5013
      %vm5020 = vmor %vm5018, %vm5019
      %v5021 = vsel %vm5020, %v5013, %v5017
      %v5022 = vand.u32 2147483647, %v4753
      %vm5023 = vcmp.eq.f32.partialorder %v5022, 8.507059e+37
      %v5024 = vand.u32 %v4753, 2147483648
      %v5025 = vor.u32 1.1754944e-38, %v5024
      %v5026 = vsel %vm5023, %v5025, %v5021
      %v5027 = vmul.f32 1.0, %v5026
      %v5028 = vrcp.pop %v4754
      %v5029 = vmul.f32 %v4754, %v5028
      %v5030 = vsub.f32 1.0, %v5029
      %v5031 = vmul.f32 %v5028, %v5030
      %v5032 = vadd.f32 %v5028, %v5031
      %vm5033 = vweird.f32 %v4754
      %vm5034 = vweird.f32 %v5028
      %vm5035 = vmor %vm5033, %vm5034
      %v5036 = vsel %vm5035, %v5028, %v5032
      %v5037 = vand.u32 2147483647, %v4754
      %vm5038 = vcmp.eq.f32.partialorder %v5037, 8.507059e+37
      %v5039 = vand.u32 %v4754, 2147483648
      %v5040 = vor.u32 1.1754944e-38, %v5039
      %v5041 = vsel %vm5038, %v5040, %v5036
      %v5042 = vmul.f32 1.0, %v5041
      %v5043 = vrcp.pop %v4755
      %v5044 = vmul.f32 %v4755, %v5043
      %v5045 = vsub.f32 1.0, %v5044
      %v5046 = vmul.f32 %v5043, %v5045
      %v5047 = vadd.f32 %v5043, %v5046
      %vm5048 = vweird.f32 %v4755
      %vm5049 = vweird.f32 %v5043
      %vm5050 = vmor %vm5048, %vm5049
      %v5051 = vsel %vm5050, %v5043, %v5047
      %v5052 = vand.u32 2147483647, %v4755
      %vm5053 = vcmp.eq.f32.partialorder %v5052, 8.507059e+37
      %v5054 = vand.u32 %v4755, 2147483648
      %v5055 = vor.u32 1.1754944e-38, %v5054
      %v5056 = vsel %vm5053, %v5055, %v5051
      %v5057 = vmul.f32 1.0, %v5056
      %v5058 = vrcp.pop %v4756
      %v5059 = vmul.f32 %v4756, %v5058
      %v5060 = vsub.f32 1.0, %v5059
      %v5061 = vmul.f32 %v5058, %v5060
      %v5062 = vadd.f32 %v5058, %v5061
      %vm5063 = vweird.f32 %v4756
      %vm5064 = vweird.f32 %v5058
      %vm5065 = vmor %vm5063, %vm5064
      %v5066 = vsel %vm5065, %v5058, %v5062
      %v5067 = vand.u32 2147483647, %v4756
      %vm5068 = vcmp.eq.f32.partialorder %v5067, 8.507059e+37
      %v5069 = vand.u32 %v4756, 2147483648
      %v5070 = vor.u32 1.1754944e-38, %v5069
      %v5071 = vsel %vm5068, %v5070, %v5066
      %v5072 = vmul.f32 1.0, %v5071
      %v5073 = vrcp.pop %v4757
      %v5074 = vmul.f32 %v4757, %v5073
      %v5075 = vsub.f32 1.0, %v5074
      %v5076 = vmul.f32 %v5073, %v5075
      %v5077 = vadd.f32 %v5073, %v5076
      %vm5078 = vweird.f32 %v4757
      %vm5079 = vweird.f32 %v5073
      %vm5080 = vmor %vm5078, %vm5079
      %v5081 = vsel %vm5080, %v5073, %v5077
      %v5082 = vand.u32 2147483647, %v4757
      %vm5083 = vcmp.eq.f32.partialorder %v5082, 8.507059e+37
      %v5084 = vand.u32 %v4757, 2147483648
      %v5085 = vor.u32 1.1754944e-38, %v5084
      %v5086 = vsel %vm5083, %v5085, %v5081
      %v5087 = vmul.f32 1.0, %v5086
      %v5088 = vrcp.pop %v4758
      %v5089 = vmul.f32 %v4758, %v5088
      %v5090 = vsub.f32 1.0, %v5089
      %v5091 = vmul.f32 %v5088, %v5090
      %v5092 = vadd.f32 %v5088, %v5091
      %vm5093 = vweird.f32 %v4758
      %vm5094 = vweird.f32 %v5088
      %vm5095 = vmor %vm5093, %vm5094
      %v5096 = vsel %vm5095, %v5088, %v5092
      %v5097 = vand.u32 2147483647, %v4758
      %vm5098 = vcmp.eq.f32.partialorder %v5097, 8.507059e+37
      %v5099 = vand.u32 %v4758, 2147483648
      %v5100 = vor.u32 1.1754944e-38, %v5099
      %v5101 = vsel %vm5098, %v5100, %v5096
      %v5102 = vmul.f32 1.0, %v5101
      %v5103 = vrcp.pop %v4759
      %v5104 = vmul.f32 %v4759, %v5103
      %v5105 = vsub.f32 1.0, %v5104
      %v5106 = vmul.f32 %v5103, %v5105
      %v5107 = vadd.f32 %v5103, %v5106
      %vm5108 = vweird.f32 %v4759
      %vm5109 = vweird.f32 %v5103
      %vm5110 = vmor %vm5108, %vm5109
      %v5111 = vsel %vm5110, %v5103, %v5107
      %v5112 = vand.u32 2147483647, %v4759
      %vm5113 = vcmp.eq.f32.partialorder %v5112, 8.507059e+37
      %v5114 = vand.u32 %v4759, 2147483648
      %v5115 = vor.u32 1.1754944e-38, %v5114
      %v5116 = vsel %vm5113, %v5115, %v5111
      %v5117 = vmul.f32 1.0, %v5116
      %v5118 = vrcp.pop %v4760
      %v5119 = vmul.f32 %v4760, %v5118
      %v5120 = vsub.f32 1.0, %v5119
      %v5121 = vmul.f32 %v5118, %v5120
      %v5122 = vadd.f32 %v5118, %v5121
      %vm5123 = vweird.f32 %v4760
      %vm5124 = vweird.f32 %v5118
      %vm5125 = vmor %vm5123, %vm5124
      %v5126 = vsel %vm5125, %v5118, %v5122
      %v5127 = vand.u32 2147483647, %v4760
      %vm5128 = vcmp.eq.f32.partialorder %v5127, 8.507059e+37
      %v5129 = vand.u32 %v4760, 2147483648
      %v5130 = vor.u32 1.1754944e-38, %v5129
      %v5131 = vsel %vm5128, %v5130, %v5126
      %v5132 = vmul.f32 1.0, %v5131
      %v5133 = vrcp.pop %v4761
      %v5134 = vmul.f32 %v4761, %v5133
      %v5135 = vsub.f32 1.0, %v5134
      %v5136 = vmul.f32 %v5133, %v5135
      %v5137 = vadd.f32 %v5133, %v5136
      %vm5138 = vweird.f32 %v4761
      %vm5139 = vweird.f32 %v5133
      %vm5140 = vmor %vm5138, %vm5139
      %v5141 = vsel %vm5140, %v5133, %v5137
      %v5142 = vand.u32 2147483647, %v4761
      %vm5143 = vcmp.eq.f32.partialorder %v5142, 8.507059e+37
      %v5144 = vand.u32 %v4761, 2147483648
      %v5145 = vor.u32 1.1754944e-38, %v5144
      %v5146 = vsel %vm5143, %v5145, %v5141
      %v5147 = vmul.f32 1.0, %v5146
      %v5148 = vrcp.pop %v4762
      %v5149 = vmul.f32 %v4762, %v5148
      %v5150 = vsub.f32 1.0, %v5149
      %v5151 = vmul.f32 %v5148, %v5150
      %v5152 = vadd.f32 %v5148, %v5151
      %vm5153 = vweird.f32 %v4762
      %vm5154 = vweird.f32 %v5148
      %vm5155 = vmor %vm5153, %vm5154
      %v5156 = vsel %vm5155, %v5148, %v5152
      %v5157 = vand.u32 2147483647, %v4762
      %vm5158 = vcmp.eq.f32.partialorder %v5157, 8.507059e+37
      %v5159 = vand.u32 %v4762, 2147483648
      %v5160 = vor.u32 1.1754944e-38, %v5159
      %v5161 = vsel %vm5158, %v5160, %v5156
      %v5162 = vmul.f32 1.0, %v5161
      %v5163 = vrcp.pop %v4763
      %v5164 = vmul.f32 %v4763, %v5163
      %v5165 = vsub.f32 1.0, %v5164
      %v5166 = vmul.f32 %v5163, %v5165
      %v5167 = vadd.f32 %v5163, %v5166
      %vm5168 = vweird.f32 %v4763
      %vm5169 = vweird.f32 %v5163
      %vm5170 = vmor %vm5168, %vm5169
      %v5171 = vsel %vm5170, %v5163, %v5167
      %v5172 = vand.u32 2147483647, %v4763
      %vm5173 = vcmp.eq.f32.partialorder %v5172, 8.507059e+37
      %v5174 = vand.u32 %v4763, 2147483648
      %v5175 = vor.u32 1.1754944e-38, %v5174
      %v5176 = vsel %vm5173, %v5175, %v5171
      %v5177 = vmul.f32 1.0, %v5176
      %v5178 = vrcp.pop %v4764
      %v5179 = vmul.f32 %v4764, %v5178
      %v5180 = vsub.f32 1.0, %v5179
      %v5181 = vmul.f32 %v5178, %v5180
      %v5182 = vadd.f32 %v5178, %v5181
      %vm5183 = vweird.f32 %v4764
      %vm5184 = vweird.f32 %v5178
      %vm5185 = vmor %vm5183, %vm5184
      %v5186 = vsel %vm5185, %v5178, %v5182
      %v5187 = vand.u32 2147483647, %v4764
      %vm5188 = vcmp.eq.f32.partialorder %v5187, 8.507059e+37
      %v5189 = vand.u32 %v4764, 2147483648
      %v5190 = vor.u32 1.1754944e-38, %v5189
      %v5191 = vsel %vm5188, %v5190, %v5186
      %v5192 = vmul.f32 1.0, %v5191
      %v5193 = vrcp.pop %v4765
      %v5194 = vmul.f32 %v4765, %v5193
      %v5195 = vsub.f32 1.0, %v5194
      %v5196 = vmul.f32 %v5193, %v5195
      %v5197 = vadd.f32 %v5193, %v5196
      %vm5198 = vweird.f32 %v4765
      %vm5199 = vweird.f32 %v5193
      %vm5200 = vmor %vm5198, %vm5199
      %v5201 = vsel %vm5200, %v5193, %v5197
      %v5202 = vand.u32 2147483647, %v4765
      %vm5203 = vcmp.eq.f32.partialorder %v5202, 8.507059e+37
      %v5204 = vand.u32 %v4765, 2147483648
      %v5205 = vor.u32 1.1754944e-38, %v5204
      %v5206 = vsel %vm5203, %v5205, %v5201
      %v5207 = vmul.f32 1.0, %v5206
      %v5208 = vrcp.pop %v4766
      %v5209 = vmul.f32 %v4766, %v5208
      %v5210 = vsub.f32 1.0, %v5209
      %v5211 = vmul.f32 %v5208, %v5210
      %v5212 = vadd.f32 %v5208, %v5211
      %vm5213 = vweird.f32 %v4766
      %vm5214 = vweird.f32 %v5208
      %vm5215 = vmor %vm5213, %vm5214
      %v5216 = vsel %vm5215, %v5208, %v5212
      %v5217 = vand.u32 2147483647, %v4766
      %vm5218 = vcmp.eq.f32.partialorder %v5217, 8.507059e+37
      %v5219 = vand.u32 %v4766, 2147483648
      %v5220 = vor.u32 1.1754944e-38, %v5219
      %v5221 = vsel %vm5218, %v5220, %v5216
      %v5222 = vmul.f32 1.0, %v5221
      %v5223 = vrcp.pop %v4767
      %v5224 = vmul.f32 %v4767, %v5223
      %v5225 = vsub.f32 1.0, %v5224
      %v5226 = vmul.f32 %v5223, %v5225
      %v5227 = vadd.f32 %v5223, %v5226
      %vm5228 = vweird.f32 %v4767
      %vm5229 = vweird.f32 %v5223
      %vm5230 = vmor %vm5228, %vm5229
      %v5231 = vsel %vm5230, %v5223, %v5227
      %v5232 = vand.u32 2147483647, %v4767
      %vm5233 = vcmp.eq.f32.partialorder %v5232, 8.507059e+37
      %v5234 = vand.u32 %v4767, 2147483648
      %v5235 = vor.u32 1.1754944e-38, %v5234
      %v5236 = vsel %vm5233, %v5235, %v5231
      %v5237 = vmul.f32 1.0, %v5236
      %v5238 = vrcp.pop %v4768
      %v5239 = vmul.f32 %v4768, %v5238
      %v5240 = vsub.f32 1.0, %v5239
      %v5241 = vmul.f32 %v5238, %v5240
      %v5242 = vadd.f32 %v5238, %v5241
      %vm5243 = vweird.f32 %v4768
      %vm5244 = vweird.f32 %v5238
      %vm5245 = vmor %vm5243, %vm5244
      %v5246 = vsel %vm5245, %v5238, %v5242
      %v5247 = vand.u32 2147483647, %v4768
      %vm5248 = vcmp.eq.f32.partialorder %v5247, 8.507059e+37
      %v5249 = vand.u32 %v4768, 2147483648
      %v5250 = vor.u32 1.1754944e-38, %v5249
      %v5251 = vsel %vm5248, %v5250, %v5246
      %v5252 = vmul.f32 1.0, %v5251
      %v5253 = vrcp.pop %v4769
      %v5254 = vmul.f32 %v4769, %v5253
      %v5255 = vsub.f32 1.0, %v5254
      %v5256 = vmul.f32 %v5253, %v5255
      %v5257 = vadd.f32 %v5253, %v5256
      %vm5258 = vweird.f32 %v4769
      %vm5259 = vweird.f32 %v5253
      %vm5260 = vmor %vm5258, %vm5259
      %v5261 = vsel %vm5260, %v5253, %v5257
      %v5262 = vand.u32 2147483647, %v4769
      %vm5263 = vcmp.eq.f32.partialorder %v5262, 8.507059e+37
      %v5264 = vand.u32 %v4769, 2147483648
      %v5265 = vor.u32 1.1754944e-38, %v5264
      %v5266 = vsel %vm5263, %v5265, %v5261
      %v5267 = vmul.f32 1.0, %v5266
      %v5268 = vrcp.pop %v4770
      %v5269 = vmul.f32 %v4770, %v5268
      %v5270 = vsub.f32 1.0, %v5269
      %v5271 = vmul.f32 %v5268, %v5270
      %v5272 = vadd.f32 %v5268, %v5271
      %vm5273 = vweird.f32 %v4770
      %vm5274 = vweird.f32 %v5268
      %vm5275 = vmor %vm5273, %vm5274
      %v5276 = vsel %vm5275, %v5268, %v5272
      %v5277 = vand.u32 2147483647, %v4770
      %vm5278 = vcmp.eq.f32.partialorder %v5277, 8.507059e+37
      %v5279 = vand.u32 %v4770, 2147483648
      %v5280 = vor.u32 1.1754944e-38, %v5279
      %v5281 = vsel %vm5278, %v5280, %v5276
      %v5282 = vmul.f32 1.0, %v5281
      %v5283 = vrcp.pop %v4771
      %v5284 = vmul.f32 %v4771, %v5283
      %v5285 = vsub.f32 1.0, %v5284
      %v5286 = vmul.f32 %v5283, %v5285
      %v5287 = vadd.f32 %v5283, %v5286
      %vm5288 = vweird.f32 %v4771
      %vm5289 = vweird.f32 %v5283
      %vm5290 = vmor %vm5288, %vm5289
      %v5291 = vsel %vm5290, %v5283, %v5287
      %v5292 = vand.u32 2147483647, %v4771
      %vm5293 = vcmp.eq.f32.partialorder %v5292, 8.507059e+37
      %v5294 = vand.u32 %v4771, 2147483648
      %v5295 = vor.u32 1.1754944e-38, %v5294
      %v5296 = vsel %vm5293, %v5295, %v5291
      %v5297 = vmul.f32 1.0, %v5296
      %v5298 = vrcp.pop %v4772
      %v5299 = vmul.f32 %v4772, %v5298
      %v5300 = vsub.f32 1.0, %v5299
      %v5301 = vmul.f32 %v5298, %v5300
      %v5302 = vadd.f32 %v5298, %v5301
      %vm5303 = vweird.f32 %v4772
      %vm5304 = vweird.f32 %v5298
      %vm5305 = vmor %vm5303, %vm5304
      %v5306 = vsel %vm5305, %v5298, %v5302
      %v5307 = vand.u32 2147483647, %v4772
      %vm5308 = vcmp.eq.f32.partialorder %v5307, 8.507059e+37
      %v5309 = vand.u32 %v4772, 2147483648
      %v5310 = vor.u32 1.1754944e-38, %v5309
      %v5311 = vsel %vm5308, %v5310, %v5306
      %v5312 = vmul.f32 1.0, %v5311
      %v5313 = vrcp.pop %v4773
      %v5314 = vmul.f32 %v4773, %v5313
      %v5315 = vsub.f32 1.0, %v5314
      %v5316 = vmul.f32 %v5313, %v5315
      %v5317 = vadd.f32 %v5313, %v5316
      %vm5318 = vweird.f32 %v4773
      %vm5319 = vweird.f32 %v5313
      %vm5320 = vmor %vm5318, %vm5319
      %v5321 = vsel %vm5320, %v5313, %v5317
      %v5322 = vand.u32 2147483647, %v4773
      %vm5323 = vcmp.eq.f32.partialorder %v5322, 8.507059e+37
      %v5324 = vand.u32 %v4773, 2147483648
      %v5325 = vor.u32 1.1754944e-38, %v5324
      %v5326 = vsel %vm5323, %v5325, %v5321
      %v5327 = vmul.f32 1.0, %v5326
      %v5328 = vrcp.pop %v4774
      %v5329 = vmul.f32 %v4774, %v5328
      %v5330 = vsub.f32 1.0, %v5329
      %v5331 = vmul.f32 %v5328, %v5330
      %v5332 = vadd.f32 %v5328, %v5331
      %vm5333 = vweird.f32 %v4774
      %vm5334 = vweird.f32 %v5328
      %vm5335 = vmor %vm5333, %vm5334
      %v5336 = vsel %vm5335, %v5328, %v5332
      %v5337 = vand.u32 2147483647, %v4774
      %vm5338 = vcmp.eq.f32.partialorder %v5337, 8.507059e+37
      %v5339 = vand.u32 %v4774, 2147483648
      %v5340 = vor.u32 1.1754944e-38, %v5339
      %v5341 = vsel %vm5338, %v5340, %v5336
      %v5342 = vmul.f32 1.0, %v5341
      %v5343 = vrcp.pop %v4775
      %v5344 = vmul.f32 %v4775, %v5343
      %v5345 = vsub.f32 1.0, %v5344
      %v5346 = vmul.f32 %v5343, %v5345
      %v5347 = vadd.f32 %v5343, %v5346
      %vm5348 = vweird.f32 %v4775
      %vm5349 = vweird.f32 %v5343
      %vm5350 = vmor %vm5348, %vm5349
      %v5351 = vsel %vm5350, %v5343, %v5347
      %v5352 = vand.u32 2147483647, %v4775
      %vm5353 = vcmp.eq.f32.partialorder %v5352, 8.507059e+37
      %v5354 = vand.u32 %v4775, 2147483648
      %v5355 = vor.u32 1.1754944e-38, %v5354
      %v5356 = vsel %vm5353, %v5355, %v5351
      %v5357 = vmul.f32 1.0, %v5356
      %v5358 = vrcp.pop %v4776
      %v5359 = vmul.f32 %v4776, %v5358
      %v5360 = vsub.f32 1.0, %v5359
      %v5361 = vmul.f32 %v5358, %v5360
      %v5362 = vadd.f32 %v5358, %v5361
      %vm5363 = vweird.f32 %v4776
      %vm5364 = vweird.f32 %v5358
      %vm5365 = vmor %vm5363, %vm5364
      %v5366 = vsel %vm5365, %v5358, %v5362
      %v5367 = vand.u32 2147483647, %v4776
      %vm5368 = vcmp.eq.f32.partialorder %v5367, 8.507059e+37
      %v5369 = vand.u32 %v4776, 2147483648
      %v5370 = vor.u32 1.1754944e-38, %v5369
      %v5371 = vsel %vm5368, %v5370, %v5366
      %v5372 = vmul.f32 1.0, %v5371
      %v5373 = vrcp.pop %v4777
      %v5374 = vmul.f32 %v4777, %v5373
      %v5375 = vsub.f32 1.0, %v5374
      %v5376 = vmul.f32 %v5373, %v5375
      %v5377 = vadd.f32 %v5373, %v5376
      %vm5378 = vweird.f32 %v4777
      %vm5379 = vweird.f32 %v5373
      %vm5380 = vmor %vm5378, %vm5379
      %v5381 = vsel %vm5380, %v5373, %v5377
      %v5382 = vand.u32 2147483647, %v4777
      %vm5383 = vcmp.eq.f32.partialorder %v5382, 8.507059e+37
      %v5384 = vand.u32 %v4777, 2147483648
      %v5385 = vor.u32 1.1754944e-38, %v5384
      %v5386 = vsel %vm5383, %v5385, %v5381
      %v5387 = vmul.f32 1.0, %v5386
      %v5388 = vrcp.pop %v4778
      %v5389 = vmul.f32 %v4778, %v5388
      %v5390 = vsub.f32 1.0, %v5389
      %v5391 = vmul.f32 %v5388, %v5390
      %v5392 = vadd.f32 %v5388, %v5391
      %vm5393 = vweird.f32 %v4778
      %vm5394 = vweird.f32 %v5388
      %vm5395 = vmor %vm5393, %vm5394
      %v5396 = vsel %vm5395, %v5388, %v5392
      %v5397 = vand.u32 2147483647, %v4778
      %vm5398 = vcmp.eq.f32.partialorder %v5397, 8.507059e+37
      %v5399 = vand.u32 %v4778, 2147483648
      %v5400 = vor.u32 1.1754944e-38, %v5399
      %v5401 = vsel %vm5398, %v5400, %v5396
      %v5402 = vmul.f32 1.0, %v5401
      %v5403 = vrcp.pop %v4779
      %v5404 = vmul.f32 %v4779, %v5403
      %v5405 = vsub.f32 1.0, %v5404
      %v5406 = vmul.f32 %v5403, %v5405
      %v5407 = vadd.f32 %v5403, %v5406
      %vm5408 = vweird.f32 %v4779
      %vm5409 = vweird.f32 %v5403
      %vm5410 = vmor %vm5408, %vm5409
      %v5411 = vsel %vm5410, %v5403, %v5407
      %v5412 = vand.u32 2147483647, %v4779
      %vm5413 = vcmp.eq.f32.partialorder %v5412, 8.507059e+37
      %v5414 = vand.u32 %v4779, 2147483648
      %v5415 = vor.u32 1.1754944e-38, %v5414
      %v5416 = vsel %vm5413, %v5415, %v5411
      %v5417 = vmul.f32 1.0, %v5416
      %v5418 = vrcp.pop %v4780
      %v5419 = vmul.f32 %v4780, %v5418
      %v5420 = vsub.f32 1.0, %v5419
      %v5421 = vmul.f32 %v5418, %v5420
      %v5422 = vadd.f32 %v5418, %v5421
      %vm5423 = vweird.f32 %v4780
      %vm5424 = vweird.f32 %v5418
      %vm5425 = vmor %vm5423, %vm5424
      %v5426 = vsel %vm5425, %v5418, %v5422
      %v5427 = vand.u32 2147483647, %v4780
      %vm5428 = vcmp.eq.f32.partialorder %v5427, 8.507059e+37
      %v5429 = vand.u32 %v4780, 2147483648
      %v5430 = vor.u32 1.1754944e-38, %v5429
      %v5431 = vsel %vm5428, %v5430, %v5426
      %v5432 = vmul.f32 1.0, %v5431
      %v5433 = vrcp.pop %v4781
      %v5434 = vmul.f32 %v4781, %v5433
      %v5435 = vsub.f32 1.0, %v5434
      %v5436 = vmul.f32 %v5433, %v5435
      %v5437 = vadd.f32 %v5433, %v5436
      %vm5438 = vweird.f32 %v4781
      %vm5439 = vweird.f32 %v5433
      %vm5440 = vmor %vm5438, %vm5439
      %v5441 = vsel %vm5440, %v5433, %v5437
      %v5442 = vand.u32 2147483647, %v4781
      %vm5443 = vcmp.eq.f32.partialorder %v5442, 8.507059e+37
      %v5444 = vand.u32 %v4781, 2147483648
      %v5445 = vor.u32 1.1754944e-38, %v5444
      %v5446 = vsel %vm5443, %v5445, %v5441
      %v5447 = vmul.f32 1.0, %v5446
      %v5448 = vrcp.pop %v4782
      %v5449 = vmul.f32 %v4782, %v5448
      %v5450 = vsub.f32 1.0, %v5449
      %v5451 = vmul.f32 %v5448, %v5450
      %v5452 = vadd.f32 %v5448, %v5451
      %vm5453 = vweird.f32 %v4782
      %vm5454 = vweird.f32 %v5448
      %vm5455 = vmor %vm5453, %vm5454
      %v5456 = vsel %vm5455, %v5448, %v5452
      %v5457 = vand.u32 2147483647, %v4782
      %vm5458 = vcmp.eq.f32.partialorder %v5457, 8.507059e+37
      %v5459 = vand.u32 %v4782, 2147483648
      %v5460 = vor.u32 1.1754944e-38, %v5459
      %v5461 = vsel %vm5458, %v5460, %v5456
      %v5462 = vmul.f32 1.0, %v5461
      %v5463 = vrcp.pop %v4783
      %v5464 = vmul.f32 %v4783, %v5463
      %v5465 = vsub.f32 1.0, %v5464
      %v5466 = vmul.f32 %v5463, %v5465
      %v5467 = vadd.f32 %v5463, %v5466
      %vm5468 = vweird.f32 %v4783
      %vm5469 = vweird.f32 %v5463
      %vm5470 = vmor %vm5468, %vm5469
      %v5471 = vsel %vm5470, %v5463, %v5467
      %v5472 = vand.u32 2147483647, %v4783
      %vm5473 = vcmp.eq.f32.partialorder %v5472, 8.507059e+37
      %v5474 = vand.u32 %v4783, 2147483648
      %v5475 = vor.u32 1.1754944e-38, %v5474
      %v5476 = vsel %vm5473, %v5475, %v5471
      %v5477 = vmul.f32 1.0, %v5476
      %v5478 = vrcp.pop %v4784
      %v5479 = vmul.f32 %v4784, %v5478
      %v5480 = vsub.f32 1.0, %v5479
      %v5481 = vmul.f32 %v5478, %v5480
      %v5482 = vadd.f32 %v5478, %v5481
      %vm5483 = vweird.f32 %v4784
      %vm5484 = vweird.f32 %v5478
      %vm5485 = vmor %vm5483, %vm5484
      %v5486 = vsel %vm5485, %v5478, %v5482
      %v5487 = vand.u32 2147483647, %v4784
      %vm5488 = vcmp.eq.f32.partialorder %v5487, 8.507059e+37
      %v5489 = vand.u32 %v4784, 2147483648
      %v5490 = vor.u32 1.1754944e-38, %v5489
      %v5491 = vsel %vm5488, %v5490, %v5486
      %v5492 = vmul.f32 1.0, %v5491
      %v5493 = vrcp.pop %v4785
      %v5494 = vmul.f32 %v4785, %v5493
      %v5495 = vsub.f32 1.0, %v5494
      %v5496 = vmul.f32 %v5493, %v5495
      %v5497 = vadd.f32 %v5493, %v5496
      %vm5498 = vweird.f32 %v4785
      %vm5499 = vweird.f32 %v5493
      %vm5500 = vmor %vm5498, %vm5499
      %v5501 = vsel %vm5500, %v5493, %v5497
      %v5502 = vand.u32 2147483647, %v4785
      %vm5503 = vcmp.eq.f32.partialorder %v5502, 8.507059e+37
      %v5504 = vand.u32 %v4785, 2147483648
      %v5505 = vor.u32 1.1754944e-38, %v5504
      %v5506 = vsel %vm5503, %v5505, %v5501
      %v5507 = vmul.f32 1.0, %v5506
      %v5508 = vrcp.pop %v4786
      %v5509 = vmul.f32 %v4786, %v5508
      %v5510 = vsub.f32 1.0, %v5509
      %v5511 = vmul.f32 %v5508, %v5510
      %v5512 = vadd.f32 %v5508, %v5511
      %vm5513 = vweird.f32 %v4786
      %vm5514 = vweird.f32 %v5508
      %vm5515 = vmor %vm5513, %vm5514
      %v5516 = vsel %vm5515, %v5508, %v5512
      %v5517 = vand.u32 2147483647, %v4786
      %vm5518 = vcmp.eq.f32.partialorder %v5517, 8.507059e+37
      %v5519 = vand.u32 %v4786, 2147483648
      %v5520 = vor.u32 1.1754944e-38, %v5519
      %v5521 = vsel %vm5518, %v5520, %v5516
      %v5522 = vmul.f32 1.0, %v5521
      %v5523 = vrcp.pop %v4787
      %v5524 = vmul.f32 %v4787, %v5523
      %v5525 = vsub.f32 1.0, %v5524
      %v5526 = vmul.f32 %v5523, %v5525
      %v5527 = vadd.f32 %v5523, %v5526
      %vm5528 = vweird.f32 %v4787
      %vm5529 = vweird.f32 %v5523
      %vm5530 = vmor %vm5528, %vm5529
      %v5531 = vsel %vm5530, %v5523, %v5527
      %v5532 = vand.u32 2147483647, %v4787
      %vm5533 = vcmp.eq.f32.partialorder %v5532, 8.507059e+37
      %v5534 = vand.u32 %v4787, 2147483648
      %v5535 = vor.u32 1.1754944e-38, %v5534
      %v5536 = vsel %vm5533, %v5535, %v5531
      %v5537 = vmul.f32 1.0, %v5536
      %v5538 = vrcp.pop %v4788
      %v5539 = vmul.f32 %v4788, %v5538
      %v5540 = vsub.f32 1.0, %v5539
      %v5541 = vmul.f32 %v5538, %v5540
      %v5542 = vadd.f32 %v5538, %v5541
      %vm5543 = vweird.f32 %v4788
      %vm5544 = vweird.f32 %v5538
      %vm5545 = vmor %vm5543, %vm5544
      %v5546 = vsel %vm5545, %v5538, %v5542
      %v5547 = vand.u32 2147483647, %v4788
      %vm5548 = vcmp.eq.f32.partialorder %v5547, 8.507059e+37
      %v5549 = vand.u32 %v4788, 2147483648
      %v5550 = vor.u32 1.1754944e-38, %v5549
      %v5551 = vsel %vm5548, %v5550, %v5546
      %v5552 = vmul.f32 1.0, %v5551
      %v5553 = vrcp.pop %v4789
      %v5554 = vmul.f32 %v4789, %v5553
      %v5555 = vsub.f32 1.0, %v5554
      %v5556 = vmul.f32 %v5553, %v5555
      %v5557 = vadd.f32 %v5553, %v5556
      %vm5558 = vweird.f32 %v4789
      %vm5559 = vweird.f32 %v5553
      %vm5560 = vmor %vm5558, %vm5559
      %v5561 = vsel %vm5560, %v5553, %v5557
      %v5562 = vand.u32 2147483647, %v4789
      %vm5563 = vcmp.eq.f32.partialorder %v5562, 8.507059e+37
      %v5564 = vand.u32 %v4789, 2147483648
      %v5565 = vor.u32 1.1754944e-38, %v5564
      %v5566 = vsel %vm5563, %v5565, %v5561
      %v5567 = vmul.f32 1.0, %v5566
      %v5568 = vrcp.pop %v4790
      %v5569 = vmul.f32 %v4790, %v5568
      %v5570 = vsub.f32 1.0, %v5569
      %v5571 = vmul.f32 %v5568, %v5570
      %v5572 = vadd.f32 %v5568, %v5571
      %vm5573 = vweird.f32 %v4790
      %vm5574 = vweird.f32 %v5568
      %vm5575 = vmor %vm5573, %vm5574
      %v5576 = vsel %vm5575, %v5568, %v5572
      %v5577 = vand.u32 2147483647, %v4790
      %vm5578 = vcmp.eq.f32.partialorder %v5577, 8.507059e+37
      %v5579 = vand.u32 %v4790, 2147483648
      %v5580 = vor.u32 1.1754944e-38, %v5579
      %v5581 = vsel %vm5578, %v5580, %v5576
      %v5582 = vmul.f32 1.0, %v5581
      %v5583 = vrcp.pop %v4791
      %v5584 = vmul.f32 %v4791, %v5583
      %v5585 = vsub.f32 1.0, %v5584
      %v5586 = vmul.f32 %v5583, %v5585
      %v5587 = vadd.f32 %v5583, %v5586
      %vm5588 = vweird.f32 %v4791
      %vm5589 = vweird.f32 %v5583
      %vm5590 = vmor %vm5588, %vm5589
      %v5591 = vsel %vm5590, %v5583, %v5587
      %v5592 = vand.u32 2147483647, %v4791
      %vm5593 = vcmp.eq.f32.partialorder %v5592, 8.507059e+37
      %v5594 = vand.u32 %v4791, 2147483648
      %v5595 = vor.u32 1.1754944e-38, %v5594
      %v5596 = vsel %vm5593, %v5595, %v5591
      %v5597 = vmul.f32 1.0, %v5596
      %v5598 = vrcp.pop %v4792
      %v5599 = vmul.f32 %v4792, %v5598
      %v5600 = vsub.f32 1.0, %v5599
      %v5601 = vmul.f32 %v5598, %v5600
      %v5602 = vadd.f32 %v5598, %v5601
      %vm5603 = vweird.f32 %v4792
      %vm5604 = vweird.f32 %v5598
      %vm5605 = vmor %vm5603, %vm5604
      %v5606 = vsel %vm5605, %v5598, %v5602
      %v5607 = vand.u32 2147483647, %v4792
      %vm5608 = vcmp.eq.f32.partialorder %v5607, 8.507059e+37
      %v5609 = vand.u32 %v4792, 2147483648
      %v5610 = vor.u32 1.1754944e-38, %v5609
      %v5611 = vsel %vm5608, %v5610, %v5606
      %v5612 = vmul.f32 1.0, %v5611
      %v5613 = vrcp.pop %v4793
      %v5614 = vmul.f32 %v4793, %v5613
      %v5615 = vsub.f32 1.0, %v5614
      %v5616 = vmul.f32 %v5613, %v5615
      %v5617 = vadd.f32 %v5613, %v5616
      %vm5618 = vweird.f32 %v4793
      %vm5619 = vweird.f32 %v5613
      %vm5620 = vmor %vm5618, %vm5619
      %v5621 = vsel %vm5620, %v5613, %v5617
      %v5622 = vand.u32 2147483647, %v4793
      %vm5623 = vcmp.eq.f32.partialorder %v5622, 8.507059e+37
      %v5624 = vand.u32 %v4793, 2147483648
      %v5625 = vor.u32 1.1754944e-38, %v5624
      %v5626 = vsel %vm5623, %v5625, %v5621
      %v5627 = vmul.f32 1.0, %v5626
      %v5628 = vrcp.pop %v4794
      %v5629 = vmul.f32 %v4794, %v5628
      %v5630 = vsub.f32 1.0, %v5629
      %v5631 = vmul.f32 %v5628, %v5630
      %v5632 = vadd.f32 %v5628, %v5631
      %vm5633 = vweird.f32 %v4794
      %vm5634 = vweird.f32 %v5628
      %vm5635 = vmor %vm5633, %vm5634
      %v5636 = vsel %vm5635, %v5628, %v5632
      %v5637 = vand.u32 2147483647, %v4794
      %vm5638 = vcmp.eq.f32.partialorder %v5637, 8.507059e+37
      %v5639 = vand.u32 %v4794, 2147483648
      %v5640 = vor.u32 1.1754944e-38, %v5639
      %v5641 = vsel %vm5638, %v5640, %v5636
      %v5642 = vmul.f32 1.0, %v5641
      %v5643 = vrcp.pop %v4795
      %v5644 = vmul.f32 %v4795, %v5643
      %v5645 = vsub.f32 1.0, %v5644
      %v5646 = vmul.f32 %v5643, %v5645
      %v5647 = vadd.f32 %v5643, %v5646
      %vm5648 = vweird.f32 %v4795
      %vm5649 = vweird.f32 %v5643
      %vm5650 = vmor %vm5648, %vm5649
      %v5651 = vsel %vm5650, %v5643, %v5647
      %v5652 = vand.u32 2147483647, %v4795
      %vm5653 = vcmp.eq.f32.partialorder %v5652, 8.507059e+37
      %v5654 = vand.u32 %v4795, 2147483648
      %v5655 = vor.u32 1.1754944e-38, %v5654
      %v5656 = vsel %vm5653, %v5655, %v5651
      %v5657 = vmul.f32 1.0, %v5656
      %v5658 = vrcp.pop %v4796
      %v5659 = vmul.f32 %v4796, %v5658
      %v5660 = vsub.f32 1.0, %v5659
      %v5661 = vmul.f32 %v5658, %v5660
      %v5662 = vadd.f32 %v5658, %v5661
      %vm5663 = vweird.f32 %v4796
      %vm5664 = vweird.f32 %v5658
      %vm5665 = vmor %vm5663, %vm5664
      %v5666 = vsel %vm5665, %v5658, %v5662
      %v5667 = vand.u32 2147483647, %v4796
      %vm5668 = vcmp.eq.f32.partialorder %v5667, 8.507059e+37
      %v5669 = vand.u32 %v4796, 2147483648
      %v5670 = vor.u32 1.1754944e-38, %v5669
      %v5671 = vsel %vm5668, %v5670, %v5666
      %v5672 = vmul.f32 1.0, %v5671
      %v5673 = vrcp.pop %v4797
      %v5674 = vmul.f32 %v4797, %v5673
      %v5675 = vsub.f32 1.0, %v5674
      %v5676 = vmul.f32 %v5673, %v5675
      %v5677 = vadd.f32 %v5673, %v5676
      %vm5678 = vweird.f32 %v4797
      %vm5679 = vweird.f32 %v5673
      %vm5680 = vmor %vm5678, %vm5679
      %v5681 = vsel %vm5680, %v5673, %v5677
      %v5682 = vand.u32 2147483647, %v4797
      %vm5683 = vcmp.eq.f32.partialorder %v5682, 8.507059e+37
      %v5684 = vand.u32 %v4797, 2147483648
      %v5685 = vor.u32 1.1754944e-38, %v5684
      %v5686 = vsel %vm5683, %v5685, %v5681
      %v5687 = vmul.f32 1.0, %v5686
      %v5688 = vrcp.pop %v4798
      %v5689 = vmul.f32 %v4798, %v5688
      %v5690 = vsub.f32 1.0, %v5689
      %v5691 = vmul.f32 %v5688, %v5690
      %v5692 = vadd.f32 %v5688, %v5691
      %vm5693 = vweird.f32 %v4798
      %vm5694 = vweird.f32 %v5688
      %vm5695 = vmor %vm5693, %vm5694
      %v5696 = vsel %vm5695, %v5688, %v5692
      %v5697 = vand.u32 2147483647, %v4798
      %vm5698 = vcmp.eq.f32.partialorder %v5697, 8.507059e+37
      %v5699 = vand.u32 %v4798, 2147483648
      %v5700 = vor.u32 1.1754944e-38, %v5699
      %v5701 = vsel %vm5698, %v5700, %v5696
      %v5702 = vmul.f32 1.0, %v5701
      %v5703 = vrcp.pop %v4799
      %v5704 = vmul.f32 %v4799, %v5703
      %v5705 = vsub.f32 1.0, %v5704
      %v5706 = vmul.f32 %v5703, %v5705
      %v5707 = vadd.f32 %v5703, %v5706
      %vm5708 = vweird.f32 %v4799
      %vm5709 = vweird.f32 %v5703
      %vm5710 = vmor %vm5708, %vm5709
      %v5711 = vsel %vm5710, %v5703, %v5707
      %v5712 = vand.u32 2147483647, %v4799
      %vm5713 = vcmp.eq.f32.partialorder %v5712, 8.507059e+37
      %v5714 = vand.u32 %v4799, 2147483648
      %v5715 = vor.u32 1.1754944e-38, %v5714
      %v5716 = vsel %vm5713, %v5715, %v5711
      %v5717 = vmul.f32 1.0, %v5716
      %v5718 = vrcp.pop %v4800
      %v5719 = vmul.f32 %v4800, %v5718
      %v5720 = vsub.f32 1.0, %v5719
      %v5721 = vmul.f32 %v5718, %v5720
      %v5722 = vadd.f32 %v5718, %v5721
      %vm5723 = vweird.f32 %v4800
      %vm5724 = vweird.f32 %v5718
      %vm5725 = vmor %vm5723, %vm5724
      %v5726 = vsel %vm5725, %v5718, %v5722
      %v5727 = vand.u32 2147483647, %v4800
      %vm5728 = vcmp.eq.f32.partialorder %v5727, 8.507059e+37
      %v5729 = vand.u32 %v4800, 2147483648
      %v5730 = vor.u32 1.1754944e-38, %v5729
      %v5731 = vsel %vm5728, %v5730, %v5726
      %v5732 = vmul.f32 1.0, %v5731
      %v5733 = vrcp.pop %v4801
      %v5734 = vmul.f32 %v4801, %v5733
      %v5735 = vsub.f32 1.0, %v5734
      %v5736 = vmul.f32 %v5733, %v5735
      %v5737 = vadd.f32 %v5733, %v5736
      %vm5738 = vweird.f32 %v4801
      %vm5739 = vweird.f32 %v5733
      %vm5740 = vmor %vm5738, %vm5739
      %v5741 = vsel %vm5740, %v5733, %v5737
      %v5742 = vand.u32 2147483647, %v4801
      %vm5743 = vcmp.eq.f32.partialorder %v5742, 8.507059e+37
      %v5744 = vand.u32 %v4801, 2147483648
      %v5745 = vor.u32 1.1754944e-38, %v5744
      %v5746 = vsel %vm5743, %v5745, %v5741
      %v5747 = vmul.f32 1.0, %v5746
      %v5748 = vrcp.pop %v4802
      %v5749 = vmul.f32 %v4802, %v5748
      %v5750 = vsub.f32 1.0, %v5749
      %v5751 = vmul.f32 %v5748, %v5750
      %v5752 = vadd.f32 %v5748, %v5751
      %vm5753 = vweird.f32 %v4802
      %vm5754 = vweird.f32 %v5748
      %vm5755 = vmor %vm5753, %vm5754
      %v5756 = vsel %vm5755, %v5748, %v5752
      %v5757 = vand.u32 2147483647, %v4802
      %vm5758 = vcmp.eq.f32.partialorder %v5757, 8.507059e+37
      %v5759 = vand.u32 %v4802, 2147483648
      %v5760 = vor.u32 1.1754944e-38, %v5759
      %v5761 = vsel %vm5758, %v5760, %v5756
      %v5762 = vmul.f32 1.0, %v5761
      %v5763 = vmul.f32 %v4483, %v4817
      %v5764 = vmul.f32 %v4484, %v4832
      %v5765 = vmul.f32 %v4485, %v4847
      %v5766 = vmul.f32 %v4486, %v4862
      %v5767 = vmul.f32 %v4487, %v4877
      %v5768 = vmul.f32 %v4488, %v4892
      %v5769 = vmul.f32 %v4489, %v4907
      %v5770 = vmul.f32 %v4490, %v4922
      %v5771 = vmul.f32 %v4491, %v4937
      %v5772 = vmul.f32 %v4492, %v4952
      %v5773 = vmul.f32 %v4493, %v4967
      %v5774 = vmul.f32 %v4494, %v4982
      %v5775 = vmul.f32 %v4495, %v4997
      %v5776 = vmul.f32 %v4496, %v5012
      %v5777 = vmul.f32 %v4497, %v5027
      %v5778 = vmul.f32 %v4498, %v5042
      %v5779 = vmul.f32 %v4499, %v5057
      %v5780 = vmul.f32 %v4500, %v5072
      %v5781 = vmul.f32 %v4501, %v5087
      %v5782 = vmul.f32 %v4502, %v5102
      %v5783 = vmul.f32 %v4503, %v5117
      %v5784 = vmul.f32 %v4504, %v5132
      %v5785 = vmul.f32 %v4505, %v5147
      %v5786 = vmul.f32 %v4506, %v5162
      %v5787 = vmul.f32 %v4507, %v5177
      %v5788 = vmul.f32 %v4508, %v5192
      %v5789 = vmul.f32 %v4509, %v5207
      %v5790 = vmul.f32 %v4510, %v5222
      %v5791 = vmul.f32 %v4511, %v5237
      %v5792 = vmul.f32 %v4512, %v5252
      %v5793 = vmul.f32 %v4513, %v5267
      %v5794 = vmul.f32 %v4514, %v5282
      %v5795 = vmul.f32 %v4515, %v5297
      %v5796 = vmul.f32 %v4516, %v5312
      %v5797 = vmul.f32 %v4517, %v5327
      %v5798 = vmul.f32 %v4518, %v5342
      %v5799 = vmul.f32 %v4519, %v5357
      %v5800 = vmul.f32 %v4520, %v5372
      %v5801 = vmul.f32 %v4521, %v5387
      %v5802 = vmul.f32 %v4522, %v5402
      %v5803 = vmul.f32 %v4523, %v5417
      %v5804 = vmul.f32 %v4524, %v5432
      %v5805 = vmul.f32 %v4525, %v5447
      %v5806 = vmul.f32 %v4526, %v5462
      %v5807 = vmul.f32 %v4527, %v5477
      %v5808 = vmul.f32 %v4528, %v5492
      %v5809 = vmul.f32 %v4529, %v5507
      %v5810 = vmul.f32 %v4530, %v5522
      %v5811 = vmul.f32 %v4531, %v5537
      %v5812 = vmul.f32 %v4532, %v5552
      %v5813 = vmul.f32 %v4533, %v5567
      %v5814 = vmul.f32 %v4534, %v5582
      %v5815 = vmul.f32 %v4535, %v5597
      %v5816 = vmul.f32 %v4536, %v5612
      %v5817 = vmul.f32 %v4537, %v5627
      %v5818 = vmul.f32 %v4538, %v5642
      %v5819 = vmul.f32 %v4539, %v5657
      %v5820 = vmul.f32 %v4540, %v5672
      %v5821 = vmul.f32 %v4541, %v5687
      %v5822 = vmul.f32 %v4542, %v5702
      %v5823 = vmul.f32 %v4543, %v5717
      %v5824 = vmul.f32 %v4544, %v5732
      %v5825 = vmul.f32 %v4545, %v5747
      %v5826 = vmul.f32 %v4546, %v5762
      %5891 = vst [vmem:[#allocation1] ss:$4 sm:$0xff] %v5763
      %s5892 = scalar_lea.vmem [#allocation1], 1
      %5893 = vst [vmem:[%s5892] ss:$4 sm:$0xff] %v5764
      %s5894 = scalar_lea.vmem [#allocation1], 2
      %5895 = vst [vmem:[%s5894] ss:$4 sm:$0xff] %v5765
      %s5896 = scalar_lea.vmem [#allocation1], 3
      %5897 = vst [vmem:[%s5896] ss:$4 sm:$0xff] %v5766
      %s5898 = scalar_lea.vmem [#allocation1], 32
      %5899 = vst [vmem:[%s5898] ss:$4 sm:$0xff] %v5767
      %s5900 = scalar_lea.vmem [#allocation1], 33
      %5901 = vst [vmem:[%s5900] ss:$4 sm:$0xff] %v5768
      %s5902 = scalar_lea.vmem [#allocation1], 34
      %5903 = vst [vmem:[%s5902] ss:$4 sm:$0xff] %v5769
      %s5904 = scalar_lea.vmem [#allocation1], 35
      %5905 = vst [vmem:[%s5904] ss:$4 sm:$0xff] %v5770
      %v5906 = vld.sshfl [vmem:[#allocation1] sm:$0xff pattern:$0x73625140]
      %v5907 = vld.sshfl [vmem:[#allocation1 + $0x20] sm:$0xff pattern:$0x73625140]
      %5908 = vst [vmem:[#allocation1] ss:$4 sm:$0xff] %v5771
      %5909 = vst [vmem:[%s5892] ss:$4 sm:$0xff] %v5772
      %5910 = vst [vmem:[%s5894] ss:$4 sm:$0xff] %v5773
      %5911 = vst [vmem:[%s5896] ss:$4 sm:$0xff] %v5774
      %5912 = vst [vmem:[%s5898] ss:$4 sm:$0xff] %v5775
      %5913 = vst [vmem:[%s5900] ss:$4 sm:$0xff] %v5776
      %5914 = vst [vmem:[%s5902] ss:$4 sm:$0xff] %v5777
      %5915 = vst [vmem:[%s5904] ss:$4 sm:$0xff] %v5778
      %v5916 = vld.sshfl [vmem:[#allocation1] sm:$0xff pattern:$0x73625140]
      %v5917 = vld.sshfl [vmem:[#allocation1 + $0x20] sm:$0xff pattern:$0x73625140]
      %5918 = vst [vmem:[#allocation1] ss:$4 sm:$0xff] %v5779
      %5919 = vst [vmem:[%s5892] ss:$4 sm:$0xff] %v5780
      %5920 = vst [vmem:[%s5894] ss:$4 sm:$0xff] %v5781
      %5921 = vst [vmem:[%s5896] ss:$4 sm:$0xff] %v5782
      %5922 = vst [vmem:[%s5898] ss:$4 sm:$0xff] %v5783
      %5923 = vst [vmem:[%s5900] ss:$4 sm:$0xff] %v5784
      %5924 = vst [vmem:[%s5902] ss:$4 sm:$0xff] %v5785
      %5925 = vst [vmem:[%s5904] ss:$4 sm:$0xff] %v5786
      %v5926 = vld.sshfl [vmem:[#allocation1] sm:$0xff pattern:$0x73625140]
      %v5927 = vld.sshfl [vmem:[#allocation1 + $0x20] sm:$0xff pattern:$0x73625140]
      %5928 = vst [vmem:[#allocation1] ss:$4 sm:$0xff] %v5787
      %5929 = vst [vmem:[%s5892] ss:$4 sm:$0xff] %v5788
      %5930 = vst [vmem:[%s5894] ss:$4 sm:$0xff] %v5789
      %5931 = vst [vmem:[%s5896] ss:$4 sm:$0xff] %v5790
      %5932 = vst [vmem:[%s5898] ss:$4 sm:$0xff] %v5791
      %5933 = vst [vmem:[%s5900] ss:$4 sm:$0xff] %v5792
      %5934 = vst [vmem:[%s5902] ss:$4 sm:$0xff] %v5793
      %5935 = vst [vmem:[%s5904] ss:$4 sm:$0xff] %v5794
      %v5936 = vld.sshfl [vmem:[#allocation1] sm:$0xff pattern:$0x73625140]
      %v5937 = vld.sshfl [vmem:[#allocation1 + $0x20] sm:$0xff pattern:$0x73625140]
      %5938 = vst [vmem:[#allocation1] ss:$4 sm:$0xff] %v5795
      %5939 = vst [vmem:[%s5892] ss:$4 sm:$0xff] %v5796
      %5940 = vst [vmem:[%s5894] ss:$4 sm:$0xff] %v5797
      %5941 = vst [vmem:[%s5896] ss:$4 sm:$0xff] %v5798
      %5942 = vst [vmem:[%s5898] ss:$4 sm:$0xff] %v5799
      %5943 = vst [vmem:[%s5900] ss:$4 sm:$0xff] %v5800
      %5944 = vst [vmem:[%s5902] ss:$4 sm:$0xff] %v5801
      %5945 = vst [vmem:[%s5904] ss:$4 sm:$0xff] %v5802
      %v5946 = vld.sshfl [vmem:[#allocation1] sm:$0xff pattern:$0x73625140]
      %v5947 = vld.sshfl [vmem:[#allocation1 + $0x20] sm:$0xff pattern:$0x73625140]
      %5948 = vst [vmem:[#allocation1] ss:$4 sm:$0xff] %v5803
      %5949 = vst [vmem:[%s5892] ss:$4 sm:$0xff] %v5804
      %5950 = vst [vmem:[%s5894] ss:$4 sm:$0xff] %v5805
      %5951 = vst [vmem:[%s5896] ss:$4 sm:$0xff] %v5806
      %5952 = vst [vmem:[%s5898] ss:$4 sm:$0xff] %v5807
      %5953 = vst [vmem:[%s5900] ss:$4 sm:$0xff] %v5808
      %5954 = vst [vmem:[%s5902] ss:$4 sm:$0xff] %v5809
      %5955 = vst [vmem:[%s5904] ss:$4 sm:$0xff] %v5810
      %v5956 = vld.sshfl [vmem:[#allocation1] sm:$0xff pattern:$0x73625140]
      %v5957 = vld.sshfl [vmem:[#allocation1 + $0x20] sm:$0xff pattern:$0x73625140]
      %5958 = vst [vmem:[#allocation1] ss:$4 sm:$0xff] %v5811
      %5959 = vst [vmem:[%s5892] ss:$4 sm:$0xff] %v5812
      %5960 = vst [vmem:[%s5894] ss:$4 sm:$0xff] %v5813
      %5961 = vst [vmem:[%s5896] ss:$4 sm:$0xff] %v5814
      %5962 = vst [vmem:[%s5898] ss:$4 sm:$0xff] %v5815
      %5963 = vst [vmem:[%s5900] ss:$4 sm:$0xff] %v5816
      %5964 = vst [vmem:[%s5902] ss:$4 sm:$0xff] %v5817
      %5965 = vst [vmem:[%s5904] ss:$4 sm:$0xff] %v5818
      %v5966 = vld.sshfl [vmem:[#allocation1] sm:$0xff pattern:$0x73625140]
      %v5967 = vld.sshfl [vmem:[#allocation1 + $0x20] sm:$0xff pattern:$0x73625140]
      %5968 = vst [vmem:[#allocation1] ss:$4 sm:$0xff] %v5819
      %5969 = vst [vmem:[%s5892] ss:$4 sm:$0xff] %v5820
      %5970 = vst [vmem:[%s5894] ss:$4 sm:$0xff] %v5821
      %5971 = vst [vmem:[%s5896] ss:$4 sm:$0xff] %v5822
      %5972 = vst [vmem:[%s5898] ss:$4 sm:$0xff] %v5823
      %5973 = vst [vmem:[%s5900] ss:$4 sm:$0xff] %v5824
      %5974 = vst [vmem:[%s5902] ss:$4 sm:$0xff] %v5825
      %5975 = vst [vmem:[%s5904] ss:$4 sm:$0xff] %v5826
      %v5976 = vld.sshfl [vmem:[#allocation1] sm:$0xff pattern:$0x73625140]
      %v5977 = vld.sshfl [vmem:[#allocation1 + $0x20] sm:$0xff pattern:$0x73625140]
      %v5994 = vpack.c.bf16 %v5906, %v5906
      %v5995 = vpack.c.bf16 %v5907, %v5907
      %v5996 = vpack.c.bf16 %v5916, %v5916
      %v5997 = vpack.c.bf16 %v5917, %v5917
      %v5998 = vpack.c.bf16 %v5926, %v5926
      %v5999 = vpack.c.bf16 %v5927, %v5927
      %v6000 = vpack.c.bf16 %v5936, %v5936
      %v6001 = vpack.c.bf16 %v5937, %v5937
      %v6002 = vpack.c.bf16 %v5946, %v5946
      %v6003 = vpack.c.bf16 %v5947, %v5947
      %v6004 = vpack.c.bf16 %v5956, %v5956
      %v6005 = vpack.c.bf16 %v5957, %v5957
      %v6006 = vpack.c.bf16 %v5966, %v5966
      %v6007 = vpack.c.bf16 %v5967, %v5967
      %v6008 = vpack.c.bf16 %v5976, %v5976
      %v6009 = vpack.c.bf16 %v5977, %v5977
      %6010 = vst [vmem:[%s355] sm:$0xf] %v5994
      %6011 = vst [vmem:[%s355 + $0x4] sm:$0xf] %v5995
      %6012 = vst [vmem:[%s355 + $0x8] sm:$0xf] %v5996
      %6013 = vst [vmem:[%s355 + $0xc] sm:$0xf] %v5997
      %6014 = vst [vmem:[%s355 + $0x10] sm:$0xf] %v5998
      %6015 = vst [vmem:[%s355 + $0x14] sm:$0xf] %v5999
      %6016 = vst [vmem:[%s355 + $0x18] sm:$0xf] %v6000
      %6017 = vst [vmem:[%s355 + $0x1c] sm:$0xf] %v6001
      %6018 = vst [vmem:[%s355 + $0x20] sm:$0xf] %v6002
      %6019 = vst [vmem:[%s355 + $0x24] sm:$0xf] %v6003
      %6020 = vst [vmem:[%s355 + $0x28] sm:$0xf] %v6004
      %6021 = vst [vmem:[%s355 + $0x2c] sm:$0xf] %v6005
      %6022 = vst [vmem:[%s355 + $0x30] sm:$0xf] %v6006
      %6023 = vst [vmem:[%s355 + $0x34] sm:$0xf] %v6007
      %6024 = vst [vmem:[%s355 + $0x38] sm:$0xf] %v6008
      %6025 = vst [vmem:[%s355 + $0x3c] sm:$0xf] %v6009
      %6026 = vst [vmem:[#allocation1] ss:$4 sm:$0xff] %v5763
      %s6027 = scalar_lea.vmem [#allocation1], 1
      %6028 = vst [vmem:[%s6027] ss:$4 sm:$0xff] %v5764
      %s6029 = scalar_lea.vmem [#allocation1], 2
      %6030 = vst [vmem:[%s6029] ss:$4 sm:$0xff] %v5765
      %s6031 = scalar_lea.vmem [#allocation1], 3
      %6032 = vst [vmem:[%s6031] ss:$4 sm:$0xff] %v5766
      %s6033 = scalar_lea.vmem [#allocation1], 32
      %6034 = vst [vmem:[%s6033] ss:$4 sm:$0xff] %v5767
      %s6035 = scalar_lea.vmem [#allocation1], 33
      %6036 = vst [vmem:[%s6035] ss:$4 sm:$0xff] %v5768
      %s6037 = scalar_lea.vmem [#allocation1], 34
      %6038 = vst [vmem:[%s6037] ss:$4 sm:$0xff] %v5769
      %s6039 = scalar_lea.vmem [#allocation1], 35
      %6040 = vst [vmem:[%s6039] ss:$4 sm:$0xff] %v5770
      %v6041 = vld.sshfl [vmem:[#allocation1] sm:$0xff pattern:$0x73625140]
      %v6042 = vld.sshfl [vmem:[#allocation1 + $0x20] sm:$0xff pattern:$0x73625140]
      %6043 = vst [vmem:[#allocation1] ss:$4 sm:$0xff] %v5771
      %6044 = vst [vmem:[%s6027] ss:$4 sm:$0xff] %v5772
      %6045 = vst [vmem:[%s6029] ss:$4 sm:$0xff] %v5773
      %6046 = vst [vmem:[%s6031] ss:$4 sm:$0xff] %v5774
      %6047 = vst [vmem:[%s6033] ss:$4 sm:$0xff] %v5775
      %6048 = vst [vmem:[%s6035] ss:$4 sm:$0xff] %v5776
      %6049 = vst [vmem:[%s6037] ss:$4 sm:$0xff] %v5777
      %6050 = vst [vmem:[%s6039] ss:$4 sm:$0xff] %v5778
      %v6051 = vld.sshfl [vmem:[#allocation1] sm:$0xff pattern:$0x73625140]
      %v6052 = vld.sshfl [vmem:[#allocation1 + $0x20] sm:$0xff pattern:$0x73625140]
      %6053 = vst [vmem:[#allocation1] ss:$4 sm:$0xff] %v5779
      %6054 = vst [vmem:[%s6027] ss:$4 sm:$0xff] %v5780
      %6055 = vst [vmem:[%s6029] ss:$4 sm:$0xff] %v5781
      %6056 = vst [vmem:[%s6031] ss:$4 sm:$0xff] %v5782
      %6057 = vst [vmem:[%s6033] ss:$4 sm:$0xff] %v5783
      %6058 = vst [vmem:[%s6035] ss:$4 sm:$0xff] %v5784
      %6059 = vst [vmem:[%s6037] ss:$4 sm:$0xff] %v5785
      %6060 = vst [vmem:[%s6039] ss:$4 sm:$0xff] %v5786
      %v6061 = vld.sshfl [vmem:[#allocation1] sm:$0xff pattern:$0x73625140]
      %v6062 = vld.sshfl [vmem:[#allocation1 + $0x20] sm:$0xff pattern:$0x73625140]
      %6063 = vst [vmem:[#allocation1] ss:$4 sm:$0xff] %v5787
      %6064 = vst [vmem:[%s6027] ss:$4 sm:$0xff] %v5788
      %6065 = vst [vmem:[%s6029] ss:$4 sm:$0xff] %v5789
      %6066 = vst [vmem:[%s6031] ss:$4 sm:$0xff] %v5790
      %6067 = vst [vmem:[%s6033] ss:$4 sm:$0xff] %v5791
      %6068 = vst [vmem:[%s6035] ss:$4 sm:$0xff] %v5792
      %6069 = vst [vmem:[%s6037] ss:$4 sm:$0xff] %v5793
      %6070 = vst [vmem:[%s6039] ss:$4 sm:$0xff] %v5794
      %v6071 = vld.sshfl [vmem:[#allocation1] sm:$0xff pattern:$0x73625140]
      %v6072 = vld.sshfl [vmem:[#allocation1 + $0x20] sm:$0xff pattern:$0x73625140]
      %6073 = vst [vmem:[#allocation1] ss:$4 sm:$0xff] %v5795
      %6074 = vst [vmem:[%s6027] ss:$4 sm:$0xff] %v5796
      %6075 = vst [vmem:[%s6029] ss:$4 sm:$0xff] %v5797
      %6076 = vst [vmem:[%s6031] ss:$4 sm:$0xff] %v5798
      %6077 = vst [vmem:[%s6033] ss:$4 sm:$0xff] %v5799
      %6078 = vst [vmem:[%s6035] ss:$4 sm:$0xff] %v5800
      %6079 = vst [vmem:[%s6037] ss:$4 sm:$0xff] %v5801
      %6080 = vst [vmem:[%s6039] ss:$4 sm:$0xff] %v5802
      %v6081 = vld.sshfl [vmem:[#allocation1] sm:$0xff pattern:$0x73625140]
      %v6082 = vld.sshfl [vmem:[#allocation1 + $0x20] sm:$0xff pattern:$0x73625140]
      %6083 = vst [vmem:[#allocation1] ss:$4 sm:$0xff] %v5803
      %6084 = vst [vmem:[%s6027] ss:$4 sm:$0xff] %v5804
      %6085 = vst [vmem:[%s6029] ss:$4 sm:$0xff] %v5805
      %6086 = vst [vmem:[%s6031] ss:$4 sm:$0xff] %v5806
      %6087 = vst [vmem:[%s6033] ss:$4 sm:$0xff] %v5807
      %6088 = vst [vmem:[%s6035] ss:$4 sm:$0xff] %v5808
      %6089 = vst [vmem:[%s6037] ss:$4 sm:$0xff] %v5809
      %6090 = vst [vmem:[%s6039] ss:$4 sm:$0xff] %v5810
      %v6091 = vld.sshfl [vmem:[#allocation1] sm:$0xff pattern:$0x73625140]
      %v6092 = vld.sshfl [vmem:[#allocation1 + $0x20] sm:$0xff pattern:$0x73625140]
      %6093 = vst [vmem:[#allocation1] ss:$4 sm:$0xff] %v5811
      %6094 = vst [vmem:[%s6027] ss:$4 sm:$0xff] %v5812
      %6095 = vst [vmem:[%s6029] ss:$4 sm:$0xff] %v5813
      %6096 = vst [vmem:[%s6031] ss:$4 sm:$0xff] %v5814
      %6097 = vst [vmem:[%s6033] ss:$4 sm:$0xff] %v5815
      %6098 = vst [vmem:[%s6035] ss:$4 sm:$0xff] %v5816
      %6099 = vst [vmem:[%s6037] ss:$4 sm:$0xff] %v5817
      %6100 = vst [vmem:[%s6039] ss:$4 sm:$0xff] %v5818
      %v6101 = vld.sshfl [vmem:[#allocation1] sm:$0xff pattern:$0x73625140]
      %v6102 = vld.sshfl [vmem:[#allocation1 + $0x20] sm:$0xff pattern:$0x73625140]
      %6103 = vst [vmem:[#allocation1] ss:$4 sm:$0xff] %v5819
      %6104 = vst [vmem:[%s6027] ss:$4 sm:$0xff] %v5820
      %6105 = vst [vmem:[%s6029] ss:$4 sm:$0xff] %v5821
      %6106 = vst [vmem:[%s6031] ss:$4 sm:$0xff] %v5822
      %6107 = vst [vmem:[%s6033] ss:$4 sm:$0xff] %v5823
      %6108 = vst [vmem:[%s6035] ss:$4 sm:$0xff] %v5824
      %6109 = vst [vmem:[%s6037] ss:$4 sm:$0xff] %v5825
      %6110 = vst [vmem:[%s6039] ss:$4 sm:$0xff] %v5826
      %v6111 = vld.sshfl [vmem:[#allocation1] sm:$0xff pattern:$0x73625140]
      %v6112 = vld.sshfl [vmem:[#allocation1 + $0x20] sm:$0xff pattern:$0x73625140]
      %v6129 = vadd.f32 %v6041, %v6042
      %v6130 = vadd.f32 %v6129, %v6051
      %v6131 = vadd.f32 %v6130, %v6052
      %v6132 = vadd.f32 %v6131, %v6061
      %v6133 = vadd.f32 %v6132, %v6062
      %v6134 = vadd.f32 %v6133, %v6071
      %v6135 = vadd.f32 %v6134, %v6072
      %v6136 = vadd.f32 %v6135, %v6081
      %v6137 = vadd.f32 %v6136, %v6082
      %v6138 = vadd.f32 %v6137, %v6091
      %v6139 = vadd.f32 %v6138, %v6092
      %v6140 = vadd.f32 %v6139, %v6101
      %v6141 = vadd.f32 %v6140, %v6102
      %v6142 = vadd.f32 %v6141, %v6111
      %v6143 = vadd.f32 %v6142, %v6112
      %v6144 = vrot.slane %v6143, 4
      %v6145 = vadd.f32 %v6143, %v6144
      %v6146 = vrot.slane %v6145, 2
      %v6147 = vadd.f32 %v6145, %v6146
      %v6148 = vrot.slane %v6147, 1
      %v6149 = vadd.f32 %v6147, %v6148
      %6150 = vst [vmem:[%s363] sm:$0x1] %v6149
      %s6151 = smul.u32 8, %s25
      %p6152 = scmp.lt.s32.totalorder %s24, 1
      %s6153 = scalar_select %p6152, %s24, 1
      %p6154 = scmp.lt.s32.totalorder %s6151, 15
      %s6155 = scalar_select %p6154, %s6151, 15
      %s6156 = smul.addr %s6155, 2
      %s6157 = smul.addr %s6153, 32
      %s6158 = sadd.s32 %s6156, %s6157
      %s6159 = smul.addr %s6158, 4
      %s6160 = scalar_lea.vmem %s7, %s6159
      %p6161 = scmp.lt.s32.totalorder %s24, 1
      %s6162 = scalar_select %p6161, %s24, 1
      %p6163 = scmp.lt.s32.totalorder %s25, 1
      %s6164 = scalar_select %p6163, %s25, 1
      %s6165 = smul.addr %s6162, 2
      %s6166 = sadd.s32 %s6164, %s6165
      %s6167 = scalar_lea.vmem %s8, %s6166
      // Predicated region
      $region49: #{mbconv_forward.2} parent=47 // pred_check
        %p6168 = pneg %p206
      $region50: #{mbconv_forward.2} parent=47 // pred_check_branch
        %6170 = sbr.rel (%p6168) target = $region52
      $region51: #{mbconv_forward.2} parent=47 // pred_region
        %s6171 = smul.u32 8, %s25
      $region52: #{mbconv_forward.2} parent=47 // pred_fallthru
        _
      // Predicated region
      $region53: #{mbconv_forward.2} parent=47 // pred_check
        %p6172 = pneg %p234
      $region54: #{mbconv_forward.2} parent=47 // pred_check_branch
        %6174 = sbr.rel (%p6172) target = $region56
      $region55: #{mbconv_forward.2} parent=47 // pred_region
        _
      $region56: #{mbconv_forward.2} parent=47 // pred_fallthru
        _
    $region48: #{mbconv_forward.2} parent=5 // pred_fallthru
      _
    %p6175 = scmp.le.s32.totalorder 2, %s15
    // Predicated region
    $region57: #{mbconv_forward.2} parent=5 // pred_check
      %p6176 = pneg %p6175
    $region58: #{mbconv_forward.2} parent=5 // pred_check_branch
      %6178 = sbr.rel (%p6176) target = $region60
    $region59: #{mbconv_forward.2} parent=5 // pred_region
      %s6179 = ssub.s32 %s15, 2
      // Predicated region
      $region61: #{mbconv_forward.2} parent=59 // pred_check
        %p6180 = pneg %p212
      $region62: #{mbconv_forward.2} parent=59 // pred_check_branch
        %6182 = sbr.rel (%p6180) target = $region64
      $region63: #{mbconv_forward.2} parent=59 // pred_region
        %s6183 = smul.u32 8, %s27
        %p6184 = scmp.lt.s32.totalorder %s26, 1
        %s6185 = scalar_select %p6184, %s26, 1
        %p6186 = scmp.lt.s32.totalorder %s6183, 15
        %s6187 = scalar_select %p6186, %s6183, 15
        %s6188 = smul.addr %s6187, 2
        %s6189 = smul.addr %s6185, 32
        %s6190 = sadd.s32 %s6188, %s6189
        %s6191 = smul.addr %s6190, 4
        %s6192 = scalar_lea.vmem %s7, %s6191
      $region64: #{mbconv_forward.2} parent=59 // pred_fallthru
        _
      // Predicated region
      $region65: #{mbconv_forward.2} parent=59 // pred_check
        %p6193 = pneg %p240
      $region66: #{mbconv_forward.2} parent=59 // pred_check_branch
        %6195 = sbr.rel (%p6193) target = $region68
      $region67: #{mbconv_forward.2} parent=59 // pred_region
        %p6196 = scmp.lt.s32.totalorder %s26, 1
        %s6197 = scalar_select %p6196, %s26, 1
        %p6198 = scmp.lt.s32.totalorder %s27, 1
        %s6199 = scalar_select %p6198, %s27, 1
        %s6200 = smul.addr %s6197, 2
        %s6201 = sadd.s32 %s6199, %s6200
        %s6202 = scalar_lea.vmem %s8, %s6201
      $region68: #{mbconv_forward.2} parent=59 // pred_fallthru
        _
    $region60: #{mbconv_forward.2} parent=5 // pred_fallthru
      _
  $region6: #{mbconv_forward.2} parent=0 // loop_footer
    %s19 = sadd.s32 1, %s15
  $region7: #{mbconv_forward.2} parent=0 // loop_footer_branch
    %14 = sbr.rel target = $region3
  $region8: #{mbconv_forward.2} parent=0 // loop_exit
    _

</llo_original>
